<compile_context>
chip_gen: v5e
topology: v5e:2x2
jax: 0.10.0
libtpu: 0.0.40
codegen_flags: <defaults>
</compile_context>

<pallas_src>
import functools

import jax
import jax.numpy as jnp
from jax.experimental import pallas as pl
from jax.experimental.pallas import tpu as pltpu

K = 3                     # TNet k (input channels)
KK = K * K                # 9: flattened k*k transform
C1, C2, C3 = 64, 128, 1024
F1, F2 = 512, 256
OUT_PAD = 128             # fc3 output padded to a full lane tile
BN_EPS = 1e-5


def _round_up(v, m):
    return (v + m - 1) // m * m


# ---------------------------------------------------------------------------
# Kernel A: conv1 -> conv2 -> conv3 -> global max pool.
# Grid: (batch tiles [parallel], N chunks [arbitrary / accumulated]).
#   x_ref : (bt, K, n_tile) f32   PyTorch layout chunk, N lane-minor
#   g_ref : (bt, C3)        f32   relu(max_n conv3 + b3), written on last chunk
# ---------------------------------------------------------------------------
def tnet_conv_kernel(x_ref, w1_ref, b1_ref, w2_ref, b2_ref, w3_ref, b3_ref,
                     g_ref, acc_ref, *, bt, n_tile):
    c = pl.program_id(1)
    rows = bt * n_tile

    @pl.when(c == 0)
    def _init():
        acc_ref[...] = jnp.full((bt, C3), -jnp.inf, dtype=jnp.float32)

    xs = x_ref[...]                                              # (bt, K, n_tile)

    # Lay the chunk out as (K, rows): columns ordered batch-major, then point.
    x_all = jnp.concatenate([xs[b] for b in range(bt)], axis=1)  # (K, rows)

    # conv1 (k=3 -> 64): contraction of 3 is too small for the MXU -> three f32
    # VPU broadcast multiply-adds (channels on sublanes, points on lanes).
    w1 = w1_ref[...]                                             # (C1, K)
    a = b1_ref[...]                                              # (C1, 1) broadcast
    for j in range(K):
        a = a + w1[:, j:j + 1] * x_all[j:j + 1, :]               # (C1, rows)
    a = jnp.maximum(a, 0.0).astype(jnp.bfloat16)

    # conv2 (64 -> 128), still transposed: (C2, C1) @ (C1, rows), f32 accumulate.
    h = jnp.dot(w2_ref[...], a, preferred_element_type=jnp.float32)  # (C2, rows)
    h = jnp.maximum(h + b2_ref[...], 0.0)

    # One aligned (C2, rows) -> (rows, C2) transpose to switch to rows-major, so
    # conv3 runs with full 1024-wide output tiles on the MXU.
    h = jnp.transpose(h).astype(jnp.bfloat16)                    # (rows, C2)

    # conv3 (128 -> 1024); bias + ReLU deferred past the max pool (exact).
    h = jnp.dot(h, w3_ref[...], preferred_element_type=jnp.float32)  # (rows, C3)

    # Running max pool over this N chunk (torch.max(x, 2)).
    m = jnp.max(h.reshape(bt, n_tile, C3), axis=1)               # (bt, C3)
    acc_ref[...] = jnp.maximum(acc_ref[...], m)

    @pl.when(c == pl.num_programs(1) - 1)
    def _finalize():
        g_ref[...] = jnp.maximum(acc_ref[...] + b3_ref[...], 0.0)


# ---------------------------------------------------------------------------
# Kernel B: FC head (fc1/fc2/fc3) over the whole batch of pooled features.
# ---------------------------------------------------------------------------
def tnet_fc_kernel(g_ref, w4_ref, b4_ref, w5_ref, b5_ref, w6_ref, b6_ref, o_ref):
    f = g_ref[...].astype(jnp.bfloat16)                                   # (bm, C3)
    f = jnp.dot(f, w4_ref[...], preferred_element_type=jnp.float32) + b4_ref[...]
    f = jnp.maximum(f, 0.0).astype(jnp.bfloat16)                          # (bm, F1)
    f = jnp.dot(f, w5_ref[...], preferred_element_type=jnp.float32) + b5_ref[...]
    f = jnp.maximum(f, 0.0).astype(jnp.bfloat16)                          # (bm, F2)
    o_ref[...] = (jnp.dot(f, w6_ref[...], preferred_element_type=jnp.float32)
                  + b6_ref[...])                                          # (bm, OUT_PAD)


# ---------------------------------------------------------------------------
# Deterministic parameters + inference-mode BN folding.
# ---------------------------------------------------------------------------
def init_params(key):
    dims = [(C1, K), (C2, C1), (C3, C2), (F1, C3), (F2, F1), (KK, F2)]
    params = {}
    keys = jax.random.split(key, 6 * 2 + 5 * 4)
    ki = 0
    for i, (cout, cin) in enumerate(dims):
        params[f"w{i+1}"] = jax.random.normal(keys[ki], (cout, cin), jnp.float32) * 0.05; ki += 1
        params[f"b{i+1}"] = jax.random.normal(keys[ki], (cout,), jnp.float32) * 0.05; ki += 1
    for i, c in enumerate([C1, C2, C3, F1, F2]):
        params[f"bn{i+1}_gamma"] = 0.5 + jax.random.uniform(keys[ki], (c,), jnp.float32); ki += 1
        params[f"bn{i+1}_beta"]  = jax.random.normal(keys[ki], (c,), jnp.float32) * 0.1;  ki += 1
        params[f"bn{i+1}_mean"]  = jax.random.normal(keys[ki], (c,), jnp.float32) * 0.1;  ki += 1
        params[f"bn{i+1}_var"]   = 0.5 + jax.random.uniform(keys[ki], (c,), jnp.float32); ki += 1
    return params


def _fold_bn(w, b, gamma, beta, mean, var):
    scale = gamma / jnp.sqrt(var + BN_EPS)
    return w * scale[:, None], (b - mean) * scale + beta


def prepare_params(params):
    folded = []
    for i in range(1, 7):
        w, b = params[f"w{i}"], params[f"b{i}"]
        if i <= 5:  # layers 1..5 are followed by a BatchNorm
            w, b = _fold_bn(w, b, params[f"bn{i}_gamma"], params[f"bn{i}_beta"],
                            params[f"bn{i}_mean"], params[f"bn{i}_var"])
        folded.append((w, b))
    (w1, b1), (w2, b2), (w3, b3), (w4, b4), (w5, b5), (w6, b6) = folded

    w6p = jnp.zeros((F2, OUT_PAD), jnp.float32).at[:, :KK].set(w6.T)
    b6p = jnp.zeros((1, OUT_PAD), jnp.float32).at[0, :KK].set(b6)

    return {
        # conv1/conv2 run "transposed" (channels on sublanes): PyTorch (out, in) as-is.
        "w1": w1.astype(jnp.float32),                 # (C1, K)  f32 (VPU path)
        "b1": b1.reshape(C1, 1).astype(jnp.float32),
        "w2": w2.astype(jnp.bfloat16),                # (C2, C1)
        "b2": b2.reshape(C2, 1).astype(jnp.float32),
        # conv3 / FC head run rows-major: (in, out).
        "w3": w3.T.astype(jnp.bfloat16),              # (C2, C3)
        "b3": b3.reshape(1, C3).astype(jnp.float32),
        "w4": w4.T.astype(jnp.bfloat16),              # (C3, F1)
        "b4": b4.reshape(1, F1).astype(jnp.float32),
        "w5": w5.T.astype(jnp.bfloat16),              # (F1, F2)
        "b5": b5.reshape(1, F2).astype(jnp.float32),
        "w6": w6p.astype(jnp.bfloat16),               # (F2, OUT_PAD), zero-padded cols
        "b6": b6p.astype(jnp.float32),
    }


# ---------------------------------------------------------------------------
# Wrapper.
# ---------------------------------------------------------------------------
def tnet_forward(x_bkn, p, *, bt=8, n_tile=128):
    """TNet forward. x_bkn uses the PyTorch Conv1d layout (B, k, N)."""
    B, k, N = x_bkn.shape
    assert k == K
    assert bt % 8 == 0, "batch tile must be sublane-aligned"
    assert n_tile % 128 == 0, "N tile must be lane-aligned"

    b_pad = _round_up(B, bt)
    n_pad = _round_up(N, n_tile)
    nb, nc = b_pad // bt, n_pad // n_tile

    x = x_bkn.astype(jnp.float32)
    if n_pad != N:   # edge replication is max-pool invariant
        x = jnp.pad(x, ((0, 0), (0, 0), (0, n_pad - N)), mode="edge")
    if b_pad != B:   # zero rows, sliced off afterwards
        x = jnp.pad(x, ((0, b_pad - B), (0, 0), (0, 0)))

    const2 = lambda arr: pl.BlockSpec(arr.shape, lambda i, c: (0, 0))

    conv = pl.pallas_call(
        functools.partial(tnet_conv_kernel, bt=bt, n_tile=n_tile),
        out_shape=jax.ShapeDtypeStruct((b_pad, C3), jnp.float32),
        grid_spec=pltpu.PrefetchScalarGridSpec(
            num_scalar_prefetch=0,
            grid=(nb, nc),
            in_specs=[
                pl.BlockSpec((bt, K, n_tile), lambda i, c: (i, 0, c)),  # x chunks
                const2(p["w1"]), const2(p["b1"]),
                const2(p["w2"]), const2(p["b2"]),
                const2(p["w3"]), const2(p["b3"]),
            ],
            out_specs=pl.BlockSpec((bt, C3), lambda i, c: (i, 0)),
            scratch_shapes=[pltpu.VMEM((bt, C3), jnp.float32)],         # running max
        ),
        compiler_params=pltpu.CompilerParams(
            dimension_semantics=("parallel", "arbitrary"),
            vmem_limit_bytes=48 * 1024 * 1024,
        ),
    )
    g = conv(x, p["w1"], p["b1"], p["w2"], p["b2"], p["w3"], p["b3"])

    # FC head once over the whole batch of pooled features (amortizes weights).
    bm = b_pad if b_pad <= 256 else 256
    b_pad2 = _round_up(b_pad, bm)
    if b_pad2 != b_pad:
        g = jnp.pad(g, ((0, b_pad2 - b_pad), (0, 0)))

    const1 = lambda arr: pl.BlockSpec(arr.shape, lambda i: (0, 0))
    fc = pl.pallas_call(
        tnet_fc_kernel,
        out_shape=jax.ShapeDtypeStruct((b_pad2, OUT_PAD), jnp.float32),
        grid_spec=pltpu.PrefetchScalarGridSpec(
            num_scalar_prefetch=0,
            grid=(b_pad2 // bm,),
            in_specs=[
                pl.BlockSpec((bm, C3), lambda i: (i, 0)),
                const1(p["w4"]), const1(p["b4"]),
                const1(p["w5"]), const1(p["b5"]),
                const1(p["w6"]), const1(p["b6"]),
            ],
            out_specs=pl.BlockSpec((bm, OUT_PAD), lambda i: (i, 0)),
        ),
        compiler_params=pltpu.CompilerParams(
            dimension_semantics=("parallel",),
            vmem_limit_bytes=48 * 1024 * 1024,
        ),
    )
    out = fc(g, p["w4"], p["b4"], p["w5"], p["b5"], p["w6"], p["b6"])

    out = out[:B, :KK] + jnp.eye(K, dtype=jnp.float32).reshape(1, KK)
    return out.reshape(B, K, K)


# ---------------------------------------------------------------------------
# Pure-JAX reference (same folded params, same bf16 cast points).
# ---------------------------------------------------------------------------
def tnet_reference(x_bkn, p):
    B = x_bkn.shape[0]
    x = x_bkn.astype(jnp.float32)                                        # (B, K, N)
    h1 = jnp.einsum("ck,bkn->bcn", p["w1"], x) + p["b1"][None]
    h1 = jax.nn.relu(h1).astype(jnp.bfloat16)                            # (B, C1, N)
    h2 = jnp.einsum("dc,bcn->bdn", p["w2"], h1,
                    preferred_element_type=jnp.float32) + p["b2"][None]
    h2 = jax.nn.relu(h2).astype(jnp.bfloat16)                            # (B, C2, N)
    h3 = jnp.einsum("bdn,de->bne", h2, p["w3"],
                    preferred_element_type=jnp.float32) + p["b3"][None]
    h3 = jax.nn.relu(h3)                                                 # (B, N, C3)
    g = jnp.max(h3, axis=1)                                              # (B, C3)
    f = g.astype(jnp.bfloat16)
    f = jax.nn.relu(jnp.dot(f, p["w4"], preferred_element_type=jnp.float32)
                    + p["b4"]).astype(jnp.bfloat16)
    f = jax.nn.relu(jnp.dot(f, p["w5"], preferred_element_type=jnp.float32)
                    + p["b5"]).astype(jnp.bfloat16)
    o = jnp.dot(f, p["w6"], preferred_element_type=jnp.float32) + p["b6"]
    o = o[:, :KK] + jnp.eye(K, dtype=jnp.float32).reshape(1, KK)
    return o.reshape(B, K, K)


if __name__ == "__main__":
    key = jax.random.PRNGKey(0)
    k_params, k_x = jax.random.split(key)

    B, N = 16, 256            # small: 2 batch tiles x 2 N chunks for kernel A
    x = jax.random.normal(k_x, (B, K, N), jnp.float32)    # PyTorch NCW layout

    p = prepare_params(init_params(k_params))

    out = jax.block_until_ready(tnet_forward(x, p))
    ref = jax.block_until_ready(tnet_reference(x, p))

    assert out.shape == (B, K, K)
    max_err = jnp.max(jnp.abs(out - ref))
    assert jnp.allclose(out, ref, atol=3e-2, rtol=3e-2), (
        f"mismatch: max abs err = {max_err}")

    print("KERNEL_OK")
</pallas_src>

<mosaic_0001>
module attributes {stable_mosaic.version = 11 : i64} {
  func.func @tnet_conv_kernel(%arg0: i32, %arg1: i32, %arg2: memref<8x3x128xf32, #tpu.memory_space<vmem>>, %arg3: memref<64x3xf32, #tpu.memory_space<vmem>>, %arg4: memref<64x1xf32, #tpu.memory_space<vmem>>, %arg5: memref<128x64xbf16, #tpu.memory_space<vmem>>, %arg6: memref<128x1xf32, #tpu.memory_space<vmem>>, %arg7: memref<128x1024xbf16, #tpu.memory_space<vmem>>, %arg8: memref<1x1024xf32, #tpu.memory_space<vmem>>, %arg9: memref<8x1024xf32, #tpu.memory_space<vmem>>, %arg10: memref<8x1024xf32, #tpu.memory_space<vmem>>) attributes {dimension_semantics = [#tpu.dimension_semantics<parallel>, #tpu.dimension_semantics<arbitrary>], iteration_bounds = array<i64: 2, 2>, scalar_prefetch = 0 : i64, scratch_operands = 1 : i64, tpu.core_type = #tpu.core_type<tc>, window_params = [{transform_indices = @transform_0, window_bounds = array<i64: 8, 3, 128>}, {pipeline_mode = #tpu.pipeline_mode<synchronous>, transform_indices = @transform_1, window_bounds = array<i64: 64, 3>}, {pipeline_mode = #tpu.pipeline_mode<synchronous>, transform_indices = @transform_2, window_bounds = array<i64: 64, 1>}, {pipeline_mode = #tpu.pipeline_mode<synchronous>, transform_indices = @transform_3, window_bounds = array<i64: 128, 64>}, {pipeline_mode = #tpu.pipeline_mode<synchronous>, transform_indices = @transform_4, window_bounds = array<i64: 128, 1>}, {pipeline_mode = #tpu.pipeline_mode<synchronous>, transform_indices = @transform_5, window_bounds = array<i64: 128, 1024>}, {pipeline_mode = #tpu.pipeline_mode<synchronous>, transform_indices = @transform_6, window_bounds = array<i64: 1, 1024>}, {transform_indices = @transform_7, window_bounds = array<i64: 8, 1024>}]} {
    %c0_i32 = arith.constant 0 : i32
    %0 = arith.cmpi eq, %arg1, %c0_i32 : i32
    %1 = arith.extui %0 : i1 to i32
    %c0_i32_0 = arith.constant 0 : i32
    %2 = arith.cmpi ne, %1, %c0_i32_0 : i32
    scf.if %2 {
      %cst_22 = arith.constant 0xFF800000 : f32
      %64 = vector.broadcast %cst_22 : f32 to vector<8x1024xf32>
      %c0_23 = arith.constant 0 : index
      %c0_24 = arith.constant 0 : index
      %65 = vector.load %arg10[%c0_23, %c0_24] : memref<8x1024xf32, #tpu.memory_space<vmem>>, vector<8x1024xf32>
      tpu.vector_store %arg10[%c0_23, %c0_24], %64 {strides = array<i32>} : memref<8x1024xf32, #tpu.memory_space<vmem>>, vector<8x1024xf32>,
    } else {
    }
    %c0 = arith.constant 0 : index
    %c0_1 = arith.constant 0 : index
    %c0_2 = arith.constant 0 : index
    %3 = vector.load %arg2[%c0, %c0_1, %c0_2] : memref<8x3x128xf32, #tpu.memory_space<vmem>>, vector<8x3x128xf32>
    %4 = vector.extract_strided_slice %3 {offsets = [0, 0, 0], sizes = [1, 3, 128], strides = [1, 1, 1]} : vector<8x3x128xf32> to vector<1x3x128xf32>
    %5 = vector.shape_cast %4 : vector<1x3x128xf32> to vector<3x128xf32>
    %6 = vector.extract_strided_slice %3 {offsets = [1, 0, 0], sizes = [1, 3, 128], strides = [1, 1, 1]} : vector<8x3x128xf32> to vector<1x3x128xf32>
    %7 = vector.shape_cast %6 : vector<1x3x128xf32> to vector<3x128xf32>
    %8 = vector.extract_strided_slice %3 {offsets = [2, 0, 0], sizes = [1, 3, 128], strides = [1, 1, 1]} : vector<8x3x128xf32> to vector<1x3x128xf32>
    %9 = vector.shape_cast %8 : vector<1x3x128xf32> to vector<3x128xf32>
    %10 = vector.extract_strided_slice %3 {offsets = [3, 0, 0], sizes = [1, 3, 128], strides = [1, 1, 1]} : vector<8x3x128xf32> to vector<1x3x128xf32>
    %11 = vector.shape_cast %10 : vector<1x3x128xf32> to vector<3x128xf32>
    %12 = vector.extract_strided_slice %3 {offsets = [4, 0, 0], sizes = [1, 3, 128], strides = [1, 1, 1]} : vector<8x3x128xf32> to vector<1x3x128xf32>
    %13 = vector.shape_cast %12 : vector<1x3x128xf32> to vector<3x128xf32>
    %14 = vector.extract_strided_slice %3 {offsets = [5, 0, 0], sizes = [1, 3, 128], strides = [1, 1, 1]} : vector<8x3x128xf32> to vector<1x3x128xf32>
    %15 = vector.shape_cast %14 : vector<1x3x128xf32> to vector<3x128xf32>
    %16 = vector.extract_strided_slice %3 {offsets = [6, 0, 0], sizes = [1, 3, 128], strides = [1, 1, 1]} : vector<8x3x128xf32> to vector<1x3x128xf32>
    %17 = vector.shape_cast %16 : vector<1x3x128xf32> to vector<3x128xf32>
    %18 = vector.extract_strided_slice %3 {offsets = [7, 0, 0], sizes = [1, 3, 128], strides = [1, 1, 1]} : vector<8x3x128xf32> to vector<1x3x128xf32>
    %19 = vector.shape_cast %18 : vector<1x3x128xf32> to vector<3x128xf32>
    %20 = tpu.concatenate %5, %7, %9, %11, %13, %15, %17, %19 in 1 : vector<3x128xf32>, vector<3x128xf32>, vector<3x128xf32>, vector<3x128xf32>, vector<3x128xf32>, vector<3x128xf32>, vector<3x128xf32>, vector<3x128xf32> -> vector<3x1024xf32>
    %c0_3 = arith.constant 0 : index
    %c0_4 = arith.constant 0 : index
    %21 = vector.load %arg3[%c0_3, %c0_4] : memref<64x3xf32, #tpu.memory_space<vmem>>, vector<64x3xf32>
    %c0_5 = arith.constant 0 : index
    %c0_6 = arith.constant 0 : index
    %22 = vector.load %arg4[%c0_5, %c0_6] : memref<64x1xf32, #tpu.memory_space<vmem>>, vector<64x1xf32>
    %23 = vector.extract_strided_slice %21 {offsets = [0, 0], sizes = [64, 1], strides = [1, 1]} : vector<64x3xf32> to vector<64x1xf32>
    %24 = vector.extract_strided_slice %20 {offsets = [0, 0], sizes = [1, 1024], strides = [1, 1]} : vector<3x1024xf32> to vector<1x1024xf32>
    %25 = vector.broadcast %23 : vector<64x1xf32> to vector<64x1024xf32>
    %26 = vector.broadcast %24 : vector<1x1024xf32> to vector<64x1024xf32>
    %27 = arith.mulf %25, %26 : vector<64x1024xf32>
    %28 = vector.broadcast %22 : vector<64x1xf32> to vector<64x1024xf32>
    %29 = arith.addf %28, %27 : vector<64x1024xf32>
    %30 = vector.extract_strided_slice %21 {offsets = [0, 1], sizes = [64, 1], strides = [1, 1]} : vector<64x3xf32> to vector<64x1xf32>
    %31 = vector.extract_strided_slice %20 {offsets = [1, 0], sizes = [1, 1024], strides = [1, 1]} : vector<3x1024xf32> to vector<1x1024xf32>
    %32 = vector.broadcast %30 : vector<64x1xf32> to vector<64x1024xf32>
    %33 = vector.broadcast %31 : vector<1x1024xf32> to vector<64x1024xf32>
    %34 = arith.mulf %32, %33 : vector<64x1024xf32>
    %35 = arith.addf %29, %34 : vector<64x1024xf32>
    %36 = vector.extract_strided_slice %21 {offsets = [0, 2], sizes = [64, 1], strides = [1, 1]} : vector<64x3xf32> to vector<64x1xf32>
    %37 = vector.extract_strided_slice %20 {offsets = [2, 0], sizes = [1, 1024], strides = [1, 1]} : vector<3x1024xf32> to vector<1x1024xf32>
    %38 = vector.broadcast %36 : vector<64x1xf32> to vector<64x1024xf32>
    %39 = vector.broadcast %37 : vector<1x1024xf32> to vector<64x1024xf32>
    %40 = arith.mulf %38, %39 : vector<64x1024xf32>
    %41 = arith.addf %35, %40 : vector<64x1024xf32>
    %cst = arith.constant 0.000000e+00 : f32
    %42 = vector.broadcast %cst : f32 to vector<64x1024xf32>
    %43 = arith.maximumf %41, %42 : vector<64x1024xf32>
    %44 = arith.truncf %43 : vector<64x1024xf32> to vector<64x1024xbf16>
    %c0_7 = arith.constant 0 : index
    %c0_8 = arith.constant 0 : index
    %45 = vector.load %arg5[%c0_7, %c0_8] : memref<128x64xbf16, #tpu.memory_space<vmem>>, vector<128x64xbf16>
    %cst_9 = arith.constant dense<0.000000e+00> : vector<128x1024xf32>
    %46 = tpu.matmul %45, %44, %cst_9 {dimension_numbers = #tpu.dot_dimension_numbers<[1], [0], [0], [1], [0, 0, 1, 1], [], []>} : vector<128x64xbf16>, vector<64x1024xbf16>, vector<128x1024xf32> -> vector<128x1024xf32>
    %c0_10 = arith.constant 0 : index
    %c0_11 = arith.constant 0 : index
    %47 = vector.load %arg6[%c0_10, %c0_11] : memref<128x1xf32, #tpu.memory_space<vmem>>, vector<128x1xf32>
    %48 = vector.broadcast %47 : vector<128x1xf32> to vector<128x1024xf32>
    %49 = arith.addf %46, %48 : vector<128x1024xf32>
    %cst_12 = arith.constant 0.000000e+00 : f32
    %50 = vector.broadcast %cst_12 : f32 to vector<128x1024xf32>
    %51 = arith.maximumf %49, %50 : vector<128x1024xf32>
    %52 = tpu.transpose %51, [1, 0] : vector<128x1024xf32> -> vector<1024x128xf32>
    %53 = arith.truncf %52 : vector<1024x128xf32> to vector<1024x128xbf16>
    %c0_13 = arith.constant 0 : index
    %c0_14 = arith.constant 0 : index
    %54 = vector.load %arg7[%c0_13, %c0_14] : memref<128x1024xbf16, #tpu.memory_space<vmem>>, vector<128x1024xbf16>
    %cst_15 = arith.constant dense<0.000000e+00> : vector<1024x1024xf32>
    %55 = tpu.matmul %53, %54, %cst_15 {dimension_numbers = #tpu.dot_dimension_numbers<[1], [0], [0], [1], [0, 0, 1, 1], [], []>} : vector<1024x128xbf16>, vector<128x1024xbf16>, vector<1024x1024xf32> -> vector<1024x1024xf32>
    %56 = vector.shape_cast %55 : vector<1024x1024xf32> to vector<8x128x1024xf32>
    %cst_16 = arith.constant dense<0xFF800000> : vector<8x1024xf32>
    %57 = vector.multi_reduction <maximumf>, %56, %cst_16 [1] : vector<8x128x1024xf32> to vector<8x1024xf32>
    %c0_17 = arith.constant 0 : index
    %c0_18 = arith.constant 0 : index
    %58 = vector.load %arg10[%c0_17, %c0_18] : memref<8x1024xf32, #tpu.memory_space<vmem>>, vector<8x1024xf32>
    %59 = arith.maximumf %58, %57 : vector<8x1024xf32>
    %c0_19 = arith.constant 0 : index
    %c0_20 = arith.constant 0 : index
    %60 = vector.load %arg10[%c0_19, %c0_20] : memref<8x1024xf32, #tpu.memory_space<vmem>>, vector<8x1024xf32>
    tpu.vector_store %arg10[%c0_19, %c0_20], %59 {strides = array<i32>} : memref<8x1024xf32, #tpu.memory_space<vmem>>, vector<8x1024xf32>,
    %c1_i32 = arith.constant 1 : i32
    %61 = arith.cmpi eq, %arg1, %c1_i32 : i32
    %62 = arith.extui %61 : i1 to i32
    %c0_i32_21 = arith.constant 0 : i32
    %63 = arith.cmpi ne, %62, %c0_i32_21 : i32
    scf.if %63 {
      %c0_22 = arith.constant 0 : index
      %c0_23 = arith.constant 0 : index
      %64 = vector.load %arg10[%c0_22, %c0_23] : memref<8x1024xf32, #tpu.memory_space<vmem>>, vector<8x1024xf32>
      %c0_24 = arith.constant 0 : index
      %c0_25 = arith.constant 0 : index
      %65 = vector.load %arg8[%c0_24, %c0_25] : memref<1x1024xf32, #tpu.memory_space<vmem>>, vector<1x1024xf32>
      %66 = vector.broadcast %65 : vector<1x1024xf32> to vector<8x1024xf32>
      %67 = arith.addf %64, %66 : vector<8x1024xf32>
      %cst_26 = arith.constant 0.000000e+00 : f32
      %68 = vector.broadcast %cst_26 : f32 to vector<8x1024xf32>
      %69 = arith.maximumf %67, %68 : vector<8x1024xf32>
      %c0_27 = arith.constant 0 : index
      %c0_28 = arith.constant 0 : index
      %70 = vector.load %arg9[%c0_27, %c0_28] : memref<8x1024xf32, #tpu.memory_space<vmem>>, vector<8x1024xf32>
      tpu.vector_store %arg9[%c0_27, %c0_28], %69 {strides = array<i32>} : memref<8x1024xf32, #tpu.memory_space<vmem>>, vector<8x1024xf32>,
    } else {
    }
    return
  }
  func.func @transform_0(%arg0: i32, %arg1: i32) -> (i32, i32, i32) {
    %c0_i32 = arith.constant 0 : i32
    %c0_i32_0 = arith.constant 0 : i32
    return %arg0, %c0_i32, %arg1 : i32, i32, i32
  }
  func.func @transform_1(%arg0: i32, %arg1: i32) -> (i32, i32) {
    %c0_i32 = arith.constant 0 : i32
    %c0_i32_0 = arith.constant 0 : i32
    %c0_i32_1 = arith.constant 0 : i32
    return %c0_i32, %c0_i32_0 : i32, i32
  }
  func.func @transform_2(%arg0: i32, %arg1: i32) -> (i32, i32) {
    %c0_i32 = arith.constant 0 : i32
    %c0_i32_0 = arith.constant 0 : i32
    %c0_i32_1 = arith.constant 0 : i32
    return %c0_i32, %c0_i32_0 : i32, i32
  }
  func.func @transform_3(%arg0: i32, %arg1: i32) -> (i32, i32) {
    %c0_i32 = arith.constant 0 : i32
    %c0_i32_0 = arith.constant 0 : i32
    %c0_i32_1 = arith.constant 0 : i32
    return %c0_i32, %c0_i32_0 : i32, i32
  }
  func.func @transform_4(%arg0: i32, %arg1: i32) -> (i32, i32) {
    %c0_i32 = arith.constant 0 : i32
    %c0_i32_0 = arith.constant 0 : i32
    %c0_i32_1 = arith.constant 0 : i32
    return %c0_i32, %c0_i32_0 : i32, i32
  }
  func.func @transform_5(%arg0: i32, %arg1: i32) -> (i32, i32) {
    %c0_i32 = arith.constant 0 : i32
    %c0_i32_0 = arith.constant 0 : i32
    %c0_i32_1 = arith.constant 0 : i32
    return %c0_i32, %c0_i32_0 : i32, i32
  }
  func.func @transform_6(%arg0: i32, %arg1: i32) -> (i32, i32) {
    %c0_i32 = arith.constant 0 : i32
    %c0_i32_0 = arith.constant 0 : i32
    %c0_i32_1 = arith.constant 0 : i32
    return %c0_i32, %c0_i32_0 : i32, i32
  }
  func.func @transform_7(%arg0: i32, %arg1: i32) -> (i32, i32) {
    %c0_i32 = arith.constant 0 : i32
    %c0_i32_0 = arith.constant 0 : i32
    return %arg0, %c0_i32 : i32, i32
  }
}

</mosaic_0001>

<llo_original>
// kernel: tpu_custom_call.1
$region0: #{tpu_custom_call.1}
  #allocation0 [shape = 'u32[]', space=smem, size = 0x4, offset = 0x4, fixed_abs, tag = 'smem constant byte address 0x4 - core index']
  #allocation1 [shape = 'u32[72,128]{1,0:T(1,128)}', space=vmem, size = 0x9000, scoped, tag = 'internal scratch']
  #allocation2 [shape = 'f32[8,1024]{1,0:T(8,128)}', space=vmem, size = 0x8000, scoped, tag = 'scratch operand']
  %s0 = inlined_call_operand.vmem [shape: f32[16,3,256], index: 0, kind: input, shape index: {}]
  %s1 = inlined_call_operand.vmem [shape: f32[64,3], index: 1, kind: input, shape index: {}]
  %s2 = inlined_call_operand.vmem [shape: f32[64,1], index: 2, kind: input, shape index: {}]
  %s3 = inlined_call_operand.vmem [shape: bf16[128,64], index: 3, kind: input, shape index: {}]
  %s4 = inlined_call_operand.vmem [shape: f32[128,1], index: 4, kind: input, shape index: {}]
  %s5 = inlined_call_operand.hbm [shape: bf16[128,1024], index: 5, kind: input, shape index: {}]
  %s6 = inlined_call_operand.vmem [shape: f32[1,1024], index: 6, kind: input, shape index: {}]
  %s7 = inlined_call_operand.hbm [shape: f32[16,1024], index: 7, kind: output, shape index: {}]
  %s8 = sld [smem:[#allocation0]]
  $region114: #{tpu_custom_call.1} parent=0
    _
  %s10 = ssub.s32 1, %s8
  %s11 = scalar_select 0, %s10, %s8
  $region1: #{tpu_custom_call.1} parent=0
    #allocation3 [shape = 'u8[32768]{0}', space=vmem, size = 0x8000, scoped, tag = 'input window, operand 0']
    #allocation4 [shape = 'u8[262144]{0}', space=vmem, size = 0x40000, scoped, tag = 'input window, operand 5, single buffered']
    #allocation5 [shape = 's32[2]{0}', space=sflag, size = 0x8, scoped, tag = 'scoped memory for tpu_custom_call.1']
    #allocation6 [shape = 's32[2]{0}', space=sflag, size = 0x8, scoped, tag = 'scoped memory for tpu_custom_call.1']
    #allocation7 [shape = 'u8[65536]{0}', space=vmem, size = 0x10000, scoped, tag = 'output window, operand 0']
    %12 = vsyncpa [#allocation5], 0
    %13 = vsyncpa [#allocation6], 0
    %s14 = scalar_lea.sflag [#allocation6], 1
    %15 = vsyncpa %s14, 0
    loop: start=0, step=1, limit=6
    $region2: #{tpu_custom_call.1} parent=1 // loop_pre_header
      _
    $region3: #{tpu_custom_call.1} parent=1 // loop_header
      %s17 = sphi 0, %s21
      %p18 = scmp.ge.s32.totalorder %s17, 6
      %s24 = sphi 0, %s36
      %s25 = sphi 0, %s32
      %s26 = sphi 0, %s24
      %s27 = sphi 0, %s25
      %s28 = sphi 0, %s26
      %s29 = sphi 0, %s27
      %s41 = sphi 0, %s43
      %s44 = sphi 0, %s41
      %s45 = sphi 0, %s44
      %s61 = sphi 0, %s45
      %s65 = sphi 0, %s65
      %s67 = sphi 0, %s65
      %s68 = sphi 0, %s67
      %s82 = sphi 0, %s68
      %s86 = sphi 0, %s86
      %s88 = sphi 0, %s86
      %s89 = sphi 0, %s88
      %s103 = sphi 0, %s89
      %s107 = sphi 0, %s107
      %s109 = sphi 0, %s107
      %s110 = sphi 0, %s109
      %s124 = sphi 0, %s110
      %s128 = sphi 0, %s128
      %s130 = sphi 0, %s128
      %s131 = sphi 0, %s130
      %s145 = sphi 0, %s131
      %s149 = sphi 0, %s149
      %s151 = sphi 0, %s149
      %s152 = sphi 0, %s151
      %s166 = sphi 0, %s152
      %s170 = sphi 0, %s170
      %s172 = sphi 0, %s170
      %s173 = sphi 0, %s172
      %s187 = sphi 0, %s173
      %s193 = sphi 0, %s195
      %s196 = sphi 0, %s193
      %s197 = sphi 0, %s196
      %s213 = sphi 0, %s197
    $region4: #{tpu_custom_call.1} parent=1 // loop_header_branch
      %20 = sbr.rel (%p18) target = $region8
    $region5: #{tpu_custom_call.1} parent=1 // loop_body
      %s22 = ssub.s32 %s17, 1
      %s23 = ssub.s32 %s17, 2
      %s30 = sadd.s32 1, %s25
      %p31 = scmp.ge.s32.totalorder %s30, 2
      %s32 = scalar_select %p31, 0, %s30
      %s33 = sadd.s32 1, %s24
      %s34 = scalar_select %p31, %s33, %s24
      %p35 = scmp.ge.s32.totalorder %s34, 2
      %s36 = scalar_select %p35, 0, %s34
      %s37 = ssub.s32 %s24, %s36
      %s38 = ssub.s32 %s25, %s32
      %s39 = sor.u32 %s37, %s38
      %p40 = scmp.eq.s32.totalorder %s39, 0
      %s42 = sadd.s32 %s41, 1
      %s43 = scalar_select %p40, %s41, %s42
      %p46 = pneg %p40
      %p47 = scmp.eq.s32.totalorder %s17, 3
      %p48 = por %p46, %p47
      %p49 = scmp.ne.s32.totalorder %s41, %s44
      %p50 = scmp.eq.s32.totalorder %s17, 0
      %p51 = por %p49, %p50
      %p52 = scmp.ne.s32.totalorder %s41, %s44
      %p53 = scmp.eq.s32.totalorder %s22, 3
      %p54 = por %p52, %p53
      %p55 = scmp.ne.s32.totalorder %s44, %s45
      %p56 = scmp.eq.s32.totalorder %s22, 0
      %p57 = por %p55, %p56
      %p58 = scmp.ne.s32.totalorder %s44, %s45
      %p59 = scmp.eq.s32.totalorder %s23, 3
      %p60 = por %p58, %p59
      %p62 = scmp.ne.s32.totalorder %s45, %s61
      %p63 = scmp.eq.s32.totalorder %s23, 0
      %p64 = por %p62, %p63
      %s66 = sadd.s32 %s65, 1
      %p69 = scmp.eq.s32.totalorder %s17, 3
      %p70 = scmp.ne.s32.totalorder %s65, %s67
      %p71 = scmp.eq.s32.totalorder %s17, 0
      %p72 = por %p70, %p71
      %p73 = scmp.ne.s32.totalorder %s65, %s67
      %p74 = scmp.eq.s32.totalorder %s22, 3
      %p75 = por %p73, %p74
      %p76 = scmp.ne.s32.totalorder %s67, %s68
      %p77 = scmp.eq.s32.totalorder %s22, 0
      %p78 = por %p76, %p77
      %p79 = scmp.ne.s32.totalorder %s67, %s68
      %p80 = scmp.eq.s32.totalorder %s23, 3
      %p81 = por %p79, %p80
      %p83 = scmp.ne.s32.totalorder %s68, %s82
      %p84 = scmp.eq.s32.totalorder %s23, 0
      %p85 = por %p83, %p84
      %s87 = sadd.s32 %s86, 1
      %p90 = scmp.eq.s32.totalorder %s17, 3
      %p91 = scmp.ne.s32.totalorder %s86, %s88
      %p92 = scmp.eq.s32.totalorder %s17, 0
      %p93 = por %p91, %p92
      %p94 = scmp.ne.s32.totalorder %s86, %s88
      %p95 = scmp.eq.s32.totalorder %s22, 3
      %p96 = por %p94, %p95
      %p97 = scmp.ne.s32.totalorder %s88, %s89
      %p98 = scmp.eq.s32.totalorder %s22, 0
      %p99 = por %p97, %p98
      %p100 = scmp.ne.s32.totalorder %s88, %s89
      %p101 = scmp.eq.s32.totalorder %s23, 3
      %p102 = por %p100, %p101
      %p104 = scmp.ne.s32.totalorder %s89, %s103
      %p105 = scmp.eq.s32.totalorder %s23, 0
      %p106 = por %p104, %p105
      %s108 = sadd.s32 %s107, 1
      %p111 = scmp.eq.s32.totalorder %s17, 3
      %p112 = scmp.ne.s32.totalorder %s107, %s109
      %p113 = scmp.eq.s32.totalorder %s17, 0
      %p114 = por %p112, %p113
      %p115 = scmp.ne.s32.totalorder %s107, %s109
      %p116 = scmp.eq.s32.totalorder %s22, 3
      %p117 = por %p115, %p116
      %p118 = scmp.ne.s32.totalorder %s109, %s110
      %p119 = scmp.eq.s32.totalorder %s22, 0
      %p120 = por %p118, %p119
      %p121 = scmp.ne.s32.totalorder %s109, %s110
      %p122 = scmp.eq.s32.totalorder %s23, 3
      %p123 = por %p121, %p122
      %p125 = scmp.ne.s32.totalorder %s110, %s124
      %p126 = scmp.eq.s32.totalorder %s23, 0
      %p127 = por %p125, %p126
      %s129 = sadd.s32 %s128, 1
      %p132 = scmp.eq.s32.totalorder %s17, 3
      %p133 = scmp.ne.s32.totalorder %s128, %s130
      %p134 = scmp.eq.s32.totalorder %s17, 0
      %p135 = por %p133, %p134
      %p136 = scmp.ne.s32.totalorder %s128, %s130
      %p137 = scmp.eq.s32.totalorder %s22, 3
      %p138 = por %p136, %p137
      %p139 = scmp.ne.s32.totalorder %s130, %s131
      %p140 = scmp.eq.s32.totalorder %s22, 0
      %p141 = por %p139, %p140
      %p142 = scmp.ne.s32.totalorder %s130, %s131
      %p143 = scmp.eq.s32.totalorder %s23, 3
      %p144 = por %p142, %p143
      %p146 = scmp.ne.s32.totalorder %s131, %s145
      %p147 = scmp.eq.s32.totalorder %s23, 0
      %p148 = por %p146, %p147
      %s150 = sadd.s32 %s149, 1
      %p153 = scmp.eq.s32.totalorder %s17, 3
      %p154 = scmp.ne.s32.totalorder %s149, %s151
      %p155 = scmp.eq.s32.totalorder %s17, 0
      %p156 = por %p154, %p155
      %p157 = scmp.ne.s32.totalorder %s149, %s151
      %p158 = scmp.eq.s32.totalorder %s22, 3
      %p159 = por %p157, %p158
      %p160 = scmp.ne.s32.totalorder %s151, %s152
      %p161 = scmp.eq.s32.totalorder %s22, 0
      %p162 = por %p160, %p161
      %p163 = scmp.ne.s32.totalorder %s151, %s152
      %p164 = scmp.eq.s32.totalorder %s23, 3
      %p165 = por %p163, %p164
      %p167 = scmp.ne.s32.totalorder %s152, %s166
      %p168 = scmp.eq.s32.totalorder %s23, 0
      %p169 = por %p167, %p168
      %s171 = sadd.s32 %s170, 1
      %p174 = scmp.eq.s32.totalorder %s17, 3
      %p175 = scmp.ne.s32.totalorder %s170, %s172
      %p176 = scmp.eq.s32.totalorder %s17, 0
      %p177 = por %p175, %p176
      %p178 = scmp.ne.s32.totalorder %s170, %s172
      %p179 = scmp.eq.s32.totalorder %s22, 3
      %p180 = por %p178, %p179
      %p181 = scmp.ne.s32.totalorder %s172, %s173
      %p182 = scmp.eq.s32.totalorder %s22, 0
      %p183 = por %p181, %p182
      %p184 = scmp.ne.s32.totalorder %s172, %s173
      %p185 = scmp.eq.s32.totalorder %s23, 3
      %p186 = por %p184, %p185
      %p188 = scmp.ne.s32.totalorder %s173, %s187
      %p189 = scmp.eq.s32.totalorder %s23, 0
      %p190 = por %p188, %p189
      %s191 = ssub.s32 %s24, %s36
      %p192 = scmp.eq.s32.totalorder %s191, 0
      %s194 = sadd.s32 %s193, 1
      %s195 = scalar_select %p192, %s193, %s194
      %p198 = pneg %p192
      %p199 = scmp.eq.s32.totalorder %s17, 3
      %p200 = por %p198, %p199
      %p201 = scmp.ne.s32.totalorder %s193, %s196
      %p202 = scmp.eq.s32.totalorder %s17, 0
      %p203 = por %p201, %p202
      %p204 = scmp.ne.s32.totalorder %s193, %s196
      %p205 = scmp.eq.s32.totalorder %s22, 3
      %p206 = por %p204, %p205
      %p207 = scmp.ne.s32.totalorder %s196, %s197
      %p208 = scmp.eq.s32.totalorder %s22, 0
      %p209 = por %p207, %p208
      %p210 = scmp.ne.s32.totalorder %s196, %s197
      %p211 = scmp.eq.s32.totalorder %s23, 3
      %p212 = por %p210, %p211
      %p214 = scmp.ne.s32.totalorder %s197, %s213
      %p215 = scmp.eq.s32.totalorder %s23, 0
      %p216 = por %p214, %p215
      %p217 = scmp.le.s32.totalorder 1, %s17
      %p218 = scmp.lt.s32.totalorder %s17, 5
      %p219 = pnand %p217, %p218
      %p220 = pneg %p219
      // Predicated region
      $region9: #{tpu_custom_call.1} parent=5 // pred_check
        _
      $region10: #{tpu_custom_call.1} parent=5 // pred_check_branch
        %222 = sbr.rel (%p219) target = $region12
      $region11: #{tpu_custom_call.1} parent=5 // pred_region
        %s223 = ssub.s32 %s17, 1
        // Predicated region
        $region13: #{tpu_custom_call.1} parent=11 // pred_check
          %p224 = pneg %p78
        $region14: #{tpu_custom_call.1} parent=11 // pred_check_branch
          %226 = sbr.rel (%p224) target = $region16
        $region15: #{tpu_custom_call.1} parent=11 // pred_region
          _
        $region16: #{tpu_custom_call.1} parent=11 // pred_fallthru
          _
        // Predicated region
        $region17: #{tpu_custom_call.1} parent=11 // pred_check
          %p227 = pneg %p99
        $region18: #{tpu_custom_call.1} parent=11 // pred_check_branch
          %229 = sbr.rel (%p227) target = $region20
        $region19: #{tpu_custom_call.1} parent=11 // pred_region
          _
        $region20: #{tpu_custom_call.1} parent=11 // pred_fallthru
          _
        // Predicated region
        $region21: #{tpu_custom_call.1} parent=11 // pred_check
          %p230 = pneg %p120
        $region22: #{tpu_custom_call.1} parent=11 // pred_check_branch
          %232 = sbr.rel (%p230) target = $region24
        $region23: #{tpu_custom_call.1} parent=11 // pred_region
          _
        $region24: #{tpu_custom_call.1} parent=11 // pred_fallthru
          _
        // Predicated region
        $region25: #{tpu_custom_call.1} parent=11 // pred_check
          %p233 = pneg %p141
        $region26: #{tpu_custom_call.1} parent=11 // pred_check_branch
          %235 = sbr.rel (%p233) target = $region28
        $region27: #{tpu_custom_call.1} parent=11 // pred_region
          _
        $region28: #{tpu_custom_call.1} parent=11 // pred_fallthru
          _
        // Predicated region
        $region29: #{tpu_custom_call.1} parent=11 // pred_check
          %p236 = pneg %p162
        $region30: #{tpu_custom_call.1} parent=11 // pred_check_branch
          %238 = sbr.rel (%p236) target = $region32
        $region31: #{tpu_custom_call.1} parent=11 // pred_region
          %240 = vsyncadd [#allocation5], 0
          %s241 = sshll.u32 %s5, 4
          %s242 = int_to_ptr.hbm [resolvable:$true] %s241
          %s243 = sshll.u32 [#allocation4], 4
          %s244 = int_to_ptr.vmem [resolvable:$true] %s243
          %249 = dma.hbm_to_vmem [thread:$0]  %s242, 8192, %s244, [#allocation5], 512, 512, 32
        $region32: #{tpu_custom_call.1} parent=11 // pred_fallthru
          _
        // Predicated region
        $region33: #{tpu_custom_call.1} parent=11 // pred_check
          %p250 = pneg %p183
        $region34: #{tpu_custom_call.1} parent=11 // pred_check_branch
          %252 = sbr.rel (%p250) target = $region36
        $region35: #{tpu_custom_call.1} parent=11 // pred_region
          _
        $region36: #{tpu_custom_call.1} parent=11 // pred_fallthru
          _
      $region12: #{tpu_custom_call.1} parent=5 // pred_fallthru
        _
      %p253 = scmp.lt.s32.totalorder %s17, 4
      // Predicated region
      $region37: #{tpu_custom_call.1} parent=5 // pred_check
        %p254 = pneg %p253
      $region38: #{tpu_custom_call.1} parent=5 // pred_check_branch
        %256 = sbr.rel (%p254) target = $region40
      $region39: #{tpu_custom_call.1} parent=5 // pred_region
        // Predicated region
        $region41: #{tpu_custom_call.1} parent=39 // pred_check
          %p257 = pneg %p51
        $region42: #{tpu_custom_call.1} parent=39 // pred_check_branch
          %259 = sbr.rel (%p257) target = $region44
        $region43: #{tpu_custom_call.1} parent=39 // pred_region
          %s260 = sand.u32 %s41, 1
          %s261 = sand.u32 %s41, 1
          %s262 = smul.addr %s261, 32
          %s263 = scalar_lea.vmem [#allocation3], %s262
          %s264 = smul.u32 8, %s24
          %s265 = smul.addr %s264, 2
          %s266 = sadd.s32 %s25, %s265
          %s267 = smul.addr %s266, 4
          %s268 = scalar_lea.vmem %s0, %s267
          // Predicated region
          $region45: #{tpu_custom_call.1} parent=43 // pred_check
            _
          $region46: #{tpu_custom_call.1} parent=43 // pred_check_branch
            %270 = sbr.rel (0) target = $region48
          $region47: #{tpu_custom_call.1} parent=43 // pred_region
            // Predicated region
            $region49: #{tpu_custom_call.1} parent=47 // pred_check
              _
            $region50: #{tpu_custom_call.1} parent=47 // pred_check_branch
              %272 = sbr.rel target = $region52
            $region51: #{tpu_custom_call.1} parent=47 // pred_region
              // Predicated region
              $region64: #{tpu_custom_call.1} parent=51 // pred_check
                _
              $region65: #{tpu_custom_call.1} parent=51 // pred_check_branch
                %302 = sbr.rel (0) target = $region67
              $region66: #{tpu_custom_call.1} parent=51 // pred_region
                loop: start=0, step=1, limit=1
                $region68: #{tpu_custom_call.1} parent=66 // loop_pre_header
                  _
                $region69: #{tpu_custom_call.1} parent=66 // loop_header
                  %s304 = sphi 0, %s308
                  %p305 = scmp.ge.s32.totalorder %s304, 1
                  %s309 = sphi %s268, %s268
                  %s310 = sphi %s263, %s263
                $region70: #{tpu_custom_call.1} parent=66 // loop_header_branch
                  %307 = sbr.rel (%p305) target = $region74
                $region71: #{tpu_custom_call.1} parent=66 // loop_body
                  _
                $region72: #{tpu_custom_call.1} parent=66 // loop_footer
                  %s308 = sadd.s32 1, %s304
                $region73: #{tpu_custom_call.1} parent=66 // loop_footer_branch
                  %303 = sbr.rel target = $region69
                $region74: #{tpu_custom_call.1} parent=66 // loop_exit
                  _
                %s312 = ssub.s32 16, 1
                loop: start=0, step=1, limit=1
                $region75: #{tpu_custom_call.1} parent=66 // loop_pre_header
                  _
                $region76: #{tpu_custom_call.1} parent=66 // loop_header
                  %s314 = sphi 0, %s318
                  %p315 = scmp.ge.s32.totalorder %s314, 1
                  %s319 = sphi %s268, %s268
                  %s320 = sphi %s263, %s263
                $region77: #{tpu_custom_call.1} parent=66 // loop_header_branch
                  %317 = sbr.rel (%p315) target = $region81
                $region78: #{tpu_custom_call.1} parent=66 // loop_body
                  %v321 = vld [vmem:[%s319] sm:%s312]
                  %322 = vst [vmem:[%s320] sm:%s312] %v321
                  %v323 = vld [vmem:[%s319 + $0x8] sm:%s312]
                  %324 = vst [vmem:[%s320 + $0x4] sm:%s312] %v323
                  %v325 = vld [vmem:[%s319 + $0x10] sm:%s312]
                  %326 = vst [vmem:[%s320 + $0x8] sm:%s312] %v325
                  %v327 = vld [vmem:[%s319 + $0x18] sm:%s312]
                  %328 = vst [vmem:[%s320 + $0xc] sm:%s312] %v327
                  %v329 = vld [vmem:[%s319 + $0x20] sm:%s312]
                  %330 = vst [vmem:[%s320 + $0x10] sm:%s312] %v329
                  %v331 = vld [vmem:[%s319 + $0x28] sm:%s312]
                  %332 = vst [vmem:[%s320 + $0x14] sm:%s312] %v331
                  %v333 = vld [vmem:[%s319 + $0x30] sm:%s312]
                  %334 = vst [vmem:[%s320 + $0x18] sm:%s312] %v333
                  %v335 = vld [vmem:[%s319 + $0x38] sm:%s312]
                  %336 = vst [vmem:[%s320 + $0x1c] sm:%s312] %v335
                $region79: #{tpu_custom_call.1} parent=66 // loop_footer
                  %s318 = sadd.s32 1, %s314
                $region80: #{tpu_custom_call.1} parent=66 // loop_footer_branch
                  %313 = sbr.rel target = $region76
                $region81: #{tpu_custom_call.1} parent=66 // loop_exit
                  _
              $region67: #{tpu_custom_call.1} parent=51 // pred_fallthru
                _
            $region52: #{tpu_custom_call.1} parent=47 // pred_fallthru
              _
            // Predicated region
            $region53: #{tpu_custom_call.1} parent=47 // pred_check
              _
            $region54: #{tpu_custom_call.1} parent=47 // pred_check_branch
              %274 = sbr.rel (0) target = $region56
            $region55: #{tpu_custom_call.1} parent=47 // pred_region
              %s276 = ssub.s32 16, 1
              loop: start=0, step=1, limit=1
              $region57: #{tpu_custom_call.1} parent=55 // loop_pre_header
                _
              $region58: #{tpu_custom_call.1} parent=55 // loop_header
                %s278 = sphi 0, %s282
                %p279 = scmp.ge.s32.totalorder %s278, 1
                %s283 = sphi %s268, %s268
                %s284 = sphi %s263, %s263
              $region59: #{tpu_custom_call.1} parent=55 // loop_header_branch
                %281 = sbr.rel (%p279) target = $region63
              $region60: #{tpu_custom_call.1} parent=55 // loop_body
                %v285 = vld [vmem:[%s283] sm:%s276]
                %286 = vst [vmem:[%s284] sm:%s276] %v285
                %v287 = vld [vmem:[%s283 + $0x8] sm:%s276]
                %288 = vst [vmem:[%s284 + $0x4] sm:%s276] %v287
                %v289 = vld [vmem:[%s283 + $0x10] sm:%s276]
                %290 = vst [vmem:[%s284 + $0x8] sm:%s276] %v289
                %v291 = vld [vmem:[%s283 + $0x18] sm:%s276]
                %292 = vst [vmem:[%s284 + $0xc] sm:%s276] %v291
                %v293 = vld [vmem:[%s283 + $0x20] sm:%s276]
                %294 = vst [vmem:[%s284 + $0x10] sm:%s276] %v293
                %v295 = vld [vmem:[%s283 + $0x28] sm:%s276]
                %296 = vst [vmem:[%s284 + $0x14] sm:%s276] %v295
                %v297 = vld [vmem:[%s283 + $0x30] sm:%s276]
                %298 = vst [vmem:[%s284 + $0x18] sm:%s276] %v297
                %v299 = vld [vmem:[%s283 + $0x38] sm:%s276]
                %300 = vst [vmem:[%s284 + $0x1c] sm:%s276] %v299
              $region61: #{tpu_custom_call.1} parent=55 // loop_footer
                %s282 = sadd.s32 1, %s278
              $region62: #{tpu_custom_call.1} parent=55 // loop_footer_branch
                %277 = sbr.rel target = $region58
              $region63: #{tpu_custom_call.1} parent=55 // loop_exit
                _
            $region56: #{tpu_custom_call.1} parent=47 // pred_fallthru
              _
          $region48: #{tpu_custom_call.1} parent=43 // pred_fallthru
            _
          %337 = vnop
        $region44: #{tpu_custom_call.1} parent=39 // pred_fallthru
          _
      $region40: #{tpu_custom_call.1} parent=5 // pred_fallthru
        _
      %p338 = scmp.le.s32.totalorder 1, %s17
      %p339 = scmp.lt.s32.totalorder %s17, 5
      %p340 = pnand %p338, %p339
      %p341 = pneg %p340
      // Predicated region
      $region82: #{tpu_custom_call.1} parent=5 // pred_check
        _
      $region83: #{tpu_custom_call.1} parent=5 // pred_check_branch
        %343 = sbr.rel (%p340) target = $region85
      $region84: #{tpu_custom_call.1} parent=5 // pred_region
        %s344 = ssub.s32 %s17, 1
        %s345 = sand.u32 %s44, 1
        %s346 = sand.u32 %s44, 1
        %s347 = smul.addr %s346, 32
        %s348 = scalar_lea.vmem [#allocation3], %s347
        // Predicated region
        $region86: #{tpu_custom_call.1} parent=84 // pred_check
          %p349 = pneg %p57
        $region87: #{tpu_custom_call.1} parent=84 // pred_check_branch
          %351 = sbr.rel (%p349) target = $region89
        $region88: #{tpu_custom_call.1} parent=84 // pred_region
          _
        $region89: #{tpu_custom_call.1} parent=84 // pred_fallthru
          _
        // Predicated region
        $region90: #{tpu_custom_call.1} parent=84 // pred_check
          %p352 = pneg %p162
        $region91: #{tpu_custom_call.1} parent=84 // pred_check_branch
          %354 = sbr.rel (%p352) target = $region93
        $region92: #{tpu_custom_call.1} parent=84 // pred_region
          %356 = dma.done [#allocation5], 8192
        $region93: #{tpu_custom_call.1} parent=84 // pred_fallthru
          _
        %s357 = sand.u32 %s44, 1
        %s358 = sand.u32 %s44, 1
        %s359 = smul.addr %s358, 32
        %s360 = scalar_lea.vmem [#allocation3], %s359
        %p361 = pneg %p57
        %p362 = pneg %p54
        %p363 = pneg %p78
        %p364 = pneg %p75
        %p365 = pneg %p99
        %p366 = pneg %p96
        %p367 = pneg %p120
        %p368 = pneg %p117
        %p369 = pneg %p141
        %p370 = pneg %p138
        %p371 = pneg %p162
        %p372 = pneg %p159
        %p373 = pneg %p183
        %p374 = pneg %p180
        %p375 = pneg %p209
        %p376 = pneg %p206
        %s377 = sand.u32 %s196, 1
        %s378 = scalar_lea.sflag [#allocation6], %s377
        %s379 = sand.u32 %s196, 1
        %s380 = smul.addr %s379, 64
        %s381 = scalar_lea.vmem [#allocation7], %s380
        %s382 = smul.u32 8, %s26
        %p384 = scmp.eq.s32.totalorder %s27, 0
        // Predicated region
        $region94: #{tpu_custom_call.1} parent=84 // pred_check
          %p385 = pneg %p384
        $region95: #{tpu_custom_call.1} parent=84 // pred_check_branch
          %387 = sbr.rel (%p385) target = $region97
        $region96: #{tpu_custom_call.1} parent=84 // pred_region
          %388 = vst [vmem:[#allocation2] sm:$0xff] -inf
          %389 = vst [vmem:[#allocation2 + $0x8] sm:$0xff] -inf
          %390 = vst [vmem:[#allocation2 + $0x10] sm:$0xff] -inf
          %391 = vst [vmem:[#allocation2 + $0x18] sm:$0xff] -inf
          %392 = vst [vmem:[#allocation2 + $0x20] sm:$0xff] -inf
          %393 = vst [vmem:[#allocation2 + $0x28] sm:$0xff] -inf
          %394 = vst [vmem:[#allocation2 + $0x30] sm:$0xff] -inf
          %395 = vst [vmem:[#allocation2 + $0x38] sm:$0xff] -inf
        $region97: #{tpu_custom_call.1} parent=84 // pred_fallthru
          _
        %v396 = vld [vmem:[%s348] sm:$0x7]
        %v397 = vld [vmem:[%s348 + $0x4] sm:$0x7]
        %v398 = vld [vmem:[%s348 + $0x8] sm:$0x7]
        %v399 = vld [vmem:[%s348 + $0xc] sm:$0x7]
        %v400 = vld [vmem:[%s348 + $0x10] sm:$0x7]
        %v401 = vld [vmem:[%s348 + $0x14] sm:$0x7]
        %v402 = vld [vmem:[%s348 + $0x18] sm:$0x7]
        %v403 = vld [vmem:[%s348 + $0x1c] sm:$0x7]
        %v404 = vld [vmem:[%s1] sm:$0xff]
        %v405 = vld [vmem:[%s1 + $0x8] sm:$0xff]
        %v406 = vld [vmem:[%s1 + $0x10] sm:$0xff]
        %v407 = vld [vmem:[%s1 + $0x18] sm:$0xff]
        %v408 = vld [vmem:[%s1 + $0x20] sm:$0xff]
        %v409 = vld [vmem:[%s1 + $0x28] sm:$0xff]
        %v410 = vld [vmem:[%s1 + $0x30] sm:$0xff]
        %v411 = vld [vmem:[%s1 + $0x38] sm:$0xff]
        %v412 = vld [vmem:[%s2] sm:$0xff]
        %v413 = vld [vmem:[%s2 + $0x8] sm:$0xff]
        %v414 = vld [vmem:[%s2 + $0x10] sm:$0xff]
        %v415 = vld [vmem:[%s2 + $0x18] sm:$0xff]
        %v416 = vld [vmem:[%s2 + $0x20] sm:$0xff]
        %v417 = vld [vmem:[%s2 + $0x28] sm:$0xff]
        %v418 = vld [vmem:[%s2 + $0x30] sm:$0xff]
        %v419 = vld [vmem:[%s2 + $0x38] sm:$0xff]
        %421 = vset.pattern.permute.xlu0 0
        %422 = vperm.xlu0 %421, %v404
        %v423 = vpop.permute.xlu0 %422
        %426 = vset.pattern.permute.xlu0 0
        %427 = vperm.xlu0 %426, %v405
        %v428 = vpop.permute.xlu0 %427
        %431 = vset.pattern.permute.xlu0 0
        %432 = vperm.xlu0 %431, %v406
        %v433 = vpop.permute.xlu0 %432
        %436 = vset.pattern.permute.xlu0 0
        %437 = vperm.xlu0 %436, %v407
        %v438 = vpop.permute.xlu0 %437
        %441 = vset.pattern.permute.xlu0 0
        %442 = vperm.xlu0 %441, %v408
        %v443 = vpop.permute.xlu0 %442
        %446 = vset.pattern.permute.xlu0 0
        %447 = vperm.xlu0 %446, %v409
        %v448 = vpop.permute.xlu0 %447
        %451 = vset.pattern.permute.xlu0 0
        %452 = vperm.xlu0 %451, %v410
        %v453 = vpop.permute.xlu0 %452
        %456 = vset.pattern.permute.xlu0 0
        %457 = vperm.xlu0 %456, %v411
        %v458 = vpop.permute.xlu0 %457
        %v460 = vperm.slane %v396, 0
        %v461 = vperm.slane %v397, 0
        %v462 = vperm.slane %v398, 0
        %v463 = vperm.slane %v399, 0
        %v464 = vperm.slane %v400, 0
        %v465 = vperm.slane %v401, 0
        %v466 = vperm.slane %v402, 0
        %v467 = vperm.slane %v403, 0
        %v468 = vmul.f32 %v423, %v460
        %v469 = vmul.f32 %v423, %v461
        %v470 = vmul.f32 %v423, %v462
        %v471 = vmul.f32 %v423, %v463
        %v472 = vmul.f32 %v423, %v464
        %v473 = vmul.f32 %v423, %v465
        %v474 = vmul.f32 %v423, %v466
        %v475 = vmul.f32 %v423, %v467
        %v476 = vmul.f32 %v428, %v460
        %v477 = vmul.f32 %v428, %v461
        %v478 = vmul.f32 %v428, %v462
        %v479 = vmul.f32 %v428, %v463
        %v480 = vmul.f32 %v428, %v464
        %v481 = vmul.f32 %v428, %v465
        %v482 = vmul.f32 %v428, %v466
        %v483 = vmul.f32 %v428, %v467
        %v484 = vmul.f32 %v433, %v460
        %v485 = vmul.f32 %v433, %v461
        %v486 = vmul.f32 %v433, %v462
        %v487 = vmul.f32 %v433, %v463
        %v488 = vmul.f32 %v433, %v464
        %v489 = vmul.f32 %v433, %v465
        %v490 = vmul.f32 %v433, %v466
        %v491 = vmul.f32 %v433, %v467
        %v492 = vmul.f32 %v438, %v460
        %v493 = vmul.f32 %v438, %v461
        %v494 = vmul.f32 %v438, %v462
        %v495 = vmul.f32 %v438, %v463
        %v496 = vmul.f32 %v438, %v464
        %v497 = vmul.f32 %v438, %v465
        %v498 = vmul.f32 %v438, %v466
        %v499 = vmul.f32 %v438, %v467
        %v500 = vmul.f32 %v443, %v460
        %v501 = vmul.f32 %v443, %v461
        %v502 = vmul.f32 %v443, %v462
        %v503 = vmul.f32 %v443, %v463
        %v504 = vmul.f32 %v443, %v464
        %v505 = vmul.f32 %v443, %v465
        %v506 = vmul.f32 %v443, %v466
        %v507 = vmul.f32 %v443, %v467
        %v508 = vmul.f32 %v448, %v460
        %v509 = vmul.f32 %v448, %v461
        %v510 = vmul.f32 %v448, %v462
        %v511 = vmul.f32 %v448, %v463
        %v512 = vmul.f32 %v448, %v464
        %v513 = vmul.f32 %v448, %v465
        %v514 = vmul.f32 %v448, %v466
        %v515 = vmul.f32 %v448, %v467
        %v516 = vmul.f32 %v453, %v460
        %v517 = vmul.f32 %v453, %v461
        %v518 = vmul.f32 %v453, %v462
        %v519 = vmul.f32 %v453, %v463
        %v520 = vmul.f32 %v453, %v464
        %v521 = vmul.f32 %v453, %v465
        %v522 = vmul.f32 %v453, %v466
        %v523 = vmul.f32 %v453, %v467
        %v524 = vmul.f32 %v458, %v460
        %v525 = vmul.f32 %v458, %v461
        %v526 = vmul.f32 %v458, %v462
        %v527 = vmul.f32 %v458, %v463
        %v528 = vmul.f32 %v458, %v464
        %v529 = vmul.f32 %v458, %v465
        %v530 = vmul.f32 %v458, %v466
        %v531 = vmul.f32 %v458, %v467
        %533 = vset.pattern.permute.xlu0 0
        %534 = vperm.xlu0 %533, %v412
        %v535 = vpop.permute.xlu0 %534
        %538 = vset.pattern.permute.xlu0 0
        %539 = vperm.xlu0 %538, %v413
        %v540 = vpop.permute.xlu0 %539
        %543 = vset.pattern.permute.xlu0 0
        %544 = vperm.xlu0 %543, %v414
        %v545 = vpop.permute.xlu0 %544
        %548 = vset.pattern.permute.xlu0 0
        %549 = vperm.xlu0 %548, %v415
        %v550 = vpop.permute.xlu0 %549
        %553 = vset.pattern.permute.xlu0 0
        %554 = vperm.xlu0 %553, %v416
        %v555 = vpop.permute.xlu0 %554
        %558 = vset.pattern.permute.xlu0 0
        %559 = vperm.xlu0 %558, %v417
        %v560 = vpop.permute.xlu0 %559
        %563 = vset.pattern.permute.xlu0 0
        %564 = vperm.xlu0 %563, %v418
        %v565 = vpop.permute.xlu0 %564
        %568 = vset.pattern.permute.xlu0 0
        %569 = vperm.xlu0 %568, %v419
        %v570 = vpop.permute.xlu0 %569
        %v572 = vadd.f32 %v535, %v468
        %v573 = vadd.f32 %v535, %v469
        %v574 = vadd.f32 %v535, %v470
        %v575 = vadd.f32 %v535, %v471
        %v576 = vadd.f32 %v535, %v472
        %v577 = vadd.f32 %v535, %v473
        %v578 = vadd.f32 %v535, %v474
        %v579 = vadd.f32 %v535, %v475
        %v580 = vadd.f32 %v540, %v476
        %v581 = vadd.f32 %v540, %v477
        %v582 = vadd.f32 %v540, %v478
        %v583 = vadd.f32 %v540, %v479
        %v584 = vadd.f32 %v540, %v480
        %v585 = vadd.f32 %v540, %v481
        %v586 = vadd.f32 %v540, %v482
        %v587 = vadd.f32 %v540, %v483
        %v588 = vadd.f32 %v545, %v484
        %v589 = vadd.f32 %v545, %v485
        %v590 = vadd.f32 %v545, %v486
        %v591 = vadd.f32 %v545, %v487
        %v592 = vadd.f32 %v545, %v488
        %v593 = vadd.f32 %v545, %v489
        %v594 = vadd.f32 %v545, %v490
        %v595 = vadd.f32 %v545, %v491
        %v596 = vadd.f32 %v550, %v492
        %v597 = vadd.f32 %v550, %v493
        %v598 = vadd.f32 %v550, %v494
        %v599 = vadd.f32 %v550, %v495
        %v600 = vadd.f32 %v550, %v496
        %v601 = vadd.f32 %v550, %v497
        %v602 = vadd.f32 %v550, %v498
        %v603 = vadd.f32 %v550, %v499
        %v604 = vadd.f32 %v555, %v500
        %v605 = vadd.f32 %v555, %v501
        %v606 = vadd.f32 %v555, %v502
        %v607 = vadd.f32 %v555, %v503
        %v608 = vadd.f32 %v555, %v504
        %v609 = vadd.f32 %v555, %v505
        %v610 = vadd.f32 %v555, %v506
        %v611 = vadd.f32 %v555, %v507
        %v612 = vadd.f32 %v560, %v508
        %v613 = vadd.f32 %v560, %v509
        %v614 = vadd.f32 %v560, %v510
        %v615 = vadd.f32 %v560, %v511
        %v616 = vadd.f32 %v560, %v512
        %v617 = vadd.f32 %v560, %v513
        %v618 = vadd.f32 %v560, %v514
        %v619 = vadd.f32 %v560, %v515
        %v620 = vadd.f32 %v565, %v516
        %v621 = vadd.f32 %v565, %v517
        %v622 = vadd.f32 %v565, %v518
        %v623 = vadd.f32 %v565, %v519
        %v624 = vadd.f32 %v565, %v520
        %v625 = vadd.f32 %v565, %v521
        %v626 = vadd.f32 %v565, %v522
        %v627 = vadd.f32 %v565, %v523
        %v628 = vadd.f32 %v570, %v524
        %v629 = vadd.f32 %v570, %v525
        %v630 = vadd.f32 %v570, %v526
        %v631 = vadd.f32 %v570, %v527
        %v632 = vadd.f32 %v570, %v528
        %v633 = vadd.f32 %v570, %v529
        %v634 = vadd.f32 %v570, %v530
        %v635 = vadd.f32 %v570, %v531
        %636 = vset.pattern.permute.xlu0 1
        %637 = vperm.xlu0 %636, %v404
        %v638 = vpop.permute.xlu0 %637
        %640 = vset.pattern.permute.xlu0 1
        %641 = vperm.xlu0 %640, %v405
        %v642 = vpop.permute.xlu0 %641
        %644 = vset.pattern.permute.xlu0 1
        %645 = vperm.xlu0 %644, %v406
        %v646 = vpop.permute.xlu0 %645
        %648 = vset.pattern.permute.xlu0 1
        %649 = vperm.xlu0 %648, %v407
        %v650 = vpop.permute.xlu0 %649
        %652 = vset.pattern.permute.xlu0 1
        %653 = vperm.xlu0 %652, %v408
        %v654 = vpop.permute.xlu0 %653
        %656 = vset.pattern.permute.xlu0 1
        %657 = vperm.xlu0 %656, %v409
        %v658 = vpop.permute.xlu0 %657
        %660 = vset.pattern.permute.xlu0 1
        %661 = vperm.xlu0 %660, %v410
        %v662 = vpop.permute.xlu0 %661
        %664 = vset.pattern.permute.xlu0 1
        %665 = vperm.xlu0 %664, %v411
        %v666 = vpop.permute.xlu0 %665
        %v668 = vperm.slane %v396, 1
        %v669 = vperm.slane %v397, 1
        %v670 = vperm.slane %v398, 1
        %v671 = vperm.slane %v399, 1
        %v672 = vperm.slane %v400, 1
        %v673 = vperm.slane %v401, 1
        %v674 = vperm.slane %v402, 1
        %v675 = vperm.slane %v403, 1
        %v676 = vmul.f32 %v638, %v668
        %v677 = vmul.f32 %v638, %v669
        %v678 = vmul.f32 %v638, %v670
        %v679 = vmul.f32 %v638, %v671
        %v680 = vmul.f32 %v638, %v672
        %v681 = vmul.f32 %v638, %v673
        %v682 = vmul.f32 %v638, %v674
        %v683 = vmul.f32 %v638, %v675
        %v684 = vmul.f32 %v642, %v668
        %v685 = vmul.f32 %v642, %v669
        %v686 = vmul.f32 %v642, %v670
        %v687 = vmul.f32 %v642, %v671
        %v688 = vmul.f32 %v642, %v672
        %v689 = vmul.f32 %v642, %v673
        %v690 = vmul.f32 %v642, %v674
        %v691 = vmul.f32 %v642, %v675
        %v692 = vmul.f32 %v646, %v668
        %v693 = vmul.f32 %v646, %v669
        %v694 = vmul.f32 %v646, %v670
        %v695 = vmul.f32 %v646, %v671
        %v696 = vmul.f32 %v646, %v672
        %v697 = vmul.f32 %v646, %v673
        %v698 = vmul.f32 %v646, %v674
        %v699 = vmul.f32 %v646, %v675
        %v700 = vmul.f32 %v650, %v668
        %v701 = vmul.f32 %v650, %v669
        %v702 = vmul.f32 %v650, %v670
        %v703 = vmul.f32 %v650, %v671
        %v704 = vmul.f32 %v650, %v672
        %v705 = vmul.f32 %v650, %v673
        %v706 = vmul.f32 %v650, %v674
        %v707 = vmul.f32 %v650, %v675
        %v708 = vmul.f32 %v654, %v668
        %v709 = vmul.f32 %v654, %v669
        %v710 = vmul.f32 %v654, %v670
        %v711 = vmul.f32 %v654, %v671
        %v712 = vmul.f32 %v654, %v672
        %v713 = vmul.f32 %v654, %v673
        %v714 = vmul.f32 %v654, %v674
        %v715 = vmul.f32 %v654, %v675
        %v716 = vmul.f32 %v658, %v668
        %v717 = vmul.f32 %v658, %v669
        %v718 = vmul.f32 %v658, %v670
        %v719 = vmul.f32 %v658, %v671
        %v720 = vmul.f32 %v658, %v672
        %v721 = vmul.f32 %v658, %v673
        %v722 = vmul.f32 %v658, %v674
        %v723 = vmul.f32 %v658, %v675
        %v724 = vmul.f32 %v662, %v668
        %v725 = vmul.f32 %v662, %v669
        %v726 = vmul.f32 %v662, %v670
        %v727 = vmul.f32 %v662, %v671
        %v728 = vmul.f32 %v662, %v672
        %v729 = vmul.f32 %v662, %v673
        %v730 = vmul.f32 %v662, %v674
        %v731 = vmul.f32 %v662, %v675
        %v732 = vmul.f32 %v666, %v668
        %v733 = vmul.f32 %v666, %v669
        %v734 = vmul.f32 %v666, %v670
        %v735 = vmul.f32 %v666, %v671
        %v736 = vmul.f32 %v666, %v672
        %v737 = vmul.f32 %v666, %v673
        %v738 = vmul.f32 %v666, %v674
        %v739 = vmul.f32 %v666, %v675
        %v740 = vadd.f32 %v572, %v676
        %v741 = vadd.f32 %v573, %v677
        %v742 = vadd.f32 %v574, %v678
        %v743 = vadd.f32 %v575, %v679
        %v744 = vadd.f32 %v576, %v680
        %v745 = vadd.f32 %v577, %v681
        %v746 = vadd.f32 %v578, %v682
        %v747 = vadd.f32 %v579, %v683
        %v748 = vadd.f32 %v580, %v684
        %v749 = vadd.f32 %v581, %v685
        %v750 = vadd.f32 %v582, %v686
        %v751 = vadd.f32 %v583, %v687
        %v752 = vadd.f32 %v584, %v688
        %v753 = vadd.f32 %v585, %v689
        %v754 = vadd.f32 %v586, %v690
        %v755 = vadd.f32 %v587, %v691
        %v756 = vadd.f32 %v588, %v692
        %v757 = vadd.f32 %v589, %v693
        %v758 = vadd.f32 %v590, %v694
        %v759 = vadd.f32 %v591, %v695
        %v760 = vadd.f32 %v592, %v696
        %v761 = vadd.f32 %v593, %v697
        %v762 = vadd.f32 %v594, %v698
        %v763 = vadd.f32 %v595, %v699
        %v764 = vadd.f32 %v596, %v700
        %v765 = vadd.f32 %v597, %v701
        %v766 = vadd.f32 %v598, %v702
        %v767 = vadd.f32 %v599, %v703
        %v768 = vadd.f32 %v600, %v704
        %v769 = vadd.f32 %v601, %v705
        %v770 = vadd.f32 %v602, %v706
        %v771 = vadd.f32 %v603, %v707
        %v772 = vadd.f32 %v604, %v708
        %v773 = vadd.f32 %v605, %v709
        %v774 = vadd.f32 %v606, %v710
        %v775 = vadd.f32 %v607, %v711
        %v776 = vadd.f32 %v608, %v712
        %v777 = vadd.f32 %v609, %v713
        %v778 = vadd.f32 %v610, %v714
        %v779 = vadd.f32 %v611, %v715
        %v780 = vadd.f32 %v612, %v716
        %v781 = vadd.f32 %v613, %v717
        %v782 = vadd.f32 %v614, %v718
        %v783 = vadd.f32 %v615, %v719
        %v784 = vadd.f32 %v616, %v720
        %v785 = vadd.f32 %v617, %v721
        %v786 = vadd.f32 %v618, %v722
        %v787 = vadd.f32 %v619, %v723
        %v788 = vadd.f32 %v620, %v724
        %v789 = vadd.f32 %v621, %v725
        %v790 = vadd.f32 %v622, %v726
        %v791 = vadd.f32 %v623, %v727
        %v792 = vadd.f32 %v624, %v728
        %v793 = vadd.f32 %v625, %v729
        %v794 = vadd.f32 %v626, %v730
        %v795 = vadd.f32 %v627, %v731
        %v796 = vadd.f32 %v628, %v732
        %v797 = vadd.f32 %v629, %v733
        %v798 = vadd.f32 %v630, %v734
        %v799 = vadd.f32 %v631, %v735
        %v800 = vadd.f32 %v632, %v736
        %v801 = vadd.f32 %v633, %v737
        %v802 = vadd.f32 %v634, %v738
        %v803 = vadd.f32 %v635, %v739
        %804 = vset.pattern.permute.xlu0 2
        %805 = vperm.xlu0 %804, %v404
        %v806 = vpop.permute.xlu0 %805
        %808 = vset.pattern.permute.xlu0 2
        %809 = vperm.xlu0 %808, %v405
        %v810 = vpop.permute.xlu0 %809
        %812 = vset.pattern.permute.xlu0 2
        %813 = vperm.xlu0 %812, %v406
        %v814 = vpop.permute.xlu0 %813
        %816 = vset.pattern.permute.xlu0 2
        %817 = vperm.xlu0 %816, %v407
        %v818 = vpop.permute.xlu0 %817
        %820 = vset.pattern.permute.xlu0 2
        %821 = vperm.xlu0 %820, %v408
        %v822 = vpop.permute.xlu0 %821
        %824 = vset.pattern.permute.xlu0 2
        %825 = vperm.xlu0 %824, %v409
        %v826 = vpop.permute.xlu0 %825
        %828 = vset.pattern.permute.xlu0 2
        %829 = vperm.xlu0 %828, %v410
        %v830 = vpop.permute.xlu0 %829
        %832 = vset.pattern.permute.xlu0 2
        %833 = vperm.xlu0 %832, %v411
        %v834 = vpop.permute.xlu0 %833
        %v836 = vperm.slane %v396, 2
        %v837 = vperm.slane %v397, 2
        %v838 = vperm.slane %v398, 2
        %v839 = vperm.slane %v399, 2
        %v840 = vperm.slane %v400, 2
        %v841 = vperm.slane %v401, 2
        %v842 = vperm.slane %v402, 2
        %v843 = vperm.slane %v403, 2
        %v844 = vmul.f32 %v806, %v836
        %v845 = vmul.f32 %v806, %v837
        %v846 = vmul.f32 %v806, %v838
        %v847 = vmul.f32 %v806, %v839
        %v848 = vmul.f32 %v806, %v840
        %v849 = vmul.f32 %v806, %v841
        %v850 = vmul.f32 %v806, %v842
        %v851 = vmul.f32 %v806, %v843
        %v852 = vmul.f32 %v810, %v836
        %v853 = vmul.f32 %v810, %v837
        %v854 = vmul.f32 %v810, %v838
        %v855 = vmul.f32 %v810, %v839
        %v856 = vmul.f32 %v810, %v840
        %v857 = vmul.f32 %v810, %v841
        %v858 = vmul.f32 %v810, %v842
        %v859 = vmul.f32 %v810, %v843
        %v860 = vmul.f32 %v814, %v836
        %v861 = vmul.f32 %v814, %v837
        %v862 = vmul.f32 %v814, %v838
        %v863 = vmul.f32 %v814, %v839
        %v864 = vmul.f32 %v814, %v840
        %v865 = vmul.f32 %v814, %v841
        %v866 = vmul.f32 %v814, %v842
        %v867 = vmul.f32 %v814, %v843
        %v868 = vmul.f32 %v818, %v836
        %v869 = vmul.f32 %v818, %v837
        %v870 = vmul.f32 %v818, %v838
        %v871 = vmul.f32 %v818, %v839
        %v872 = vmul.f32 %v818, %v840
        %v873 = vmul.f32 %v818, %v841
        %v874 = vmul.f32 %v818, %v842
        %v875 = vmul.f32 %v818, %v843
        %v876 = vmul.f32 %v822, %v836
        %v877 = vmul.f32 %v822, %v837
        %v878 = vmul.f32 %v822, %v838
        %v879 = vmul.f32 %v822, %v839
        %v880 = vmul.f32 %v822, %v840
        %v881 = vmul.f32 %v822, %v841
        %v882 = vmul.f32 %v822, %v842
        %v883 = vmul.f32 %v822, %v843
        %v884 = vmul.f32 %v826, %v836
        %v885 = vmul.f32 %v826, %v837
        %v886 = vmul.f32 %v826, %v838
        %v887 = vmul.f32 %v826, %v839
        %v888 = vmul.f32 %v826, %v840
        %v889 = vmul.f32 %v826, %v841
        %v890 = vmul.f32 %v826, %v842
        %v891 = vmul.f32 %v826, %v843
        %v892 = vmul.f32 %v830, %v836
        %v893 = vmul.f32 %v830, %v837
        %v894 = vmul.f32 %v830, %v838
        %v895 = vmul.f32 %v830, %v839
        %v896 = vmul.f32 %v830, %v840
        %v897 = vmul.f32 %v830, %v841
        %v898 = vmul.f32 %v830, %v842
        %v899 = vmul.f32 %v830, %v843
        %v900 = vmul.f32 %v834, %v836
        %v901 = vmul.f32 %v834, %v837
        %v902 = vmul.f32 %v834, %v838
        %v903 = vmul.f32 %v834, %v839
        %v904 = vmul.f32 %v834, %v840
        %v905 = vmul.f32 %v834, %v841
        %v906 = vmul.f32 %v834, %v842
        %v907 = vmul.f32 %v834, %v843
        %v908 = vadd.f32 %v740, %v844
        %v909 = vadd.f32 %v741, %v845
        %v910 = vadd.f32 %v742, %v846
        %v911 = vadd.f32 %v743, %v847
        %v912 = vadd.f32 %v744, %v848
        %v913 = vadd.f32 %v745, %v849
        %v914 = vadd.f32 %v746, %v850
        %v915 = vadd.f32 %v747, %v851
        %v916 = vadd.f32 %v748, %v852
        %v917 = vadd.f32 %v749, %v853
        %v918 = vadd.f32 %v750, %v854
        %v919 = vadd.f32 %v751, %v855
        %v920 = vadd.f32 %v752, %v856
        %v921 = vadd.f32 %v753, %v857
        %v922 = vadd.f32 %v754, %v858
        %v923 = vadd.f32 %v755, %v859
        %v924 = vadd.f32 %v756, %v860
        %v925 = vadd.f32 %v757, %v861
        %v926 = vadd.f32 %v758, %v862
        %v927 = vadd.f32 %v759, %v863
        %v928 = vadd.f32 %v760, %v864
        %v929 = vadd.f32 %v761, %v865
        %v930 = vadd.f32 %v762, %v866
        %v931 = vadd.f32 %v763, %v867
        %v932 = vadd.f32 %v764, %v868
        %v933 = vadd.f32 %v765, %v869
        %v934 = vadd.f32 %v766, %v870
        %v935 = vadd.f32 %v767, %v871
        %v936 = vadd.f32 %v768, %v872
        %v937 = vadd.f32 %v769, %v873
        %v938 = vadd.f32 %v770, %v874
        %v939 = vadd.f32 %v771, %v875
        %v940 = vadd.f32 %v772, %v876
        %v941 = vadd.f32 %v773, %v877
        %v942 = vadd.f32 %v774, %v878
        %v943 = vadd.f32 %v775, %v879
        %v944 = vadd.f32 %v776, %v880
        %v945 = vadd.f32 %v777, %v881
        %v946 = vadd.f32 %v778, %v882
        %v947 = vadd.f32 %v779, %v883
        %v948 = vadd.f32 %v780, %v884
        %v949 = vadd.f32 %v781, %v885
        %v950 = vadd.f32 %v782, %v886
        %v951 = vadd.f32 %v783, %v887
        %v952 = vadd.f32 %v784, %v888
        %v953 = vadd.f32 %v785, %v889
        %v954 = vadd.f32 %v786, %v890
        %v955 = vadd.f32 %v787, %v891
        %v956 = vadd.f32 %v788, %v892
        %v957 = vadd.f32 %v789, %v893
        %v958 = vadd.f32 %v790, %v894
        %v959 = vadd.f32 %v791, %v895
        %v960 = vadd.f32 %v792, %v896
        %v961 = vadd.f32 %v793, %v897
        %v962 = vadd.f32 %v794, %v898
        %v963 = vadd.f32 %v795, %v899
        %v964 = vadd.f32 %v796, %v900
        %v965 = vadd.f32 %v797, %v901
        %v966 = vadd.f32 %v798, %v902
        %v967 = vadd.f32 %v799, %v903
        %v968 = vadd.f32 %v800, %v904
        %v969 = vadd.f32 %v801, %v905
        %v970 = vadd.f32 %v802, %v906
        %v971 = vadd.f32 %v803, %v907
        %v972 = vmax.f32 %v908, 0.0
        %v973 = vmax.f32 %v909, 0.0
        %v974 = vmax.f32 %v910, 0.0
        %v975 = vmax.f32 %v911, 0.0
        %v976 = vmax.f32 %v912, 0.0
        %v977 = vmax.f32 %v913, 0.0
        %v978 = vmax.f32 %v914, 0.0
        %v979 = vmax.f32 %v915, 0.0
        %v980 = vmax.f32 %v916, 0.0
        %v981 = vmax.f32 %v917, 0.0
        %v982 = vmax.f32 %v918, 0.0
        %v983 = vmax.f32 %v919, 0.0
        %v984 = vmax.f32 %v920, 0.0
        %v985 = vmax.f32 %v921, 0.0
        %v986 = vmax.f32 %v922, 0.0
        %v987 = vmax.f32 %v923, 0.0
        %v988 = vmax.f32 %v924, 0.0
        %v989 = vmax.f32 %v925, 0.0
        %v990 = vmax.f32 %v926, 0.0
        %v991 = vmax.f32 %v927, 0.0
        %v992 = vmax.f32 %v928, 0.0
        %v993 = vmax.f32 %v929, 0.0
        %v994 = vmax.f32 %v930, 0.0
        %v995 = vmax.f32 %v931, 0.0
        %v996 = vmax.f32 %v932, 0.0
        %v997 = vmax.f32 %v933, 0.0
        %v998 = vmax.f32 %v934, 0.0
        %v999 = vmax.f32 %v935, 0.0
        %v1000 = vmax.f32 %v936, 0.0
        %v1001 = vmax.f32 %v937, 0.0
        %v1002 = vmax.f32 %v938, 0.0
        %v1003 = vmax.f32 %v939, 0.0
        %v1004 = vmax.f32 %v940, 0.0
        %v1005 = vmax.f32 %v941, 0.0
        %v1006 = vmax.f32 %v942, 0.0
        %v1007 = vmax.f32 %v943, 0.0
        %v1008 = vmax.f32 %v944, 0.0
        %v1009 = vmax.f32 %v945, 0.0
        %v1010 = vmax.f32 %v946, 0.0
        %v1011 = vmax.f32 %v947, 0.0
        %v1012 = vmax.f32 %v948, 0.0
        %v1013 = vmax.f32 %v949, 0.0
        %v1014 = vmax.f32 %v950, 0.0
        %v1015 = vmax.f32 %v951, 0.0
        %v1016 = vmax.f32 %v952, 0.0
        %v1017 = vmax.f32 %v953, 0.0
        %v1018 = vmax.f32 %v954, 0.0
        %v1019 = vmax.f32 %v955, 0.0
        %v1020 = vmax.f32 %v956, 0.0
        %v1021 = vmax.f32 %v957, 0.0
        %v1022 = vmax.f32 %v958, 0.0
        %v1023 = vmax.f32 %v959, 0.0
        %v1024 = vmax.f32 %v960, 0.0
        %v1025 = vmax.f32 %v961, 0.0
        %v1026 = vmax.f32 %v962, 0.0
        %v1027 = vmax.f32 %v963, 0.0
        %v1028 = vmax.f32 %v964, 0.0
        %v1029 = vmax.f32 %v965, 0.0
        %v1030 = vmax.f32 %v966, 0.0
        %v1031 = vmax.f32 %v967, 0.0
        %v1032 = vmax.f32 %v968, 0.0
        %v1033 = vmax.f32 %v969, 0.0
        %v1034 = vmax.f32 %v970, 0.0
        %v1035 = vmax.f32 %v971, 0.0
        %v1036 = vpack.c.bf16 %v980, %v972
        %v1037 = vpack.c.bf16 %v981, %v973
        %v1038 = vpack.c.bf16 %v982, %v974
        %v1039 = vpack.c.bf16 %v983, %v975
        %v1040 = vpack.c.bf16 %v984, %v976
        %v1041 = vpack.c.bf16 %v985, %v977
        %v1042 = vpack.c.bf16 %v986, %v978
        %v1043 = vpack.c.bf16 %v987, %v979
        %v1044 = vpack.c.bf16 %v996, %v988
        %v1045 = vpack.c.bf16 %v997, %v989
        %v1046 = vpack.c.bf16 %v998, %v990
        %v1047 = vpack.c.bf16 %v999, %v991
        %v1048 = vpack.c.bf16 %v1000, %v992
        %v1049 = vpack.c.bf16 %v1001, %v993
        %v1050 = vpack.c.bf16 %v1002, %v994
        %v1051 = vpack.c.bf16 %v1003, %v995
        %v1052 = vpack.c.bf16 %v1012, %v1004
        %v1053 = vpack.c.bf16 %v1013, %v1005
        %v1054 = vpack.c.bf16 %v1014, %v1006
        %v1055 = vpack.c.bf16 %v1015, %v1007
        %v1056 = vpack.c.bf16 %v1016, %v1008
        %v1057 = vpack.c.bf16 %v1017, %v1009
        %v1058 = vpack.c.bf16 %v1018, %v1010
        %v1059 = vpack.c.bf16 %v1019, %v1011
        %v1060 = vpack.c.bf16 %v1028, %v1020
        %v1061 = vpack.c.bf16 %v1029, %v1021
        %v1062 = vpack.c.bf16 %v1030, %v1022
        %v1063 = vpack.c.bf16 %v1031, %v1023
        %v1064 = vpack.c.bf16 %v1032, %v1024
        %v1065 = vpack.c.bf16 %v1033, %v1025
        %v1066 = vpack.c.bf16 %v1034, %v1026
        %v1067 = vpack.c.bf16 %v1035, %v1027
        %v1068 = vld [vmem:[%s3] sm:$0xf]
        %v1069 = vld [vmem:[%s3 + $0x4] sm:$0xf]
        %v1070 = vld [vmem:[%s3 + $0x8] sm:$0xf]
        %v1071 = vld [vmem:[%s3 + $0xc] sm:$0xf]
        %v1072 = vld [vmem:[%s3 + $0x10] sm:$0xf]
        %v1073 = vld [vmem:[%s3 + $0x14] sm:$0xf]
        %v1074 = vld [vmem:[%s3 + $0x18] sm:$0xf]
        %v1075 = vld [vmem:[%s3 + $0x1c] sm:$0xf]
        %v1076 = vld [vmem:[%s3 + $0x20] sm:$0xf]
        %v1077 = vld [vmem:[%s3 + $0x24] sm:$0xf]
        %v1078 = vld [vmem:[%s3 + $0x28] sm:$0xf]
        %v1079 = vld [vmem:[%s3 + $0x2c] sm:$0xf]
        %v1080 = vld [vmem:[%s3 + $0x30] sm:$0xf]
        %v1081 = vld [vmem:[%s3 + $0x34] sm:$0xf]
        %v1082 = vld [vmem:[%s3 + $0x38] sm:$0xf]
        %v1083 = vld [vmem:[%s3 + $0x3c] sm:$0xf]
        %v1084 = vld [vmem:[%s4] sm:$0xff]
        %v1085 = vld [vmem:[%s4 + $0x8] sm:$0xff]
        %v1086 = vld [vmem:[%s4 + $0x10] sm:$0xff]
        %v1087 = vld [vmem:[%s4 + $0x18] sm:$0xff]
        %v1088 = vld [vmem:[%s4 + $0x20] sm:$0xff]
        %v1089 = vld [vmem:[%s4 + $0x28] sm:$0xff]
        %v1090 = vld [vmem:[%s4 + $0x30] sm:$0xff]
        %v1091 = vld [vmem:[%s4 + $0x38] sm:$0xff]
        %v1092 = vld [vmem:[%s4 + $0x40] sm:$0xff]
        %v1093 = vld [vmem:[%s4 + $0x48] sm:$0xff]
        %v1094 = vld [vmem:[%s4 + $0x50] sm:$0xff]
        %v1095 = vld [vmem:[%s4 + $0x58] sm:$0xff]
        %v1096 = vld [vmem:[%s4 + $0x60] sm:$0xff]
        %v1097 = vld [vmem:[%s4 + $0x68] sm:$0xff]
        %v1098 = vld [vmem:[%s4 + $0x70] sm:$0xff]
        %v1099 = vld [vmem:[%s4 + $0x78] sm:$0xff]
        %1101 = vset.pattern.permute.xlu0 0
        %1102 = vperm.xlu0 %1101, %v1084
        %v1103 = vpop.permute.xlu0 %1102
        %1106 = vset.pattern.permute.xlu0 0
        %1107 = vperm.xlu0 %1106, %v1085
        %v1108 = vpop.permute.xlu0 %1107
        %1111 = vset.pattern.permute.xlu0 0
        %1112 = vperm.xlu0 %1111, %v1086
        %v1113 = vpop.permute.xlu0 %1112
        %1116 = vset.pattern.permute.xlu0 0
        %1117 = vperm.xlu0 %1116, %v1087
        %v1118 = vpop.permute.xlu0 %1117
        %1121 = vset.pattern.permute.xlu0 0
        %1122 = vperm.xlu0 %1121, %v1088
        %v1123 = vpop.permute.xlu0 %1122
        %1126 = vset.pattern.permute.xlu0 0
        %1127 = vperm.xlu0 %1126, %v1089
        %v1128 = vpop.permute.xlu0 %1127
        %1131 = vset.pattern.permute.xlu0 0
        %1132 = vperm.xlu0 %1131, %v1090
        %v1133 = vpop.permute.xlu0 %1132
        %1136 = vset.pattern.permute.xlu0 0
        %1137 = vperm.xlu0 %1136, %v1091
        %v1138 = vpop.permute.xlu0 %1137
        %1141 = vset.pattern.permute.xlu0 0
        %1142 = vperm.xlu0 %1141, %v1092
        %v1143 = vpop.permute.xlu0 %1142
        %1146 = vset.pattern.permute.xlu0 0
        %1147 = vperm.xlu0 %1146, %v1093
        %v1148 = vpop.permute.xlu0 %1147
        %1151 = vset.pattern.permute.xlu0 0
        %1152 = vperm.xlu0 %1151, %v1094
        %v1153 = vpop.permute.xlu0 %1152
        %1156 = vset.pattern.permute.xlu0 0
        %1157 = vperm.xlu0 %1156, %v1095
        %v1158 = vpop.permute.xlu0 %1157
        %1161 = vset.pattern.permute.xlu0 0
        %1162 = vperm.xlu0 %1161, %v1096
        %v1163 = vpop.permute.xlu0 %1162
        %1166 = vset.pattern.permute.xlu0 0
        %1167 = vperm.xlu0 %1166, %v1097
        %v1168 = vpop.permute.xlu0 %1167
        %1171 = vset.pattern.permute.xlu0 0
        %1172 = vperm.xlu0 %1171, %v1098
        %v1173 = vpop.permute.xlu0 %1172
        %1176 = vset.pattern.permute.xlu0 0
        %1177 = vperm.xlu0 %1176, %v1099
        %v1178 = vpop.permute.xlu0 %1177
        %v1196 = vunpack.c.l.b16 %v1068
        %v1197 = vunpack.c.l.b16 %v1069
        %v1198 = vunpack.c.l.b16 %v1070
        %v1199 = vunpack.c.l.b16 %v1071
        %v1200 = vunpack.c.l.b16 %v1072
        %v1201 = vunpack.c.l.b16 %v1073
        %v1202 = vunpack.c.l.b16 %v1074
        %v1203 = vunpack.c.l.b16 %v1075
        %v1204 = vunpack.c.l.b16 %v1076
        %v1205 = vunpack.c.l.b16 %v1077
        %v1206 = vunpack.c.l.b16 %v1078
        %v1207 = vunpack.c.l.b16 %v1079
        %v1208 = vunpack.c.l.b16 %v1080
        %v1209 = vunpack.c.l.b16 %v1081
        %v1210 = vunpack.c.l.b16 %v1082
        %v1211 = vunpack.c.l.b16 %v1083
        %v1212 = vpack.c.b16 %v1197, %v1196
        %v1213 = vpack.c.b16 %v1199, %v1198
        %v1214 = vpack.c.b16 %v1201, %v1200
        %v1215 = vpack.c.b16 %v1203, %v1202
        %v1216 = vpack.c.b16 %v1205, %v1204
        %v1217 = vpack.c.b16 %v1207, %v1206
        %v1218 = vpack.c.b16 %v1209, %v1208
        %v1219 = vpack.c.b16 %v1211, %v1210
        %vm1220 = vcmask 523264
        %v1222 = vsel %vm1220, %v1212, 0
        %v1225 = vsel %vm1220, %v1213, 0
        %v1228 = vsel %vm1220, %v1214, 0
        %v1231 = vsel %vm1220, %v1215, 0
        %v1234 = vsel %vm1220, %v1216, 0
        %v1237 = vsel %vm1220, %v1217, 0
        %v1240 = vsel %vm1220, %v1218, 0
        %v1243 = vsel %vm1220, %v1219, 0
        %1245 = vmatpush.bf16.msra.mxu0 0
        %1246 = vmatpush.bf16.msra.mxu0 0
        %1247 = vmatpush.bf16.msra.mxu0 0
        %1248 = vmatpush.bf16.msra.mxu0 0
        %1249 = vmatpush.bf16.msra.mxu0 %v1060
        %1250 = vmatpush.bf16.msra.mxu0 %v1052
        %1251 = vmatpush.bf16.msra.mxu0 %v1044
        %1252 = vmatpush.bf16.msra.mxu0 %v1036
        %1253 = vmatmul.bf16.gmra.mxu0 %v1222
        %v1254 = vpop.f32.mrf.mxu0
        %v1255 = vadd.f32 %v1103, %v1254
        %v1256 = vpop.f32.mrf.mxu0
        %v1257 = vadd.f32 %v1108, %v1256
        %1258 = vmatmul.bf16.gmra.mxu0 %v1225
        %v1259 = vpop.f32.mrf.mxu0
        %v1260 = vadd.f32 %v1113, %v1259
        %v1261 = vpop.f32.mrf.mxu0
        %v1262 = vadd.f32 %v1118, %v1261
        %1263 = vmatmul.bf16.gmra.mxu0 %v1228
        %v1264 = vpop.f32.mrf.mxu0
        %v1265 = vadd.f32 %v1123, %v1264
        %v1266 = vpop.f32.mrf.mxu0
        %v1267 = vadd.f32 %v1128, %v1266
        %1268 = vmatmul.bf16.gmra.mxu0 %v1231
        %v1269 = vpop.f32.mrf.mxu0
        %v1270 = vadd.f32 %v1133, %v1269
        %v1271 = vpop.f32.mrf.mxu0
        %v1272 = vadd.f32 %v1138, %v1271
        %1273 = vmatmul.bf16.gmra.mxu0 %v1234
        %v1274 = vpop.f32.mrf.mxu0
        %v1275 = vadd.f32 %v1143, %v1274
        %v1276 = vpop.f32.mrf.mxu0
        %v1277 = vadd.f32 %v1148, %v1276
        %1278 = vmatmul.bf16.gmra.mxu0 %v1237
        %v1279 = vpop.f32.mrf.mxu0
        %v1280 = vadd.f32 %v1153, %v1279
        %v1281 = vpop.f32.mrf.mxu0
        %v1282 = vadd.f32 %v1158, %v1281
        %1283 = vmatmul.bf16.gmra.mxu0 %v1240
        %v1284 = vpop.f32.mrf.mxu0
        %v1285 = vadd.f32 %v1163, %v1284
        %v1286 = vpop.f32.mrf.mxu0
        %v1287 = vadd.f32 %v1168, %v1286
        %1288 = vmatmul.bf16.gmra.mxu0 %v1243
        %v1289 = vpop.f32.mrf.mxu0
        %v1290 = vadd.f32 %v1173, %v1289
        %v1291 = vpop.f32.mrf.mxu0
        %v1292 = vadd.f32 %v1178, %v1291
        %1293 = vdwg.mxu0
        %1294 = vmatpush.bf16.msra.mxu0 0
        %1295 = vmatpush.bf16.msra.mxu0 0
        %1296 = vmatpush.bf16.msra.mxu0 0
        %1297 = vmatpush.bf16.msra.mxu0 0
        %1298 = vmatpush.bf16.msra.mxu0 %v1061
        %1299 = vmatpush.bf16.msra.mxu0 %v1053
        %1300 = vmatpush.bf16.msra.mxu0 %v1045
        %1301 = vmatpush.bf16.msra.mxu0 %v1037
        %1302 = vmatmul.bf16.gmra.mxu0 %v1222
        %v1303 = vpop.f32.mrf.mxu0
        %v1304 = vadd.f32 %v1103, %v1303
        %v1305 = vpop.f32.mrf.mxu0
        %v1306 = vadd.f32 %v1108, %v1305
        %1307 = vmatmul.bf16.gmra.mxu0 %v1225
        %v1308 = vpop.f32.mrf.mxu0
        %v1309 = vadd.f32 %v1113, %v1308
        %v1310 = vpop.f32.mrf.mxu0
        %v1311 = vadd.f32 %v1118, %v1310
        %1312 = vmatmul.bf16.gmra.mxu0 %v1228
        %v1313 = vpop.f32.mrf.mxu0
        %v1314 = vadd.f32 %v1123, %v1313
        %v1315 = vpop.f32.mrf.mxu0
        %v1316 = vadd.f32 %v1128, %v1315
        %1317 = vmatmul.bf16.gmra.mxu0 %v1231
        %v1318 = vpop.f32.mrf.mxu0
        %v1319 = vadd.f32 %v1133, %v1318
        %v1320 = vpop.f32.mrf.mxu0
        %v1321 = vadd.f32 %v1138, %v1320
        %1322 = vmatmul.bf16.gmra.mxu0 %v1234
        %v1323 = vpop.f32.mrf.mxu0
        %v1324 = vadd.f32 %v1143, %v1323
        %v1325 = vpop.f32.mrf.mxu0
        %v1326 = vadd.f32 %v1148, %v1325
        %1327 = vmatmul.bf16.gmra.mxu0 %v1237
        %v1328 = vpop.f32.mrf.mxu0
        %v1329 = vadd.f32 %v1153, %v1328
        %v1330 = vpop.f32.mrf.mxu0
        %v1331 = vadd.f32 %v1158, %v1330
        %1332 = vmatmul.bf16.gmra.mxu0 %v1240
        %v1333 = vpop.f32.mrf.mxu0
        %v1334 = vadd.f32 %v1163, %v1333
        %v1335 = vpop.f32.mrf.mxu0
        %v1336 = vadd.f32 %v1168, %v1335
        %1337 = vmatmul.bf16.gmra.mxu0 %v1243
        %v1338 = vpop.f32.mrf.mxu0
        %v1339 = vadd.f32 %v1173, %v1338
        %v1340 = vpop.f32.mrf.mxu0
        %v1341 = vadd.f32 %v1178, %v1340
        %1342 = vdwg.mxu0
        %1343 = vmatpush.bf16.msra.mxu0 0
        %1344 = vmatpush.bf16.msra.mxu0 0
        %1345 = vmatpush.bf16.msra.mxu0 0
        %1346 = vmatpush.bf16.msra.mxu0 0
        %1347 = vmatpush.bf16.msra.mxu0 %v1062
        %1348 = vmatpush.bf16.msra.mxu0 %v1054
        %1349 = vmatpush.bf16.msra.mxu0 %v1046
        %1350 = vmatpush.bf16.msra.mxu0 %v1038
        %1351 = vmatmul.bf16.gmra.mxu0 %v1222
        %v1352 = vpop.f32.mrf.mxu0
        %v1353 = vadd.f32 %v1103, %v1352
        %v1354 = vpop.f32.mrf.mxu0
        %v1355 = vadd.f32 %v1108, %v1354
        %1356 = vmatmul.bf16.gmra.mxu0 %v1225
        %v1357 = vpop.f32.mrf.mxu0
        %v1358 = vadd.f32 %v1113, %v1357
        %v1359 = vpop.f32.mrf.mxu0
        %v1360 = vadd.f32 %v1118, %v1359
        %1361 = vmatmul.bf16.gmra.mxu0 %v1228
        %v1362 = vpop.f32.mrf.mxu0
        %v1363 = vadd.f32 %v1123, %v1362
        %v1364 = vpop.f32.mrf.mxu0
        %v1365 = vadd.f32 %v1128, %v1364
        %1366 = vmatmul.bf16.gmra.mxu0 %v1231
        %v1367 = vpop.f32.mrf.mxu0
        %v1368 = vadd.f32 %v1133, %v1367
        %v1369 = vpop.f32.mrf.mxu0
        %v1370 = vadd.f32 %v1138, %v1369
        %1371 = vmatmul.bf16.gmra.mxu0 %v1234
        %v1372 = vpop.f32.mrf.mxu0
        %v1373 = vadd.f32 %v1143, %v1372
        %v1374 = vpop.f32.mrf.mxu0
        %v1375 = vadd.f32 %v1148, %v1374
        %1376 = vmatmul.bf16.gmra.mxu0 %v1237
        %v1377 = vpop.f32.mrf.mxu0
        %v1378 = vadd.f32 %v1153, %v1377
        %v1379 = vpop.f32.mrf.mxu0
        %v1380 = vadd.f32 %v1158, %v1379
        %1381 = vmatmul.bf16.gmra.mxu0 %v1240
        %v1382 = vpop.f32.mrf.mxu0
        %v1383 = vadd.f32 %v1163, %v1382
        %v1384 = vpop.f32.mrf.mxu0
        %v1385 = vadd.f32 %v1168, %v1384
        %1386 = vmatmul.bf16.gmra.mxu0 %v1243
        %v1387 = vpop.f32.mrf.mxu0
        %v1388 = vadd.f32 %v1173, %v1387
        %v1389 = vpop.f32.mrf.mxu0
        %v1390 = vadd.f32 %v1178, %v1389
        %1391 = vdwg.mxu0
        %1392 = vmatpush.bf16.msra.mxu0 0
        %1393 = vmatpush.bf16.msra.mxu0 0
        %1394 = vmatpush.bf16.msra.mxu0 0
        %1395 = vmatpush.bf16.msra.mxu0 0
        %1396 = vmatpush.bf16.msra.mxu0 %v1063
        %1397 = vmatpush.bf16.msra.mxu0 %v1055
        %1398 = vmatpush.bf16.msra.mxu0 %v1047
        %1399 = vmatpush.bf16.msra.mxu0 %v1039
        %1400 = vmatmul.bf16.gmra.mxu0 %v1222
        %v1401 = vpop.f32.mrf.mxu0
        %v1402 = vadd.f32 %v1103, %v1401
        %v1403 = vpop.f32.mrf.mxu0
        %v1404 = vadd.f32 %v1108, %v1403
        %1405 = vmatmul.bf16.gmra.mxu0 %v1225
        %v1406 = vpop.f32.mrf.mxu0
        %v1407 = vadd.f32 %v1113, %v1406
        %v1408 = vpop.f32.mrf.mxu0
        %v1409 = vadd.f32 %v1118, %v1408
        %1410 = vmatmul.bf16.gmra.mxu0 %v1228
        %v1411 = vpop.f32.mrf.mxu0
        %v1412 = vadd.f32 %v1123, %v1411
        %v1413 = vpop.f32.mrf.mxu0
        %v1414 = vadd.f32 %v1128, %v1413
        %1415 = vmatmul.bf16.gmra.mxu0 %v1231
        %v1416 = vpop.f32.mrf.mxu0
        %v1417 = vadd.f32 %v1133, %v1416
        %v1418 = vpop.f32.mrf.mxu0
        %v1419 = vadd.f32 %v1138, %v1418
        %1420 = vmatmul.bf16.gmra.mxu0 %v1234
        %v1421 = vpop.f32.mrf.mxu0
        %v1422 = vadd.f32 %v1143, %v1421
        %v1423 = vpop.f32.mrf.mxu0
        %v1424 = vadd.f32 %v1148, %v1423
        %1425 = vmatmul.bf16.gmra.mxu0 %v1237
        %v1426 = vpop.f32.mrf.mxu0
        %v1427 = vadd.f32 %v1153, %v1426
        %v1428 = vpop.f32.mrf.mxu0
        %v1429 = vadd.f32 %v1158, %v1428
        %1430 = vmatmul.bf16.gmra.mxu0 %v1240
        %v1431 = vpop.f32.mrf.mxu0
        %v1432 = vadd.f32 %v1163, %v1431
        %v1433 = vpop.f32.mrf.mxu0
        %v1434 = vadd.f32 %v1168, %v1433
        %1435 = vmatmul.bf16.gmra.mxu0 %v1243
        %v1436 = vpop.f32.mrf.mxu0
        %v1437 = vadd.f32 %v1173, %v1436
        %v1438 = vpop.f32.mrf.mxu0
        %v1439 = vadd.f32 %v1178, %v1438
        %1440 = vdwg.mxu0
        %1441 = vmatpush.bf16.msra.mxu0 0
        %1442 = vmatpush.bf16.msra.mxu0 0
        %1443 = vmatpush.bf16.msra.mxu0 0
        %1444 = vmatpush.bf16.msra.mxu0 0
        %1445 = vmatpush.bf16.msra.mxu0 %v1064
        %1446 = vmatpush.bf16.msra.mxu0 %v1056
        %1447 = vmatpush.bf16.msra.mxu0 %v1048
        %1448 = vmatpush.bf16.msra.mxu0 %v1040
        %1449 = vmatmul.bf16.gmra.mxu0 %v1222
        %v1450 = vpop.f32.mrf.mxu0
        %v1451 = vadd.f32 %v1103, %v1450
        %v1452 = vpop.f32.mrf.mxu0
        %v1453 = vadd.f32 %v1108, %v1452
        %1454 = vmatmul.bf16.gmra.mxu0 %v1225
        %v1455 = vpop.f32.mrf.mxu0
        %v1456 = vadd.f32 %v1113, %v1455
        %v1457 = vpop.f32.mrf.mxu0
        %v1458 = vadd.f32 %v1118, %v1457
        %1459 = vmatmul.bf16.gmra.mxu0 %v1228
        %v1460 = vpop.f32.mrf.mxu0
        %v1461 = vadd.f32 %v1123, %v1460
        %v1462 = vpop.f32.mrf.mxu0
        %v1463 = vadd.f32 %v1128, %v1462
        %1464 = vmatmul.bf16.gmra.mxu0 %v1231
        %v1465 = vpop.f32.mrf.mxu0
        %v1466 = vadd.f32 %v1133, %v1465
        %v1467 = vpop.f32.mrf.mxu0
        %v1468 = vadd.f32 %v1138, %v1467
        %1469 = vmatmul.bf16.gmra.mxu0 %v1234
        %v1470 = vpop.f32.mrf.mxu0
        %v1471 = vadd.f32 %v1143, %v1470
        %v1472 = vpop.f32.mrf.mxu0
        %v1473 = vadd.f32 %v1148, %v1472
        %1474 = vmatmul.bf16.gmra.mxu0 %v1237
        %v1475 = vpop.f32.mrf.mxu0
        %v1476 = vadd.f32 %v1153, %v1475
        %v1477 = vpop.f32.mrf.mxu0
        %v1478 = vadd.f32 %v1158, %v1477
        %1479 = vmatmul.bf16.gmra.mxu0 %v1240
        %v1480 = vpop.f32.mrf.mxu0
        %v1481 = vadd.f32 %v1163, %v1480
        %v1482 = vpop.f32.mrf.mxu0
        %v1483 = vadd.f32 %v1168, %v1482
        %1484 = vmatmul.bf16.gmra.mxu0 %v1243
        %v1485 = vpop.f32.mrf.mxu0
        %v1486 = vadd.f32 %v1173, %v1485
        %v1487 = vpop.f32.mrf.mxu0
        %v1488 = vadd.f32 %v1178, %v1487
        %1489 = vdwg.mxu0
        %1490 = vmatpush.bf16.msra.mxu0 0
        %1491 = vmatpush.bf16.msra.mxu0 0
        %1492 = vmatpush.bf16.msra.mxu0 0
        %1493 = vmatpush.bf16.msra.mxu0 0
        %1494 = vmatpush.bf16.msra.mxu0 %v1065
        %1495 = vmatpush.bf16.msra.mxu0 %v1057
        %1496 = vmatpush.bf16.msra.mxu0 %v1049
        %1497 = vmatpush.bf16.msra.mxu0 %v1041
        %1498 = vmatmul.bf16.gmra.mxu0 %v1222
        %v1499 = vpop.f32.mrf.mxu0
        %v1500 = vadd.f32 %v1103, %v1499
        %v1501 = vpop.f32.mrf.mxu0
        %v1502 = vadd.f32 %v1108, %v1501
        %1503 = vmatmul.bf16.gmra.mxu0 %v1225
        %v1504 = vpop.f32.mrf.mxu0
        %v1505 = vadd.f32 %v1113, %v1504
        %v1506 = vpop.f32.mrf.mxu0
        %v1507 = vadd.f32 %v1118, %v1506
        %1508 = vmatmul.bf16.gmra.mxu0 %v1228
        %v1509 = vpop.f32.mrf.mxu0
        %v1510 = vadd.f32 %v1123, %v1509
        %v1511 = vpop.f32.mrf.mxu0
        %v1512 = vadd.f32 %v1128, %v1511
        %1513 = vmatmul.bf16.gmra.mxu0 %v1231
        %v1514 = vpop.f32.mrf.mxu0
        %v1515 = vadd.f32 %v1133, %v1514
        %v1516 = vpop.f32.mrf.mxu0
        %v1517 = vadd.f32 %v1138, %v1516
        %1518 = vmatmul.bf16.gmra.mxu0 %v1234
        %v1519 = vpop.f32.mrf.mxu0
        %v1520 = vadd.f32 %v1143, %v1519
        %v1521 = vpop.f32.mrf.mxu0
        %v1522 = vadd.f32 %v1148, %v1521
        %1523 = vmatmul.bf16.gmra.mxu0 %v1237
        %v1524 = vpop.f32.mrf.mxu0
        %v1525 = vadd.f32 %v1153, %v1524
        %v1526 = vpop.f32.mrf.mxu0
        %v1527 = vadd.f32 %v1158, %v1526
        %1528 = vmatmul.bf16.gmra.mxu0 %v1240
        %v1529 = vpop.f32.mrf.mxu0
        %v1530 = vadd.f32 %v1163, %v1529
        %v1531 = vpop.f32.mrf.mxu0
        %v1532 = vadd.f32 %v1168, %v1531
        %1533 = vmatmul.bf16.gmra.mxu0 %v1243
        %v1534 = vpop.f32.mrf.mxu0
        %v1535 = vadd.f32 %v1173, %v1534
        %v1536 = vpop.f32.mrf.mxu0
        %v1537 = vadd.f32 %v1178, %v1536
        %1538 = vdwg.mxu0
        %1539 = vmatpush.bf16.msra.mxu0 0
        %1540 = vmatpush.bf16.msra.mxu0 0
        %1541 = vmatpush.bf16.msra.mxu0 0
        %1542 = vmatpush.bf16.msra.mxu0 0
        %1543 = vmatpush.bf16.msra.mxu0 %v1066
        %1544 = vmatpush.bf16.msra.mxu0 %v1058
        %1545 = vmatpush.bf16.msra.mxu0 %v1050
        %1546 = vmatpush.bf16.msra.mxu0 %v1042
        %1547 = vmatmul.bf16.gmra.mxu0 %v1222
        %v1548 = vpop.f32.mrf.mxu0
        %v1549 = vadd.f32 %v1103, %v1548
        %v1550 = vpop.f32.mrf.mxu0
        %v1551 = vadd.f32 %v1108, %v1550
        %1552 = vmatmul.bf16.gmra.mxu0 %v1225
        %v1553 = vpop.f32.mrf.mxu0
        %v1554 = vadd.f32 %v1113, %v1553
        %v1555 = vpop.f32.mrf.mxu0
        %v1556 = vadd.f32 %v1118, %v1555
        %1557 = vmatmul.bf16.gmra.mxu0 %v1228
        %v1558 = vpop.f32.mrf.mxu0
        %v1559 = vadd.f32 %v1123, %v1558
        %v1560 = vpop.f32.mrf.mxu0
        %v1561 = vadd.f32 %v1128, %v1560
        %1562 = vmatmul.bf16.gmra.mxu0 %v1231
        %v1563 = vpop.f32.mrf.mxu0
        %v1564 = vadd.f32 %v1133, %v1563
        %v1565 = vpop.f32.mrf.mxu0
        %v1566 = vadd.f32 %v1138, %v1565
        %1567 = vmatmul.bf16.gmra.mxu0 %v1234
        %v1568 = vpop.f32.mrf.mxu0
        %v1569 = vadd.f32 %v1143, %v1568
        %v1570 = vpop.f32.mrf.mxu0
        %v1571 = vadd.f32 %v1148, %v1570
        %1572 = vmatmul.bf16.gmra.mxu0 %v1237
        %v1573 = vpop.f32.mrf.mxu0
        %v1574 = vadd.f32 %v1153, %v1573
        %v1575 = vpop.f32.mrf.mxu0
        %v1576 = vadd.f32 %v1158, %v1575
        %1577 = vmatmul.bf16.gmra.mxu0 %v1240
        %v1578 = vpop.f32.mrf.mxu0
        %v1579 = vadd.f32 %v1163, %v1578
        %v1580 = vpop.f32.mrf.mxu0
        %v1581 = vadd.f32 %v1168, %v1580
        %1582 = vmatmul.bf16.gmra.mxu0 %v1243
        %v1583 = vpop.f32.mrf.mxu0
        %v1584 = vadd.f32 %v1173, %v1583
        %v1585 = vpop.f32.mrf.mxu0
        %v1586 = vadd.f32 %v1178, %v1585
        %1587 = vdwg.mxu0
        %1588 = vmatpush.bf16.msra.mxu0 0
        %1589 = vmatpush.bf16.msra.mxu0 0
        %1590 = vmatpush.bf16.msra.mxu0 0
        %1591 = vmatpush.bf16.msra.mxu0 0
        %1592 = vmatpush.bf16.msra.mxu0 %v1067
        %1593 = vmatpush.bf16.msra.mxu0 %v1059
        %1594 = vmatpush.bf16.msra.mxu0 %v1051
        %1595 = vmatpush.bf16.msra.mxu0 %v1043
        %1596 = vmatmul.bf16.gmra.mxu0 %v1222
        %v1597 = vpop.f32.mrf.mxu0
        %v1598 = vadd.f32 %v1103, %v1597
        %v1599 = vpop.f32.mrf.mxu0
        %v1600 = vadd.f32 %v1108, %v1599
        %1601 = vmatmul.bf16.gmra.mxu0 %v1225
        %v1602 = vpop.f32.mrf.mxu0
        %v1603 = vadd.f32 %v1113, %v1602
        %v1604 = vpop.f32.mrf.mxu0
        %v1605 = vadd.f32 %v1118, %v1604
        %1606 = vmatmul.bf16.gmra.mxu0 %v1228
        %v1607 = vpop.f32.mrf.mxu0
        %v1608 = vadd.f32 %v1123, %v1607
        %v1609 = vpop.f32.mrf.mxu0
        %v1610 = vadd.f32 %v1128, %v1609
        %1611 = vmatmul.bf16.gmra.mxu0 %v1231
        %v1612 = vpop.f32.mrf.mxu0
        %v1613 = vadd.f32 %v1133, %v1612
        %v1614 = vpop.f32.mrf.mxu0
        %v1615 = vadd.f32 %v1138, %v1614
        %1616 = vmatmul.bf16.gmra.mxu0 %v1234
        %v1617 = vpop.f32.mrf.mxu0
        %v1618 = vadd.f32 %v1143, %v1617
        %v1619 = vpop.f32.mrf.mxu0
        %v1620 = vadd.f32 %v1148, %v1619
        %1621 = vmatmul.bf16.gmra.mxu0 %v1237
        %v1622 = vpop.f32.mrf.mxu0
        %v1623 = vadd.f32 %v1153, %v1622
        %v1624 = vpop.f32.mrf.mxu0
        %v1625 = vadd.f32 %v1158, %v1624
        %1626 = vmatmul.bf16.gmra.mxu0 %v1240
        %v1627 = vpop.f32.mrf.mxu0
        %v1628 = vadd.f32 %v1163, %v1627
        %v1629 = vpop.f32.mrf.mxu0
        %v1630 = vadd.f32 %v1168, %v1629
        %1631 = vmatmul.bf16.gmra.mxu0 %v1243
        %v1632 = vpop.f32.mrf.mxu0
        %v1633 = vadd.f32 %v1173, %v1632
        %v1634 = vpop.f32.mrf.mxu0
        %v1635 = vadd.f32 %v1178, %v1634
        %1636 = vdwg.mxu0
        %v1637 = vmax.f32 %v1255, 0.0
        %v1638 = vmax.f32 %v1304, 0.0
        %v1639 = vmax.f32 %v1353, 0.0
        %v1640 = vmax.f32 %v1402, 0.0
        %v1641 = vmax.f32 %v1451, 0.0
        %v1642 = vmax.f32 %v1500, 0.0
        %v1643 = vmax.f32 %v1549, 0.0
        %v1644 = vmax.f32 %v1598, 0.0
        %v1645 = vmax.f32 %v1257, 0.0
        %v1646 = vmax.f32 %v1306, 0.0
        %v1647 = vmax.f32 %v1355, 0.0
        %v1648 = vmax.f32 %v1404, 0.0
        %v1649 = vmax.f32 %v1453, 0.0
        %v1650 = vmax.f32 %v1502, 0.0
        %v1651 = vmax.f32 %v1551, 0.0
        %v1652 = vmax.f32 %v1600, 0.0
        %v1653 = vmax.f32 %v1260, 0.0
        %v1654 = vmax.f32 %v1309, 0.0
        %v1655 = vmax.f32 %v1358, 0.0
        %v1656 = vmax.f32 %v1407, 0.0
        %v1657 = vmax.f32 %v1456, 0.0
        %v1658 = vmax.f32 %v1505, 0.0
        %v1659 = vmax.f32 %v1554, 0.0
        %v1660 = vmax.f32 %v1603, 0.0
        %v1661 = vmax.f32 %v1262, 0.0
        %v1662 = vmax.f32 %v1311, 0.0
        %v1663 = vmax.f32 %v1360, 0.0
        %v1664 = vmax.f32 %v1409, 0.0
        %v1665 = vmax.f32 %v1458, 0.0
        %v1666 = vmax.f32 %v1507, 0.0
        %v1667 = vmax.f32 %v1556, 0.0
        %v1668 = vmax.f32 %v1605, 0.0
        %v1669 = vmax.f32 %v1265, 0.0
        %v1670 = vmax.f32 %v1314, 0.0
        %v1671 = vmax.f32 %v1363, 0.0
        %v1672 = vmax.f32 %v1412, 0.0
        %v1673 = vmax.f32 %v1461, 0.0
        %v1674 = vmax.f32 %v1510, 0.0
        %v1675 = vmax.f32 %v1559, 0.0
        %v1676 = vmax.f32 %v1608, 0.0
        %v1677 = vmax.f32 %v1267, 0.0
        %v1678 = vmax.f32 %v1316, 0.0
        %v1679 = vmax.f32 %v1365, 0.0
        %v1680 = vmax.f32 %v1414, 0.0
        %v1681 = vmax.f32 %v1463, 0.0
        %v1682 = vmax.f32 %v1512, 0.0
        %v1683 = vmax.f32 %v1561, 0.0
        %v1684 = vmax.f32 %v1610, 0.0
        %v1685 = vmax.f32 %v1270, 0.0
        %v1686 = vmax.f32 %v1319, 0.0
        %v1687 = vmax.f32 %v1368, 0.0
        %v1688 = vmax.f32 %v1417, 0.0
        %v1689 = vmax.f32 %v1466, 0.0
        %v1690 = vmax.f32 %v1515, 0.0
        %v1691 = vmax.f32 %v1564, 0.0
        %v1692 = vmax.f32 %v1613, 0.0
        %v1693 = vmax.f32 %v1272, 0.0
        %v1694 = vmax.f32 %v1321, 0.0
        %v1695 = vmax.f32 %v1370, 0.0
        %v1696 = vmax.f32 %v1419, 0.0
        %v1697 = vmax.f32 %v1468, 0.0
        %v1698 = vmax.f32 %v1517, 0.0
        %v1699 = vmax.f32 %v1566, 0.0
        %v1700 = vmax.f32 %v1615, 0.0
        %v1701 = vmax.f32 %v1275, 0.0
        %v1702 = vmax.f32 %v1324, 0.0
        %v1703 = vmax.f32 %v1373, 0.0
        %v1704 = vmax.f32 %v1422, 0.0
        %v1705 = vmax.f32 %v1471, 0.0
        %v1706 = vmax.f32 %v1520, 0.0
        %v1707 = vmax.f32 %v1569, 0.0
        %v1708 = vmax.f32 %v1618, 0.0
        %v1709 = vmax.f32 %v1277, 0.0
        %v1710 = vmax.f32 %v1326, 0.0
        %v1711 = vmax.f32 %v1375, 0.0
        %v1712 = vmax.f32 %v1424, 0.0
        %v1713 = vmax.f32 %v1473, 0.0
        %v1714 = vmax.f32 %v1522, 0.0
        %v1715 = vmax.f32 %v1571, 0.0
        %v1716 = vmax.f32 %v1620, 0.0
        %v1717 = vmax.f32 %v1280, 0.0
        %v1718 = vmax.f32 %v1329, 0.0
        %v1719 = vmax.f32 %v1378, 0.0
        %v1720 = vmax.f32 %v1427, 0.0
        %v1721 = vmax.f32 %v1476, 0.0
        %v1722 = vmax.f32 %v1525, 0.0
        %v1723 = vmax.f32 %v1574, 0.0
        %v1724 = vmax.f32 %v1623, 0.0
        %v1725 = vmax.f32 %v1282, 0.0
        %v1726 = vmax.f32 %v1331, 0.0
        %v1727 = vmax.f32 %v1380, 0.0
        %v1728 = vmax.f32 %v1429, 0.0
        %v1729 = vmax.f32 %v1478, 0.0
        %v1730 = vmax.f32 %v1527, 0.0
        %v1731 = vmax.f32 %v1576, 0.0
        %v1732 = vmax.f32 %v1625, 0.0
        %v1733 = vmax.f32 %v1285, 0.0
        %v1734 = vmax.f32 %v1334, 0.0
        %v1735 = vmax.f32 %v1383, 0.0
        %v1736 = vmax.f32 %v1432, 0.0
        %v1737 = vmax.f32 %v1481, 0.0
        %v1738 = vmax.f32 %v1530, 0.0
        %v1739 = vmax.f32 %v1579, 0.0
        %v1740 = vmax.f32 %v1628, 0.0
        %v1741 = vmax.f32 %v1287, 0.0
        %v1742 = vmax.f32 %v1336, 0.0
        %v1743 = vmax.f32 %v1385, 0.0
        %v1744 = vmax.f32 %v1434, 0.0
        %v1745 = vmax.f32 %v1483, 0.0
        %v1746 = vmax.f32 %v1532, 0.0
        %v1747 = vmax.f32 %v1581, 0.0
        %v1748 = vmax.f32 %v1630, 0.0
        %v1749 = vmax.f32 %v1290, 0.0
        %v1750 = vmax.f32 %v1339, 0.0
        %v1751 = vmax.f32 %v1388, 0.0
        %v1752 = vmax.f32 %v1437, 0.0
        %v1753 = vmax.f32 %v1486, 0.0
        %v1754 = vmax.f32 %v1535, 0.0
        %v1755 = vmax.f32 %v1584, 0.0
        %v1756 = vmax.f32 %v1633, 0.0
        %v1757 = vmax.f32 %v1292, 0.0
        %v1758 = vmax.f32 %v1341, 0.0
        %v1759 = vmax.f32 %v1390, 0.0
        %v1760 = vmax.f32 %v1439, 0.0
        %v1761 = vmax.f32 %v1488, 0.0
        %v1762 = vmax.f32 %v1537, 0.0
        %v1763 = vmax.f32 %v1586, 0.0
        %v1764 = vmax.f32 %v1635, 0.0
        %1765 = vxpose.xlu0.b32.start [1/16] %v1637, 128
        %1766 = vxpose.xlu0.b32.cont [2/16] %v1645, 128
        %1767 = vxpose.xlu0.b32.cont [3/16] %v1653, 128
        %1768 = vxpose.xlu0.b32.cont [4/16] %v1661, 128
        %1769 = vxpose.xlu0.b32.cont [5/16] %v1669, 128
        %1770 = vxpose.xlu0.b32.cont [6/16] %v1677, 128
        %1771 = vxpose.xlu0.b32.cont [7/16] %v1685, 128
        %1772 = vxpose.xlu0.b32.cont [8/16] %v1693, 128
        %1773 = vxpose.xlu0.b32.cont [9/16] %v1701, 128
        %1774 = vxpose.xlu0.b32.cont [10/16] %v1709, 128
        %1775 = vxpose.xlu0.b32.cont [11/16] %v1717, 128
        %1776 = vxpose.xlu0.b32.cont [12/16] %v1725, 128
        %1777 = vxpose.xlu0.b32.cont [13/16] %v1733, 128
        %1778 = vxpose.xlu0.b32.cont [14/16] %v1741, 128
        %1779 = vxpose.xlu0.b32.cont [15/16] %v1749, 128
        %1780 = vxpose.xlu0.b32.end [16/16] %v1757, 128
        %v1781 = vpop.trf.xlu0
        %v1782 = vpop.trf.xlu0
        %v1783 = vpop.trf.xlu0
        %v1784 = vpop.trf.xlu0
        %v1785 = vpop.trf.xlu0
        %v1786 = vpop.trf.xlu0
        %v1787 = vpop.trf.xlu0
        %v1788 = vpop.trf.xlu0
        %v1789 = vpop.trf.xlu0
        %v1790 = vpop.trf.xlu0
        %v1791 = vpop.trf.xlu0
        %v1792 = vpop.trf.xlu0
        %v1793 = vpop.trf.xlu0
        %v1794 = vpop.trf.xlu0
        %v1795 = vpop.trf.xlu0
        %v1796 = vpop.trf.xlu0
        %1797 = vxpose.xlu0.b32.start [1/16] %v1638, 128
        %1798 = vxpose.xlu0.b32.cont [2/16] %v1646, 128
        %1799 = vxpose.xlu0.b32.cont [3/16] %v1654, 128
        %1800 = vxpose.xlu0.b32.cont [4/16] %v1662, 128
        %1801 = vxpose.xlu0.b32.cont [5/16] %v1670, 128
        %1802 = vxpose.xlu0.b32.cont [6/16] %v1678, 128
        %1803 = vxpose.xlu0.b32.cont [7/16] %v1686, 128
        %1804 = vxpose.xlu0.b32.cont [8/16] %v1694, 128
        %1805 = vxpose.xlu0.b32.cont [9/16] %v1702, 128
        %1806 = vxpose.xlu0.b32.cont [10/16] %v1710, 128
        %1807 = vxpose.xlu0.b32.cont [11/16] %v1718, 128
        %1808 = vxpose.xlu0.b32.cont [12/16] %v1726, 128
        %1809 = vxpose.xlu0.b32.cont [13/16] %v1734, 128
        %1810 = vxpose.xlu0.b32.cont [14/16] %v1742, 128
        %1811 = vxpose.xlu0.b32.cont [15/16] %v1750, 128
        %1812 = vxpose.xlu0.b32.end [16/16] %v1758, 128
        %v1813 = vpop.trf.xlu0
        %v1814 = vpop.trf.xlu0
        %v1815 = vpop.trf.xlu0
        %v1816 = vpop.trf.xlu0
        %v1817 = vpop.trf.xlu0
        %v1818 = vpop.trf.xlu0
        %v1819 = vpop.trf.xlu0
        %v1820 = vpop.trf.xlu0
        %v1821 = vpop.trf.xlu0
        %v1822 = vpop.trf.xlu0
        %v1823 = vpop.trf.xlu0
        %v1824 = vpop.trf.xlu0
        %v1825 = vpop.trf.xlu0
        %v1826 = vpop.trf.xlu0
        %v1827 = vpop.trf.xlu0
        %v1828 = vpop.trf.xlu0
        %1829 = vxpose.xlu0.b32.start [1/16] %v1639, 128
        %1830 = vxpose.xlu0.b32.cont [2/16] %v1647, 128
        %1831 = vxpose.xlu0.b32.cont [3/16] %v1655, 128
        %1832 = vxpose.xlu0.b32.cont [4/16] %v1663, 128
        %1833 = vxpose.xlu0.b32.cont [5/16] %v1671, 128
        %1834 = vxpose.xlu0.b32.cont [6/16] %v1679, 128
        %1835 = vxpose.xlu0.b32.cont [7/16] %v1687, 128
        %1836 = vxpose.xlu0.b32.cont [8/16] %v1695, 128
        %1837 = vxpose.xlu0.b32.cont [9/16] %v1703, 128
        %1838 = vxpose.xlu0.b32.cont [10/16] %v1711, 128
        %1839 = vxpose.xlu0.b32.cont [11/16] %v1719, 128
        %1840 = vxpose.xlu0.b32.cont [12/16] %v1727, 128
        %1841 = vxpose.xlu0.b32.cont [13/16] %v1735, 128
        %1842 = vxpose.xlu0.b32.cont [14/16] %v1743, 128
        %1843 = vxpose.xlu0.b32.cont [15/16] %v1751, 128
        %1844 = vxpose.xlu0.b32.end [16/16] %v1759, 128
        %v1845 = vpop.trf.xlu0
        %v1846 = vpop.trf.xlu0
        %v1847 = vpop.trf.xlu0
        %v1848 = vpop.trf.xlu0
        %v1849 = vpop.trf.xlu0
        %v1850 = vpop.trf.xlu0
        %v1851 = vpop.trf.xlu0
        %v1852 = vpop.trf.xlu0
        %v1853 = vpop.trf.xlu0
        %v1854 = vpop.trf.xlu0
        %v1855 = vpop.trf.xlu0
        %v1856 = vpop.trf.xlu0
        %v1857 = vpop.trf.xlu0
        %v1858 = vpop.trf.xlu0
        %v1859 = vpop.trf.xlu0
        %v1860 = vpop.trf.xlu0
        %1861 = vxpose.xlu0.b32.start [1/16] %v1640, 128
        %1862 = vxpose.xlu0.b32.cont [2/16] %v1648, 128
        %1863 = vxpose.xlu0.b32.cont [3/16] %v1656, 128
        %1864 = vxpose.xlu0.b32.cont [4/16] %v1664, 128
        %1865 = vxpose.xlu0.b32.cont [5/16] %v1672, 128
        %1866 = vxpose.xlu0.b32.cont [6/16] %v1680, 128
        %1867 = vxpose.xlu0.b32.cont [7/16] %v1688, 128
        %1868 = vxpose.xlu0.b32.cont [8/16] %v1696, 128
        %1869 = vxpose.xlu0.b32.cont [9/16] %v1704, 128
        %1870 = vxpose.xlu0.b32.cont [10/16] %v1712, 128
        %1871 = vxpose.xlu0.b32.cont [11/16] %v1720, 128
        %1872 = vxpose.xlu0.b32.cont [12/16] %v1728, 128
        %1873 = vxpose.xlu0.b32.cont [13/16] %v1736, 128
        %1874 = vxpose.xlu0.b32.cont [14/16] %v1744, 128
        %1875 = vxpose.xlu0.b32.cont [15/16] %v1752, 128
        %1876 = vxpose.xlu0.b32.end [16/16] %v1760, 128
        %v1877 = vpop.trf.xlu0
        %v1878 = vpop.trf.xlu0
        %v1879 = vpop.trf.xlu0
        %v1880 = vpop.trf.xlu0
        %v1881 = vpop.trf.xlu0
        %v1882 = vpop.trf.xlu0
        %v1883 = vpop.trf.xlu0
        %v1884 = vpop.trf.xlu0
        %v1885 = vpop.trf.xlu0
        %v1886 = vpop.trf.xlu0
        %v1887 = vpop.trf.xlu0
        %v1888 = vpop.trf.xlu0
        %v1889 = vpop.trf.xlu0
        %v1890 = vpop.trf.xlu0
        %v1891 = vpop.trf.xlu0
        %v1892 = vpop.trf.xlu0
        %1893 = vxpose.xlu0.b32.start [1/16] %v1641, 128
        %1894 = vxpose.xlu0.b32.cont [2/16] %v1649, 128
        %1895 = vxpose.xlu0.b32.cont [3/16] %v1657, 128
        %1896 = vxpose.xlu0.b32.cont [4/16] %v1665, 128
        %1897 = vxpose.xlu0.b32.cont [5/16] %v1673, 128
        %1898 = vxpose.xlu0.b32.cont [6/16] %v1681, 128
        %1899 = vxpose.xlu0.b32.cont [7/16] %v1689, 128
        %1900 = vxpose.xlu0.b32.cont [8/16] %v1697, 128
        %1901 = vxpose.xlu0.b32.cont [9/16] %v1705, 128
        %1902 = vxpose.xlu0.b32.cont [10/16] %v1713, 128
        %1903 = vxpose.xlu0.b32.cont [11/16] %v1721, 128
        %1904 = vxpose.xlu0.b32.cont [12/16] %v1729, 128
        %1905 = vxpose.xlu0.b32.cont [13/16] %v1737, 128
        %1906 = vxpose.xlu0.b32.cont [14/16] %v1745, 128
        %1907 = vxpose.xlu0.b32.cont [15/16] %v1753, 128
        %1908 = vxpose.xlu0.b32.end [16/16] %v1761, 128
        %v1909 = vpop.trf.xlu0
        %v1910 = vpop.trf.xlu0
        %v1911 = vpop.trf.xlu0
        %v1912 = vpop.trf.xlu0
        %v1913 = vpop.trf.xlu0
        %v1914 = vpop.trf.xlu0
        %v1915 = vpop.trf.xlu0
        %v1916 = vpop.trf.xlu0
        %v1917 = vpop.trf.xlu0
        %v1918 = vpop.trf.xlu0
        %v1919 = vpop.trf.xlu0
        %v1920 = vpop.trf.xlu0
        %v1921 = vpop.trf.xlu0
        %v1922 = vpop.trf.xlu0
        %v1923 = vpop.trf.xlu0
        %v1924 = vpop.trf.xlu0
        %1925 = vxpose.xlu0.b32.start [1/16] %v1642, 128
        %1926 = vxpose.xlu0.b32.cont [2/16] %v1650, 128
        %1927 = vxpose.xlu0.b32.cont [3/16] %v1658, 128
        %1928 = vxpose.xlu0.b32.cont [4/16] %v1666, 128
        %1929 = vxpose.xlu0.b32.cont [5/16] %v1674, 128
        %1930 = vxpose.xlu0.b32.cont [6/16] %v1682, 128
        %1931 = vxpose.xlu0.b32.cont [7/16] %v1690, 128
        %1932 = vxpose.xlu0.b32.cont [8/16] %v1698, 128
        %1933 = vxpose.xlu0.b32.cont [9/16] %v1706, 128
        %1934 = vxpose.xlu0.b32.cont [10/16] %v1714, 128
        %1935 = vxpose.xlu0.b32.cont [11/16] %v1722, 128
        %1936 = vxpose.xlu0.b32.cont [12/16] %v1730, 128
        %1937 = vxpose.xlu0.b32.cont [13/16] %v1738, 128
        %1938 = vxpose.xlu0.b32.cont [14/16] %v1746, 128
        %1939 = vxpose.xlu0.b32.cont [15/16] %v1754, 128
        %1940 = vxpose.xlu0.b32.end [16/16] %v1762, 128
        %v1941 = vpop.trf.xlu0
        %v1942 = vpop.trf.xlu0
        %v1943 = vpop.trf.xlu0
        %v1944 = vpop.trf.xlu0
        %v1945 = vpop.trf.xlu0
        %v1946 = vpop.trf.xlu0
        %v1947 = vpop.trf.xlu0
        %v1948 = vpop.trf.xlu0
        %v1949 = vpop.trf.xlu0
        %v1950 = vpop.trf.xlu0
        %v1951 = vpop.trf.xlu0
        %v1952 = vpop.trf.xlu0
        %v1953 = vpop.trf.xlu0
        %v1954 = vpop.trf.xlu0
        %v1955 = vpop.trf.xlu0
        %v1956 = vpop.trf.xlu0
        %1957 = vxpose.xlu0.b32.start [1/16] %v1643, 128
        %1958 = vxpose.xlu0.b32.cont [2/16] %v1651, 128
        %1959 = vxpose.xlu0.b32.cont [3/16] %v1659, 128
        %1960 = vxpose.xlu0.b32.cont [4/16] %v1667, 128
        %1961 = vxpose.xlu0.b32.cont [5/16] %v1675, 128
        %1962 = vxpose.xlu0.b32.cont [6/16] %v1683, 128
        %1963 = vxpose.xlu0.b32.cont [7/16] %v1691, 128
        %1964 = vxpose.xlu0.b32.cont [8/16] %v1699, 128
        %1965 = vxpose.xlu0.b32.cont [9/16] %v1707, 128
        %1966 = vxpose.xlu0.b32.cont [10/16] %v1715, 128
        %1967 = vxpose.xlu0.b32.cont [11/16] %v1723, 128
        %1968 = vxpose.xlu0.b32.cont [12/16] %v1731, 128
        %1969 = vxpose.xlu0.b32.cont [13/16] %v1739, 128
        %1970 = vxpose.xlu0.b32.cont [14/16] %v1747, 128
        %1971 = vxpose.xlu0.b32.cont [15/16] %v1755, 128
        %1972 = vxpose.xlu0.b32.end [16/16] %v1763, 128
        %v1973 = vpop.trf.xlu0
        %v1974 = vpop.trf.xlu0
        %v1975 = vpop.trf.xlu0
        %v1976 = vpop.trf.xlu0
        %v1977 = vpop.trf.xlu0
        %v1978 = vpop.trf.xlu0
        %v1979 = vpop.trf.xlu0
        %v1980 = vpop.trf.xlu0
        %v1981 = vpop.trf.xlu0
        %v1982 = vpop.trf.xlu0
        %v1983 = vpop.trf.xlu0
        %v1984 = vpop.trf.xlu0
        %v1985 = vpop.trf.xlu0
        %v1986 = vpop.trf.xlu0
        %v1987 = vpop.trf.xlu0
        %v1988 = vpop.trf.xlu0
        %1989 = vxpose.xlu0.b32.start [1/16] %v1644, 128
        %1990 = vxpose.xlu0.b32.cont [2/16] %v1652, 128
        %1991 = vxpose.xlu0.b32.cont [3/16] %v1660, 128
        %1992 = vxpose.xlu0.b32.cont [4/16] %v1668, 128
        %1993 = vxpose.xlu0.b32.cont [5/16] %v1676, 128
        %1994 = vxpose.xlu0.b32.cont [6/16] %v1684, 128
        %1995 = vxpose.xlu0.b32.cont [7/16] %v1692, 128
        %1996 = vxpose.xlu0.b32.cont [8/16] %v1700, 128
        %1997 = vxpose.xlu0.b32.cont [9/16] %v1708, 128
        %1998 = vxpose.xlu0.b32.cont [10/16] %v1716, 128
        %1999 = vxpose.xlu0.b32.cont [11/16] %v1724, 128
        %2000 = vxpose.xlu0.b32.cont [12/16] %v1732, 128
        %2001 = vxpose.xlu0.b32.cont [13/16] %v1740, 128
        %2002 = vxpose.xlu0.b32.cont [14/16] %v1748, 128
        %2003 = vxpose.xlu0.b32.cont [15/16] %v1756, 128
        %2004 = vxpose.xlu0.b32.end [16/16] %v1764, 128
        %v2005 = vpop.trf.xlu0
        %v2006 = vpop.trf.xlu0
        %v2007 = vpop.trf.xlu0
        %v2008 = vpop.trf.xlu0
        %v2009 = vpop.trf.xlu0
        %v2010 = vpop.trf.xlu0
        %v2011 = vpop.trf.xlu0
        %v2012 = vpop.trf.xlu0
        %v2013 = vpop.trf.xlu0
        %v2014 = vpop.trf.xlu0
        %v2015 = vpop.trf.xlu0
        %v2016 = vpop.trf.xlu0
        %v2017 = vpop.trf.xlu0
        %v2018 = vpop.trf.xlu0
        %v2019 = vpop.trf.xlu0
        %v2020 = vpop.trf.xlu0
        %v2021 = vpack.c.bf16 %v1782, %v1781
        %v2022 = vpack.c.bf16 %v1784, %v1783
        %v2023 = vpack.c.bf16 %v1786, %v1785
        %v2024 = vpack.c.bf16 %v1788, %v1787
        %v2025 = vpack.c.bf16 %v1790, %v1789
        %v2026 = vpack.c.bf16 %v1792, %v1791
        %v2027 = vpack.c.bf16 %v1794, %v1793
        %v2028 = vpack.c.bf16 %v1796, %v1795
        %v2029 = vpack.c.bf16 %v1814, %v1813
        %v2030 = vpack.c.bf16 %v1816, %v1815
        %v2031 = vpack.c.bf16 %v1818, %v1817
        %v2032 = vpack.c.bf16 %v1820, %v1819
        %v2033 = vpack.c.bf16 %v1822, %v1821
        %v2034 = vpack.c.bf16 %v1824, %v1823
        %v2035 = vpack.c.bf16 %v1826, %v1825
        %v2036 = vpack.c.bf16 %v1828, %v1827
        %v2037 = vpack.c.bf16 %v1846, %v1845
        %v2038 = vpack.c.bf16 %v1848, %v1847
        %v2039 = vpack.c.bf16 %v1850, %v1849
        %v2040 = vpack.c.bf16 %v1852, %v1851
        %v2041 = vpack.c.bf16 %v1854, %v1853
        %v2042 = vpack.c.bf16 %v1856, %v1855
        %v2043 = vpack.c.bf16 %v1858, %v1857
        %v2044 = vpack.c.bf16 %v1860, %v1859
        %v2045 = vpack.c.bf16 %v1878, %v1877
        %v2046 = vpack.c.bf16 %v1880, %v1879
        %v2047 = vpack.c.bf16 %v1882, %v1881
        %v2048 = vpack.c.bf16 %v1884, %v1883
        %v2049 = vpack.c.bf16 %v1886, %v1885
        %v2050 = vpack.c.bf16 %v1888, %v1887
        %v2051 = vpack.c.bf16 %v1890, %v1889
        %v2052 = vpack.c.bf16 %v1892, %v1891
        %v2053 = vpack.c.bf16 %v1910, %v1909
        %v2054 = vpack.c.bf16 %v1912, %v1911
        %v2055 = vpack.c.bf16 %v1914, %v1913
        %v2056 = vpack.c.bf16 %v1916, %v1915
        %v2057 = vpack.c.bf16 %v1918, %v1917
        %v2058 = vpack.c.bf16 %v1920, %v1919
        %v2059 = vpack.c.bf16 %v1922, %v1921
        %v2060 = vpack.c.bf16 %v1924, %v1923
        %v2061 = vpack.c.bf16 %v1942, %v1941
        %v2062 = vpack.c.bf16 %v1944, %v1943
        %v2063 = vpack.c.bf16 %v1946, %v1945
        %v2064 = vpack.c.bf16 %v1948, %v1947
        %v2065 = vpack.c.bf16 %v1950, %v1949
        %v2066 = vpack.c.bf16 %v1952, %v1951
        %v2067 = vpack.c.bf16 %v1954, %v1953
        %v2068 = vpack.c.bf16 %v1956, %v1955
        %v2069 = vpack.c.bf16 %v1974, %v1973
        %v2070 = vpack.c.bf16 %v1976, %v1975
        %v2071 = vpack.c.bf16 %v1978, %v1977
        %v2072 = vpack.c.bf16 %v1980, %v1979
        %v2073 = vpack.c.bf16 %v1982, %v1981
        %v2074 = vpack.c.bf16 %v1984, %v1983
        %v2075 = vpack.c.bf16 %v1986, %v1985
        %v2076 = vpack.c.bf16 %v1988, %v1987
        %v2077 = vpack.c.bf16 %v2006, %v2005
        %v2078 = vpack.c.bf16 %v2008, %v2007
        %v2079 = vpack.c.bf16 %v2010, %v2009
        %v2080 = vpack.c.bf16 %v2012, %v2011
        %v2081 = vpack.c.bf16 %v2014, %v2013
        %v2082 = vpack.c.bf16 %v2016, %v2015
        %v2083 = vpack.c.bf16 %v2018, %v2017
        %v2084 = vpack.c.bf16 %v2020, %v2019
        %v2085 = vld [vmem:[#allocation4] sm:$0xff]
        %v2086 = vld [vmem:[#allocation4 + $0x8] sm:$0xff]
        %v2087 = vld [vmem:[#allocation4 + $0x10] sm:$0xff]
        %v2088 = vld [vmem:[#allocation4 + $0x18] sm:$0xff]
        %v2089 = vld [vmem:[#allocation4 + $0x20] sm:$0xff]
        %v2090 = vld [vmem:[#allocation4 + $0x28] sm:$0xff]
        %v2091 = vld [vmem:[#allocation4 + $0x30] sm:$0xff]
        %v2092 = vld [vmem:[#allocation4 + $0x38] sm:$0xff]
        %v2093 = vld [vmem:[#allocation4 + $0x40] sm:$0xff]
        %v2094 = vld [vmem:[#allocation4 + $0x48] sm:$0xff]
        %v2095 = vld [vmem:[#allocation4 + $0x50] sm:$0xff]
        %v2096 = vld [vmem:[#allocation4 + $0x58] sm:$0xff]
        %v2097 = vld [vmem:[#allocation4 + $0x60] sm:$0xff]
        %v2098 = vld [vmem:[#allocation4 + $0x68] sm:$0xff]
        %v2099 = vld [vmem:[#allocation4 + $0x70] sm:$0xff]
        %v2100 = vld [vmem:[#allocation4 + $0x78] sm:$0xff]
        %v2101 = vld [vmem:[#allocation4 + $0x80] sm:$0xff]
        %v2102 = vld [vmem:[#allocation4 + $0x88] sm:$0xff]
        %v2103 = vld [vmem:[#allocation4 + $0x90] sm:$0xff]
        %v2104 = vld [vmem:[#allocation4 + $0x98] sm:$0xff]
        %v2105 = vld [vmem:[#allocation4 + $0xa0] sm:$0xff]
        %v2106 = vld [vmem:[#allocation4 + $0xa8] sm:$0xff]
        %v2107 = vld [vmem:[#allocation4 + $0xb0] sm:$0xff]
        %v2108 = vld [vmem:[#allocation4 + $0xb8] sm:$0xff]
        %v2109 = vld [vmem:[#allocation4 + $0xc0] sm:$0xff]
        %v2110 = vld [vmem:[#allocation4 + $0xc8] sm:$0xff]
        %v2111 = vld [vmem:[#allocation4 + $0xd0] sm:$0xff]
        %v2112 = vld [vmem:[#allocation4 + $0xd8] sm:$0xff]
        %v2113 = vld [vmem:[#allocation4 + $0xe0] sm:$0xff]
        %v2114 = vld [vmem:[#allocation4 + $0xe8] sm:$0xff]
        %v2115 = vld [vmem:[#allocation4 + $0xf0] sm:$0xff]
        %v2116 = vld [vmem:[#allocation4 + $0xf8] sm:$0xff]
        %v2117 = vld [vmem:[#allocation4 + $0x100] sm:$0xff]
        %v2118 = vld [vmem:[#allocation4 + $0x108] sm:$0xff]
        %v2119 = vld [vmem:[#allocation4 + $0x110] sm:$0xff]
        %v2120 = vld [vmem:[#allocation4 + $0x118] sm:$0xff]
        %v2121 = vld [vmem:[#allocation4 + $0x120] sm:$0xff]
        %v2122 = vld [vmem:[#allocation4 + $0x128] sm:$0xff]
        %v2123 = vld [vmem:[#allocation4 + $0x130] sm:$0xff]
        %v2124 = vld [vmem:[#allocation4 + $0x138] sm:$0xff]
        %v2125 = vld [vmem:[#allocation4 + $0x140] sm:$0xff]
        %v2126 = vld [vmem:[#allocation4 + $0x148] sm:$0xff]
        %v2127 = vld [vmem:[#allocation4 + $0x150] sm:$0xff]
        %v2128 = vld [vmem:[#allocation4 + $0x158] sm:$0xff]
        %v2129 = vld [vmem:[#allocation4 + $0x160] sm:$0xff]
        %v2130 = vld [vmem:[#allocation4 + $0x168] sm:$0xff]
        %v2131 = vld [vmem:[#allocation4 + $0x170] sm:$0xff]
        %v2132 = vld [vmem:[#allocation4 + $0x178] sm:$0xff]
        %v2133 = vld [vmem:[#allocation4 + $0x180] sm:$0xff]
        %v2134 = vld [vmem:[#allocation4 + $0x188] sm:$0xff]
        %v2135 = vld [vmem:[#allocation4 + $0x190] sm:$0xff]
        %v2136 = vld [vmem:[#allocation4 + $0x198] sm:$0xff]
        %v2137 = vld [vmem:[#allocation4 + $0x1a0] sm:$0xff]
        %v2138 = vld [vmem:[#allocation4 + $0x1a8] sm:$0xff]
        %v2139 = vld [vmem:[#allocation4 + $0x1b0] sm:$0xff]
        %v2140 = vld [vmem:[#allocation4 + $0x1b8] sm:$0xff]
        %v2141 = vld [vmem:[#allocation4 + $0x1c0] sm:$0xff]
        %v2142 = vld [vmem:[#allocation4 + $0x1c8] sm:$0xff]
        %v2143 = vld [vmem:[#allocation4 + $0x1d0] sm:$0xff]
        %v2144 = vld [vmem:[#allocation4 + $0x1d8] sm:$0xff]
        %v2145 = vld [vmem:[#allocation4 + $0x1e0] sm:$0xff]
        %v2146 = vld [vmem:[#allocation4 + $0x1e8] sm:$0xff]
        %v2147 = vld [vmem:[#allocation4 + $0x1f0] sm:$0xff]
        %v2148 = vld [vmem:[#allocation4 + $0x1f8] sm:$0xff]
        %v2213 = vunpack.c.l.b16 %v2085
        %v2214 = vunpack.c.h.b16 %v2085
        %v2215 = vunpack.c.l.b16 %v2086
        %v2216 = vunpack.c.h.b16 %v2086
        %v2217 = vunpack.c.l.b16 %v2087
        %v2218 = vunpack.c.h.b16 %v2087
        %v2219 = vunpack.c.l.b16 %v2088
        %v2220 = vunpack.c.h.b16 %v2088
        %v2221 = vunpack.c.l.b16 %v2089
        %v2222 = vunpack.c.h.b16 %v2089
        %v2223 = vunpack.c.l.b16 %v2090
        %v2224 = vunpack.c.h.b16 %v2090
        %v2225 = vunpack.c.l.b16 %v2091
        %v2226 = vunpack.c.h.b16 %v2091
        %v2227 = vunpack.c.l.b16 %v2092
        %v2228 = vunpack.c.h.b16 %v2092
        %v2229 = vunpack.c.l.b16 %v2093
        %v2230 = vunpack.c.h.b16 %v2093
        %v2231 = vunpack.c.l.b16 %v2094
        %v2232 = vunpack.c.h.b16 %v2094
        %v2233 = vunpack.c.l.b16 %v2095
        %v2234 = vunpack.c.h.b16 %v2095
        %v2235 = vunpack.c.l.b16 %v2096
        %v2236 = vunpack.c.h.b16 %v2096
        %v2237 = vunpack.c.l.b16 %v2097
        %v2238 = vunpack.c.h.b16 %v2097
        %v2239 = vunpack.c.l.b16 %v2098
        %v2240 = vunpack.c.h.b16 %v2098
        %v2241 = vunpack.c.l.b16 %v2099
        %v2242 = vunpack.c.h.b16 %v2099
        %v2243 = vunpack.c.l.b16 %v2100
        %v2244 = vunpack.c.h.b16 %v2100
        %v2245 = vunpack.c.l.b16 %v2101
        %v2246 = vunpack.c.h.b16 %v2101
        %v2247 = vunpack.c.l.b16 %v2102
        %v2248 = vunpack.c.h.b16 %v2102
        %v2249 = vunpack.c.l.b16 %v2103
        %v2250 = vunpack.c.h.b16 %v2103
        %v2251 = vunpack.c.l.b16 %v2104
        %v2252 = vunpack.c.h.b16 %v2104
        %v2253 = vunpack.c.l.b16 %v2105
        %v2254 = vunpack.c.h.b16 %v2105
        %v2255 = vunpack.c.l.b16 %v2106
        %v2256 = vunpack.c.h.b16 %v2106
        %v2257 = vunpack.c.l.b16 %v2107
        %v2258 = vunpack.c.h.b16 %v2107
        %v2259 = vunpack.c.l.b16 %v2108
        %v2260 = vunpack.c.h.b16 %v2108
        %v2261 = vunpack.c.l.b16 %v2109
        %v2262 = vunpack.c.h.b16 %v2109
        %v2263 = vunpack.c.l.b16 %v2110
        %v2264 = vunpack.c.h.b16 %v2110
        %v2265 = vunpack.c.l.b16 %v2111
        %v2266 = vunpack.c.h.b16 %v2111
        %v2267 = vunpack.c.l.b16 %v2112
        %v2268 = vunpack.c.h.b16 %v2112
        %v2269 = vunpack.c.l.b16 %v2113
        %v2270 = vunpack.c.h.b16 %v2113
        %v2271 = vunpack.c.l.b16 %v2114
        %v2272 = vunpack.c.h.b16 %v2114
        %v2273 = vunpack.c.l.b16 %v2115
        %v2274 = vunpack.c.h.b16 %v2115
        %v2275 = vunpack.c.l.b16 %v2116
        %v2276 = vunpack.c.h.b16 %v2116
        %v2277 = vunpack.c.l.b16 %v2117
        %v2278 = vunpack.c.h.b16 %v2117
        %v2279 = vunpack.c.l.b16 %v2118
        %v2280 = vunpack.c.h.b16 %v2118
        %v2281 = vunpack.c.l.b16 %v2119
        %v2282 = vunpack.c.h.b16 %v2119
        %v2283 = vunpack.c.l.b16 %v2120
        %v2284 = vunpack.c.h.b16 %v2120
        %v2285 = vunpack.c.l.b16 %v2121
        %v2286 = vunpack.c.h.b16 %v2121
        %v2287 = vunpack.c.l.b16 %v2122
        %v2288 = vunpack.c.h.b16 %v2122
        %v2289 = vunpack.c.l.b16 %v2123
        %v2290 = vunpack.c.h.b16 %v2123
        %v2291 = vunpack.c.l.b16 %v2124
        %v2292 = vunpack.c.h.b16 %v2124
        %v2293 = vunpack.c.l.b16 %v2125
        %v2294 = vunpack.c.h.b16 %v2125
        %v2295 = vunpack.c.l.b16 %v2126
        %v2296 = vunpack.c.h.b16 %v2126
        %v2297 = vunpack.c.l.b16 %v2127
        %v2298 = vunpack.c.h.b16 %v2127
        %v2299 = vunpack.c.l.b16 %v2128
        %v2300 = vunpack.c.h.b16 %v2128
        %v2301 = vunpack.c.l.b16 %v2129
        %v2302 = vunpack.c.h.b16 %v2129
        %v2303 = vunpack.c.l.b16 %v2130
        %v2304 = vunpack.c.h.b16 %v2130
        %v2305 = vunpack.c.l.b16 %v2131
        %v2306 = vunpack.c.h.b16 %v2131
        %v2307 = vunpack.c.l.b16 %v2132
        %v2308 = vunpack.c.h.b16 %v2132
        %v2309 = vunpack.c.l.b16 %v2133
        %v2310 = vunpack.c.h.b16 %v2133
        %v2311 = vunpack.c.l.b16 %v2134
        %v2312 = vunpack.c.h.b16 %v2134
        %v2313 = vunpack.c.l.b16 %v2135
        %v2314 = vunpack.c.h.b16 %v2135
        %v2315 = vunpack.c.l.b16 %v2136
        %v2316 = vunpack.c.h.b16 %v2136
        %v2317 = vunpack.c.l.b16 %v2137
        %v2318 = vunpack.c.h.b16 %v2137
        %v2319 = vunpack.c.l.b16 %v2138
        %v2320 = vunpack.c.h.b16 %v2138
        %v2321 = vunpack.c.l.b16 %v2139
        %v2322 = vunpack.c.h.b16 %v2139
        %v2323 = vunpack.c.l.b16 %v2140
        %v2324 = vunpack.c.h.b16 %v2140
        %v2325 = vunpack.c.l.b16 %v2141
        %v2326 = vunpack.c.h.b16 %v2141
        %v2327 = vunpack.c.l.b16 %v2142
        %v2328 = vunpack.c.h.b16 %v2142
        %v2329 = vunpack.c.l.b16 %v2143
        %v2330 = vunpack.c.h.b16 %v2143
        %v2331 = vunpack.c.l.b16 %v2144
        %v2332 = vunpack.c.h.b16 %v2144
        %v2333 = vunpack.c.l.b16 %v2145
        %v2334 = vunpack.c.h.b16 %v2145
        %v2335 = vunpack.c.l.b16 %v2146
        %v2336 = vunpack.c.h.b16 %v2146
        %v2337 = vunpack.c.l.b16 %v2147
        %v2338 = vunpack.c.h.b16 %v2147
        %v2339 = vunpack.c.l.b16 %v2148
        %v2340 = vunpack.c.h.b16 %v2148
        %v2341 = vpack.c.b16 %v2221, %v2213
        %v2342 = vpack.c.b16 %v2222, %v2214
        %v2343 = vpack.c.b16 %v2223, %v2215
        %v2344 = vpack.c.b16 %v2224, %v2216
        %v2345 = vpack.c.b16 %v2225, %v2217
        %v2346 = vpack.c.b16 %v2226, %v2218
        %v2347 = vpack.c.b16 %v2227, %v2219
        %v2348 = vpack.c.b16 %v2228, %v2220
        %v2349 = vpack.c.b16 %v2237, %v2229
        %v2350 = vpack.c.b16 %v2238, %v2230
        %v2351 = vpack.c.b16 %v2239, %v2231
        %v2352 = vpack.c.b16 %v2240, %v2232
        %v2353 = vpack.c.b16 %v2241, %v2233
        %v2354 = vpack.c.b16 %v2242, %v2234
        %v2355 = vpack.c.b16 %v2243, %v2235
        %v2356 = vpack.c.b16 %v2244, %v2236
        %v2357 = vpack.c.b16 %v2253, %v2245
        %v2358 = vpack.c.b16 %v2254, %v2246
        %v2359 = vpack.c.b16 %v2255, %v2247
        %v2360 = vpack.c.b16 %v2256, %v2248
        %v2361 = vpack.c.b16 %v2257, %v2249
        %v2362 = vpack.c.b16 %v2258, %v2250
        %v2363 = vpack.c.b16 %v2259, %v2251
        %v2364 = vpack.c.b16 %v2260, %v2252
        %v2365 = vpack.c.b16 %v2269, %v2261
        %v2366 = vpack.c.b16 %v2270, %v2262
        %v2367 = vpack.c.b16 %v2271, %v2263
        %v2368 = vpack.c.b16 %v2272, %v2264
        %v2369 = vpack.c.b16 %v2273, %v2265
        %v2370 = vpack.c.b16 %v2274, %v2266
        %v2371 = vpack.c.b16 %v2275, %v2267
        %v2372 = vpack.c.b16 %v2276, %v2268
        %v2373 = vpack.c.b16 %v2285, %v2277
        %v2374 = vpack.c.b16 %v2286, %v2278
        %v2375 = vpack.c.b16 %v2287, %v2279
        %v2376 = vpack.c.b16 %v2288, %v2280
        %v2377 = vpack.c.b16 %v2289, %v2281
        %v2378 = vpack.c.b16 %v2290, %v2282
        %v2379 = vpack.c.b16 %v2291, %v2283
        %v2380 = vpack.c.b16 %v2292, %v2284
        %v2381 = vpack.c.b16 %v2301, %v2293
        %v2382 = vpack.c.b16 %v2302, %v2294
        %v2383 = vpack.c.b16 %v2303, %v2295
        %v2384 = vpack.c.b16 %v2304, %v2296
        %v2385 = vpack.c.b16 %v2305, %v2297
        %v2386 = vpack.c.b16 %v2306, %v2298
        %v2387 = vpack.c.b16 %v2307, %v2299
        %v2388 = vpack.c.b16 %v2308, %v2300
        %v2389 = vpack.c.b16 %v2317, %v2309
        %v2390 = vpack.c.b16 %v2318, %v2310
        %v2391 = vpack.c.b16 %v2319, %v2311
        %v2392 = vpack.c.b16 %v2320, %v2312
        %v2393 = vpack.c.b16 %v2321, %v2313
        %v2394 = vpack.c.b16 %v2322, %v2314
        %v2395 = vpack.c.b16 %v2323, %v2315
        %v2396 = vpack.c.b16 %v2324, %v2316
        %v2397 = vpack.c.b16 %v2333, %v2325
        %v2398 = vpack.c.b16 %v2334, %v2326
        %v2399 = vpack.c.b16 %v2335, %v2327
        %v2400 = vpack.c.b16 %v2336, %v2328
        %v2401 = vpack.c.b16 %v2337, %v2329
        %v2402 = vpack.c.b16 %v2338, %v2330
        %v2403 = vpack.c.b16 %v2339, %v2331
        %v2404 = vpack.c.b16 %v2340, %v2332
        %2469 = vmatpush.bf16.msra.mxu0 %v2397
        %2470 = vmatpush.bf16.msra.mxu0 %v2389
        %2471 = vmatpush.bf16.msra.mxu0 %v2381
        %2472 = vmatpush.bf16.msra.mxu0 %v2373
        %2473 = vmatpush.bf16.msra.mxu0 %v2365
        %2474 = vmatpush.bf16.msra.mxu0 %v2357
        %2475 = vmatpush.bf16.msra.mxu0 %v2349
        %2476 = vmatpush.bf16.msra.mxu0 %v2341
        %2477 = vmatmul.bf16.gmra.mxu0 %v2021
        %v2478 = vpop.f32.mrf.mxu0
        %v2479 = vadd.f32 0.0, %v2478
        %v2480 = vpop.f32.mrf.mxu0
        %v2481 = vadd.f32 0.0, %v2480
        %2482 = vmatmul.bf16.gmra.mxu0 %v2022
        %v2483 = vpop.f32.mrf.mxu0
        %v2484 = vadd.f32 0.0, %v2483
        %v2485 = vpop.f32.mrf.mxu0
        %v2486 = vadd.f32 0.0, %v2485
        %2487 = vmatmul.bf16.gmra.mxu0 %v2023
        %v2488 = vpop.f32.mrf.mxu0
        %v2489 = vadd.f32 0.0, %v2488
        %v2490 = vpop.f32.mrf.mxu0
        %v2491 = vadd.f32 0.0, %v2490
        %2492 = vmatmul.bf16.gmra.mxu0 %v2024
        %v2493 = vpop.f32.mrf.mxu0
        %v2494 = vadd.f32 0.0, %v2493
        %v2495 = vpop.f32.mrf.mxu0
        %v2496 = vadd.f32 0.0, %v2495
        %2497 = vmatmul.bf16.gmra.mxu0 %v2025
        %v2498 = vpop.f32.mrf.mxu0
        %v2499 = vadd.f32 0.0, %v2498
        %v2500 = vpop.f32.mrf.mxu0
        %v2501 = vadd.f32 0.0, %v2500
        %2502 = vmatmul.bf16.gmra.mxu0 %v2026
        %v2503 = vpop.f32.mrf.mxu0
        %v2504 = vadd.f32 0.0, %v2503
        %v2505 = vpop.f32.mrf.mxu0
        %v2506 = vadd.f32 0.0, %v2505
        %2507 = vmatmul.bf16.gmra.mxu0 %v2027
        %v2508 = vpop.f32.mrf.mxu0
        %v2509 = vadd.f32 0.0, %v2508
        %v2510 = vpop.f32.mrf.mxu0
        %v2511 = vadd.f32 0.0, %v2510
        %2512 = vmatmul.bf16.gmra.mxu0 %v2028
        %v2513 = vpop.f32.mrf.mxu0
        %v2514 = vadd.f32 0.0, %v2513
        %v2515 = vpop.f32.mrf.mxu0
        %v2516 = vadd.f32 0.0, %v2515
        %2517 = vmatmul.bf16.gmra.mxu0 %v2029
        %v2518 = vpop.f32.mrf.mxu0
        %v2519 = vadd.f32 0.0, %v2518
        %v2520 = vpop.f32.mrf.mxu0
        %v2521 = vadd.f32 0.0, %v2520
        %2522 = vmatmul.bf16.gmra.mxu0 %v2030
        %v2523 = vpop.f32.mrf.mxu0
        %v2524 = vadd.f32 0.0, %v2523
        %v2525 = vpop.f32.mrf.mxu0
        %v2526 = vadd.f32 0.0, %v2525
        %2527 = vmatmul.bf16.gmra.mxu0 %v2031
        %v2528 = vpop.f32.mrf.mxu0
        %v2529 = vadd.f32 0.0, %v2528
        %v2530 = vpop.f32.mrf.mxu0
        %v2531 = vadd.f32 0.0, %v2530
        %2532 = vmatmul.bf16.gmra.mxu0 %v2032
        %v2533 = vpop.f32.mrf.mxu0
        %v2534 = vadd.f32 0.0, %v2533
        %v2535 = vpop.f32.mrf.mxu0
        %v2536 = vadd.f32 0.0, %v2535
        %2537 = vmatmul.bf16.gmra.mxu0 %v2033
        %v2538 = vpop.f32.mrf.mxu0
        %v2539 = vadd.f32 0.0, %v2538
        %v2540 = vpop.f32.mrf.mxu0
        %v2541 = vadd.f32 0.0, %v2540
        %2542 = vmatmul.bf16.gmra.mxu0 %v2034
        %v2543 = vpop.f32.mrf.mxu0
        %v2544 = vadd.f32 0.0, %v2543
        %v2545 = vpop.f32.mrf.mxu0
        %v2546 = vadd.f32 0.0, %v2545
        %2547 = vmatmul.bf16.gmra.mxu0 %v2035
        %v2548 = vpop.f32.mrf.mxu0
        %v2549 = vadd.f32 0.0, %v2548
        %v2550 = vpop.f32.mrf.mxu0
        %v2551 = vadd.f32 0.0, %v2550
        %2552 = vmatmul.bf16.gmra.mxu0 %v2036
        %v2553 = vpop.f32.mrf.mxu0
        %v2554 = vadd.f32 0.0, %v2553
        %v2555 = vpop.f32.mrf.mxu0
        %v2556 = vadd.f32 0.0, %v2555
        %2557 = vmatmul.bf16.gmra.mxu0 %v2037
        %v2558 = vpop.f32.mrf.mxu0
        %v2559 = vadd.f32 0.0, %v2558
        %v2560 = vpop.f32.mrf.mxu0
        %v2561 = vadd.f32 0.0, %v2560
        %2562 = vmatmul.bf16.gmra.mxu0 %v2038
        %v2563 = vpop.f32.mrf.mxu0
        %v2564 = vadd.f32 0.0, %v2563
        %v2565 = vpop.f32.mrf.mxu0
        %v2566 = vadd.f32 0.0, %v2565
        %2567 = vmatmul.bf16.gmra.mxu0 %v2039
        %v2568 = vpop.f32.mrf.mxu0
        %v2569 = vadd.f32 0.0, %v2568
        %v2570 = vpop.f32.mrf.mxu0
        %v2571 = vadd.f32 0.0, %v2570
        %2572 = vmatmul.bf16.gmra.mxu0 %v2040
        %v2573 = vpop.f32.mrf.mxu0
        %v2574 = vadd.f32 0.0, %v2573
        %v2575 = vpop.f32.mrf.mxu0
        %v2576 = vadd.f32 0.0, %v2575
        %2577 = vmatmul.bf16.gmra.mxu0 %v2041
        %v2578 = vpop.f32.mrf.mxu0
        %v2579 = vadd.f32 0.0, %v2578
        %v2580 = vpop.f32.mrf.mxu0
        %v2581 = vadd.f32 0.0, %v2580
        %2582 = vmatmul.bf16.gmra.mxu0 %v2042
        %v2583 = vpop.f32.mrf.mxu0
        %v2584 = vadd.f32 0.0, %v2583
        %v2585 = vpop.f32.mrf.mxu0
        %v2586 = vadd.f32 0.0, %v2585
        %2587 = vmatmul.bf16.gmra.mxu0 %v2043
        %v2588 = vpop.f32.mrf.mxu0
        %v2589 = vadd.f32 0.0, %v2588
        %v2590 = vpop.f32.mrf.mxu0
        %v2591 = vadd.f32 0.0, %v2590
        %2592 = vmatmul.bf16.gmra.mxu0 %v2044
        %v2593 = vpop.f32.mrf.mxu0
        %v2594 = vadd.f32 0.0, %v2593
        %v2595 = vpop.f32.mrf.mxu0
        %v2596 = vadd.f32 0.0, %v2595
        %2597 = vmatmul.bf16.gmra.mxu0 %v2045
        %v2598 = vpop.f32.mrf.mxu0
        %v2599 = vadd.f32 0.0, %v2598
        %v2600 = vpop.f32.mrf.mxu0
        %v2601 = vadd.f32 0.0, %v2600
        %2602 = vmatmul.bf16.gmra.mxu0 %v2046
        %v2603 = vpop.f32.mrf.mxu0
        %v2604 = vadd.f32 0.0, %v2603
        %v2605 = vpop.f32.mrf.mxu0
        %v2606 = vadd.f32 0.0, %v2605
        %2607 = vmatmul.bf16.gmra.mxu0 %v2047
        %v2608 = vpop.f32.mrf.mxu0
        %v2609 = vadd.f32 0.0, %v2608
        %v2610 = vpop.f32.mrf.mxu0
        %v2611 = vadd.f32 0.0, %v2610
        %2612 = vmatmul.bf16.gmra.mxu0 %v2048
        %v2613 = vpop.f32.mrf.mxu0
        %v2614 = vadd.f32 0.0, %v2613
        %v2615 = vpop.f32.mrf.mxu0
        %v2616 = vadd.f32 0.0, %v2615
        %2617 = vmatmul.bf16.gmra.mxu0 %v2049
        %v2618 = vpop.f32.mrf.mxu0
        %v2619 = vadd.f32 0.0, %v2618
        %v2620 = vpop.f32.mrf.mxu0
        %v2621 = vadd.f32 0.0, %v2620
        %2622 = vmatmul.bf16.gmra.mxu0 %v2050
        %v2623 = vpop.f32.mrf.mxu0
        %v2624 = vadd.f32 0.0, %v2623
        %v2625 = vpop.f32.mrf.mxu0
        %v2626 = vadd.f32 0.0, %v2625
        %2627 = vmatmul.bf16.gmra.mxu0 %v2051
        %v2628 = vpop.f32.mrf.mxu0
        %v2629 = vadd.f32 0.0, %v2628
        %v2630 = vpop.f32.mrf.mxu0
        %v2631 = vadd.f32 0.0, %v2630
        %2632 = vmatmul.bf16.gmra.mxu0 %v2052
        %v2633 = vpop.f32.mrf.mxu0
        %v2634 = vadd.f32 0.0, %v2633
        %v2635 = vpop.f32.mrf.mxu0
        %v2636 = vadd.f32 0.0, %v2635
        %2637 = vmatmul.bf16.gmra.mxu0 %v2053
        %v2638 = vpop.f32.mrf.mxu0
        %v2639 = vadd.f32 0.0, %v2638
        %v2640 = vpop.f32.mrf.mxu0
        %v2641 = vadd.f32 0.0, %v2640
        %2642 = vmatmul.bf16.gmra.mxu0 %v2054
        %v2643 = vpop.f32.mrf.mxu0
        %v2644 = vadd.f32 0.0, %v2643
        %v2645 = vpop.f32.mrf.mxu0
        %v2646 = vadd.f32 0.0, %v2645
        %2647 = vmatmul.bf16.gmra.mxu0 %v2055
        %v2648 = vpop.f32.mrf.mxu0
        %v2649 = vadd.f32 0.0, %v2648
        %v2650 = vpop.f32.mrf.mxu0
        %v2651 = vadd.f32 0.0, %v2650
        %2652 = vmatmul.bf16.gmra.mxu0 %v2056
        %v2653 = vpop.f32.mrf.mxu0
        %v2654 = vadd.f32 0.0, %v2653
        %v2655 = vpop.f32.mrf.mxu0
        %v2656 = vadd.f32 0.0, %v2655
        %2657 = vmatmul.bf16.gmra.mxu0 %v2057
        %v2658 = vpop.f32.mrf.mxu0
        %v2659 = vadd.f32 0.0, %v2658
        %v2660 = vpop.f32.mrf.mxu0
        %v2661 = vadd.f32 0.0, %v2660
        %2662 = vmatmul.bf16.gmra.mxu0 %v2058
        %v2663 = vpop.f32.mrf.mxu0
        %v2664 = vadd.f32 0.0, %v2663
        %v2665 = vpop.f32.mrf.mxu0
        %v2666 = vadd.f32 0.0, %v2665
        %2667 = vmatmul.bf16.gmra.mxu0 %v2059
        %v2668 = vpop.f32.mrf.mxu0
        %v2669 = vadd.f32 0.0, %v2668
        %v2670 = vpop.f32.mrf.mxu0
        %v2671 = vadd.f32 0.0, %v2670
        %2672 = vmatmul.bf16.gmra.mxu0 %v2060
        %v2673 = vpop.f32.mrf.mxu0
        %v2674 = vadd.f32 0.0, %v2673
        %v2675 = vpop.f32.mrf.mxu0
        %v2676 = vadd.f32 0.0, %v2675
        %2677 = vmatmul.bf16.gmra.mxu0 %v2061
        %v2678 = vpop.f32.mrf.mxu0
        %v2679 = vadd.f32 0.0, %v2678
        %v2680 = vpop.f32.mrf.mxu0
        %v2681 = vadd.f32 0.0, %v2680
        %2682 = vmatmul.bf16.gmra.mxu0 %v2062
        %v2683 = vpop.f32.mrf.mxu0
        %v2684 = vadd.f32 0.0, %v2683
        %v2685 = vpop.f32.mrf.mxu0
        %v2686 = vadd.f32 0.0, %v2685
        %2687 = vmatmul.bf16.gmra.mxu0 %v2063
        %v2688 = vpop.f32.mrf.mxu0
        %v2689 = vadd.f32 0.0, %v2688
        %v2690 = vpop.f32.mrf.mxu0
        %v2691 = vadd.f32 0.0, %v2690
        %2692 = vmatmul.bf16.gmra.mxu0 %v2064
        %v2693 = vpop.f32.mrf.mxu0
        %v2694 = vadd.f32 0.0, %v2693
        %v2695 = vpop.f32.mrf.mxu0
        %v2696 = vadd.f32 0.0, %v2695
        %2697 = vmatmul.bf16.gmra.mxu0 %v2065
        %v2698 = vpop.f32.mrf.mxu0
        %v2699 = vadd.f32 0.0, %v2698
        %v2700 = vpop.f32.mrf.mxu0
        %v2701 = vadd.f32 0.0, %v2700
        %2702 = vmatmul.bf16.gmra.mxu0 %v2066
        %v2703 = vpop.f32.mrf.mxu0
        %v2704 = vadd.f32 0.0, %v2703
        %v2705 = vpop.f32.mrf.mxu0
        %v2706 = vadd.f32 0.0, %v2705
        %2707 = vmatmul.bf16.gmra.mxu0 %v2067
        %v2708 = vpop.f32.mrf.mxu0
        %v2709 = vadd.f32 0.0, %v2708
        %v2710 = vpop.f32.mrf.mxu0
        %v2711 = vadd.f32 0.0, %v2710
        %2712 = vmatmul.bf16.gmra.mxu0 %v2068
        %v2713 = vpop.f32.mrf.mxu0
        %v2714 = vadd.f32 0.0, %v2713
        %v2715 = vpop.f32.mrf.mxu0
        %v2716 = vadd.f32 0.0, %v2715
        %2717 = vmatmul.bf16.gmra.mxu0 %v2069
        %v2718 = vpop.f32.mrf.mxu0
        %v2719 = vadd.f32 0.0, %v2718
        %v2720 = vpop.f32.mrf.mxu0
        %v2721 = vadd.f32 0.0, %v2720
        %2722 = vmatmul.bf16.gmra.mxu0 %v2070
        %v2723 = vpop.f32.mrf.mxu0
        %v2724 = vadd.f32 0.0, %v2723
        %v2725 = vpop.f32.mrf.mxu0
        %v2726 = vadd.f32 0.0, %v2725
        %2727 = vmatmul.bf16.gmra.mxu0 %v2071
        %v2728 = vpop.f32.mrf.mxu0
        %v2729 = vadd.f32 0.0, %v2728
        %v2730 = vpop.f32.mrf.mxu0
        %v2731 = vadd.f32 0.0, %v2730
        %2732 = vmatmul.bf16.gmra.mxu0 %v2072
        %v2733 = vpop.f32.mrf.mxu0
        %v2734 = vadd.f32 0.0, %v2733
        %v2735 = vpop.f32.mrf.mxu0
        %v2736 = vadd.f32 0.0, %v2735
        %2737 = vmatmul.bf16.gmra.mxu0 %v2073
        %v2738 = vpop.f32.mrf.mxu0
        %v2739 = vadd.f32 0.0, %v2738
        %v2740 = vpop.f32.mrf.mxu0
        %v2741 = vadd.f32 0.0, %v2740
        %2742 = vmatmul.bf16.gmra.mxu0 %v2074
        %v2743 = vpop.f32.mrf.mxu0
        %v2744 = vadd.f32 0.0, %v2743
        %v2745 = vpop.f32.mrf.mxu0
        %v2746 = vadd.f32 0.0, %v2745
        %2747 = vmatmul.bf16.gmra.mxu0 %v2075
        %v2748 = vpop.f32.mrf.mxu0
        %v2749 = vadd.f32 0.0, %v2748
        %v2750 = vpop.f32.mrf.mxu0
        %v2751 = vadd.f32 0.0, %v2750
        %2752 = vmatmul.bf16.gmra.mxu0 %v2076
        %v2753 = vpop.f32.mrf.mxu0
        %v2754 = vadd.f32 0.0, %v2753
        %v2755 = vpop.f32.mrf.mxu0
        %v2756 = vadd.f32 0.0, %v2755
        %2757 = vmatmul.bf16.gmra.mxu0 %v2077
        %v2758 = vpop.f32.mrf.mxu0
        %v2759 = vadd.f32 0.0, %v2758
        %v2760 = vpop.f32.mrf.mxu0
        %v2761 = vadd.f32 0.0, %v2760
        %2762 = vmatmul.bf16.gmra.mxu0 %v2078
        %v2763 = vpop.f32.mrf.mxu0
        %v2764 = vadd.f32 0.0, %v2763
        %v2765 = vpop.f32.mrf.mxu0
        %v2766 = vadd.f32 0.0, %v2765
        %2767 = vmatmul.bf16.gmra.mxu0 %v2079
        %v2768 = vpop.f32.mrf.mxu0
        %v2769 = vadd.f32 0.0, %v2768
        %v2770 = vpop.f32.mrf.mxu0
        %v2771 = vadd.f32 0.0, %v2770
        %2772 = vmatmul.bf16.gmra.mxu0 %v2080
        %v2773 = vpop.f32.mrf.mxu0
        %v2774 = vadd.f32 0.0, %v2773
        %v2775 = vpop.f32.mrf.mxu0
        %v2776 = vadd.f32 0.0, %v2775
        %2777 = vmatmul.bf16.gmra.mxu0 %v2081
        %v2778 = vpop.f32.mrf.mxu0
        %v2779 = vadd.f32 0.0, %v2778
        %v2780 = vpop.f32.mrf.mxu0
        %v2781 = vadd.f32 0.0, %v2780
        %2782 = vmatmul.bf16.gmra.mxu0 %v2082
        %v2783 = vpop.f32.mrf.mxu0
        %v2784 = vadd.f32 0.0, %v2783
        %v2785 = vpop.f32.mrf.mxu0
        %v2786 = vadd.f32 0.0, %v2785
        %2787 = vmatmul.bf16.gmra.mxu0 %v2083
        %v2788 = vpop.f32.mrf.mxu0
        %v2789 = vadd.f32 0.0, %v2788
        %v2790 = vpop.f32.mrf.mxu0
        %v2791 = vadd.f32 0.0, %v2790
        %2792 = vmatmul.bf16.gmra.mxu0 %v2084
        %v2793 = vpop.f32.mrf.mxu0
        %v2794 = vadd.f32 0.0, %v2793
        %v2795 = vpop.f32.mrf.mxu0
        %v2796 = vadd.f32 0.0, %v2795
        %2797 = vdwg.mxu0
        %2798 = vmatpush.bf16.msra.mxu0 %v2398
        %2799 = vmatpush.bf16.msra.mxu0 %v2390
        %2800 = vmatpush.bf16.msra.mxu0 %v2382
        %2801 = vmatpush.bf16.msra.mxu0 %v2374
        %2802 = vmatpush.bf16.msra.mxu0 %v2366
        %2803 = vmatpush.bf16.msra.mxu0 %v2358
        %2804 = vmatpush.bf16.msra.mxu0 %v2350
        %2805 = vmatpush.bf16.msra.mxu0 %v2342
        %2806 = vmatmul.bf16.gmra.mxu0 %v2021
        %v2807 = vpop.f32.mrf.mxu0
        %v2808 = vadd.f32 0.0, %v2807
        %v2809 = vpop.f32.mrf.mxu0
        %v2810 = vadd.f32 0.0, %v2809
        %2811 = vmatmul.bf16.gmra.mxu0 %v2022
        %v2812 = vpop.f32.mrf.mxu0
        %v2813 = vadd.f32 0.0, %v2812
        %v2814 = vpop.f32.mrf.mxu0
        %v2815 = vadd.f32 0.0, %v2814
        %2816 = vmatmul.bf16.gmra.mxu0 %v2023
        %v2817 = vpop.f32.mrf.mxu0
        %v2818 = vadd.f32 0.0, %v2817
        %v2819 = vpop.f32.mrf.mxu0
        %v2820 = vadd.f32 0.0, %v2819
        %2821 = vmatmul.bf16.gmra.mxu0 %v2024
        %v2822 = vpop.f32.mrf.mxu0
        %v2823 = vadd.f32 0.0, %v2822
        %v2824 = vpop.f32.mrf.mxu0
        %v2825 = vadd.f32 0.0, %v2824
        %2826 = vmatmul.bf16.gmra.mxu0 %v2025
        %v2827 = vpop.f32.mrf.mxu0
        %v2828 = vadd.f32 0.0, %v2827
        %v2829 = vpop.f32.mrf.mxu0
        %v2830 = vadd.f32 0.0, %v2829
        %2831 = vmatmul.bf16.gmra.mxu0 %v2026
        %v2832 = vpop.f32.mrf.mxu0
        %v2833 = vadd.f32 0.0, %v2832
        %v2834 = vpop.f32.mrf.mxu0
        %v2835 = vadd.f32 0.0, %v2834
        %2836 = vmatmul.bf16.gmra.mxu0 %v2027
        %v2837 = vpop.f32.mrf.mxu0
        %v2838 = vadd.f32 0.0, %v2837
        %v2839 = vpop.f32.mrf.mxu0
        %v2840 = vadd.f32 0.0, %v2839
        %2841 = vmatmul.bf16.gmra.mxu0 %v2028
        %v2842 = vpop.f32.mrf.mxu0
        %v2843 = vadd.f32 0.0, %v2842
        %v2844 = vpop.f32.mrf.mxu0
        %v2845 = vadd.f32 0.0, %v2844
        %2846 = vmatmul.bf16.gmra.mxu0 %v2029
        %v2847 = vpop.f32.mrf.mxu0
        %v2848 = vadd.f32 0.0, %v2847
        %v2849 = vpop.f32.mrf.mxu0
        %v2850 = vadd.f32 0.0, %v2849
        %2851 = vmatmul.bf16.gmra.mxu0 %v2030
        %v2852 = vpop.f32.mrf.mxu0
        %v2853 = vadd.f32 0.0, %v2852
        %v2854 = vpop.f32.mrf.mxu0
        %v2855 = vadd.f32 0.0, %v2854
        %2856 = vmatmul.bf16.gmra.mxu0 %v2031
        %v2857 = vpop.f32.mrf.mxu0
        %v2858 = vadd.f32 0.0, %v2857
        %v2859 = vpop.f32.mrf.mxu0
        %v2860 = vadd.f32 0.0, %v2859
        %2861 = vmatmul.bf16.gmra.mxu0 %v2032
        %v2862 = vpop.f32.mrf.mxu0
        %v2863 = vadd.f32 0.0, %v2862
        %v2864 = vpop.f32.mrf.mxu0
        %v2865 = vadd.f32 0.0, %v2864
        %2866 = vmatmul.bf16.gmra.mxu0 %v2033
        %v2867 = vpop.f32.mrf.mxu0
        %v2868 = vadd.f32 0.0, %v2867
        %v2869 = vpop.f32.mrf.mxu0
        %v2870 = vadd.f32 0.0, %v2869
        %2871 = vmatmul.bf16.gmra.mxu0 %v2034
        %v2872 = vpop.f32.mrf.mxu0
        %v2873 = vadd.f32 0.0, %v2872
        %v2874 = vpop.f32.mrf.mxu0
        %v2875 = vadd.f32 0.0, %v2874
        %2876 = vmatmul.bf16.gmra.mxu0 %v2035
        %v2877 = vpop.f32.mrf.mxu0
        %v2878 = vadd.f32 0.0, %v2877
        %v2879 = vpop.f32.mrf.mxu0
        %v2880 = vadd.f32 0.0, %v2879
        %2881 = vmatmul.bf16.gmra.mxu0 %v2036
        %v2882 = vpop.f32.mrf.mxu0
        %v2883 = vadd.f32 0.0, %v2882
        %v2884 = vpop.f32.mrf.mxu0
        %v2885 = vadd.f32 0.0, %v2884
        %2886 = vmatmul.bf16.gmra.mxu0 %v2037
        %v2887 = vpop.f32.mrf.mxu0
        %v2888 = vadd.f32 0.0, %v2887
        %v2889 = vpop.f32.mrf.mxu0
        %v2890 = vadd.f32 0.0, %v2889
        %2891 = vmatmul.bf16.gmra.mxu0 %v2038
        %v2892 = vpop.f32.mrf.mxu0
        %v2893 = vadd.f32 0.0, %v2892
        %v2894 = vpop.f32.mrf.mxu0
        %v2895 = vadd.f32 0.0, %v2894
        %2896 = vmatmul.bf16.gmra.mxu0 %v2039
        %v2897 = vpop.f32.mrf.mxu0
        %v2898 = vadd.f32 0.0, %v2897
        %v2899 = vpop.f32.mrf.mxu0
        %v2900 = vadd.f32 0.0, %v2899
        %2901 = vmatmul.bf16.gmra.mxu0 %v2040
        %v2902 = vpop.f32.mrf.mxu0
        %v2903 = vadd.f32 0.0, %v2902
        %v2904 = vpop.f32.mrf.mxu0
        %v2905 = vadd.f32 0.0, %v2904
        %2906 = vmatmul.bf16.gmra.mxu0 %v2041
        %v2907 = vpop.f32.mrf.mxu0
        %v2908 = vadd.f32 0.0, %v2907
        %v2909 = vpop.f32.mrf.mxu0
        %v2910 = vadd.f32 0.0, %v2909
        %2911 = vmatmul.bf16.gmra.mxu0 %v2042
        %v2912 = vpop.f32.mrf.mxu0
        %v2913 = vadd.f32 0.0, %v2912
        %v2914 = vpop.f32.mrf.mxu0
        %v2915 = vadd.f32 0.0, %v2914
        %2916 = vmatmul.bf16.gmra.mxu0 %v2043
        %v2917 = vpop.f32.mrf.mxu0
        %v2918 = vadd.f32 0.0, %v2917
        %v2919 = vpop.f32.mrf.mxu0
        %v2920 = vadd.f32 0.0, %v2919
        %2921 = vmatmul.bf16.gmra.mxu0 %v2044
        %v2922 = vpop.f32.mrf.mxu0
        %v2923 = vadd.f32 0.0, %v2922
        %v2924 = vpop.f32.mrf.mxu0
        %v2925 = vadd.f32 0.0, %v2924
        %2926 = vmatmul.bf16.gmra.mxu0 %v2045
        %v2927 = vpop.f32.mrf.mxu0
        %v2928 = vadd.f32 0.0, %v2927
        %v2929 = vpop.f32.mrf.mxu0
        %v2930 = vadd.f32 0.0, %v2929
        %2931 = vmatmul.bf16.gmra.mxu0 %v2046
        %v2932 = vpop.f32.mrf.mxu0
        %v2933 = vadd.f32 0.0, %v2932
        %v2934 = vpop.f32.mrf.mxu0
        %v2935 = vadd.f32 0.0, %v2934
        %2936 = vmatmul.bf16.gmra.mxu0 %v2047
        %v2937 = vpop.f32.mrf.mxu0
        %v2938 = vadd.f32 0.0, %v2937
        %v2939 = vpop.f32.mrf.mxu0
        %v2940 = vadd.f32 0.0, %v2939
        %2941 = vmatmul.bf16.gmra.mxu0 %v2048
        %v2942 = vpop.f32.mrf.mxu0
        %v2943 = vadd.f32 0.0, %v2942
        %v2944 = vpop.f32.mrf.mxu0
        %v2945 = vadd.f32 0.0, %v2944
        %2946 = vmatmul.bf16.gmra.mxu0 %v2049
        %v2947 = vpop.f32.mrf.mxu0
        %v2948 = vadd.f32 0.0, %v2947
        %v2949 = vpop.f32.mrf.mxu0
        %v2950 = vadd.f32 0.0, %v2949
        %2951 = vmatmul.bf16.gmra.mxu0 %v2050
        %v2952 = vpop.f32.mrf.mxu0
        %v2953 = vadd.f32 0.0, %v2952
        %v2954 = vpop.f32.mrf.mxu0
        %v2955 = vadd.f32 0.0, %v2954
        %2956 = vmatmul.bf16.gmra.mxu0 %v2051
        %v2957 = vpop.f32.mrf.mxu0
        %v2958 = vadd.f32 0.0, %v2957
        %v2959 = vpop.f32.mrf.mxu0
        %v2960 = vadd.f32 0.0, %v2959
        %2961 = vmatmul.bf16.gmra.mxu0 %v2052
        %v2962 = vpop.f32.mrf.mxu0
        %v2963 = vadd.f32 0.0, %v2962
        %v2964 = vpop.f32.mrf.mxu0
        %v2965 = vadd.f32 0.0, %v2964
        %2966 = vmatmul.bf16.gmra.mxu0 %v2053
        %v2967 = vpop.f32.mrf.mxu0
        %v2968 = vadd.f32 0.0, %v2967
        %v2969 = vpop.f32.mrf.mxu0
        %v2970 = vadd.f32 0.0, %v2969
        %2971 = vmatmul.bf16.gmra.mxu0 %v2054
        %v2972 = vpop.f32.mrf.mxu0
        %v2973 = vadd.f32 0.0, %v2972
        %v2974 = vpop.f32.mrf.mxu0
        %v2975 = vadd.f32 0.0, %v2974
        %2976 = vmatmul.bf16.gmra.mxu0 %v2055
        %v2977 = vpop.f32.mrf.mxu0
        %v2978 = vadd.f32 0.0, %v2977
        %v2979 = vpop.f32.mrf.mxu0
        %v2980 = vadd.f32 0.0, %v2979
        %2981 = vmatmul.bf16.gmra.mxu0 %v2056
        %v2982 = vpop.f32.mrf.mxu0
        %v2983 = vadd.f32 0.0, %v2982
        %v2984 = vpop.f32.mrf.mxu0
        %v2985 = vadd.f32 0.0, %v2984
        %2986 = vmatmul.bf16.gmra.mxu0 %v2057
        %v2987 = vpop.f32.mrf.mxu0
        %v2988 = vadd.f32 0.0, %v2987
        %v2989 = vpop.f32.mrf.mxu0
        %v2990 = vadd.f32 0.0, %v2989
        %2991 = vmatmul.bf16.gmra.mxu0 %v2058
        %v2992 = vpop.f32.mrf.mxu0
        %v2993 = vadd.f32 0.0, %v2992
        %v2994 = vpop.f32.mrf.mxu0
        %v2995 = vadd.f32 0.0, %v2994
        %2996 = vmatmul.bf16.gmra.mxu0 %v2059
        %v2997 = vpop.f32.mrf.mxu0
        %v2998 = vadd.f32 0.0, %v2997
        %v2999 = vpop.f32.mrf.mxu0
        %v3000 = vadd.f32 0.0, %v2999
        %3001 = vmatmul.bf16.gmra.mxu0 %v2060
        %v3002 = vpop.f32.mrf.mxu0
        %v3003 = vadd.f32 0.0, %v3002
        %v3004 = vpop.f32.mrf.mxu0
        %v3005 = vadd.f32 0.0, %v3004
        %3006 = vmatmul.bf16.gmra.mxu0 %v2061
        %v3007 = vpop.f32.mrf.mxu0
        %v3008 = vadd.f32 0.0, %v3007
        %v3009 = vpop.f32.mrf.mxu0
        %v3010 = vadd.f32 0.0, %v3009
        %3011 = vmatmul.bf16.gmra.mxu0 %v2062
        %v3012 = vpop.f32.mrf.mxu0
        %v3013 = vadd.f32 0.0, %v3012
        %v3014 = vpop.f32.mrf.mxu0
        %v3015 = vadd.f32 0.0, %v3014
        %3016 = vmatmul.bf16.gmra.mxu0 %v2063
        %v3017 = vpop.f32.mrf.mxu0
        %v3018 = vadd.f32 0.0, %v3017
        %v3019 = vpop.f32.mrf.mxu0
        %v3020 = vadd.f32 0.0, %v3019
        %3021 = vmatmul.bf16.gmra.mxu0 %v2064
        %v3022 = vpop.f32.mrf.mxu0
        %v3023 = vadd.f32 0.0, %v3022
        %v3024 = vpop.f32.mrf.mxu0
        %v3025 = vadd.f32 0.0, %v3024
        %3026 = vmatmul.bf16.gmra.mxu0 %v2065
        %v3027 = vpop.f32.mrf.mxu0
        %v3028 = vadd.f32 0.0, %v3027
        %v3029 = vpop.f32.mrf.mxu0
        %v3030 = vadd.f32 0.0, %v3029
        %3031 = vmatmul.bf16.gmra.mxu0 %v2066
        %v3032 = vpop.f32.mrf.mxu0
        %v3033 = vadd.f32 0.0, %v3032
        %v3034 = vpop.f32.mrf.mxu0
        %v3035 = vadd.f32 0.0, %v3034
        %3036 = vmatmul.bf16.gmra.mxu0 %v2067
        %v3037 = vpop.f32.mrf.mxu0
        %v3038 = vadd.f32 0.0, %v3037
        %v3039 = vpop.f32.mrf.mxu0
        %v3040 = vadd.f32 0.0, %v3039
        %3041 = vmatmul.bf16.gmra.mxu0 %v2068
        %v3042 = vpop.f32.mrf.mxu0
        %v3043 = vadd.f32 0.0, %v3042
        %v3044 = vpop.f32.mrf.mxu0
        %v3045 = vadd.f32 0.0, %v3044
        %3046 = vmatmul.bf16.gmra.mxu0 %v2069
        %v3047 = vpop.f32.mrf.mxu0
        %v3048 = vadd.f32 0.0, %v3047
        %v3049 = vpop.f32.mrf.mxu0
        %v3050 = vadd.f32 0.0, %v3049
        %3051 = vmatmul.bf16.gmra.mxu0 %v2070
        %v3052 = vpop.f32.mrf.mxu0
        %v3053 = vadd.f32 0.0, %v3052
        %v3054 = vpop.f32.mrf.mxu0
        %v3055 = vadd.f32 0.0, %v3054
        %3056 = vmatmul.bf16.gmra.mxu0 %v2071
        %v3057 = vpop.f32.mrf.mxu0
        %v3058 = vadd.f32 0.0, %v3057
        %v3059 = vpop.f32.mrf.mxu0
        %v3060 = vadd.f32 0.0, %v3059
        %3061 = vmatmul.bf16.gmra.mxu0 %v2072
        %v3062 = vpop.f32.mrf.mxu0
        %v3063 = vadd.f32 0.0, %v3062
        %v3064 = vpop.f32.mrf.mxu0
        %v3065 = vadd.f32 0.0, %v3064
        %3066 = vmatmul.bf16.gmra.mxu0 %v2073
        %v3067 = vpop.f32.mrf.mxu0
        %v3068 = vadd.f32 0.0, %v3067
        %v3069 = vpop.f32.mrf.mxu0
        %v3070 = vadd.f32 0.0, %v3069
        %3071 = vmatmul.bf16.gmra.mxu0 %v2074
        %v3072 = vpop.f32.mrf.mxu0
        %v3073 = vadd.f32 0.0, %v3072
        %v3074 = vpop.f32.mrf.mxu0
        %v3075 = vadd.f32 0.0, %v3074
        %3076 = vmatmul.bf16.gmra.mxu0 %v2075
        %v3077 = vpop.f32.mrf.mxu0
        %v3078 = vadd.f32 0.0, %v3077
        %v3079 = vpop.f32.mrf.mxu0
        %v3080 = vadd.f32 0.0, %v3079
        %3081 = vmatmul.bf16.gmra.mxu0 %v2076
        %v3082 = vpop.f32.mrf.mxu0
        %v3083 = vadd.f32 0.0, %v3082
        %v3084 = vpop.f32.mrf.mxu0
        %v3085 = vadd.f32 0.0, %v3084
        %3086 = vmatmul.bf16.gmra.mxu0 %v2077
        %v3087 = vpop.f32.mrf.mxu0
        %v3088 = vadd.f32 0.0, %v3087
        %v3089 = vpop.f32.mrf.mxu0
        %v3090 = vadd.f32 0.0, %v3089
        %3091 = vmatmul.bf16.gmra.mxu0 %v2078
        %v3092 = vpop.f32.mrf.mxu0
        %v3093 = vadd.f32 0.0, %v3092
        %v3094 = vpop.f32.mrf.mxu0
        %v3095 = vadd.f32 0.0, %v3094
        %3096 = vmatmul.bf16.gmra.mxu0 %v2079
        %v3097 = vpop.f32.mrf.mxu0
        %v3098 = vadd.f32 0.0, %v3097
        %v3099 = vpop.f32.mrf.mxu0
        %v3100 = vadd.f32 0.0, %v3099
        %3101 = vmatmul.bf16.gmra.mxu0 %v2080
        %v3102 = vpop.f32.mrf.mxu0
        %v3103 = vadd.f32 0.0, %v3102
        %v3104 = vpop.f32.mrf.mxu0
        %v3105 = vadd.f32 0.0, %v3104
        %3106 = vmatmul.bf16.gmra.mxu0 %v2081
        %v3107 = vpop.f32.mrf.mxu0
        %v3108 = vadd.f32 0.0, %v3107
        %v3109 = vpop.f32.mrf.mxu0
        %v3110 = vadd.f32 0.0, %v3109
        %3111 = vmatmul.bf16.gmra.mxu0 %v2082
        %v3112 = vpop.f32.mrf.mxu0
        %v3113 = vadd.f32 0.0, %v3112
        %v3114 = vpop.f32.mrf.mxu0
        %v3115 = vadd.f32 0.0, %v3114
        %3116 = vmatmul.bf16.gmra.mxu0 %v2083
        %v3117 = vpop.f32.mrf.mxu0
        %v3118 = vadd.f32 0.0, %v3117
        %v3119 = vpop.f32.mrf.mxu0
        %v3120 = vadd.f32 0.0, %v3119
        %3121 = vmatmul.bf16.gmra.mxu0 %v2084
        %v3122 = vpop.f32.mrf.mxu0
        %v3123 = vadd.f32 0.0, %v3122
        %v3124 = vpop.f32.mrf.mxu0
        %v3125 = vadd.f32 0.0, %v3124
        %3126 = vdwg.mxu0
        %3127 = vmatpush.bf16.msra.mxu0 %v2399
        %3128 = vmatpush.bf16.msra.mxu0 %v2391
        %3129 = vmatpush.bf16.msra.mxu0 %v2383
        %3130 = vmatpush.bf16.msra.mxu0 %v2375
        %3131 = vmatpush.bf16.msra.mxu0 %v2367
        %3132 = vmatpush.bf16.msra.mxu0 %v2359
        %3133 = vmatpush.bf16.msra.mxu0 %v2351
        %3134 = vmatpush.bf16.msra.mxu0 %v2343
        %3135 = vmatmul.bf16.gmra.mxu0 %v2021
        %v3136 = vpop.f32.mrf.mxu0
        %v3137 = vadd.f32 0.0, %v3136
        %v3138 = vpop.f32.mrf.mxu0
        %v3139 = vadd.f32 0.0, %v3138
        %3140 = vmatmul.bf16.gmra.mxu0 %v2022
        %v3141 = vpop.f32.mrf.mxu0
        %v3142 = vadd.f32 0.0, %v3141
        %v3143 = vpop.f32.mrf.mxu0
        %v3144 = vadd.f32 0.0, %v3143
        %3145 = vmatmul.bf16.gmra.mxu0 %v2023
        %v3146 = vpop.f32.mrf.mxu0
        %v3147 = vadd.f32 0.0, %v3146
        %v3148 = vpop.f32.mrf.mxu0
        %v3149 = vadd.f32 0.0, %v3148
        %3150 = vmatmul.bf16.gmra.mxu0 %v2024
        %v3151 = vpop.f32.mrf.mxu0
        %v3152 = vadd.f32 0.0, %v3151
        %v3153 = vpop.f32.mrf.mxu0
        %v3154 = vadd.f32 0.0, %v3153
        %3155 = vmatmul.bf16.gmra.mxu0 %v2025
        %v3156 = vpop.f32.mrf.mxu0
        %v3157 = vadd.f32 0.0, %v3156
        %v3158 = vpop.f32.mrf.mxu0
        %v3159 = vadd.f32 0.0, %v3158
        %3160 = vmatmul.bf16.gmra.mxu0 %v2026
        %v3161 = vpop.f32.mrf.mxu0
        %v3162 = vadd.f32 0.0, %v3161
        %v3163 = vpop.f32.mrf.mxu0
        %v3164 = vadd.f32 0.0, %v3163
        %3165 = vmatmul.bf16.gmra.mxu0 %v2027
        %v3166 = vpop.f32.mrf.mxu0
        %v3167 = vadd.f32 0.0, %v3166
        %v3168 = vpop.f32.mrf.mxu0
        %v3169 = vadd.f32 0.0, %v3168
        %3170 = vmatmul.bf16.gmra.mxu0 %v2028
        %v3171 = vpop.f32.mrf.mxu0
        %v3172 = vadd.f32 0.0, %v3171
        %v3173 = vpop.f32.mrf.mxu0
        %v3174 = vadd.f32 0.0, %v3173
        %3175 = vmatmul.bf16.gmra.mxu0 %v2029
        %v3176 = vpop.f32.mrf.mxu0
        %v3177 = vadd.f32 0.0, %v3176
        %v3178 = vpop.f32.mrf.mxu0
        %v3179 = vadd.f32 0.0, %v3178
        %3180 = vmatmul.bf16.gmra.mxu0 %v2030
        %v3181 = vpop.f32.mrf.mxu0
        %v3182 = vadd.f32 0.0, %v3181
        %v3183 = vpop.f32.mrf.mxu0
        %v3184 = vadd.f32 0.0, %v3183
        %3185 = vmatmul.bf16.gmra.mxu0 %v2031
        %v3186 = vpop.f32.mrf.mxu0
        %v3187 = vadd.f32 0.0, %v3186
        %v3188 = vpop.f32.mrf.mxu0
        %v3189 = vadd.f32 0.0, %v3188
        %3190 = vmatmul.bf16.gmra.mxu0 %v2032
        %v3191 = vpop.f32.mrf.mxu0
        %v3192 = vadd.f32 0.0, %v3191
        %v3193 = vpop.f32.mrf.mxu0
        %v3194 = vadd.f32 0.0, %v3193
        %3195 = vmatmul.bf16.gmra.mxu0 %v2033
        %v3196 = vpop.f32.mrf.mxu0
        %v3197 = vadd.f32 0.0, %v3196
        %v3198 = vpop.f32.mrf.mxu0
        %v3199 = vadd.f32 0.0, %v3198
        %3200 = vmatmul.bf16.gmra.mxu0 %v2034
        %v3201 = vpop.f32.mrf.mxu0
        %v3202 = vadd.f32 0.0, %v3201
        %v3203 = vpop.f32.mrf.mxu0
        %v3204 = vadd.f32 0.0, %v3203
        %3205 = vmatmul.bf16.gmra.mxu0 %v2035
        %v3206 = vpop.f32.mrf.mxu0
        %v3207 = vadd.f32 0.0, %v3206
        %v3208 = vpop.f32.mrf.mxu0
        %v3209 = vadd.f32 0.0, %v3208
        %3210 = vmatmul.bf16.gmra.mxu0 %v2036
        %v3211 = vpop.f32.mrf.mxu0
        %v3212 = vadd.f32 0.0, %v3211
        %v3213 = vpop.f32.mrf.mxu0
        %v3214 = vadd.f32 0.0, %v3213
        %3215 = vmatmul.bf16.gmra.mxu0 %v2037
        %v3216 = vpop.f32.mrf.mxu0
        %v3217 = vadd.f32 0.0, %v3216
        %v3218 = vpop.f32.mrf.mxu0
        %v3219 = vadd.f32 0.0, %v3218
        %3220 = vmatmul.bf16.gmra.mxu0 %v2038
        %v3221 = vpop.f32.mrf.mxu0
        %v3222 = vadd.f32 0.0, %v3221
        %v3223 = vpop.f32.mrf.mxu0
        %v3224 = vadd.f32 0.0, %v3223
        %3225 = vmatmul.bf16.gmra.mxu0 %v2039
        %v3226 = vpop.f32.mrf.mxu0
        %v3227 = vadd.f32 0.0, %v3226
        %v3228 = vpop.f32.mrf.mxu0
        %v3229 = vadd.f32 0.0, %v3228
        %3230 = vmatmul.bf16.gmra.mxu0 %v2040
        %v3231 = vpop.f32.mrf.mxu0
        %v3232 = vadd.f32 0.0, %v3231
        %v3233 = vpop.f32.mrf.mxu0
        %v3234 = vadd.f32 0.0, %v3233
        %3235 = vmatmul.bf16.gmra.mxu0 %v2041
        %v3236 = vpop.f32.mrf.mxu0
        %v3237 = vadd.f32 0.0, %v3236
        %v3238 = vpop.f32.mrf.mxu0
        %v3239 = vadd.f32 0.0, %v3238
        %3240 = vmatmul.bf16.gmra.mxu0 %v2042
        %v3241 = vpop.f32.mrf.mxu0
        %v3242 = vadd.f32 0.0, %v3241
        %v3243 = vpop.f32.mrf.mxu0
        %v3244 = vadd.f32 0.0, %v3243
        %3245 = vmatmul.bf16.gmra.mxu0 %v2043
        %v3246 = vpop.f32.mrf.mxu0
        %v3247 = vadd.f32 0.0, %v3246
        %v3248 = vpop.f32.mrf.mxu0
        %v3249 = vadd.f32 0.0, %v3248
        %3250 = vmatmul.bf16.gmra.mxu0 %v2044
        %v3251 = vpop.f32.mrf.mxu0
        %v3252 = vadd.f32 0.0, %v3251
        %v3253 = vpop.f32.mrf.mxu0
        %v3254 = vadd.f32 0.0, %v3253
        %3255 = vmatmul.bf16.gmra.mxu0 %v2045
        %v3256 = vpop.f32.mrf.mxu0
        %v3257 = vadd.f32 0.0, %v3256
        %v3258 = vpop.f32.mrf.mxu0
        %v3259 = vadd.f32 0.0, %v3258
        %3260 = vmatmul.bf16.gmra.mxu0 %v2046
        %v3261 = vpop.f32.mrf.mxu0
        %v3262 = vadd.f32 0.0, %v3261
        %v3263 = vpop.f32.mrf.mxu0
        %v3264 = vadd.f32 0.0, %v3263
        %3265 = vmatmul.bf16.gmra.mxu0 %v2047
        %v3266 = vpop.f32.mrf.mxu0
        %v3267 = vadd.f32 0.0, %v3266
        %v3268 = vpop.f32.mrf.mxu0
        %v3269 = vadd.f32 0.0, %v3268
        %3270 = vmatmul.bf16.gmra.mxu0 %v2048
        %v3271 = vpop.f32.mrf.mxu0
        %v3272 = vadd.f32 0.0, %v3271
        %v3273 = vpop.f32.mrf.mxu0
        %v3274 = vadd.f32 0.0, %v3273
        %3275 = vmatmul.bf16.gmra.mxu0 %v2049
        %v3276 = vpop.f32.mrf.mxu0
        %v3277 = vadd.f32 0.0, %v3276
        %v3278 = vpop.f32.mrf.mxu0
        %v3279 = vadd.f32 0.0, %v3278
        %3280 = vmatmul.bf16.gmra.mxu0 %v2050
        %v3281 = vpop.f32.mrf.mxu0
        %v3282 = vadd.f32 0.0, %v3281
        %v3283 = vpop.f32.mrf.mxu0
        %v3284 = vadd.f32 0.0, %v3283
        %3285 = vmatmul.bf16.gmra.mxu0 %v2051
        %v3286 = vpop.f32.mrf.mxu0
        %v3287 = vadd.f32 0.0, %v3286
        %v3288 = vpop.f32.mrf.mxu0
        %v3289 = vadd.f32 0.0, %v3288
        %3290 = vmatmul.bf16.gmra.mxu0 %v2052
        %v3291 = vpop.f32.mrf.mxu0
        %v3292 = vadd.f32 0.0, %v3291
        %v3293 = vpop.f32.mrf.mxu0
        %v3294 = vadd.f32 0.0, %v3293
        %3295 = vmatmul.bf16.gmra.mxu0 %v2053
        %v3296 = vpop.f32.mrf.mxu0
        %v3297 = vadd.f32 0.0, %v3296
        %v3298 = vpop.f32.mrf.mxu0
        %v3299 = vadd.f32 0.0, %v3298
        %3300 = vmatmul.bf16.gmra.mxu0 %v2054
        %v3301 = vpop.f32.mrf.mxu0
        %v3302 = vadd.f32 0.0, %v3301
        %v3303 = vpop.f32.mrf.mxu0
        %v3304 = vadd.f32 0.0, %v3303
        %3305 = vmatmul.bf16.gmra.mxu0 %v2055
        %v3306 = vpop.f32.mrf.mxu0
        %v3307 = vadd.f32 0.0, %v3306
        %v3308 = vpop.f32.mrf.mxu0
        %v3309 = vadd.f32 0.0, %v3308
        %3310 = vmatmul.bf16.gmra.mxu0 %v2056
        %v3311 = vpop.f32.mrf.mxu0
        %v3312 = vadd.f32 0.0, %v3311
        %v3313 = vpop.f32.mrf.mxu0
        %v3314 = vadd.f32 0.0, %v3313
        %3315 = vmatmul.bf16.gmra.mxu0 %v2057
        %v3316 = vpop.f32.mrf.mxu0
        %v3317 = vadd.f32 0.0, %v3316
        %v3318 = vpop.f32.mrf.mxu0
        %v3319 = vadd.f32 0.0, %v3318
        %3320 = vmatmul.bf16.gmra.mxu0 %v2058
        %v3321 = vpop.f32.mrf.mxu0
        %v3322 = vadd.f32 0.0, %v3321
        %v3323 = vpop.f32.mrf.mxu0
        %v3324 = vadd.f32 0.0, %v3323
        %3325 = vmatmul.bf16.gmra.mxu0 %v2059
        %v3326 = vpop.f32.mrf.mxu0
        %v3327 = vadd.f32 0.0, %v3326
        %v3328 = vpop.f32.mrf.mxu0
        %v3329 = vadd.f32 0.0, %v3328
        %3330 = vmatmul.bf16.gmra.mxu0 %v2060
        %v3331 = vpop.f32.mrf.mxu0
        %v3332 = vadd.f32 0.0, %v3331
        %v3333 = vpop.f32.mrf.mxu0
        %v3334 = vadd.f32 0.0, %v3333
        %3335 = vmatmul.bf16.gmra.mxu0 %v2061
        %v3336 = vpop.f32.mrf.mxu0
        %v3337 = vadd.f32 0.0, %v3336
        %v3338 = vpop.f32.mrf.mxu0
        %v3339 = vadd.f32 0.0, %v3338
        %3340 = vmatmul.bf16.gmra.mxu0 %v2062
        %v3341 = vpop.f32.mrf.mxu0
        %v3342 = vadd.f32 0.0, %v3341
        %v3343 = vpop.f32.mrf.mxu0
        %v3344 = vadd.f32 0.0, %v3343
        %3345 = vmatmul.bf16.gmra.mxu0 %v2063
        %v3346 = vpop.f32.mrf.mxu0
        %v3347 = vadd.f32 0.0, %v3346
        %v3348 = vpop.f32.mrf.mxu0
        %v3349 = vadd.f32 0.0, %v3348
        %3350 = vmatmul.bf16.gmra.mxu0 %v2064
        %v3351 = vpop.f32.mrf.mxu0
        %v3352 = vadd.f32 0.0, %v3351
        %v3353 = vpop.f32.mrf.mxu0
        %v3354 = vadd.f32 0.0, %v3353
        %3355 = vmatmul.bf16.gmra.mxu0 %v2065
        %v3356 = vpop.f32.mrf.mxu0
        %v3357 = vadd.f32 0.0, %v3356
        %v3358 = vpop.f32.mrf.mxu0
        %v3359 = vadd.f32 0.0, %v3358
        %3360 = vmatmul.bf16.gmra.mxu0 %v2066
        %v3361 = vpop.f32.mrf.mxu0
        %v3362 = vadd.f32 0.0, %v3361
        %v3363 = vpop.f32.mrf.mxu0
        %v3364 = vadd.f32 0.0, %v3363
        %3365 = vmatmul.bf16.gmra.mxu0 %v2067
        %v3366 = vpop.f32.mrf.mxu0
        %v3367 = vadd.f32 0.0, %v3366
        %v3368 = vpop.f32.mrf.mxu0
        %v3369 = vadd.f32 0.0, %v3368
        %3370 = vmatmul.bf16.gmra.mxu0 %v2068
        %v3371 = vpop.f32.mrf.mxu0
        %v3372 = vadd.f32 0.0, %v3371
        %v3373 = vpop.f32.mrf.mxu0
        %v3374 = vadd.f32 0.0, %v3373
        %3375 = vmatmul.bf16.gmra.mxu0 %v2069
        %v3376 = vpop.f32.mrf.mxu0
        %v3377 = vadd.f32 0.0, %v3376
        %v3378 = vpop.f32.mrf.mxu0
        %v3379 = vadd.f32 0.0, %v3378
        %3380 = vmatmul.bf16.gmra.mxu0 %v2070
        %v3381 = vpop.f32.mrf.mxu0
        %v3382 = vadd.f32 0.0, %v3381
        %v3383 = vpop.f32.mrf.mxu0
        %v3384 = vadd.f32 0.0, %v3383
        %3385 = vmatmul.bf16.gmra.mxu0 %v2071
        %v3386 = vpop.f32.mrf.mxu0
        %v3387 = vadd.f32 0.0, %v3386
        %v3388 = vpop.f32.mrf.mxu0
        %v3389 = vadd.f32 0.0, %v3388
        %3390 = vmatmul.bf16.gmra.mxu0 %v2072
        %v3391 = vpop.f32.mrf.mxu0
        %v3392 = vadd.f32 0.0, %v3391
        %v3393 = vpop.f32.mrf.mxu0
        %v3394 = vadd.f32 0.0, %v3393
        %3395 = vmatmul.bf16.gmra.mxu0 %v2073
        %v3396 = vpop.f32.mrf.mxu0
        %v3397 = vadd.f32 0.0, %v3396
        %v3398 = vpop.f32.mrf.mxu0
        %v3399 = vadd.f32 0.0, %v3398
        %3400 = vmatmul.bf16.gmra.mxu0 %v2074
        %v3401 = vpop.f32.mrf.mxu0
        %v3402 = vadd.f32 0.0, %v3401
        %v3403 = vpop.f32.mrf.mxu0
        %v3404 = vadd.f32 0.0, %v3403
        %3405 = vmatmul.bf16.gmra.mxu0 %v2075
        %v3406 = vpop.f32.mrf.mxu0
        %v3407 = vadd.f32 0.0, %v3406
        %v3408 = vpop.f32.mrf.mxu0
        %v3409 = vadd.f32 0.0, %v3408
        %3410 = vmatmul.bf16.gmra.mxu0 %v2076
        %v3411 = vpop.f32.mrf.mxu0
        %v3412 = vadd.f32 0.0, %v3411
        %v3413 = vpop.f32.mrf.mxu0
        %v3414 = vadd.f32 0.0, %v3413
        %3415 = vmatmul.bf16.gmra.mxu0 %v2077
        %v3416 = vpop.f32.mrf.mxu0
        %v3417 = vadd.f32 0.0, %v3416
        %v3418 = vpop.f32.mrf.mxu0
        %v3419 = vadd.f32 0.0, %v3418
        %3420 = vmatmul.bf16.gmra.mxu0 %v2078
        %v3421 = vpop.f32.mrf.mxu0
        %v3422 = vadd.f32 0.0, %v3421
        %v3423 = vpop.f32.mrf.mxu0
        %v3424 = vadd.f32 0.0, %v3423
        %3425 = vmatmul.bf16.gmra.mxu0 %v2079
        %v3426 = vpop.f32.mrf.mxu0
        %v3427 = vadd.f32 0.0, %v3426
        %v3428 = vpop.f32.mrf.mxu0
        %v3429 = vadd.f32 0.0, %v3428
        %3430 = vmatmul.bf16.gmra.mxu0 %v2080
        %v3431 = vpop.f32.mrf.mxu0
        %v3432 = vadd.f32 0.0, %v3431
        %v3433 = vpop.f32.mrf.mxu0
        %v3434 = vadd.f32 0.0, %v3433
        %3435 = vmatmul.bf16.gmra.mxu0 %v2081
        %v3436 = vpop.f32.mrf.mxu0
        %v3437 = vadd.f32 0.0, %v3436
        %v3438 = vpop.f32.mrf.mxu0
        %v3439 = vadd.f32 0.0, %v3438
        %3440 = vmatmul.bf16.gmra.mxu0 %v2082
        %v3441 = vpop.f32.mrf.mxu0
        %v3442 = vadd.f32 0.0, %v3441
        %v3443 = vpop.f32.mrf.mxu0
        %v3444 = vadd.f32 0.0, %v3443
        %3445 = vmatmul.bf16.gmra.mxu0 %v2083
        %v3446 = vpop.f32.mrf.mxu0
        %v3447 = vadd.f32 0.0, %v3446
        %v3448 = vpop.f32.mrf.mxu0
        %v3449 = vadd.f32 0.0, %v3448
        %3450 = vmatmul.bf16.gmra.mxu0 %v2084
        %v3451 = vpop.f32.mrf.mxu0
        %v3452 = vadd.f32 0.0, %v3451
        %v3453 = vpop.f32.mrf.mxu0
        %v3454 = vadd.f32 0.0, %v3453
        %3455 = vdwg.mxu0
        %3456 = vmatpush.bf16.msra.mxu0 %v2400
        %3457 = vmatpush.bf16.msra.mxu0 %v2392
        %3458 = vmatpush.bf16.msra.mxu0 %v2384
        %3459 = vmatpush.bf16.msra.mxu0 %v2376
        %3460 = vmatpush.bf16.msra.mxu0 %v2368
        %3461 = vmatpush.bf16.msra.mxu0 %v2360
        %3462 = vmatpush.bf16.msra.mxu0 %v2352
        %3463 = vmatpush.bf16.msra.mxu0 %v2344
        %3464 = vmatmul.bf16.gmra.mxu0 %v2021
        %v3465 = vpop.f32.mrf.mxu0
        %v3466 = vadd.f32 0.0, %v3465
        %v3467 = vpop.f32.mrf.mxu0
        %v3468 = vadd.f32 0.0, %v3467
        %3469 = vmatmul.bf16.gmra.mxu0 %v2022
        %v3470 = vpop.f32.mrf.mxu0
        %v3471 = vadd.f32 0.0, %v3470
        %v3472 = vpop.f32.mrf.mxu0
        %v3473 = vadd.f32 0.0, %v3472
        %3474 = vmatmul.bf16.gmra.mxu0 %v2023
        %v3475 = vpop.f32.mrf.mxu0
        %v3476 = vadd.f32 0.0, %v3475
        %v3477 = vpop.f32.mrf.mxu0
        %v3478 = vadd.f32 0.0, %v3477
        %3479 = vmatmul.bf16.gmra.mxu0 %v2024
        %v3480 = vpop.f32.mrf.mxu0
        %v3481 = vadd.f32 0.0, %v3480
        %v3482 = vpop.f32.mrf.mxu0
        %v3483 = vadd.f32 0.0, %v3482
        %3484 = vmatmul.bf16.gmra.mxu0 %v2025
        %v3485 = vpop.f32.mrf.mxu0
        %v3486 = vadd.f32 0.0, %v3485
        %v3487 = vpop.f32.mrf.mxu0
        %v3488 = vadd.f32 0.0, %v3487
        %3489 = vmatmul.bf16.gmra.mxu0 %v2026
        %v3490 = vpop.f32.mrf.mxu0
        %v3491 = vadd.f32 0.0, %v3490
        %v3492 = vpop.f32.mrf.mxu0
        %v3493 = vadd.f32 0.0, %v3492
        %3494 = vmatmul.bf16.gmra.mxu0 %v2027
        %v3495 = vpop.f32.mrf.mxu0
        %v3496 = vadd.f32 0.0, %v3495
        %v3497 = vpop.f32.mrf.mxu0
        %v3498 = vadd.f32 0.0, %v3497
        %3499 = vmatmul.bf16.gmra.mxu0 %v2028
        %v3500 = vpop.f32.mrf.mxu0
        %v3501 = vadd.f32 0.0, %v3500
        %v3502 = vpop.f32.mrf.mxu0
        %v3503 = vadd.f32 0.0, %v3502
        %3504 = vmatmul.bf16.gmra.mxu0 %v2029
        %v3505 = vpop.f32.mrf.mxu0
        %v3506 = vadd.f32 0.0, %v3505
        %v3507 = vpop.f32.mrf.mxu0
        %v3508 = vadd.f32 0.0, %v3507
        %3509 = vmatmul.bf16.gmra.mxu0 %v2030
        %v3510 = vpop.f32.mrf.mxu0
        %v3511 = vadd.f32 0.0, %v3510
        %v3512 = vpop.f32.mrf.mxu0
        %v3513 = vadd.f32 0.0, %v3512
        %3514 = vmatmul.bf16.gmra.mxu0 %v2031
        %v3515 = vpop.f32.mrf.mxu0
        %v3516 = vadd.f32 0.0, %v3515
        %v3517 = vpop.f32.mrf.mxu0
        %v3518 = vadd.f32 0.0, %v3517
        %3519 = vmatmul.bf16.gmra.mxu0 %v2032
        %v3520 = vpop.f32.mrf.mxu0
        %v3521 = vadd.f32 0.0, %v3520
        %v3522 = vpop.f32.mrf.mxu0
        %v3523 = vadd.f32 0.0, %v3522
        %3524 = vmatmul.bf16.gmra.mxu0 %v2033
        %v3525 = vpop.f32.mrf.mxu0
        %v3526 = vadd.f32 0.0, %v3525
        %v3527 = vpop.f32.mrf.mxu0
        %v3528 = vadd.f32 0.0, %v3527
        %3529 = vmatmul.bf16.gmra.mxu0 %v2034
        %v3530 = vpop.f32.mrf.mxu0
        %v3531 = vadd.f32 0.0, %v3530
        %v3532 = vpop.f32.mrf.mxu0
        %v3533 = vadd.f32 0.0, %v3532
        %3534 = vmatmul.bf16.gmra.mxu0 %v2035
        %v3535 = vpop.f32.mrf.mxu0
        %v3536 = vadd.f32 0.0, %v3535
        %v3537 = vpop.f32.mrf.mxu0
        %v3538 = vadd.f32 0.0, %v3537
        %3539 = vmatmul.bf16.gmra.mxu0 %v2036
        %v3540 = vpop.f32.mrf.mxu0
        %v3541 = vadd.f32 0.0, %v3540
        %v3542 = vpop.f32.mrf.mxu0
        %v3543 = vadd.f32 0.0, %v3542
        %3544 = vmatmul.bf16.gmra.mxu0 %v2037
        %v3545 = vpop.f32.mrf.mxu0
        %v3546 = vadd.f32 0.0, %v3545
        %v3547 = vpop.f32.mrf.mxu0
        %v3548 = vadd.f32 0.0, %v3547
        %3549 = vmatmul.bf16.gmra.mxu0 %v2038
        %v3550 = vpop.f32.mrf.mxu0
        %v3551 = vadd.f32 0.0, %v3550
        %v3552 = vpop.f32.mrf.mxu0
        %v3553 = vadd.f32 0.0, %v3552
        %3554 = vmatmul.bf16.gmra.mxu0 %v2039
        %v3555 = vpop.f32.mrf.mxu0
        %v3556 = vadd.f32 0.0, %v3555
        %v3557 = vpop.f32.mrf.mxu0
        %v3558 = vadd.f32 0.0, %v3557
        %3559 = vmatmul.bf16.gmra.mxu0 %v2040
        %v3560 = vpop.f32.mrf.mxu0
        %v3561 = vadd.f32 0.0, %v3560
        %v3562 = vpop.f32.mrf.mxu0
        %v3563 = vadd.f32 0.0, %v3562
        %3564 = vmatmul.bf16.gmra.mxu0 %v2041
        %v3565 = vpop.f32.mrf.mxu0
        %v3566 = vadd.f32 0.0, %v3565
        %v3567 = vpop.f32.mrf.mxu0
        %v3568 = vadd.f32 0.0, %v3567
        %3569 = vmatmul.bf16.gmra.mxu0 %v2042
        %v3570 = vpop.f32.mrf.mxu0
        %v3571 = vadd.f32 0.0, %v3570
        %v3572 = vpop.f32.mrf.mxu0
        %v3573 = vadd.f32 0.0, %v3572
        %3574 = vmatmul.bf16.gmra.mxu0 %v2043
        %v3575 = vpop.f32.mrf.mxu0
        %v3576 = vadd.f32 0.0, %v3575
        %v3577 = vpop.f32.mrf.mxu0
        %v3578 = vadd.f32 0.0, %v3577
        %3579 = vmatmul.bf16.gmra.mxu0 %v2044
        %v3580 = vpop.f32.mrf.mxu0
        %v3581 = vadd.f32 0.0, %v3580
        %v3582 = vpop.f32.mrf.mxu0
        %v3583 = vadd.f32 0.0, %v3582
        %3584 = vmatmul.bf16.gmra.mxu0 %v2045
        %v3585 = vpop.f32.mrf.mxu0
        %v3586 = vadd.f32 0.0, %v3585
        %v3587 = vpop.f32.mrf.mxu0
        %v3588 = vadd.f32 0.0, %v3587
        %3589 = vmatmul.bf16.gmra.mxu0 %v2046
        %v3590 = vpop.f32.mrf.mxu0
        %v3591 = vadd.f32 0.0, %v3590
        %v3592 = vpop.f32.mrf.mxu0
        %v3593 = vadd.f32 0.0, %v3592
        %3594 = vmatmul.bf16.gmra.mxu0 %v2047
        %v3595 = vpop.f32.mrf.mxu0
        %v3596 = vadd.f32 0.0, %v3595
        %v3597 = vpop.f32.mrf.mxu0
        %v3598 = vadd.f32 0.0, %v3597
        %3599 = vmatmul.bf16.gmra.mxu0 %v2048
        %v3600 = vpop.f32.mrf.mxu0
        %v3601 = vadd.f32 0.0, %v3600
        %v3602 = vpop.f32.mrf.mxu0
        %v3603 = vadd.f32 0.0, %v3602
        %3604 = vmatmul.bf16.gmra.mxu0 %v2049
        %v3605 = vpop.f32.mrf.mxu0
        %v3606 = vadd.f32 0.0, %v3605
        %v3607 = vpop.f32.mrf.mxu0
        %v3608 = vadd.f32 0.0, %v3607
        %3609 = vmatmul.bf16.gmra.mxu0 %v2050
        %v3610 = vpop.f32.mrf.mxu0
        %v3611 = vadd.f32 0.0, %v3610
        %v3612 = vpop.f32.mrf.mxu0
        %v3613 = vadd.f32 0.0, %v3612
        %3614 = vmatmul.bf16.gmra.mxu0 %v2051
        %v3615 = vpop.f32.mrf.mxu0
        %v3616 = vadd.f32 0.0, %v3615
        %v3617 = vpop.f32.mrf.mxu0
        %v3618 = vadd.f32 0.0, %v3617
        %3619 = vmatmul.bf16.gmra.mxu0 %v2052
        %v3620 = vpop.f32.mrf.mxu0
        %v3621 = vadd.f32 0.0, %v3620
        %v3622 = vpop.f32.mrf.mxu0
        %v3623 = vadd.f32 0.0, %v3622
        %3624 = vmatmul.bf16.gmra.mxu0 %v2053
        %v3625 = vpop.f32.mrf.mxu0
        %v3626 = vadd.f32 0.0, %v3625
        %v3627 = vpop.f32.mrf.mxu0
        %v3628 = vadd.f32 0.0, %v3627
        %3629 = vmatmul.bf16.gmra.mxu0 %v2054
        %v3630 = vpop.f32.mrf.mxu0
        %v3631 = vadd.f32 0.0, %v3630
        %v3632 = vpop.f32.mrf.mxu0
        %v3633 = vadd.f32 0.0, %v3632
        %3634 = vmatmul.bf16.gmra.mxu0 %v2055
        %v3635 = vpop.f32.mrf.mxu0
        %v3636 = vadd.f32 0.0, %v3635
        %v3637 = vpop.f32.mrf.mxu0
        %v3638 = vadd.f32 0.0, %v3637
        %3639 = vmatmul.bf16.gmra.mxu0 %v2056
        %v3640 = vpop.f32.mrf.mxu0
        %v3641 = vadd.f32 0.0, %v3640
        %v3642 = vpop.f32.mrf.mxu0
        %v3643 = vadd.f32 0.0, %v3642
        %3644 = vmatmul.bf16.gmra.mxu0 %v2057
        %v3645 = vpop.f32.mrf.mxu0
        %v3646 = vadd.f32 0.0, %v3645
        %v3647 = vpop.f32.mrf.mxu0
        %v3648 = vadd.f32 0.0, %v3647
        %3649 = vmatmul.bf16.gmra.mxu0 %v2058
        %v3650 = vpop.f32.mrf.mxu0
        %v3651 = vadd.f32 0.0, %v3650
        %v3652 = vpop.f32.mrf.mxu0
        %v3653 = vadd.f32 0.0, %v3652
        %3654 = vmatmul.bf16.gmra.mxu0 %v2059
        %v3655 = vpop.f32.mrf.mxu0
        %v3656 = vadd.f32 0.0, %v3655
        %v3657 = vpop.f32.mrf.mxu0
        %v3658 = vadd.f32 0.0, %v3657
        %3659 = vmatmul.bf16.gmra.mxu0 %v2060
        %v3660 = vpop.f32.mrf.mxu0
        %v3661 = vadd.f32 0.0, %v3660
        %v3662 = vpop.f32.mrf.mxu0
        %v3663 = vadd.f32 0.0, %v3662
        %3664 = vmatmul.bf16.gmra.mxu0 %v2061
        %v3665 = vpop.f32.mrf.mxu0
        %v3666 = vadd.f32 0.0, %v3665
        %v3667 = vpop.f32.mrf.mxu0
        %v3668 = vadd.f32 0.0, %v3667
        %3669 = vmatmul.bf16.gmra.mxu0 %v2062
        %v3670 = vpop.f32.mrf.mxu0
        %v3671 = vadd.f32 0.0, %v3670
        %v3672 = vpop.f32.mrf.mxu0
        %v3673 = vadd.f32 0.0, %v3672
        %3674 = vmatmul.bf16.gmra.mxu0 %v2063
        %v3675 = vpop.f32.mrf.mxu0
        %v3676 = vadd.f32 0.0, %v3675
        %v3677 = vpop.f32.mrf.mxu0
        %v3678 = vadd.f32 0.0, %v3677
        %3679 = vmatmul.bf16.gmra.mxu0 %v2064
        %v3680 = vpop.f32.mrf.mxu0
        %v3681 = vadd.f32 0.0, %v3680
        %v3682 = vpop.f32.mrf.mxu0
        %v3683 = vadd.f32 0.0, %v3682
        %3684 = vmatmul.bf16.gmra.mxu0 %v2065
        %v3685 = vpop.f32.mrf.mxu0
        %v3686 = vadd.f32 0.0, %v3685
        %v3687 = vpop.f32.mrf.mxu0
        %v3688 = vadd.f32 0.0, %v3687
        %3689 = vmatmul.bf16.gmra.mxu0 %v2066
        %v3690 = vpop.f32.mrf.mxu0
        %v3691 = vadd.f32 0.0, %v3690
        %v3692 = vpop.f32.mrf.mxu0
        %v3693 = vadd.f32 0.0, %v3692
        %3694 = vmatmul.bf16.gmra.mxu0 %v2067
        %v3695 = vpop.f32.mrf.mxu0
        %v3696 = vadd.f32 0.0, %v3695
        %v3697 = vpop.f32.mrf.mxu0
        %v3698 = vadd.f32 0.0, %v3697
        %3699 = vmatmul.bf16.gmra.mxu0 %v2068
        %v3700 = vpop.f32.mrf.mxu0
        %v3701 = vadd.f32 0.0, %v3700
        %v3702 = vpop.f32.mrf.mxu0
        %v3703 = vadd.f32 0.0, %v3702
        %3704 = vmatmul.bf16.gmra.mxu0 %v2069
        %v3705 = vpop.f32.mrf.mxu0
        %v3706 = vadd.f32 0.0, %v3705
        %v3707 = vpop.f32.mrf.mxu0
        %v3708 = vadd.f32 0.0, %v3707
        %3709 = vmatmul.bf16.gmra.mxu0 %v2070
        %v3710 = vpop.f32.mrf.mxu0
        %v3711 = vadd.f32 0.0, %v3710
        %v3712 = vpop.f32.mrf.mxu0
        %v3713 = vadd.f32 0.0, %v3712
        %3714 = vmatmul.bf16.gmra.mxu0 %v2071
        %v3715 = vpop.f32.mrf.mxu0
        %v3716 = vadd.f32 0.0, %v3715
        %v3717 = vpop.f32.mrf.mxu0
        %v3718 = vadd.f32 0.0, %v3717
        %3719 = vmatmul.bf16.gmra.mxu0 %v2072
        %v3720 = vpop.f32.mrf.mxu0
        %v3721 = vadd.f32 0.0, %v3720
        %v3722 = vpop.f32.mrf.mxu0
        %v3723 = vadd.f32 0.0, %v3722
        %3724 = vmatmul.bf16.gmra.mxu0 %v2073
        %v3725 = vpop.f32.mrf.mxu0
        %v3726 = vadd.f32 0.0, %v3725
        %v3727 = vpop.f32.mrf.mxu0
        %v3728 = vadd.f32 0.0, %v3727
        %3729 = vmatmul.bf16.gmra.mxu0 %v2074
        %v3730 = vpop.f32.mrf.mxu0
        %v3731 = vadd.f32 0.0, %v3730
        %v3732 = vpop.f32.mrf.mxu0
        %v3733 = vadd.f32 0.0, %v3732
        %3734 = vmatmul.bf16.gmra.mxu0 %v2075
        %v3735 = vpop.f32.mrf.mxu0
        %v3736 = vadd.f32 0.0, %v3735
        %v3737 = vpop.f32.mrf.mxu0
        %v3738 = vadd.f32 0.0, %v3737
        %3739 = vmatmul.bf16.gmra.mxu0 %v2076
        %v3740 = vpop.f32.mrf.mxu0
        %v3741 = vadd.f32 0.0, %v3740
        %v3742 = vpop.f32.mrf.mxu0
        %v3743 = vadd.f32 0.0, %v3742
        %3744 = vmatmul.bf16.gmra.mxu0 %v2077
        %v3745 = vpop.f32.mrf.mxu0
        %v3746 = vadd.f32 0.0, %v3745
        %v3747 = vpop.f32.mrf.mxu0
        %v3748 = vadd.f32 0.0, %v3747
        %3749 = vmatmul.bf16.gmra.mxu0 %v2078
        %v3750 = vpop.f32.mrf.mxu0
        %v3751 = vadd.f32 0.0, %v3750
        %v3752 = vpop.f32.mrf.mxu0
        %v3753 = vadd.f32 0.0, %v3752
        %3754 = vmatmul.bf16.gmra.mxu0 %v2079
        %v3755 = vpop.f32.mrf.mxu0
        %v3756 = vadd.f32 0.0, %v3755
        %v3757 = vpop.f32.mrf.mxu0
        %v3758 = vadd.f32 0.0, %v3757
        %3759 = vmatmul.bf16.gmra.mxu0 %v2080
        %v3760 = vpop.f32.mrf.mxu0
        %v3761 = vadd.f32 0.0, %v3760
        %v3762 = vpop.f32.mrf.mxu0
        %v3763 = vadd.f32 0.0, %v3762
        %3764 = vmatmul.bf16.gmra.mxu0 %v2081
        %v3765 = vpop.f32.mrf.mxu0
        %v3766 = vadd.f32 0.0, %v3765
        %v3767 = vpop.f32.mrf.mxu0
        %v3768 = vadd.f32 0.0, %v3767
        %3769 = vmatmul.bf16.gmra.mxu0 %v2082
        %v3770 = vpop.f32.mrf.mxu0
        %v3771 = vadd.f32 0.0, %v3770
        %v3772 = vpop.f32.mrf.mxu0
        %v3773 = vadd.f32 0.0, %v3772
        %3774 = vmatmul.bf16.gmra.mxu0 %v2083
        %v3775 = vpop.f32.mrf.mxu0
        %v3776 = vadd.f32 0.0, %v3775
        %v3777 = vpop.f32.mrf.mxu0
        %v3778 = vadd.f32 0.0, %v3777
        %3779 = vmatmul.bf16.gmra.mxu0 %v2084
        %v3780 = vpop.f32.mrf.mxu0
        %v3781 = vadd.f32 0.0, %v3780
        %v3782 = vpop.f32.mrf.mxu0
        %v3783 = vadd.f32 0.0, %v3782
        %3784 = vdwg.mxu0
        %3785 = vmatpush.bf16.msra.mxu0 %v2401
        %3786 = vmatpush.bf16.msra.mxu0 %v2393
        %3787 = vmatpush.bf16.msra.mxu0 %v2385
        %3788 = vmatpush.bf16.msra.mxu0 %v2377
        %3789 = vmatpush.bf16.msra.mxu0 %v2369
        %3790 = vmatpush.bf16.msra.mxu0 %v2361
        %3791 = vmatpush.bf16.msra.mxu0 %v2353
        %3792 = vmatpush.bf16.msra.mxu0 %v2345
        %3793 = vmatmul.bf16.gmra.mxu0 %v2021
        %v3794 = vpop.f32.mrf.mxu0
        %v3795 = vadd.f32 0.0, %v3794
        %v3796 = vpop.f32.mrf.mxu0
        %v3797 = vadd.f32 0.0, %v3796
        %3798 = vmatmul.bf16.gmra.mxu0 %v2022
        %v3799 = vpop.f32.mrf.mxu0
        %v3800 = vadd.f32 0.0, %v3799
        %v3801 = vpop.f32.mrf.mxu0
        %v3802 = vadd.f32 0.0, %v3801
        %3803 = vmatmul.bf16.gmra.mxu0 %v2023
        %v3804 = vpop.f32.mrf.mxu0
        %v3805 = vadd.f32 0.0, %v3804
        %v3806 = vpop.f32.mrf.mxu0
        %v3807 = vadd.f32 0.0, %v3806
        %3808 = vmatmul.bf16.gmra.mxu0 %v2024
        %v3809 = vpop.f32.mrf.mxu0
        %v3810 = vadd.f32 0.0, %v3809
        %v3811 = vpop.f32.mrf.mxu0
        %v3812 = vadd.f32 0.0, %v3811
        %3813 = vmatmul.bf16.gmra.mxu0 %v2025
        %v3814 = vpop.f32.mrf.mxu0
        %v3815 = vadd.f32 0.0, %v3814
        %v3816 = vpop.f32.mrf.mxu0
        %v3817 = vadd.f32 0.0, %v3816
        %3818 = vmatmul.bf16.gmra.mxu0 %v2026
        %v3819 = vpop.f32.mrf.mxu0
        %v3820 = vadd.f32 0.0, %v3819
        %v3821 = vpop.f32.mrf.mxu0
        %v3822 = vadd.f32 0.0, %v3821
        %3823 = vmatmul.bf16.gmra.mxu0 %v2027
        %v3824 = vpop.f32.mrf.mxu0
        %v3825 = vadd.f32 0.0, %v3824
        %v3826 = vpop.f32.mrf.mxu0
        %v3827 = vadd.f32 0.0, %v3826
        %3828 = vmatmul.bf16.gmra.mxu0 %v2028
        %v3829 = vpop.f32.mrf.mxu0
        %v3830 = vadd.f32 0.0, %v3829
        %v3831 = vpop.f32.mrf.mxu0
        %v3832 = vadd.f32 0.0, %v3831
        %3833 = vmatmul.bf16.gmra.mxu0 %v2029
        %v3834 = vpop.f32.mrf.mxu0
        %v3835 = vadd.f32 0.0, %v3834
        %v3836 = vpop.f32.mrf.mxu0
        %v3837 = vadd.f32 0.0, %v3836
        %3838 = vmatmul.bf16.gmra.mxu0 %v2030
        %v3839 = vpop.f32.mrf.mxu0
        %v3840 = vadd.f32 0.0, %v3839
        %v3841 = vpop.f32.mrf.mxu0
        %v3842 = vadd.f32 0.0, %v3841
        %3843 = vmatmul.bf16.gmra.mxu0 %v2031
        %v3844 = vpop.f32.mrf.mxu0
        %v3845 = vadd.f32 0.0, %v3844
        %v3846 = vpop.f32.mrf.mxu0
        %v3847 = vadd.f32 0.0, %v3846
        %3848 = vmatmul.bf16.gmra.mxu0 %v2032
        %v3849 = vpop.f32.mrf.mxu0
        %v3850 = vadd.f32 0.0, %v3849
        %v3851 = vpop.f32.mrf.mxu0
        %v3852 = vadd.f32 0.0, %v3851
        %3853 = vmatmul.bf16.gmra.mxu0 %v2033
        %v3854 = vpop.f32.mrf.mxu0
        %v3855 = vadd.f32 0.0, %v3854
        %v3856 = vpop.f32.mrf.mxu0
        %v3857 = vadd.f32 0.0, %v3856
        %3858 = vmatmul.bf16.gmra.mxu0 %v2034
        %v3859 = vpop.f32.mrf.mxu0
        %v3860 = vadd.f32 0.0, %v3859
        %v3861 = vpop.f32.mrf.mxu0
        %v3862 = vadd.f32 0.0, %v3861
        %3863 = vmatmul.bf16.gmra.mxu0 %v2035
        %v3864 = vpop.f32.mrf.mxu0
        %v3865 = vadd.f32 0.0, %v3864
        %v3866 = vpop.f32.mrf.mxu0
        %v3867 = vadd.f32 0.0, %v3866
        %3868 = vmatmul.bf16.gmra.mxu0 %v2036
        %v3869 = vpop.f32.mrf.mxu0
        %v3870 = vadd.f32 0.0, %v3869
        %v3871 = vpop.f32.mrf.mxu0
        %v3872 = vadd.f32 0.0, %v3871
        %3873 = vmatmul.bf16.gmra.mxu0 %v2037
        %v3874 = vpop.f32.mrf.mxu0
        %v3875 = vadd.f32 0.0, %v3874
        %v3876 = vpop.f32.mrf.mxu0
        %v3877 = vadd.f32 0.0, %v3876
        %3878 = vmatmul.bf16.gmra.mxu0 %v2038
        %v3879 = vpop.f32.mrf.mxu0
        %v3880 = vadd.f32 0.0, %v3879
        %v3881 = vpop.f32.mrf.mxu0
        %v3882 = vadd.f32 0.0, %v3881
        %3883 = vmatmul.bf16.gmra.mxu0 %v2039
        %v3884 = vpop.f32.mrf.mxu0
        %v3885 = vadd.f32 0.0, %v3884
        %v3886 = vpop.f32.mrf.mxu0
        %v3887 = vadd.f32 0.0, %v3886
        %3888 = vmatmul.bf16.gmra.mxu0 %v2040
        %v3889 = vpop.f32.mrf.mxu0
        %v3890 = vadd.f32 0.0, %v3889
        %v3891 = vpop.f32.mrf.mxu0
        %v3892 = vadd.f32 0.0, %v3891
        %3893 = vmatmul.bf16.gmra.mxu0 %v2041
        %v3894 = vpop.f32.mrf.mxu0
        %v3895 = vadd.f32 0.0, %v3894
        %v3896 = vpop.f32.mrf.mxu0
        %v3897 = vadd.f32 0.0, %v3896
        %3898 = vmatmul.bf16.gmra.mxu0 %v2042
        %v3899 = vpop.f32.mrf.mxu0
        %v3900 = vadd.f32 0.0, %v3899
        %v3901 = vpop.f32.mrf.mxu0
        %v3902 = vadd.f32 0.0, %v3901
        %3903 = vmatmul.bf16.gmra.mxu0 %v2043
        %v3904 = vpop.f32.mrf.mxu0
        %v3905 = vadd.f32 0.0, %v3904
        %v3906 = vpop.f32.mrf.mxu0
        %v3907 = vadd.f32 0.0, %v3906
        %3908 = vmatmul.bf16.gmra.mxu0 %v2044
        %v3909 = vpop.f32.mrf.mxu0
        %v3910 = vadd.f32 0.0, %v3909
        %v3911 = vpop.f32.mrf.mxu0
        %v3912 = vadd.f32 0.0, %v3911
        %3913 = vmatmul.bf16.gmra.mxu0 %v2045
        %v3914 = vpop.f32.mrf.mxu0
        %v3915 = vadd.f32 0.0, %v3914
        %v3916 = vpop.f32.mrf.mxu0
        %v3917 = vadd.f32 0.0, %v3916
        %3918 = vmatmul.bf16.gmra.mxu0 %v2046
        %v3919 = vpop.f32.mrf.mxu0
        %v3920 = vadd.f32 0.0, %v3919
        %v3921 = vpop.f32.mrf.mxu0
        %v3922 = vadd.f32 0.0, %v3921
        %3923 = vmatmul.bf16.gmra.mxu0 %v2047
        %v3924 = vpop.f32.mrf.mxu0
        %v3925 = vadd.f32 0.0, %v3924
        %v3926 = vpop.f32.mrf.mxu0
        %v3927 = vadd.f32 0.0, %v3926
        %3928 = vmatmul.bf16.gmra.mxu0 %v2048
        %v3929 = vpop.f32.mrf.mxu0
        %v3930 = vadd.f32 0.0, %v3929
        %v3931 = vpop.f32.mrf.mxu0
        %v3932 = vadd.f32 0.0, %v3931
        %3933 = vmatmul.bf16.gmra.mxu0 %v2049
        %v3934 = vpop.f32.mrf.mxu0
        %v3935 = vadd.f32 0.0, %v3934
        %v3936 = vpop.f32.mrf.mxu0
        %v3937 = vadd.f32 0.0, %v3936
        %3938 = vmatmul.bf16.gmra.mxu0 %v2050
        %v3939 = vpop.f32.mrf.mxu0
        %v3940 = vadd.f32 0.0, %v3939
        %v3941 = vpop.f32.mrf.mxu0
        %v3942 = vadd.f32 0.0, %v3941
        %3943 = vmatmul.bf16.gmra.mxu0 %v2051
        %v3944 = vpop.f32.mrf.mxu0
        %v3945 = vadd.f32 0.0, %v3944
        %v3946 = vpop.f32.mrf.mxu0
        %v3947 = vadd.f32 0.0, %v3946
        %3948 = vmatmul.bf16.gmra.mxu0 %v2052
        %v3949 = vpop.f32.mrf.mxu0
        %v3950 = vadd.f32 0.0, %v3949
        %v3951 = vpop.f32.mrf.mxu0
        %v3952 = vadd.f32 0.0, %v3951
        %3953 = vmatmul.bf16.gmra.mxu0 %v2053
        %v3954 = vpop.f32.mrf.mxu0
        %v3955 = vadd.f32 0.0, %v3954
        %v3956 = vpop.f32.mrf.mxu0
        %v3957 = vadd.f32 0.0, %v3956
        %3958 = vmatmul.bf16.gmra.mxu0 %v2054
        %v3959 = vpop.f32.mrf.mxu0
        %v3960 = vadd.f32 0.0, %v3959
        %v3961 = vpop.f32.mrf.mxu0
        %v3962 = vadd.f32 0.0, %v3961
        %3963 = vmatmul.bf16.gmra.mxu0 %v2055
        %v3964 = vpop.f32.mrf.mxu0
        %v3965 = vadd.f32 0.0, %v3964
        %v3966 = vpop.f32.mrf.mxu0
        %v3967 = vadd.f32 0.0, %v3966
        %3968 = vmatmul.bf16.gmra.mxu0 %v2056
        %v3969 = vpop.f32.mrf.mxu0
        %v3970 = vadd.f32 0.0, %v3969
        %v3971 = vpop.f32.mrf.mxu0
        %v3972 = vadd.f32 0.0, %v3971
        %3973 = vmatmul.bf16.gmra.mxu0 %v2057
        %v3974 = vpop.f32.mrf.mxu0
        %v3975 = vadd.f32 0.0, %v3974
        %v3976 = vpop.f32.mrf.mxu0
        %v3977 = vadd.f32 0.0, %v3976
        %3978 = vmatmul.bf16.gmra.mxu0 %v2058
        %v3979 = vpop.f32.mrf.mxu0
        %v3980 = vadd.f32 0.0, %v3979
        %v3981 = vpop.f32.mrf.mxu0
        %v3982 = vadd.f32 0.0, %v3981
        %3983 = vmatmul.bf16.gmra.mxu0 %v2059
        %v3984 = vpop.f32.mrf.mxu0
        %v3985 = vadd.f32 0.0, %v3984
        %v3986 = vpop.f32.mrf.mxu0
        %v3987 = vadd.f32 0.0, %v3986
        %3988 = vmatmul.bf16.gmra.mxu0 %v2060
        %v3989 = vpop.f32.mrf.mxu0
        %v3990 = vadd.f32 0.0, %v3989
        %v3991 = vpop.f32.mrf.mxu0
        %v3992 = vadd.f32 0.0, %v3991
        %3993 = vmatmul.bf16.gmra.mxu0 %v2061
        %v3994 = vpop.f32.mrf.mxu0
        %v3995 = vadd.f32 0.0, %v3994
        %v3996 = vpop.f32.mrf.mxu0
        %v3997 = vadd.f32 0.0, %v3996
        %3998 = vmatmul.bf16.gmra.mxu0 %v2062
        %v3999 = vpop.f32.mrf.mxu0
        %v4000 = vadd.f32 0.0, %v3999
        %v4001 = vpop.f32.mrf.mxu0
        %v4002 = vadd.f32 0.0, %v4001
        %4003 = vmatmul.bf16.gmra.mxu0 %v2063
        %v4004 = vpop.f32.mrf.mxu0
        %v4005 = vadd.f32 0.0, %v4004
        %v4006 = vpop.f32.mrf.mxu0
        %v4007 = vadd.f32 0.0, %v4006
        %4008 = vmatmul.bf16.gmra.mxu0 %v2064
        %v4009 = vpop.f32.mrf.mxu0
        %v4010 = vadd.f32 0.0, %v4009
        %v4011 = vpop.f32.mrf.mxu0
        %v4012 = vadd.f32 0.0, %v4011
        %4013 = vmatmul.bf16.gmra.mxu0 %v2065
        %v4014 = vpop.f32.mrf.mxu0
        %v4015 = vadd.f32 0.0, %v4014
        %v4016 = vpop.f32.mrf.mxu0
        %v4017 = vadd.f32 0.0, %v4016
        %4018 = vmatmul.bf16.gmra.mxu0 %v2066
        %v4019 = vpop.f32.mrf.mxu0
        %v4020 = vadd.f32 0.0, %v4019
        %v4021 = vpop.f32.mrf.mxu0
        %v4022 = vadd.f32 0.0, %v4021
        %4023 = vmatmul.bf16.gmra.mxu0 %v2067
        %v4024 = vpop.f32.mrf.mxu0
        %v4025 = vadd.f32 0.0, %v4024
        %v4026 = vpop.f32.mrf.mxu0
        %v4027 = vadd.f32 0.0, %v4026
        %4028 = vmatmul.bf16.gmra.mxu0 %v2068
        %v4029 = vpop.f32.mrf.mxu0
        %v4030 = vadd.f32 0.0, %v4029
        %v4031 = vpop.f32.mrf.mxu0
        %v4032 = vadd.f32 0.0, %v4031
        %4033 = vmatmul.bf16.gmra.mxu0 %v2069
        %v4034 = vpop.f32.mrf.mxu0
        %v4035 = vadd.f32 0.0, %v4034
        %v4036 = vpop.f32.mrf.mxu0
        %v4037 = vadd.f32 0.0, %v4036
        %4038 = vmatmul.bf16.gmra.mxu0 %v2070
        %v4039 = vpop.f32.mrf.mxu0
        %v4040 = vadd.f32 0.0, %v4039
        %v4041 = vpop.f32.mrf.mxu0
        %v4042 = vadd.f32 0.0, %v4041
        %4043 = vmatmul.bf16.gmra.mxu0 %v2071
        %v4044 = vpop.f32.mrf.mxu0
        %v4045 = vadd.f32 0.0, %v4044
        %v4046 = vpop.f32.mrf.mxu0
        %v4047 = vadd.f32 0.0, %v4046
        %4048 = vmatmul.bf16.gmra.mxu0 %v2072
        %v4049 = vpop.f32.mrf.mxu0
        %v4050 = vadd.f32 0.0, %v4049
        %v4051 = vpop.f32.mrf.mxu0
        %v4052 = vadd.f32 0.0, %v4051
        %4053 = vmatmul.bf16.gmra.mxu0 %v2073
        %v4054 = vpop.f32.mrf.mxu0
        %v4055 = vadd.f32 0.0, %v4054
        %v4056 = vpop.f32.mrf.mxu0
        %v4057 = vadd.f32 0.0, %v4056
        %4058 = vmatmul.bf16.gmra.mxu0 %v2074
        %v4059 = vpop.f32.mrf.mxu0
        %v4060 = vadd.f32 0.0, %v4059
        %v4061 = vpop.f32.mrf.mxu0
        %v4062 = vadd.f32 0.0, %v4061
        %4063 = vmatmul.bf16.gmra.mxu0 %v2075
        %v4064 = vpop.f32.mrf.mxu0
        %v4065 = vadd.f32 0.0, %v4064
        %v4066 = vpop.f32.mrf.mxu0
        %v4067 = vadd.f32 0.0, %v4066
        %4068 = vmatmul.bf16.gmra.mxu0 %v2076
        %v4069 = vpop.f32.mrf.mxu0
        %v4070 = vadd.f32 0.0, %v4069
        %v4071 = vpop.f32.mrf.mxu0
        %v4072 = vadd.f32 0.0, %v4071
        %4073 = vmatmul.bf16.gmra.mxu0 %v2077
        %v4074 = vpop.f32.mrf.mxu0
        %v4075 = vadd.f32 0.0, %v4074
        %v4076 = vpop.f32.mrf.mxu0
        %v4077 = vadd.f32 0.0, %v4076
        %4078 = vmatmul.bf16.gmra.mxu0 %v2078
        %v4079 = vpop.f32.mrf.mxu0
        %v4080 = vadd.f32 0.0, %v4079
        %v4081 = vpop.f32.mrf.mxu0
        %v4082 = vadd.f32 0.0, %v4081
        %4083 = vmatmul.bf16.gmra.mxu0 %v2079
        %v4084 = vpop.f32.mrf.mxu0
        %v4085 = vadd.f32 0.0, %v4084
        %v4086 = vpop.f32.mrf.mxu0
        %v4087 = vadd.f32 0.0, %v4086
        %4088 = vmatmul.bf16.gmra.mxu0 %v2080
        %v4089 = vpop.f32.mrf.mxu0
        %v4090 = vadd.f32 0.0, %v4089
        %v4091 = vpop.f32.mrf.mxu0
        %v4092 = vadd.f32 0.0, %v4091
        %4093 = vmatmul.bf16.gmra.mxu0 %v2081
        %v4094 = vpop.f32.mrf.mxu0
        %v4095 = vadd.f32 0.0, %v4094
        %v4096 = vpop.f32.mrf.mxu0
        %v4097 = vadd.f32 0.0, %v4096
        %4098 = vmatmul.bf16.gmra.mxu0 %v2082
        %v4099 = vpop.f32.mrf.mxu0
        %v4100 = vadd.f32 0.0, %v4099
        %v4101 = vpop.f32.mrf.mxu0
        %v4102 = vadd.f32 0.0, %v4101
        %4103 = vmatmul.bf16.gmra.mxu0 %v2083
        %v4104 = vpop.f32.mrf.mxu0
        %v4105 = vadd.f32 0.0, %v4104
        %v4106 = vpop.f32.mrf.mxu0
        %v4107 = vadd.f32 0.0, %v4106
        %4108 = vmatmul.bf16.gmra.mxu0 %v2084
        %v4109 = vpop.f32.mrf.mxu0
        %v4110 = vadd.f32 0.0, %v4109
        %v4111 = vpop.f32.mrf.mxu0
        %v4112 = vadd.f32 0.0, %v4111
        %4113 = vdwg.mxu0
        %4114 = vmatpush.bf16.msra.mxu0 %v2402
        %4115 = vmatpush.bf16.msra.mxu0 %v2394
        %4116 = vmatpush.bf16.msra.mxu0 %v2386
        %4117 = vmatpush.bf16.msra.mxu0 %v2378
        %4118 = vmatpush.bf16.msra.mxu0 %v2370
        %4119 = vmatpush.bf16.msra.mxu0 %v2362
        %4120 = vmatpush.bf16.msra.mxu0 %v2354
        %4121 = vmatpush.bf16.msra.mxu0 %v2346
        %4122 = vmatmul.bf16.gmra.mxu0 %v2021
        %v4123 = vpop.f32.mrf.mxu0
        %v4124 = vadd.f32 0.0, %v4123
        %v4125 = vpop.f32.mrf.mxu0
        %v4126 = vadd.f32 0.0, %v4125
        %4127 = vmatmul.bf16.gmra.mxu0 %v2022
        %v4128 = vpop.f32.mrf.mxu0
        %v4129 = vadd.f32 0.0, %v4128
        %v4130 = vpop.f32.mrf.mxu0
        %v4131 = vadd.f32 0.0, %v4130
        %4132 = vmatmul.bf16.gmra.mxu0 %v2023
        %v4133 = vpop.f32.mrf.mxu0
        %v4134 = vadd.f32 0.0, %v4133
        %v4135 = vpop.f32.mrf.mxu0
        %v4136 = vadd.f32 0.0, %v4135
        %4137 = vmatmul.bf16.gmra.mxu0 %v2024
        %v4138 = vpop.f32.mrf.mxu0
        %v4139 = vadd.f32 0.0, %v4138
        %v4140 = vpop.f32.mrf.mxu0
        %v4141 = vadd.f32 0.0, %v4140
        %4142 = vmatmul.bf16.gmra.mxu0 %v2025
        %v4143 = vpop.f32.mrf.mxu0
        %v4144 = vadd.f32 0.0, %v4143
        %v4145 = vpop.f32.mrf.mxu0
        %v4146 = vadd.f32 0.0, %v4145
        %4147 = vmatmul.bf16.gmra.mxu0 %v2026
        %v4148 = vpop.f32.mrf.mxu0
        %v4149 = vadd.f32 0.0, %v4148
        %v4150 = vpop.f32.mrf.mxu0
        %v4151 = vadd.f32 0.0, %v4150
        %4152 = vmatmul.bf16.gmra.mxu0 %v2027
        %v4153 = vpop.f32.mrf.mxu0
        %v4154 = vadd.f32 0.0, %v4153
        %v4155 = vpop.f32.mrf.mxu0
        %v4156 = vadd.f32 0.0, %v4155
        %4157 = vmatmul.bf16.gmra.mxu0 %v2028
        %v4158 = vpop.f32.mrf.mxu0
        %v4159 = vadd.f32 0.0, %v4158
        %v4160 = vpop.f32.mrf.mxu0
        %v4161 = vadd.f32 0.0, %v4160
        %4162 = vmatmul.bf16.gmra.mxu0 %v2029
        %v4163 = vpop.f32.mrf.mxu0
        %v4164 = vadd.f32 0.0, %v4163
        %v4165 = vpop.f32.mrf.mxu0
        %v4166 = vadd.f32 0.0, %v4165
        %4167 = vmatmul.bf16.gmra.mxu0 %v2030
        %v4168 = vpop.f32.mrf.mxu0
        %v4169 = vadd.f32 0.0, %v4168
        %v4170 = vpop.f32.mrf.mxu0
        %v4171 = vadd.f32 0.0, %v4170
        %4172 = vmatmul.bf16.gmra.mxu0 %v2031
        %v4173 = vpop.f32.mrf.mxu0
        %v4174 = vadd.f32 0.0, %v4173
        %v4175 = vpop.f32.mrf.mxu0
        %v4176 = vadd.f32 0.0, %v4175
        %4177 = vmatmul.bf16.gmra.mxu0 %v2032
        %v4178 = vpop.f32.mrf.mxu0
        %v4179 = vadd.f32 0.0, %v4178
        %v4180 = vpop.f32.mrf.mxu0
        %v4181 = vadd.f32 0.0, %v4180
        %4182 = vmatmul.bf16.gmra.mxu0 %v2033
        %v4183 = vpop.f32.mrf.mxu0
        %v4184 = vadd.f32 0.0, %v4183
        %v4185 = vpop.f32.mrf.mxu0
        %v4186 = vadd.f32 0.0, %v4185
        %4187 = vmatmul.bf16.gmra.mxu0 %v2034
        %v4188 = vpop.f32.mrf.mxu0
        %v4189 = vadd.f32 0.0, %v4188
        %v4190 = vpop.f32.mrf.mxu0
        %v4191 = vadd.f32 0.0, %v4190
        %4192 = vmatmul.bf16.gmra.mxu0 %v2035
        %v4193 = vpop.f32.mrf.mxu0
        %v4194 = vadd.f32 0.0, %v4193
        %v4195 = vpop.f32.mrf.mxu0
        %v4196 = vadd.f32 0.0, %v4195
        %4197 = vmatmul.bf16.gmra.mxu0 %v2036
        %v4198 = vpop.f32.mrf.mxu0
        %v4199 = vadd.f32 0.0, %v4198
        %v4200 = vpop.f32.mrf.mxu0
        %v4201 = vadd.f32 0.0, %v4200
        %4202 = vmatmul.bf16.gmra.mxu0 %v2037
        %v4203 = vpop.f32.mrf.mxu0
        %v4204 = vadd.f32 0.0, %v4203
        %v4205 = vpop.f32.mrf.mxu0
        %v4206 = vadd.f32 0.0, %v4205
        %4207 = vmatmul.bf16.gmra.mxu0 %v2038
        %v4208 = vpop.f32.mrf.mxu0
        %v4209 = vadd.f32 0.0, %v4208
        %v4210 = vpop.f32.mrf.mxu0
        %v4211 = vadd.f32 0.0, %v4210
        %4212 = vmatmul.bf16.gmra.mxu0 %v2039
        %v4213 = vpop.f32.mrf.mxu0
        %v4214 = vadd.f32 0.0, %v4213
        %v4215 = vpop.f32.mrf.mxu0
        %v4216 = vadd.f32 0.0, %v4215
        %4217 = vmatmul.bf16.gmra.mxu0 %v2040
        %v4218 = vpop.f32.mrf.mxu0
        %v4219 = vadd.f32 0.0, %v4218
        %v4220 = vpop.f32.mrf.mxu0
        %v4221 = vadd.f32 0.0, %v4220
        %4222 = vmatmul.bf16.gmra.mxu0 %v2041
        %v4223 = vpop.f32.mrf.mxu0
        %v4224 = vadd.f32 0.0, %v4223
        %v4225 = vpop.f32.mrf.mxu0
        %v4226 = vadd.f32 0.0, %v4225
        %4227 = vmatmul.bf16.gmra.mxu0 %v2042
        %v4228 = vpop.f32.mrf.mxu0
        %v4229 = vadd.f32 0.0, %v4228
        %v4230 = vpop.f32.mrf.mxu0
        %v4231 = vadd.f32 0.0, %v4230
        %4232 = vmatmul.bf16.gmra.mxu0 %v2043
        %v4233 = vpop.f32.mrf.mxu0
        %v4234 = vadd.f32 0.0, %v4233
        %v4235 = vpop.f32.mrf.mxu0
        %v4236 = vadd.f32 0.0, %v4235
        %4237 = vmatmul.bf16.gmra.mxu0 %v2044
        %v4238 = vpop.f32.mrf.mxu0
        %v4239 = vadd.f32 0.0, %v4238
        %v4240 = vpop.f32.mrf.mxu0
        %v4241 = vadd.f32 0.0, %v4240
        %4242 = vmatmul.bf16.gmra.mxu0 %v2045
        %v4243 = vpop.f32.mrf.mxu0
        %v4244 = vadd.f32 0.0, %v4243
        %v4245 = vpop.f32.mrf.mxu0
        %v4246 = vadd.f32 0.0, %v4245
        %4247 = vmatmul.bf16.gmra.mxu0 %v2046
        %v4248 = vpop.f32.mrf.mxu0
        %v4249 = vadd.f32 0.0, %v4248
        %v4250 = vpop.f32.mrf.mxu0
        %v4251 = vadd.f32 0.0, %v4250
        %4252 = vmatmul.bf16.gmra.mxu0 %v2047
        %v4253 = vpop.f32.mrf.mxu0
        %v4254 = vadd.f32 0.0, %v4253
        %v4255 = vpop.f32.mrf.mxu0
        %v4256 = vadd.f32 0.0, %v4255
        %4257 = vmatmul.bf16.gmra.mxu0 %v2048
        %v4258 = vpop.f32.mrf.mxu0
        %v4259 = vadd.f32 0.0, %v4258
        %v4260 = vpop.f32.mrf.mxu0
        %v4261 = vadd.f32 0.0, %v4260
        %4262 = vmatmul.bf16.gmra.mxu0 %v2049
        %v4263 = vpop.f32.mrf.mxu0
        %v4264 = vadd.f32 0.0, %v4263
        %v4265 = vpop.f32.mrf.mxu0
        %v4266 = vadd.f32 0.0, %v4265
        %4267 = vmatmul.bf16.gmra.mxu0 %v2050
        %v4268 = vpop.f32.mrf.mxu0
        %v4269 = vadd.f32 0.0, %v4268
        %v4270 = vpop.f32.mrf.mxu0
        %v4271 = vadd.f32 0.0, %v4270
        %4272 = vmatmul.bf16.gmra.mxu0 %v2051
        %v4273 = vpop.f32.mrf.mxu0
        %v4274 = vadd.f32 0.0, %v4273
        %v4275 = vpop.f32.mrf.mxu0
        %v4276 = vadd.f32 0.0, %v4275
        %4277 = vmatmul.bf16.gmra.mxu0 %v2052
        %v4278 = vpop.f32.mrf.mxu0
        %v4279 = vadd.f32 0.0, %v4278
        %v4280 = vpop.f32.mrf.mxu0
        %v4281 = vadd.f32 0.0, %v4280
        %4282 = vmatmul.bf16.gmra.mxu0 %v2053
        %v4283 = vpop.f32.mrf.mxu0
        %v4284 = vadd.f32 0.0, %v4283
        %v4285 = vpop.f32.mrf.mxu0
        %v4286 = vadd.f32 0.0, %v4285
        %4287 = vmatmul.bf16.gmra.mxu0 %v2054
        %v4288 = vpop.f32.mrf.mxu0
        %v4289 = vadd.f32 0.0, %v4288
        %v4290 = vpop.f32.mrf.mxu0
        %v4291 = vadd.f32 0.0, %v4290
        %4292 = vmatmul.bf16.gmra.mxu0 %v2055
        %v4293 = vpop.f32.mrf.mxu0
        %v4294 = vadd.f32 0.0, %v4293
        %v4295 = vpop.f32.mrf.mxu0
        %v4296 = vadd.f32 0.0, %v4295
        %4297 = vmatmul.bf16.gmra.mxu0 %v2056
        %v4298 = vpop.f32.mrf.mxu0
        %v4299 = vadd.f32 0.0, %v4298
        %v4300 = vpop.f32.mrf.mxu0
        %v4301 = vadd.f32 0.0, %v4300
        %4302 = vmatmul.bf16.gmra.mxu0 %v2057
        %v4303 = vpop.f32.mrf.mxu0
        %v4304 = vadd.f32 0.0, %v4303
        %v4305 = vpop.f32.mrf.mxu0
        %v4306 = vadd.f32 0.0, %v4305
        %4307 = vmatmul.bf16.gmra.mxu0 %v2058
        %v4308 = vpop.f32.mrf.mxu0
        %v4309 = vadd.f32 0.0, %v4308
        %v4310 = vpop.f32.mrf.mxu0
        %v4311 = vadd.f32 0.0, %v4310
        %4312 = vmatmul.bf16.gmra.mxu0 %v2059
        %v4313 = vpop.f32.mrf.mxu0
        %v4314 = vadd.f32 0.0, %v4313
        %v4315 = vpop.f32.mrf.mxu0
        %v4316 = vadd.f32 0.0, %v4315
        %4317 = vmatmul.bf16.gmra.mxu0 %v2060
        %v4318 = vpop.f32.mrf.mxu0
        %v4319 = vadd.f32 0.0, %v4318
        %v4320 = vpop.f32.mrf.mxu0
        %v4321 = vadd.f32 0.0, %v4320
        %4322 = vmatmul.bf16.gmra.mxu0 %v2061
        %v4323 = vpop.f32.mrf.mxu0
        %v4324 = vadd.f32 0.0, %v4323
        %v4325 = vpop.f32.mrf.mxu0
        %v4326 = vadd.f32 0.0, %v4325
        %4327 = vmatmul.bf16.gmra.mxu0 %v2062
        %v4328 = vpop.f32.mrf.mxu0
        %v4329 = vadd.f32 0.0, %v4328
        %v4330 = vpop.f32.mrf.mxu0
        %v4331 = vadd.f32 0.0, %v4330
        %4332 = vmatmul.bf16.gmra.mxu0 %v2063
        %v4333 = vpop.f32.mrf.mxu0
        %v4334 = vadd.f32 0.0, %v4333
        %v4335 = vpop.f32.mrf.mxu0
        %v4336 = vadd.f32 0.0, %v4335
        %4337 = vmatmul.bf16.gmra.mxu0 %v2064
        %v4338 = vpop.f32.mrf.mxu0
        %v4339 = vadd.f32 0.0, %v4338
        %v4340 = vpop.f32.mrf.mxu0
        %v4341 = vadd.f32 0.0, %v4340
        %4342 = vmatmul.bf16.gmra.mxu0 %v2065
        %v4343 = vpop.f32.mrf.mxu0
        %v4344 = vadd.f32 0.0, %v4343
        %v4345 = vpop.f32.mrf.mxu0
        %v4346 = vadd.f32 0.0, %v4345
        %4347 = vmatmul.bf16.gmra.mxu0 %v2066
        %v4348 = vpop.f32.mrf.mxu0
        %v4349 = vadd.f32 0.0, %v4348
        %v4350 = vpop.f32.mrf.mxu0
        %v4351 = vadd.f32 0.0, %v4350
        %4352 = vmatmul.bf16.gmra.mxu0 %v2067
        %v4353 = vpop.f32.mrf.mxu0
        %v4354 = vadd.f32 0.0, %v4353
        %v4355 = vpop.f32.mrf.mxu0
        %v4356 = vadd.f32 0.0, %v4355
        %4357 = vmatmul.bf16.gmra.mxu0 %v2068
        %v4358 = vpop.f32.mrf.mxu0
        %v4359 = vadd.f32 0.0, %v4358
        %v4360 = vpop.f32.mrf.mxu0
        %v4361 = vadd.f32 0.0, %v4360
        %4362 = vmatmul.bf16.gmra.mxu0 %v2069
        %v4363 = vpop.f32.mrf.mxu0
        %v4364 = vadd.f32 0.0, %v4363
        %v4365 = vpop.f32.mrf.mxu0
        %v4366 = vadd.f32 0.0, %v4365
        %4367 = vmatmul.bf16.gmra.mxu0 %v2070
        %v4368 = vpop.f32.mrf.mxu0
        %v4369 = vadd.f32 0.0, %v4368
        %v4370 = vpop.f32.mrf.mxu0
        %v4371 = vadd.f32 0.0, %v4370
        %4372 = vmatmul.bf16.gmra.mxu0 %v2071
        %v4373 = vpop.f32.mrf.mxu0
        %v4374 = vadd.f32 0.0, %v4373
        %v4375 = vpop.f32.mrf.mxu0
        %v4376 = vadd.f32 0.0, %v4375
        %4377 = vmatmul.bf16.gmra.mxu0 %v2072
        %v4378 = vpop.f32.mrf.mxu0
        %v4379 = vadd.f32 0.0, %v4378
        %v4380 = vpop.f32.mrf.mxu0
        %v4381 = vadd.f32 0.0, %v4380
        %4382 = vmatmul.bf16.gmra.mxu0 %v2073
        %v4383 = vpop.f32.mrf.mxu0
        %v4384 = vadd.f32 0.0, %v4383
        %v4385 = vpop.f32.mrf.mxu0
        %v4386 = vadd.f32 0.0, %v4385
        %4387 = vmatmul.bf16.gmra.mxu0 %v2074
        %v4388 = vpop.f32.mrf.mxu0
        %v4389 = vadd.f32 0.0, %v4388
        %v4390 = vpop.f32.mrf.mxu0
        %v4391 = vadd.f32 0.0, %v4390
        %4392 = vmatmul.bf16.gmra.mxu0 %v2075
        %v4393 = vpop.f32.mrf.mxu0
        %v4394 = vadd.f32 0.0, %v4393
        %v4395 = vpop.f32.mrf.mxu0
        %v4396 = vadd.f32 0.0, %v4395
        %4397 = vmatmul.bf16.gmra.mxu0 %v2076
        %v4398 = vpop.f32.mrf.mxu0
        %v4399 = vadd.f32 0.0, %v4398
        %v4400 = vpop.f32.mrf.mxu0
        %v4401 = vadd.f32 0.0, %v4400
        %4402 = vmatmul.bf16.gmra.mxu0 %v2077
        %v4403 = vpop.f32.mrf.mxu0
        %v4404 = vadd.f32 0.0, %v4403
        %v4405 = vpop.f32.mrf.mxu0
        %v4406 = vadd.f32 0.0, %v4405
        %4407 = vmatmul.bf16.gmra.mxu0 %v2078
        %v4408 = vpop.f32.mrf.mxu0
        %v4409 = vadd.f32 0.0, %v4408
        %v4410 = vpop.f32.mrf.mxu0
        %v4411 = vadd.f32 0.0, %v4410
        %4412 = vmatmul.bf16.gmra.mxu0 %v2079
        %v4413 = vpop.f32.mrf.mxu0
        %v4414 = vadd.f32 0.0, %v4413
        %v4415 = vpop.f32.mrf.mxu0
        %v4416 = vadd.f32 0.0, %v4415
        %4417 = vmatmul.bf16.gmra.mxu0 %v2080
        %v4418 = vpop.f32.mrf.mxu0
        %v4419 = vadd.f32 0.0, %v4418
        %v4420 = vpop.f32.mrf.mxu0
        %v4421 = vadd.f32 0.0, %v4420
        %4422 = vmatmul.bf16.gmra.mxu0 %v2081
        %v4423 = vpop.f32.mrf.mxu0
        %v4424 = vadd.f32 0.0, %v4423
        %v4425 = vpop.f32.mrf.mxu0
        %v4426 = vadd.f32 0.0, %v4425
        %4427 = vmatmul.bf16.gmra.mxu0 %v2082
        %v4428 = vpop.f32.mrf.mxu0
        %v4429 = vadd.f32 0.0, %v4428
        %v4430 = vpop.f32.mrf.mxu0
        %v4431 = vadd.f32 0.0, %v4430
        %4432 = vmatmul.bf16.gmra.mxu0 %v2083
        %v4433 = vpop.f32.mrf.mxu0
        %v4434 = vadd.f32 0.0, %v4433
        %v4435 = vpop.f32.mrf.mxu0
        %v4436 = vadd.f32 0.0, %v4435
        %4437 = vmatmul.bf16.gmra.mxu0 %v2084
        %v4438 = vpop.f32.mrf.mxu0
        %v4439 = vadd.f32 0.0, %v4438
        %v4440 = vpop.f32.mrf.mxu0
        %v4441 = vadd.f32 0.0, %v4440
        %4442 = vdwg.mxu0
        %4443 = vmatpush.bf16.msra.mxu0 %v2403
        %4444 = vmatpush.bf16.msra.mxu0 %v2395
        %4445 = vmatpush.bf16.msra.mxu0 %v2387
        %4446 = vmatpush.bf16.msra.mxu0 %v2379
        %4447 = vmatpush.bf16.msra.mxu0 %v2371
        %4448 = vmatpush.bf16.msra.mxu0 %v2363
        %4449 = vmatpush.bf16.msra.mxu0 %v2355
        %4450 = vmatpush.bf16.msra.mxu0 %v2347
        %4451 = vmatmul.bf16.gmra.mxu0 %v2021
        %v4452 = vpop.f32.mrf.mxu0
        %v4453 = vadd.f32 0.0, %v4452
        %v4454 = vpop.f32.mrf.mxu0
        %v4455 = vadd.f32 0.0, %v4454
        %4456 = vmatmul.bf16.gmra.mxu0 %v2022
        %v4457 = vpop.f32.mrf.mxu0
        %v4458 = vadd.f32 0.0, %v4457
        %v4459 = vpop.f32.mrf.mxu0
        %v4460 = vadd.f32 0.0, %v4459
        %4461 = vmatmul.bf16.gmra.mxu0 %v2023
        %v4462 = vpop.f32.mrf.mxu0
        %v4463 = vadd.f32 0.0, %v4462
        %v4464 = vpop.f32.mrf.mxu0
        %v4465 = vadd.f32 0.0, %v4464
        %4466 = vmatmul.bf16.gmra.mxu0 %v2024
        %v4467 = vpop.f32.mrf.mxu0
        %v4468 = vadd.f32 0.0, %v4467
        %v4469 = vpop.f32.mrf.mxu0
        %v4470 = vadd.f32 0.0, %v4469
        %4471 = vmatmul.bf16.gmra.mxu0 %v2025
        %v4472 = vpop.f32.mrf.mxu0
        %v4473 = vadd.f32 0.0, %v4472
        %v4474 = vpop.f32.mrf.mxu0
        %v4475 = vadd.f32 0.0, %v4474
        %4476 = vmatmul.bf16.gmra.mxu0 %v2026
        %v4477 = vpop.f32.mrf.mxu0
        %v4478 = vadd.f32 0.0, %v4477
        %v4479 = vpop.f32.mrf.mxu0
        %v4480 = vadd.f32 0.0, %v4479
        %4481 = vmatmul.bf16.gmra.mxu0 %v2027
        %v4482 = vpop.f32.mrf.mxu0
        %v4483 = vadd.f32 0.0, %v4482
        %v4484 = vpop.f32.mrf.mxu0
        %v4485 = vadd.f32 0.0, %v4484
        %4486 = vmatmul.bf16.gmra.mxu0 %v2028
        %v4487 = vpop.f32.mrf.mxu0
        %v4488 = vadd.f32 0.0, %v4487
        %v4489 = vpop.f32.mrf.mxu0
        %v4490 = vadd.f32 0.0, %v4489
        %4491 = vmatmul.bf16.gmra.mxu0 %v2029
        %v4492 = vpop.f32.mrf.mxu0
        %v4493 = vadd.f32 0.0, %v4492
        %v4494 = vpop.f32.mrf.mxu0
        %v4495 = vadd.f32 0.0, %v4494
        %4496 = vmatmul.bf16.gmra.mxu0 %v2030
        %v4497 = vpop.f32.mrf.mxu0
        %v4498 = vadd.f32 0.0, %v4497
        %v4499 = vpop.f32.mrf.mxu0
        %v4500 = vadd.f32 0.0, %v4499
        %4501 = vmatmul.bf16.gmra.mxu0 %v2031
        %v4502 = vpop.f32.mrf.mxu0
        %v4503 = vadd.f32 0.0, %v4502
        %v4504 = vpop.f32.mrf.mxu0
        %v4505 = vadd.f32 0.0, %v4504
        %4506 = vmatmul.bf16.gmra.mxu0 %v2032
        %v4507 = vpop.f32.mrf.mxu0
        %v4508 = vadd.f32 0.0, %v4507
        %v4509 = vpop.f32.mrf.mxu0
        %v4510 = vadd.f32 0.0, %v4509
        %4511 = vmatmul.bf16.gmra.mxu0 %v2033
        %v4512 = vpop.f32.mrf.mxu0
        %v4513 = vadd.f32 0.0, %v4512
        %v4514 = vpop.f32.mrf.mxu0
        %v4515 = vadd.f32 0.0, %v4514
        %4516 = vmatmul.bf16.gmra.mxu0 %v2034
        %v4517 = vpop.f32.mrf.mxu0
        %v4518 = vadd.f32 0.0, %v4517
        %v4519 = vpop.f32.mrf.mxu0
        %v4520 = vadd.f32 0.0, %v4519
        %4521 = vmatmul.bf16.gmra.mxu0 %v2035
        %v4522 = vpop.f32.mrf.mxu0
        %v4523 = vadd.f32 0.0, %v4522
        %v4524 = vpop.f32.mrf.mxu0
        %v4525 = vadd.f32 0.0, %v4524
        %4526 = vmatmul.bf16.gmra.mxu0 %v2036
        %v4527 = vpop.f32.mrf.mxu0
        %v4528 = vadd.f32 0.0, %v4527
        %v4529 = vpop.f32.mrf.mxu0
        %v4530 = vadd.f32 0.0, %v4529
        %4531 = vmatmul.bf16.gmra.mxu0 %v2037
        %v4532 = vpop.f32.mrf.mxu0
        %v4533 = vadd.f32 0.0, %v4532
        %v4534 = vpop.f32.mrf.mxu0
        %v4535 = vadd.f32 0.0, %v4534
        %4536 = vmatmul.bf16.gmra.mxu0 %v2038
        %v4537 = vpop.f32.mrf.mxu0
        %v4538 = vadd.f32 0.0, %v4537
        %v4539 = vpop.f32.mrf.mxu0
        %v4540 = vadd.f32 0.0, %v4539
        %4541 = vmatmul.bf16.gmra.mxu0 %v2039
        %v4542 = vpop.f32.mrf.mxu0
        %v4543 = vadd.f32 0.0, %v4542
        %v4544 = vpop.f32.mrf.mxu0
        %v4545 = vadd.f32 0.0, %v4544
        %4546 = vmatmul.bf16.gmra.mxu0 %v2040
        %v4547 = vpop.f32.mrf.mxu0
        %v4548 = vadd.f32 0.0, %v4547
        %v4549 = vpop.f32.mrf.mxu0
        %v4550 = vadd.f32 0.0, %v4549
        %4551 = vmatmul.bf16.gmra.mxu0 %v2041
        %v4552 = vpop.f32.mrf.mxu0
        %v4553 = vadd.f32 0.0, %v4552
        %v4554 = vpop.f32.mrf.mxu0
        %v4555 = vadd.f32 0.0, %v4554
        %4556 = vmatmul.bf16.gmra.mxu0 %v2042
        %v4557 = vpop.f32.mrf.mxu0
        %v4558 = vadd.f32 0.0, %v4557
        %v4559 = vpop.f32.mrf.mxu0
        %v4560 = vadd.f32 0.0, %v4559
        %4561 = vmatmul.bf16.gmra.mxu0 %v2043
        %v4562 = vpop.f32.mrf.mxu0
        %v4563 = vadd.f32 0.0, %v4562
        %v4564 = vpop.f32.mrf.mxu0
        %v4565 = vadd.f32 0.0, %v4564
        %4566 = vmatmul.bf16.gmra.mxu0 %v2044
        %v4567 = vpop.f32.mrf.mxu0
        %v4568 = vadd.f32 0.0, %v4567
        %v4569 = vpop.f32.mrf.mxu0
        %v4570 = vadd.f32 0.0, %v4569
        %4571 = vmatmul.bf16.gmra.mxu0 %v2045
        %v4572 = vpop.f32.mrf.mxu0
        %v4573 = vadd.f32 0.0, %v4572
        %v4574 = vpop.f32.mrf.mxu0
        %v4575 = vadd.f32 0.0, %v4574
        %4576 = vmatmul.bf16.gmra.mxu0 %v2046
        %v4577 = vpop.f32.mrf.mxu0
        %v4578 = vadd.f32 0.0, %v4577
        %v4579 = vpop.f32.mrf.mxu0
        %v4580 = vadd.f32 0.0, %v4579
        %4581 = vmatmul.bf16.gmra.mxu0 %v2047
        %v4582 = vpop.f32.mrf.mxu0
        %v4583 = vadd.f32 0.0, %v4582
        %v4584 = vpop.f32.mrf.mxu0
        %v4585 = vadd.f32 0.0, %v4584
        %4586 = vmatmul.bf16.gmra.mxu0 %v2048
        %v4587 = vpop.f32.mrf.mxu0
        %v4588 = vadd.f32 0.0, %v4587
        %v4589 = vpop.f32.mrf.mxu0
        %v4590 = vadd.f32 0.0, %v4589
        %4591 = vmatmul.bf16.gmra.mxu0 %v2049
        %v4592 = vpop.f32.mrf.mxu0
        %v4593 = vadd.f32 0.0, %v4592
        %v4594 = vpop.f32.mrf.mxu0
        %v4595 = vadd.f32 0.0, %v4594
        %4596 = vmatmul.bf16.gmra.mxu0 %v2050
        %v4597 = vpop.f32.mrf.mxu0
        %v4598 = vadd.f32 0.0, %v4597
        %v4599 = vpop.f32.mrf.mxu0
        %v4600 = vadd.f32 0.0, %v4599
        %4601 = vmatmul.bf16.gmra.mxu0 %v2051
        %v4602 = vpop.f32.mrf.mxu0
        %v4603 = vadd.f32 0.0, %v4602
        %v4604 = vpop.f32.mrf.mxu0
        %v4605 = vadd.f32 0.0, %v4604
        %4606 = vmatmul.bf16.gmra.mxu0 %v2052
        %v4607 = vpop.f32.mrf.mxu0
        %v4608 = vadd.f32 0.0, %v4607
        %v4609 = vpop.f32.mrf.mxu0
        %v4610 = vadd.f32 0.0, %v4609
        %4611 = vmatmul.bf16.gmra.mxu0 %v2053
        %v4612 = vpop.f32.mrf.mxu0
        %v4613 = vadd.f32 0.0, %v4612
        %v4614 = vpop.f32.mrf.mxu0
        %v4615 = vadd.f32 0.0, %v4614
        %4616 = vmatmul.bf16.gmra.mxu0 %v2054
        %v4617 = vpop.f32.mrf.mxu0
        %v4618 = vadd.f32 0.0, %v4617
        %v4619 = vpop.f32.mrf.mxu0
        %v4620 = vadd.f32 0.0, %v4619
        %4621 = vmatmul.bf16.gmra.mxu0 %v2055
        %v4622 = vpop.f32.mrf.mxu0
        %v4623 = vadd.f32 0.0, %v4622
        %v4624 = vpop.f32.mrf.mxu0
        %v4625 = vadd.f32 0.0, %v4624
        %4626 = vmatmul.bf16.gmra.mxu0 %v2056
        %v4627 = vpop.f32.mrf.mxu0
        %v4628 = vadd.f32 0.0, %v4627
        %v4629 = vpop.f32.mrf.mxu0
        %v4630 = vadd.f32 0.0, %v4629
        %4631 = vmatmul.bf16.gmra.mxu0 %v2057
        %v4632 = vpop.f32.mrf.mxu0
        %v4633 = vadd.f32 0.0, %v4632
        %v4634 = vpop.f32.mrf.mxu0
        %v4635 = vadd.f32 0.0, %v4634
        %4636 = vmatmul.bf16.gmra.mxu0 %v2058
        %v4637 = vpop.f32.mrf.mxu0
        %v4638 = vadd.f32 0.0, %v4637
        %v4639 = vpop.f32.mrf.mxu0
        %v4640 = vadd.f32 0.0, %v4639
        %4641 = vmatmul.bf16.gmra.mxu0 %v2059
        %v4642 = vpop.f32.mrf.mxu0
        %v4643 = vadd.f32 0.0, %v4642
        %v4644 = vpop.f32.mrf.mxu0
        %v4645 = vadd.f32 0.0, %v4644
        %4646 = vmatmul.bf16.gmra.mxu0 %v2060
        %v4647 = vpop.f32.mrf.mxu0
        %v4648 = vadd.f32 0.0, %v4647
        %v4649 = vpop.f32.mrf.mxu0
        %v4650 = vadd.f32 0.0, %v4649
        %4651 = vmatmul.bf16.gmra.mxu0 %v2061
        %v4652 = vpop.f32.mrf.mxu0
        %v4653 = vadd.f32 0.0, %v4652
        %v4654 = vpop.f32.mrf.mxu0
        %v4655 = vadd.f32 0.0, %v4654
        %4656 = vmatmul.bf16.gmra.mxu0 %v2062
        %v4657 = vpop.f32.mrf.mxu0
        %v4658 = vadd.f32 0.0, %v4657
        %v4659 = vpop.f32.mrf.mxu0
        %v4660 = vadd.f32 0.0, %v4659
        %4661 = vmatmul.bf16.gmra.mxu0 %v2063
        %v4662 = vpop.f32.mrf.mxu0
        %v4663 = vadd.f32 0.0, %v4662
        %v4664 = vpop.f32.mrf.mxu0
        %v4665 = vadd.f32 0.0, %v4664
        %4666 = vmatmul.bf16.gmra.mxu0 %v2064
        %v4667 = vpop.f32.mrf.mxu0
        %v4668 = vadd.f32 0.0, %v4667
        %v4669 = vpop.f32.mrf.mxu0
        %v4670 = vadd.f32 0.0, %v4669
        %4671 = vmatmul.bf16.gmra.mxu0 %v2065
        %v4672 = vpop.f32.mrf.mxu0
        %v4673 = vadd.f32 0.0, %v4672
        %v4674 = vpop.f32.mrf.mxu0
        %v4675 = vadd.f32 0.0, %v4674
        %4676 = vmatmul.bf16.gmra.mxu0 %v2066
        %v4677 = vpop.f32.mrf.mxu0
        %v4678 = vadd.f32 0.0, %v4677
        %v4679 = vpop.f32.mrf.mxu0
        %v4680 = vadd.f32 0.0, %v4679
        %4681 = vmatmul.bf16.gmra.mxu0 %v2067
        %v4682 = vpop.f32.mrf.mxu0
        %v4683 = vadd.f32 0.0, %v4682
        %v4684 = vpop.f32.mrf.mxu0
        %v4685 = vadd.f32 0.0, %v4684
        %4686 = vmatmul.bf16.gmra.mxu0 %v2068
        %v4687 = vpop.f32.mrf.mxu0
        %v4688 = vadd.f32 0.0, %v4687
        %v4689 = vpop.f32.mrf.mxu0
        %v4690 = vadd.f32 0.0, %v4689
        %4691 = vmatmul.bf16.gmra.mxu0 %v2069
        %v4692 = vpop.f32.mrf.mxu0
        %v4693 = vadd.f32 0.0, %v4692
        %v4694 = vpop.f32.mrf.mxu0
        %v4695 = vadd.f32 0.0, %v4694
        %4696 = vmatmul.bf16.gmra.mxu0 %v2070
        %v4697 = vpop.f32.mrf.mxu0
        %v4698 = vadd.f32 0.0, %v4697
        %v4699 = vpop.f32.mrf.mxu0
        %v4700 = vadd.f32 0.0, %v4699
        %4701 = vmatmul.bf16.gmra.mxu0 %v2071
        %v4702 = vpop.f32.mrf.mxu0
        %v4703 = vadd.f32 0.0, %v4702
        %v4704 = vpop.f32.mrf.mxu0
        %v4705 = vadd.f32 0.0, %v4704
        %4706 = vmatmul.bf16.gmra.mxu0 %v2072
        %v4707 = vpop.f32.mrf.mxu0
        %v4708 = vadd.f32 0.0, %v4707
        %v4709 = vpop.f32.mrf.mxu0
        %v4710 = vadd.f32 0.0, %v4709
        %4711 = vmatmul.bf16.gmra.mxu0 %v2073
        %v4712 = vpop.f32.mrf.mxu0
        %v4713 = vadd.f32 0.0, %v4712
        %v4714 = vpop.f32.mrf.mxu0
        %v4715 = vadd.f32 0.0, %v4714
        %4716 = vmatmul.bf16.gmra.mxu0 %v2074
        %v4717 = vpop.f32.mrf.mxu0
        %v4718 = vadd.f32 0.0, %v4717
        %v4719 = vpop.f32.mrf.mxu0
        %v4720 = vadd.f32 0.0, %v4719
        %4721 = vmatmul.bf16.gmra.mxu0 %v2075
        %v4722 = vpop.f32.mrf.mxu0
        %v4723 = vadd.f32 0.0, %v4722
        %v4724 = vpop.f32.mrf.mxu0
        %v4725 = vadd.f32 0.0, %v4724
        %4726 = vmatmul.bf16.gmra.mxu0 %v2076
        %v4727 = vpop.f32.mrf.mxu0
        %v4728 = vadd.f32 0.0, %v4727
        %v4729 = vpop.f32.mrf.mxu0
        %v4730 = vadd.f32 0.0, %v4729
        %4731 = vmatmul.bf16.gmra.mxu0 %v2077
        %v4732 = vpop.f32.mrf.mxu0
        %v4733 = vadd.f32 0.0, %v4732
        %v4734 = vpop.f32.mrf.mxu0
        %v4735 = vadd.f32 0.0, %v4734
        %4736 = vmatmul.bf16.gmra.mxu0 %v2078
        %v4737 = vpop.f32.mrf.mxu0
        %v4738 = vadd.f32 0.0, %v4737
        %v4739 = vpop.f32.mrf.mxu0
        %v4740 = vadd.f32 0.0, %v4739
        %4741 = vmatmul.bf16.gmra.mxu0 %v2079
        %v4742 = vpop.f32.mrf.mxu0
        %v4743 = vadd.f32 0.0, %v4742
        %v4744 = vpop.f32.mrf.mxu0
        %v4745 = vadd.f32 0.0, %v4744
        %4746 = vmatmul.bf16.gmra.mxu0 %v2080
        %v4747 = vpop.f32.mrf.mxu0
        %v4748 = vadd.f32 0.0, %v4747
        %v4749 = vpop.f32.mrf.mxu0
        %v4750 = vadd.f32 0.0, %v4749
        %4751 = vmatmul.bf16.gmra.mxu0 %v2081
        %v4752 = vpop.f32.mrf.mxu0
        %v4753 = vadd.f32 0.0, %v4752
        %v4754 = vpop.f32.mrf.mxu0
        %v4755 = vadd.f32 0.0, %v4754
        %4756 = vmatmul.bf16.gmra.mxu0 %v2082
        %v4757 = vpop.f32.mrf.mxu0
        %v4758 = vadd.f32 0.0, %v4757
        %v4759 = vpop.f32.mrf.mxu0
        %v4760 = vadd.f32 0.0, %v4759
        %4761 = vmatmul.bf16.gmra.mxu0 %v2083
        %v4762 = vpop.f32.mrf.mxu0
        %v4763 = vadd.f32 0.0, %v4762
        %v4764 = vpop.f32.mrf.mxu0
        %v4765 = vadd.f32 0.0, %v4764
        %4766 = vmatmul.bf16.gmra.mxu0 %v2084
        %v4767 = vpop.f32.mrf.mxu0
        %v4768 = vadd.f32 0.0, %v4767
        %v4769 = vpop.f32.mrf.mxu0
        %v4770 = vadd.f32 0.0, %v4769
        %4771 = vdwg.mxu0
        %4772 = vmatpush.bf16.msra.mxu0 %v2404
        %4773 = vmatpush.bf16.msra.mxu0 %v2396
        %4774 = vmatpush.bf16.msra.mxu0 %v2388
        %4775 = vmatpush.bf16.msra.mxu0 %v2380
        %4776 = vmatpush.bf16.msra.mxu0 %v2372
        %4777 = vmatpush.bf16.msra.mxu0 %v2364
        %4778 = vmatpush.bf16.msra.mxu0 %v2356
        %4779 = vmatpush.bf16.msra.mxu0 %v2348
        %4780 = vmatmul.bf16.gmra.mxu0 %v2021
        %v4781 = vpop.f32.mrf.mxu0
        %v4782 = vadd.f32 0.0, %v4781
        %v4783 = vpop.f32.mrf.mxu0
        %v4784 = vadd.f32 0.0, %v4783
        %4785 = vmatmul.bf16.gmra.mxu0 %v2022
        %v4786 = vpop.f32.mrf.mxu0
        %v4787 = vadd.f32 0.0, %v4786
        %v4788 = vpop.f32.mrf.mxu0
        %v4789 = vadd.f32 0.0, %v4788
        %4790 = vmatmul.bf16.gmra.mxu0 %v2023
        %v4791 = vpop.f32.mrf.mxu0
        %v4792 = vadd.f32 0.0, %v4791
        %v4793 = vpop.f32.mrf.mxu0
        %v4794 = vadd.f32 0.0, %v4793
        %4795 = vmatmul.bf16.gmra.mxu0 %v2024
        %v4796 = vpop.f32.mrf.mxu0
        %v4797 = vadd.f32 0.0, %v4796
        %v4798 = vpop.f32.mrf.mxu0
        %v4799 = vadd.f32 0.0, %v4798
        %4800 = vmatmul.bf16.gmra.mxu0 %v2025
        %v4801 = vpop.f32.mrf.mxu0
        %v4802 = vadd.f32 0.0, %v4801
        %v4803 = vpop.f32.mrf.mxu0
        %v4804 = vadd.f32 0.0, %v4803
        %4805 = vmatmul.bf16.gmra.mxu0 %v2026
        %v4806 = vpop.f32.mrf.mxu0
        %v4807 = vadd.f32 0.0, %v4806
        %v4808 = vpop.f32.mrf.mxu0
        %v4809 = vadd.f32 0.0, %v4808
        %4810 = vmatmul.bf16.gmra.mxu0 %v2027
        %v4811 = vpop.f32.mrf.mxu0
        %v4812 = vadd.f32 0.0, %v4811
        %v4813 = vpop.f32.mrf.mxu0
        %v4814 = vadd.f32 0.0, %v4813
        %4815 = vmatmul.bf16.gmra.mxu0 %v2028
        %v4816 = vpop.f32.mrf.mxu0
        %v4817 = vadd.f32 0.0, %v4816
        %v4818 = vpop.f32.mrf.mxu0
        %v4819 = vadd.f32 0.0, %v4818
        %4820 = vmatmul.bf16.gmra.mxu0 %v2029
        %v4821 = vpop.f32.mrf.mxu0
        %v4822 = vadd.f32 0.0, %v4821
        %v4823 = vpop.f32.mrf.mxu0
        %v4824 = vadd.f32 0.0, %v4823
        %4825 = vmatmul.bf16.gmra.mxu0 %v2030
        %v4826 = vpop.f32.mrf.mxu0
        %v4827 = vadd.f32 0.0, %v4826
        %v4828 = vpop.f32.mrf.mxu0
        %v4829 = vadd.f32 0.0, %v4828
        %4830 = vmatmul.bf16.gmra.mxu0 %v2031
        %v4831 = vpop.f32.mrf.mxu0
        %v4832 = vadd.f32 0.0, %v4831
        %v4833 = vpop.f32.mrf.mxu0
        %v4834 = vadd.f32 0.0, %v4833
        %4835 = vmatmul.bf16.gmra.mxu0 %v2032
        %v4836 = vpop.f32.mrf.mxu0
        %v4837 = vadd.f32 0.0, %v4836
        %v4838 = vpop.f32.mrf.mxu0
        %v4839 = vadd.f32 0.0, %v4838
        %4840 = vmatmul.bf16.gmra.mxu0 %v2033
        %v4841 = vpop.f32.mrf.mxu0
        %v4842 = vadd.f32 0.0, %v4841
        %v4843 = vpop.f32.mrf.mxu0
        %v4844 = vadd.f32 0.0, %v4843
        %4845 = vmatmul.bf16.gmra.mxu0 %v2034
        %v4846 = vpop.f32.mrf.mxu0
        %v4847 = vadd.f32 0.0, %v4846
        %v4848 = vpop.f32.mrf.mxu0
        %v4849 = vadd.f32 0.0, %v4848
        %4850 = vmatmul.bf16.gmra.mxu0 %v2035
        %v4851 = vpop.f32.mrf.mxu0
        %v4852 = vadd.f32 0.0, %v4851
        %v4853 = vpop.f32.mrf.mxu0
        %v4854 = vadd.f32 0.0, %v4853
        %4855 = vmatmul.bf16.gmra.mxu0 %v2036
        %v4856 = vpop.f32.mrf.mxu0
        %v4857 = vadd.f32 0.0, %v4856
        %v4858 = vpop.f32.mrf.mxu0
        %v4859 = vadd.f32 0.0, %v4858
        %4860 = vmatmul.bf16.gmra.mxu0 %v2037
        %v4861 = vpop.f32.mrf.mxu0
        %v4862 = vadd.f32 0.0, %v4861
        %v4863 = vpop.f32.mrf.mxu0
        %v4864 = vadd.f32 0.0, %v4863
        %4865 = vmatmul.bf16.gmra.mxu0 %v2038
        %v4866 = vpop.f32.mrf.mxu0
        %v4867 = vadd.f32 0.0, %v4866
        %v4868 = vpop.f32.mrf.mxu0
        %v4869 = vadd.f32 0.0, %v4868
        %4870 = vmatmul.bf16.gmra.mxu0 %v2039
        %v4871 = vpop.f32.mrf.mxu0
        %v4872 = vadd.f32 0.0, %v4871
        %v4873 = vpop.f32.mrf.mxu0
        %v4874 = vadd.f32 0.0, %v4873
        %4875 = vmatmul.bf16.gmra.mxu0 %v2040
        %v4876 = vpop.f32.mrf.mxu0
        %v4877 = vadd.f32 0.0, %v4876
        %v4878 = vpop.f32.mrf.mxu0
        %v4879 = vadd.f32 0.0, %v4878
        %4880 = vmatmul.bf16.gmra.mxu0 %v2041
        %v4881 = vpop.f32.mrf.mxu0
        %v4882 = vadd.f32 0.0, %v4881
        %v4883 = vpop.f32.mrf.mxu0
        %v4884 = vadd.f32 0.0, %v4883
        %4885 = vmatmul.bf16.gmra.mxu0 %v2042
        %v4886 = vpop.f32.mrf.mxu0
        %v4887 = vadd.f32 0.0, %v4886
        %v4888 = vpop.f32.mrf.mxu0
        %v4889 = vadd.f32 0.0, %v4888
        %4890 = vmatmul.bf16.gmra.mxu0 %v2043
        %v4891 = vpop.f32.mrf.mxu0
        %v4892 = vadd.f32 0.0, %v4891
        %v4893 = vpop.f32.mrf.mxu0
        %v4894 = vadd.f32 0.0, %v4893
        %4895 = vmatmul.bf16.gmra.mxu0 %v2044
        %v4896 = vpop.f32.mrf.mxu0
        %v4897 = vadd.f32 0.0, %v4896
        %v4898 = vpop.f32.mrf.mxu0
        %v4899 = vadd.f32 0.0, %v4898
        %4900 = vmatmul.bf16.gmra.mxu0 %v2045
        %v4901 = vpop.f32.mrf.mxu0
        %v4902 = vadd.f32 0.0, %v4901
        %v4903 = vpop.f32.mrf.mxu0
        %v4904 = vadd.f32 0.0, %v4903
        %4905 = vmatmul.bf16.gmra.mxu0 %v2046
        %v4906 = vpop.f32.mrf.mxu0
        %v4907 = vadd.f32 0.0, %v4906
        %v4908 = vpop.f32.mrf.mxu0
        %v4909 = vadd.f32 0.0, %v4908
        %4910 = vmatmul.bf16.gmra.mxu0 %v2047
        %v4911 = vpop.f32.mrf.mxu0
        %v4912 = vadd.f32 0.0, %v4911
        %v4913 = vpop.f32.mrf.mxu0
        %v4914 = vadd.f32 0.0, %v4913
        %4915 = vmatmul.bf16.gmra.mxu0 %v2048
        %v4916 = vpop.f32.mrf.mxu0
        %v4917 = vadd.f32 0.0, %v4916
        %v4918 = vpop.f32.mrf.mxu0
        %v4919 = vadd.f32 0.0, %v4918
        %4920 = vmatmul.bf16.gmra.mxu0 %v2049
        %v4921 = vpop.f32.mrf.mxu0
        %v4922 = vadd.f32 0.0, %v4921
        %v4923 = vpop.f32.mrf.mxu0
        %v4924 = vadd.f32 0.0, %v4923
        %4925 = vmatmul.bf16.gmra.mxu0 %v2050
        %v4926 = vpop.f32.mrf.mxu0
        %v4927 = vadd.f32 0.0, %v4926
        %v4928 = vpop.f32.mrf.mxu0
        %v4929 = vadd.f32 0.0, %v4928
        %4930 = vmatmul.bf16.gmra.mxu0 %v2051
        %v4931 = vpop.f32.mrf.mxu0
        %v4932 = vadd.f32 0.0, %v4931
        %v4933 = vpop.f32.mrf.mxu0
        %v4934 = vadd.f32 0.0, %v4933
        %4935 = vmatmul.bf16.gmra.mxu0 %v2052
        %v4936 = vpop.f32.mrf.mxu0
        %v4937 = vadd.f32 0.0, %v4936
        %v4938 = vpop.f32.mrf.mxu0
        %v4939 = vadd.f32 0.0, %v4938
        %4940 = vmatmul.bf16.gmra.mxu0 %v2053
        %v4941 = vpop.f32.mrf.mxu0
        %v4942 = vadd.f32 0.0, %v4941
        %v4943 = vpop.f32.mrf.mxu0
        %v4944 = vadd.f32 0.0, %v4943
        %4945 = vmatmul.bf16.gmra.mxu0 %v2054
        %v4946 = vpop.f32.mrf.mxu0
        %v4947 = vadd.f32 0.0, %v4946
        %v4948 = vpop.f32.mrf.mxu0
        %v4949 = vadd.f32 0.0, %v4948
        %4950 = vmatmul.bf16.gmra.mxu0 %v2055
        %v4951 = vpop.f32.mrf.mxu0
        %v4952 = vadd.f32 0.0, %v4951
        %v4953 = vpop.f32.mrf.mxu0
        %v4954 = vadd.f32 0.0, %v4953
        %4955 = vmatmul.bf16.gmra.mxu0 %v2056
        %v4956 = vpop.f32.mrf.mxu0
        %v4957 = vadd.f32 0.0, %v4956
        %v4958 = vpop.f32.mrf.mxu0
        %v4959 = vadd.f32 0.0, %v4958
        %4960 = vmatmul.bf16.gmra.mxu0 %v2057
        %v4961 = vpop.f32.mrf.mxu0
        %v4962 = vadd.f32 0.0, %v4961
        %v4963 = vpop.f32.mrf.mxu0
        %v4964 = vadd.f32 0.0, %v4963
        %4965 = vmatmul.bf16.gmra.mxu0 %v2058
        %v4966 = vpop.f32.mrf.mxu0
        %v4967 = vadd.f32 0.0, %v4966
        %v4968 = vpop.f32.mrf.mxu0
        %v4969 = vadd.f32 0.0, %v4968
        %4970 = vmatmul.bf16.gmra.mxu0 %v2059
        %v4971 = vpop.f32.mrf.mxu0
        %v4972 = vadd.f32 0.0, %v4971
        %v4973 = vpop.f32.mrf.mxu0
        %v4974 = vadd.f32 0.0, %v4973
        %4975 = vmatmul.bf16.gmra.mxu0 %v2060
        %v4976 = vpop.f32.mrf.mxu0
        %v4977 = vadd.f32 0.0, %v4976
        %v4978 = vpop.f32.mrf.mxu0
        %v4979 = vadd.f32 0.0, %v4978
        %4980 = vmatmul.bf16.gmra.mxu0 %v2061
        %v4981 = vpop.f32.mrf.mxu0
        %v4982 = vadd.f32 0.0, %v4981
        %v4983 = vpop.f32.mrf.mxu0
        %v4984 = vadd.f32 0.0, %v4983
        %4985 = vmatmul.bf16.gmra.mxu0 %v2062
        %v4986 = vpop.f32.mrf.mxu0
        %v4987 = vadd.f32 0.0, %v4986
        %v4988 = vpop.f32.mrf.mxu0
        %v4989 = vadd.f32 0.0, %v4988
        %4990 = vmatmul.bf16.gmra.mxu0 %v2063
        %v4991 = vpop.f32.mrf.mxu0
        %v4992 = vadd.f32 0.0, %v4991
        %v4993 = vpop.f32.mrf.mxu0
        %v4994 = vadd.f32 0.0, %v4993
        %4995 = vmatmul.bf16.gmra.mxu0 %v2064
        %v4996 = vpop.f32.mrf.mxu0
        %v4997 = vadd.f32 0.0, %v4996
        %v4998 = vpop.f32.mrf.mxu0
        %v4999 = vadd.f32 0.0, %v4998
        %5000 = vmatmul.bf16.gmra.mxu0 %v2065
        %v5001 = vpop.f32.mrf.mxu0
        %v5002 = vadd.f32 0.0, %v5001
        %v5003 = vpop.f32.mrf.mxu0
        %v5004 = vadd.f32 0.0, %v5003
        %5005 = vmatmul.bf16.gmra.mxu0 %v2066
        %v5006 = vpop.f32.mrf.mxu0
        %v5007 = vadd.f32 0.0, %v5006
        %v5008 = vpop.f32.mrf.mxu0
        %v5009 = vadd.f32 0.0, %v5008
        %5010 = vmatmul.bf16.gmra.mxu0 %v2067
        %v5011 = vpop.f32.mrf.mxu0
        %v5012 = vadd.f32 0.0, %v5011
        %v5013 = vpop.f32.mrf.mxu0
        %v5014 = vadd.f32 0.0, %v5013
        %5015 = vmatmul.bf16.gmra.mxu0 %v2068
        %v5016 = vpop.f32.mrf.mxu0
        %v5017 = vadd.f32 0.0, %v5016
        %v5018 = vpop.f32.mrf.mxu0
        %v5019 = vadd.f32 0.0, %v5018
        %5020 = vmatmul.bf16.gmra.mxu0 %v2069
        %v5021 = vpop.f32.mrf.mxu0
        %v5022 = vadd.f32 0.0, %v5021
        %v5023 = vpop.f32.mrf.mxu0
        %v5024 = vadd.f32 0.0, %v5023
        %5025 = vmatmul.bf16.gmra.mxu0 %v2070
        %v5026 = vpop.f32.mrf.mxu0
        %v5027 = vadd.f32 0.0, %v5026
        %v5028 = vpop.f32.mrf.mxu0
        %v5029 = vadd.f32 0.0, %v5028
        %5030 = vmatmul.bf16.gmra.mxu0 %v2071
        %v5031 = vpop.f32.mrf.mxu0
        %v5032 = vadd.f32 0.0, %v5031
        %v5033 = vpop.f32.mrf.mxu0
        %v5034 = vadd.f32 0.0, %v5033
        %5035 = vmatmul.bf16.gmra.mxu0 %v2072
        %v5036 = vpop.f32.mrf.mxu0
        %v5037 = vadd.f32 0.0, %v5036
        %v5038 = vpop.f32.mrf.mxu0
        %v5039 = vadd.f32 0.0, %v5038
        %5040 = vmatmul.bf16.gmra.mxu0 %v2073
        %v5041 = vpop.f32.mrf.mxu0
        %v5042 = vadd.f32 0.0, %v5041
        %v5043 = vpop.f32.mrf.mxu0
        %v5044 = vadd.f32 0.0, %v5043
        %5045 = vmatmul.bf16.gmra.mxu0 %v2074
        %v5046 = vpop.f32.mrf.mxu0
        %v5047 = vadd.f32 0.0, %v5046
        %v5048 = vpop.f32.mrf.mxu0
        %v5049 = vadd.f32 0.0, %v5048
        %5050 = vmatmul.bf16.gmra.mxu0 %v2075
        %v5051 = vpop.f32.mrf.mxu0
        %v5052 = vadd.f32 0.0, %v5051
        %v5053 = vpop.f32.mrf.mxu0
        %v5054 = vadd.f32 0.0, %v5053
        %5055 = vmatmul.bf16.gmra.mxu0 %v2076
        %v5056 = vpop.f32.mrf.mxu0
        %v5057 = vadd.f32 0.0, %v5056
        %v5058 = vpop.f32.mrf.mxu0
        %v5059 = vadd.f32 0.0, %v5058
        %5060 = vmatmul.bf16.gmra.mxu0 %v2077
        %v5061 = vpop.f32.mrf.mxu0
        %v5062 = vadd.f32 0.0, %v5061
        %v5063 = vpop.f32.mrf.mxu0
        %v5064 = vadd.f32 0.0, %v5063
        %5065 = vmatmul.bf16.gmra.mxu0 %v2078
        %v5066 = vpop.f32.mrf.mxu0
        %v5067 = vadd.f32 0.0, %v5066
        %v5068 = vpop.f32.mrf.mxu0
        %v5069 = vadd.f32 0.0, %v5068
        %5070 = vmatmul.bf16.gmra.mxu0 %v2079
        %v5071 = vpop.f32.mrf.mxu0
        %v5072 = vadd.f32 0.0, %v5071
        %v5073 = vpop.f32.mrf.mxu0
        %v5074 = vadd.f32 0.0, %v5073
        %5075 = vmatmul.bf16.gmra.mxu0 %v2080
        %v5076 = vpop.f32.mrf.mxu0
        %v5077 = vadd.f32 0.0, %v5076
        %v5078 = vpop.f32.mrf.mxu0
        %v5079 = vadd.f32 0.0, %v5078
        %5080 = vmatmul.bf16.gmra.mxu0 %v2081
        %v5081 = vpop.f32.mrf.mxu0
        %v5082 = vadd.f32 0.0, %v5081
        %v5083 = vpop.f32.mrf.mxu0
        %v5084 = vadd.f32 0.0, %v5083
        %5085 = vmatmul.bf16.gmra.mxu0 %v2082
        %v5086 = vpop.f32.mrf.mxu0
        %v5087 = vadd.f32 0.0, %v5086
        %v5088 = vpop.f32.mrf.mxu0
        %v5089 = vadd.f32 0.0, %v5088
        %5090 = vmatmul.bf16.gmra.mxu0 %v2083
        %v5091 = vpop.f32.mrf.mxu0
        %v5092 = vadd.f32 0.0, %v5091
        %v5093 = vpop.f32.mrf.mxu0
        %v5094 = vadd.f32 0.0, %v5093
        %5095 = vmatmul.bf16.gmra.mxu0 %v2084
        %v5096 = vpop.f32.mrf.mxu0
        %v5097 = vadd.f32 0.0, %v5096
        %v5098 = vpop.f32.mrf.mxu0
        %v5099 = vadd.f32 0.0, %v5098
        %5100 = vdwg.mxu0
        %v5101 = vmax.f32 %v2479, %v2481
        %v5102 = vmax.f32 %v5101, %v2484
        %v5103 = vmax.f32 %v5102, %v2486
        %v5104 = vmax.f32 %v5103, %v2489
        %v5105 = vmax.f32 %v5104, %v2491
        %v5106 = vmax.f32 %v5105, %v2494
        %v5107 = vmax.f32 %v5106, %v2496
        %v5108 = vmax.f32 %v5107, %v2499
        %v5109 = vmax.f32 %v5108, %v2501
        %v5110 = vmax.f32 %v5109, %v2504
        %v5111 = vmax.f32 %v5110, %v2506
        %v5112 = vmax.f32 %v5111, %v2509
        %v5113 = vmax.f32 %v5112, %v2511
        %v5114 = vmax.f32 %v5113, %v2514
        %v5115 = vmax.f32 %v5114, %v2516
        %v5116 = vrot.slane %v5115, 4
        %v5117 = vmax.f32 %v5115, %v5116
        %v5118 = vrot.slane %v5117, 2
        %v5119 = vmax.f32 %v5117, %v5118
        %v5120 = vrot.slane %v5119, 1
        %v5121 = vmax.f32 %v5119, %v5120
        %v5122 = vmax.f32 %v2808, %v2810
        %v5123 = vmax.f32 %v5122, %v2813
        %v5124 = vmax.f32 %v5123, %v2815
        %v5125 = vmax.f32 %v5124, %v2818
        %v5126 = vmax.f32 %v5125, %v2820
        %v5127 = vmax.f32 %v5126, %v2823
        %v5128 = vmax.f32 %v5127, %v2825
        %v5129 = vmax.f32 %v5128, %v2828
        %v5130 = vmax.f32 %v5129, %v2830
        %v5131 = vmax.f32 %v5130, %v2833
        %v5132 = vmax.f32 %v5131, %v2835
        %v5133 = vmax.f32 %v5132, %v2838
        %v5134 = vmax.f32 %v5133, %v2840
        %v5135 = vmax.f32 %v5134, %v2843
        %v5136 = vmax.f32 %v5135, %v2845
        %v5137 = vrot.slane %v5136, 4
        %v5138 = vmax.f32 %v5136, %v5137
        %v5139 = vrot.slane %v5138, 2
        %v5140 = vmax.f32 %v5138, %v5139
        %v5141 = vrot.slane %v5140, 1
        %v5142 = vmax.f32 %v5140, %v5141
        %v5143 = vmax.f32 %v3137, %v3139
        %v5144 = vmax.f32 %v5143, %v3142
        %v5145 = vmax.f32 %v5144, %v3144
        %v5146 = vmax.f32 %v5145, %v3147
        %v5147 = vmax.f32 %v5146, %v3149
        %v5148 = vmax.f32 %v5147, %v3152
        %v5149 = vmax.f32 %v5148, %v3154
        %v5150 = vmax.f32 %v5149, %v3157
        %v5151 = vmax.f32 %v5150, %v3159
        %v5152 = vmax.f32 %v5151, %v3162
        %v5153 = vmax.f32 %v5152, %v3164
        %v5154 = vmax.f32 %v5153, %v3167
        %v5155 = vmax.f32 %v5154, %v3169
        %v5156 = vmax.f32 %v5155, %v3172
        %v5157 = vmax.f32 %v5156, %v3174
        %v5158 = vrot.slane %v5157, 4
        %v5159 = vmax.f32 %v5157, %v5158
        %v5160 = vrot.slane %v5159, 2
        %v5161 = vmax.f32 %v5159, %v5160
        %v5162 = vrot.slane %v5161, 1
        %v5163 = vmax.f32 %v5161, %v5162
        %v5164 = vmax.f32 %v3466, %v3468
        %v5165 = vmax.f32 %v5164, %v3471
        %v5166 = vmax.f32 %v5165, %v3473
        %v5167 = vmax.f32 %v5166, %v3476
        %v5168 = vmax.f32 %v5167, %v3478
        %v5169 = vmax.f32 %v5168, %v3481
        %v5170 = vmax.f32 %v5169, %v3483
        %v5171 = vmax.f32 %v5170, %v3486
        %v5172 = vmax.f32 %v5171, %v3488
        %v5173 = vmax.f32 %v5172, %v3491
        %v5174 = vmax.f32 %v5173, %v3493
        %v5175 = vmax.f32 %v5174, %v3496
        %v5176 = vmax.f32 %v5175, %v3498
        %v5177 = vmax.f32 %v5176, %v3501
        %v5178 = vmax.f32 %v5177, %v3503
        %v5179 = vrot.slane %v5178, 4
        %v5180 = vmax.f32 %v5178, %v5179
        %v5181 = vrot.slane %v5180, 2
        %v5182 = vmax.f32 %v5180, %v5181
        %v5183 = vrot.slane %v5182, 1
        %v5184 = vmax.f32 %v5182, %v5183
        %v5185 = vmax.f32 %v3795, %v3797
        %v5186 = vmax.f32 %v5185, %v3800
        %v5187 = vmax.f32 %v5186, %v3802
        %v5188 = vmax.f32 %v5187, %v3805
        %v5189 = vmax.f32 %v5188, %v3807
        %v5190 = vmax.f32 %v5189, %v3810
        %v5191 = vmax.f32 %v5190, %v3812
        %v5192 = vmax.f32 %v5191, %v3815
        %v5193 = vmax.f32 %v5192, %v3817
        %v5194 = vmax.f32 %v5193, %v3820
        %v5195 = vmax.f32 %v5194, %v3822
        %v5196 = vmax.f32 %v5195, %v3825
        %v5197 = vmax.f32 %v5196, %v3827
        %v5198 = vmax.f32 %v5197, %v3830
        %v5199 = vmax.f32 %v5198, %v3832
        %v5200 = vrot.slane %v5199, 4
        %v5201 = vmax.f32 %v5199, %v5200
        %v5202 = vrot.slane %v5201, 2
        %v5203 = vmax.f32 %v5201, %v5202
        %v5204 = vrot.slane %v5203, 1
        %v5205 = vmax.f32 %v5203, %v5204
        %v5206 = vmax.f32 %v4124, %v4126
        %v5207 = vmax.f32 %v5206, %v4129
        %v5208 = vmax.f32 %v5207, %v4131
        %v5209 = vmax.f32 %v5208, %v4134
        %v5210 = vmax.f32 %v5209, %v4136
        %v5211 = vmax.f32 %v5210, %v4139
        %v5212 = vmax.f32 %v5211, %v4141
        %v5213 = vmax.f32 %v5212, %v4144
        %v5214 = vmax.f32 %v5213, %v4146
        %v5215 = vmax.f32 %v5214, %v4149
        %v5216 = vmax.f32 %v5215, %v4151
        %v5217 = vmax.f32 %v5216, %v4154
        %v5218 = vmax.f32 %v5217, %v4156
        %v5219 = vmax.f32 %v5218, %v4159
        %v5220 = vmax.f32 %v5219, %v4161
        %v5221 = vrot.slane %v5220, 4
        %v5222 = vmax.f32 %v5220, %v5221
        %v5223 = vrot.slane %v5222, 2
        %v5224 = vmax.f32 %v5222, %v5223
        %v5225 = vrot.slane %v5224, 1
        %v5226 = vmax.f32 %v5224, %v5225
        %v5227 = vmax.f32 %v4453, %v4455
        %v5228 = vmax.f32 %v5227, %v4458
        %v5229 = vmax.f32 %v5228, %v4460
        %v5230 = vmax.f32 %v5229, %v4463
        %v5231 = vmax.f32 %v5230, %v4465
        %v5232 = vmax.f32 %v5231, %v4468
        %v5233 = vmax.f32 %v5232, %v4470
        %v5234 = vmax.f32 %v5233, %v4473
        %v5235 = vmax.f32 %v5234, %v4475
        %v5236 = vmax.f32 %v5235, %v4478
        %v5237 = vmax.f32 %v5236, %v4480
        %v5238 = vmax.f32 %v5237, %v4483
        %v5239 = vmax.f32 %v5238, %v4485
        %v5240 = vmax.f32 %v5239, %v4488
        %v5241 = vmax.f32 %v5240, %v4490
        %v5242 = vrot.slane %v5241, 4
        %v5243 = vmax.f32 %v5241, %v5242
        %v5244 = vrot.slane %v5243, 2
        %v5245 = vmax.f32 %v5243, %v5244
        %v5246 = vrot.slane %v5245, 1
        %v5247 = vmax.f32 %v5245, %v5246
        %v5248 = vmax.f32 %v4782, %v4784
        %v5249 = vmax.f32 %v5248, %v4787
        %v5250 = vmax.f32 %v5249, %v4789
        %v5251 = vmax.f32 %v5250, %v4792
        %v5252 = vmax.f32 %v5251, %v4794
        %v5253 = vmax.f32 %v5252, %v4797
        %v5254 = vmax.f32 %v5253, %v4799
        %v5255 = vmax.f32 %v5254, %v4802
        %v5256 = vmax.f32 %v5255, %v4804
        %v5257 = vmax.f32 %v5256, %v4807
        %v5258 = vmax.f32 %v5257, %v4809
        %v5259 = vmax.f32 %v5258, %v4812
        %v5260 = vmax.f32 %v5259, %v4814
        %v5261 = vmax.f32 %v5260, %v4817
        %v5262 = vmax.f32 %v5261, %v4819
        %v5263 = vrot.slane %v5262, 4
        %v5264 = vmax.f32 %v5262, %v5263
        %v5265 = vrot.slane %v5264, 2
        %v5266 = vmax.f32 %v5264, %v5265
        %v5267 = vrot.slane %v5266, 1
        %v5268 = vmax.f32 %v5266, %v5267
        %v5269 = vmax.f32 %v2519, %v2521
        %v5270 = vmax.f32 %v5269, %v2524
        %v5271 = vmax.f32 %v5270, %v2526
        %v5272 = vmax.f32 %v5271, %v2529
        %v5273 = vmax.f32 %v5272, %v2531
        %v5274 = vmax.f32 %v5273, %v2534
        %v5275 = vmax.f32 %v5274, %v2536
        %v5276 = vmax.f32 %v5275, %v2539
        %v5277 = vmax.f32 %v5276, %v2541
        %v5278 = vmax.f32 %v5277, %v2544
        %v5279 = vmax.f32 %v5278, %v2546
        %v5280 = vmax.f32 %v5279, %v2549
        %v5281 = vmax.f32 %v5280, %v2551
        %v5282 = vmax.f32 %v5281, %v2554
        %v5283 = vmax.f32 %v5282, %v2556
        %v5284 = vrot.slane %v5283, 4
        %v5285 = vmax.f32 %v5283, %v5284
        %v5286 = vrot.slane %v5285, 2
        %v5287 = vmax.f32 %v5285, %v5286
        %v5288 = vrot.slane %v5287, 1
        %v5289 = vmax.f32 %v5287, %v5288
        %v5290 = vmax.f32 %v2848, %v2850
        %v5291 = vmax.f32 %v5290, %v2853
        %v5292 = vmax.f32 %v5291, %v2855
        %v5293 = vmax.f32 %v5292, %v2858
        %v5294 = vmax.f32 %v5293, %v2860
        %v5295 = vmax.f32 %v5294, %v2863
        %v5296 = vmax.f32 %v5295, %v2865
        %v5297 = vmax.f32 %v5296, %v2868
        %v5298 = vmax.f32 %v5297, %v2870
        %v5299 = vmax.f32 %v5298, %v2873
        %v5300 = vmax.f32 %v5299, %v2875
        %v5301 = vmax.f32 %v5300, %v2878
        %v5302 = vmax.f32 %v5301, %v2880
        %v5303 = vmax.f32 %v5302, %v2883
        %v5304 = vmax.f32 %v5303, %v2885
        %v5305 = vrot.slane %v5304, 4
        %v5306 = vmax.f32 %v5304, %v5305
        %v5307 = vrot.slane %v5306, 2
        %v5308 = vmax.f32 %v5306, %v5307
        %v5309 = vrot.slane %v5308, 1
        %v5310 = vmax.f32 %v5308, %v5309
        %v5311 = vmax.f32 %v3177, %v3179
        %v5312 = vmax.f32 %v5311, %v3182
        %v5313 = vmax.f32 %v5312, %v3184
        %v5314 = vmax.f32 %v5313, %v3187
        %v5315 = vmax.f32 %v5314, %v3189
        %v5316 = vmax.f32 %v5315, %v3192
        %v5317 = vmax.f32 %v5316, %v3194
        %v5318 = vmax.f32 %v5317, %v3197
        %v5319 = vmax.f32 %v5318, %v3199
        %v5320 = vmax.f32 %v5319, %v3202
        %v5321 = vmax.f32 %v5320, %v3204
        %v5322 = vmax.f32 %v5321, %v3207
        %v5323 = vmax.f32 %v5322, %v3209
        %v5324 = vmax.f32 %v5323, %v3212
        %v5325 = vmax.f32 %v5324, %v3214
        %v5326 = vrot.slane %v5325, 4
        %v5327 = vmax.f32 %v5325, %v5326
        %v5328 = vrot.slane %v5327, 2
        %v5329 = vmax.f32 %v5327, %v5328
        %v5330 = vrot.slane %v5329, 1
        %v5331 = vmax.f32 %v5329, %v5330
        %v5332 = vmax.f32 %v3506, %v3508
        %v5333 = vmax.f32 %v5332, %v3511
        %v5334 = vmax.f32 %v5333, %v3513
        %v5335 = vmax.f32 %v5334, %v3516
        %v5336 = vmax.f32 %v5335, %v3518
        %v5337 = vmax.f32 %v5336, %v3521
        %v5338 = vmax.f32 %v5337, %v3523
        %v5339 = vmax.f32 %v5338, %v3526
        %v5340 = vmax.f32 %v5339, %v3528
        %v5341 = vmax.f32 %v5340, %v3531
        %v5342 = vmax.f32 %v5341, %v3533
        %v5343 = vmax.f32 %v5342, %v3536
        %v5344 = vmax.f32 %v5343, %v3538
        %v5345 = vmax.f32 %v5344, %v3541
        %v5346 = vmax.f32 %v5345, %v3543
        %v5347 = vrot.slane %v5346, 4
        %v5348 = vmax.f32 %v5346, %v5347
        %v5349 = vrot.slane %v5348, 2
        %v5350 = vmax.f32 %v5348, %v5349
        %v5351 = vrot.slane %v5350, 1
        %v5352 = vmax.f32 %v5350, %v5351
        %v5353 = vmax.f32 %v3835, %v3837
        %v5354 = vmax.f32 %v5353, %v3840
        %v5355 = vmax.f32 %v5354, %v3842
        %v5356 = vmax.f32 %v5355, %v3845
        %v5357 = vmax.f32 %v5356, %v3847
        %v5358 = vmax.f32 %v5357, %v3850
        %v5359 = vmax.f32 %v5358, %v3852
        %v5360 = vmax.f32 %v5359, %v3855
        %v5361 = vmax.f32 %v5360, %v3857
        %v5362 = vmax.f32 %v5361, %v3860
        %v5363 = vmax.f32 %v5362, %v3862
        %v5364 = vmax.f32 %v5363, %v3865
        %v5365 = vmax.f32 %v5364, %v3867
        %v5366 = vmax.f32 %v5365, %v3870
        %v5367 = vmax.f32 %v5366, %v3872
        %v5368 = vrot.slane %v5367, 4
        %v5369 = vmax.f32 %v5367, %v5368
        %v5370 = vrot.slane %v5369, 2
        %v5371 = vmax.f32 %v5369, %v5370
        %v5372 = vrot.slane %v5371, 1
        %v5373 = vmax.f32 %v5371, %v5372
        %v5374 = vmax.f32 %v4164, %v4166
        %v5375 = vmax.f32 %v5374, %v4169
        %v5376 = vmax.f32 %v5375, %v4171
        %v5377 = vmax.f32 %v5376, %v4174
        %v5378 = vmax.f32 %v5377, %v4176
        %v5379 = vmax.f32 %v5378, %v4179
        %v5380 = vmax.f32 %v5379, %v4181
        %v5381 = vmax.f32 %v5380, %v4184
        %v5382 = vmax.f32 %v5381, %v4186
        %v5383 = vmax.f32 %v5382, %v4189
        %v5384 = vmax.f32 %v5383, %v4191
        %v5385 = vmax.f32 %v5384, %v4194
        %v5386 = vmax.f32 %v5385, %v4196
        %v5387 = vmax.f32 %v5386, %v4199
        %v5388 = vmax.f32 %v5387, %v4201
        %v5389 = vrot.slane %v5388, 4
        %v5390 = vmax.f32 %v5388, %v5389
        %v5391 = vrot.slane %v5390, 2
        %v5392 = vmax.f32 %v5390, %v5391
        %v5393 = vrot.slane %v5392, 1
        %v5394 = vmax.f32 %v5392, %v5393
        %v5395 = vmax.f32 %v4493, %v4495
        %v5396 = vmax.f32 %v5395, %v4498
        %v5397 = vmax.f32 %v5396, %v4500
        %v5398 = vmax.f32 %v5397, %v4503
        %v5399 = vmax.f32 %v5398, %v4505
        %v5400 = vmax.f32 %v5399, %v4508
        %v5401 = vmax.f32 %v5400, %v4510
        %v5402 = vmax.f32 %v5401, %v4513
        %v5403 = vmax.f32 %v5402, %v4515
        %v5404 = vmax.f32 %v5403, %v4518
        %v5405 = vmax.f32 %v5404, %v4520
        %v5406 = vmax.f32 %v5405, %v4523
        %v5407 = vmax.f32 %v5406, %v4525
        %v5408 = vmax.f32 %v5407, %v4528
        %v5409 = vmax.f32 %v5408, %v4530
        %v5410 = vrot.slane %v5409, 4
        %v5411 = vmax.f32 %v5409, %v5410
        %v5412 = vrot.slane %v5411, 2
        %v5413 = vmax.f32 %v5411, %v5412
        %v5414 = vrot.slane %v5413, 1
        %v5415 = vmax.f32 %v5413, %v5414
        %v5416 = vmax.f32 %v4822, %v4824
        %v5417 = vmax.f32 %v5416, %v4827
        %v5418 = vmax.f32 %v5417, %v4829
        %v5419 = vmax.f32 %v5418, %v4832
        %v5420 = vmax.f32 %v5419, %v4834
        %v5421 = vmax.f32 %v5420, %v4837
        %v5422 = vmax.f32 %v5421, %v4839
        %v5423 = vmax.f32 %v5422, %v4842
        %v5424 = vmax.f32 %v5423, %v4844
        %v5425 = vmax.f32 %v5424, %v4847
        %v5426 = vmax.f32 %v5425, %v4849
        %v5427 = vmax.f32 %v5426, %v4852
        %v5428 = vmax.f32 %v5427, %v4854
        %v5429 = vmax.f32 %v5428, %v4857
        %v5430 = vmax.f32 %v5429, %v4859
        %v5431 = vrot.slane %v5430, 4
        %v5432 = vmax.f32 %v5430, %v5431
        %v5433 = vrot.slane %v5432, 2
        %v5434 = vmax.f32 %v5432, %v5433
        %v5435 = vrot.slane %v5434, 1
        %v5436 = vmax.f32 %v5434, %v5435
        %v5437 = vmax.f32 %v2559, %v2561
        %v5438 = vmax.f32 %v5437, %v2564
        %v5439 = vmax.f32 %v5438, %v2566
        %v5440 = vmax.f32 %v5439, %v2569
        %v5441 = vmax.f32 %v5440, %v2571
        %v5442 = vmax.f32 %v5441, %v2574
        %v5443 = vmax.f32 %v5442, %v2576
        %v5444 = vmax.f32 %v5443, %v2579
        %v5445 = vmax.f32 %v5444, %v2581
        %v5446 = vmax.f32 %v5445, %v2584
        %v5447 = vmax.f32 %v5446, %v2586
        %v5448 = vmax.f32 %v5447, %v2589
        %v5449 = vmax.f32 %v5448, %v2591
        %v5450 = vmax.f32 %v5449, %v2594
        %v5451 = vmax.f32 %v5450, %v2596
        %v5452 = vrot.slane %v5451, 4
        %v5453 = vmax.f32 %v5451, %v5452
        %v5454 = vrot.slane %v5453, 2
        %v5455 = vmax.f32 %v5453, %v5454
        %v5456 = vrot.slane %v5455, 1
        %v5457 = vmax.f32 %v5455, %v5456
        %v5458 = vmax.f32 %v2888, %v2890
        %v5459 = vmax.f32 %v5458, %v2893
        %v5460 = vmax.f32 %v5459, %v2895
        %v5461 = vmax.f32 %v5460, %v2898
        %v5462 = vmax.f32 %v5461, %v2900
        %v5463 = vmax.f32 %v5462, %v2903
        %v5464 = vmax.f32 %v5463, %v2905
        %v5465 = vmax.f32 %v5464, %v2908
        %v5466 = vmax.f32 %v5465, %v2910
        %v5467 = vmax.f32 %v5466, %v2913
        %v5468 = vmax.f32 %v5467, %v2915
        %v5469 = vmax.f32 %v5468, %v2918
        %v5470 = vmax.f32 %v5469, %v2920
        %v5471 = vmax.f32 %v5470, %v2923
        %v5472 = vmax.f32 %v5471, %v2925
        %v5473 = vrot.slane %v5472, 4
        %v5474 = vmax.f32 %v5472, %v5473
        %v5475 = vrot.slane %v5474, 2
        %v5476 = vmax.f32 %v5474, %v5475
        %v5477 = vrot.slane %v5476, 1
        %v5478 = vmax.f32 %v5476, %v5477
        %v5479 = vmax.f32 %v3217, %v3219
        %v5480 = vmax.f32 %v5479, %v3222
        %v5481 = vmax.f32 %v5480, %v3224
        %v5482 = vmax.f32 %v5481, %v3227
        %v5483 = vmax.f32 %v5482, %v3229
        %v5484 = vmax.f32 %v5483, %v3232
        %v5485 = vmax.f32 %v5484, %v3234
        %v5486 = vmax.f32 %v5485, %v3237
        %v5487 = vmax.f32 %v5486, %v3239
        %v5488 = vmax.f32 %v5487, %v3242
        %v5489 = vmax.f32 %v5488, %v3244
        %v5490 = vmax.f32 %v5489, %v3247
        %v5491 = vmax.f32 %v5490, %v3249
        %v5492 = vmax.f32 %v5491, %v3252
        %v5493 = vmax.f32 %v5492, %v3254
        %v5494 = vrot.slane %v5493, 4
        %v5495 = vmax.f32 %v5493, %v5494
        %v5496 = vrot.slane %v5495, 2
        %v5497 = vmax.f32 %v5495, %v5496
        %v5498 = vrot.slane %v5497, 1
        %v5499 = vmax.f32 %v5497, %v5498
        %v5500 = vmax.f32 %v3546, %v3548
        %v5501 = vmax.f32 %v5500, %v3551
        %v5502 = vmax.f32 %v5501, %v3553
        %v5503 = vmax.f32 %v5502, %v3556
        %v5504 = vmax.f32 %v5503, %v3558
        %v5505 = vmax.f32 %v5504, %v3561
        %v5506 = vmax.f32 %v5505, %v3563
        %v5507 = vmax.f32 %v5506, %v3566
        %v5508 = vmax.f32 %v5507, %v3568
        %v5509 = vmax.f32 %v5508, %v3571
        %v5510 = vmax.f32 %v5509, %v3573
        %v5511 = vmax.f32 %v5510, %v3576
        %v5512 = vmax.f32 %v5511, %v3578
        %v5513 = vmax.f32 %v5512, %v3581
        %v5514 = vmax.f32 %v5513, %v3583
        %v5515 = vrot.slane %v5514, 4
        %v5516 = vmax.f32 %v5514, %v5515
        %v5517 = vrot.slane %v5516, 2
        %v5518 = vmax.f32 %v5516, %v5517
        %v5519 = vrot.slane %v5518, 1
        %v5520 = vmax.f32 %v5518, %v5519
        %v5521 = vmax.f32 %v3875, %v3877
        %v5522 = vmax.f32 %v5521, %v3880
        %v5523 = vmax.f32 %v5522, %v3882
        %v5524 = vmax.f32 %v5523, %v3885
        %v5525 = vmax.f32 %v5524, %v3887
        %v5526 = vmax.f32 %v5525, %v3890
        %v5527 = vmax.f32 %v5526, %v3892
        %v5528 = vmax.f32 %v5527, %v3895
        %v5529 = vmax.f32 %v5528, %v3897
        %v5530 = vmax.f32 %v5529, %v3900
        %v5531 = vmax.f32 %v5530, %v3902
        %v5532 = vmax.f32 %v5531, %v3905
        %v5533 = vmax.f32 %v5532, %v3907
        %v5534 = vmax.f32 %v5533, %v3910
        %v5535 = vmax.f32 %v5534, %v3912
        %v5536 = vrot.slane %v5535, 4
        %v5537 = vmax.f32 %v5535, %v5536
        %v5538 = vrot.slane %v5537, 2
        %v5539 = vmax.f32 %v5537, %v5538
        %v5540 = vrot.slane %v5539, 1
        %v5541 = vmax.f32 %v5539, %v5540
        %v5542 = vmax.f32 %v4204, %v4206
        %v5543 = vmax.f32 %v5542, %v4209
        %v5544 = vmax.f32 %v5543, %v4211
        %v5545 = vmax.f32 %v5544, %v4214
        %v5546 = vmax.f32 %v5545, %v4216
        %v5547 = vmax.f32 %v5546, %v4219
        %v5548 = vmax.f32 %v5547, %v4221
        %v5549 = vmax.f32 %v5548, %v4224
        %v5550 = vmax.f32 %v5549, %v4226
        %v5551 = vmax.f32 %v5550, %v4229
        %v5552 = vmax.f32 %v5551, %v4231
        %v5553 = vmax.f32 %v5552, %v4234
        %v5554 = vmax.f32 %v5553, %v4236
        %v5555 = vmax.f32 %v5554, %v4239
        %v5556 = vmax.f32 %v5555, %v4241
        %v5557 = vrot.slane %v5556, 4
        %v5558 = vmax.f32 %v5556, %v5557
        %v5559 = vrot.slane %v5558, 2
        %v5560 = vmax.f32 %v5558, %v5559
        %v5561 = vrot.slane %v5560, 1
        %v5562 = vmax.f32 %v5560, %v5561
        %v5563 = vmax.f32 %v4533, %v4535
        %v5564 = vmax.f32 %v5563, %v4538
        %v5565 = vmax.f32 %v5564, %v4540
        %v5566 = vmax.f32 %v5565, %v4543
        %v5567 = vmax.f32 %v5566, %v4545
        %v5568 = vmax.f32 %v5567, %v4548
        %v5569 = vmax.f32 %v5568, %v4550
        %v5570 = vmax.f32 %v5569, %v4553
        %v5571 = vmax.f32 %v5570, %v4555
        %v5572 = vmax.f32 %v5571, %v4558
        %v5573 = vmax.f32 %v5572, %v4560
        %v5574 = vmax.f32 %v5573, %v4563
        %v5575 = vmax.f32 %v5574, %v4565
        %v5576 = vmax.f32 %v5575, %v4568
        %v5577 = vmax.f32 %v5576, %v4570
        %v5578 = vrot.slane %v5577, 4
        %v5579 = vmax.f32 %v5577, %v5578
        %v5580 = vrot.slane %v5579, 2
        %v5581 = vmax.f32 %v5579, %v5580
        %v5582 = vrot.slane %v5581, 1
        %v5583 = vmax.f32 %v5581, %v5582
        %v5584 = vmax.f32 %v4862, %v4864
        %v5585 = vmax.f32 %v5584, %v4867
        %v5586 = vmax.f32 %v5585, %v4869
        %v5587 = vmax.f32 %v5586, %v4872
        %v5588 = vmax.f32 %v5587, %v4874
        %v5589 = vmax.f32 %v5588, %v4877
        %v5590 = vmax.f32 %v5589, %v4879
        %v5591 = vmax.f32 %v5590, %v4882
        %v5592 = vmax.f32 %v5591, %v4884
        %v5593 = vmax.f32 %v5592, %v4887
        %v5594 = vmax.f32 %v5593, %v4889
        %v5595 = vmax.f32 %v5594, %v4892
        %v5596 = vmax.f32 %v5595, %v4894
        %v5597 = vmax.f32 %v5596, %v4897
        %v5598 = vmax.f32 %v5597, %v4899
        %v5599 = vrot.slane %v5598, 4
        %v5600 = vmax.f32 %v5598, %v5599
        %v5601 = vrot.slane %v5600, 2
        %v5602 = vmax.f32 %v5600, %v5601
        %v5603 = vrot.slane %v5602, 1
        %v5604 = vmax.f32 %v5602, %v5603
        %v5605 = vmax.f32 %v2599, %v2601
        %v5606 = vmax.f32 %v5605, %v2604
        %v5607 = vmax.f32 %v5606, %v2606
        %v5608 = vmax.f32 %v5607, %v2609
        %v5609 = vmax.f32 %v5608, %v2611
        %v5610 = vmax.f32 %v5609, %v2614
        %v5611 = vmax.f32 %v5610, %v2616
        %v5612 = vmax.f32 %v5611, %v2619
        %v5613 = vmax.f32 %v5612, %v2621
        %v5614 = vmax.f32 %v5613, %v2624
        %v5615 = vmax.f32 %v5614, %v2626
        %v5616 = vmax.f32 %v5615, %v2629
        %v5617 = vmax.f32 %v5616, %v2631
        %v5618 = vmax.f32 %v5617, %v2634
        %v5619 = vmax.f32 %v5618, %v2636
        %v5620 = vrot.slane %v5619, 4
        %v5621 = vmax.f32 %v5619, %v5620
        %v5622 = vrot.slane %v5621, 2
        %v5623 = vmax.f32 %v5621, %v5622
        %v5624 = vrot.slane %v5623, 1
        %v5625 = vmax.f32 %v5623, %v5624
        %v5626 = vmax.f32 %v2928, %v2930
        %v5627 = vmax.f32 %v5626, %v2933
        %v5628 = vmax.f32 %v5627, %v2935
        %v5629 = vmax.f32 %v5628, %v2938
        %v5630 = vmax.f32 %v5629, %v2940
        %v5631 = vmax.f32 %v5630, %v2943
        %v5632 = vmax.f32 %v5631, %v2945
        %v5633 = vmax.f32 %v5632, %v2948
        %v5634 = vmax.f32 %v5633, %v2950
        %v5635 = vmax.f32 %v5634, %v2953
        %v5636 = vmax.f32 %v5635, %v2955
        %v5637 = vmax.f32 %v5636, %v2958
        %v5638 = vmax.f32 %v5637, %v2960
        %v5639 = vmax.f32 %v5638, %v2963
        %v5640 = vmax.f32 %v5639, %v2965
        %v5641 = vrot.slane %v5640, 4
        %v5642 = vmax.f32 %v5640, %v5641
        %v5643 = vrot.slane %v5642, 2
        %v5644 = vmax.f32 %v5642, %v5643
        %v5645 = vrot.slane %v5644, 1
        %v5646 = vmax.f32 %v5644, %v5645
        %v5647 = vmax.f32 %v3257, %v3259
        %v5648 = vmax.f32 %v5647, %v3262
        %v5649 = vmax.f32 %v5648, %v3264
        %v5650 = vmax.f32 %v5649, %v3267
        %v5651 = vmax.f32 %v5650, %v3269
        %v5652 = vmax.f32 %v5651, %v3272
        %v5653 = vmax.f32 %v5652, %v3274
        %v5654 = vmax.f32 %v5653, %v3277
        %v5655 = vmax.f32 %v5654, %v3279
        %v5656 = vmax.f32 %v5655, %v3282
        %v5657 = vmax.f32 %v5656, %v3284
        %v5658 = vmax.f32 %v5657, %v3287
        %v5659 = vmax.f32 %v5658, %v3289
        %v5660 = vmax.f32 %v5659, %v3292
        %v5661 = vmax.f32 %v5660, %v3294
        %v5662 = vrot.slane %v5661, 4
        %v5663 = vmax.f32 %v5661, %v5662
        %v5664 = vrot.slane %v5663, 2
        %v5665 = vmax.f32 %v5663, %v5664
        %v5666 = vrot.slane %v5665, 1
        %v5667 = vmax.f32 %v5665, %v5666
        %v5668 = vmax.f32 %v3586, %v3588
        %v5669 = vmax.f32 %v5668, %v3591
        %v5670 = vmax.f32 %v5669, %v3593
        %v5671 = vmax.f32 %v5670, %v3596
        %v5672 = vmax.f32 %v5671, %v3598
        %v5673 = vmax.f32 %v5672, %v3601
        %v5674 = vmax.f32 %v5673, %v3603
        %v5675 = vmax.f32 %v5674, %v3606
        %v5676 = vmax.f32 %v5675, %v3608
        %v5677 = vmax.f32 %v5676, %v3611
        %v5678 = vmax.f32 %v5677, %v3613
        %v5679 = vmax.f32 %v5678, %v3616
        %v5680 = vmax.f32 %v5679, %v3618
        %v5681 = vmax.f32 %v5680, %v3621
        %v5682 = vmax.f32 %v5681, %v3623
        %v5683 = vrot.slane %v5682, 4
        %v5684 = vmax.f32 %v5682, %v5683
        %v5685 = vrot.slane %v5684, 2
        %v5686 = vmax.f32 %v5684, %v5685
        %v5687 = vrot.slane %v5686, 1
        %v5688 = vmax.f32 %v5686, %v5687
        %v5689 = vmax.f32 %v3915, %v3917
        %v5690 = vmax.f32 %v5689, %v3920
        %v5691 = vmax.f32 %v5690, %v3922
        %v5692 = vmax.f32 %v5691, %v3925
        %v5693 = vmax.f32 %v5692, %v3927
        %v5694 = vmax.f32 %v5693, %v3930
        %v5695 = vmax.f32 %v5694, %v3932
        %v5696 = vmax.f32 %v5695, %v3935
        %v5697 = vmax.f32 %v5696, %v3937
        %v5698 = vmax.f32 %v5697, %v3940
        %v5699 = vmax.f32 %v5698, %v3942
        %v5700 = vmax.f32 %v5699, %v3945
        %v5701 = vmax.f32 %v5700, %v3947
        %v5702 = vmax.f32 %v5701, %v3950
        %v5703 = vmax.f32 %v5702, %v3952
        %v5704 = vrot.slane %v5703, 4
        %v5705 = vmax.f32 %v5703, %v5704
        %v5706 = vrot.slane %v5705, 2
        %v5707 = vmax.f32 %v5705, %v5706
        %v5708 = vrot.slane %v5707, 1
        %v5709 = vmax.f32 %v5707, %v5708
        %v5710 = vmax.f32 %v4244, %v4246
        %v5711 = vmax.f32 %v5710, %v4249
        %v5712 = vmax.f32 %v5711, %v4251
        %v5713 = vmax.f32 %v5712, %v4254
        %v5714 = vmax.f32 %v5713, %v4256
        %v5715 = vmax.f32 %v5714, %v4259
        %v5716 = vmax.f32 %v5715, %v4261
        %v5717 = vmax.f32 %v5716, %v4264
        %v5718 = vmax.f32 %v5717, %v4266
        %v5719 = vmax.f32 %v5718, %v4269
        %v5720 = vmax.f32 %v5719, %v4271
        %v5721 = vmax.f32 %v5720, %v4274
        %v5722 = vmax.f32 %v5721, %v4276
        %v5723 = vmax.f32 %v5722, %v4279
        %v5724 = vmax.f32 %v5723, %v4281
        %v5725 = vrot.slane %v5724, 4
        %v5726 = vmax.f32 %v5724, %v5725
        %v5727 = vrot.slane %v5726, 2
        %v5728 = vmax.f32 %v5726, %v5727
        %v5729 = vrot.slane %v5728, 1
        %v5730 = vmax.f32 %v5728, %v5729
        %v5731 = vmax.f32 %v4573, %v4575
        %v5732 = vmax.f32 %v5731, %v4578
        %v5733 = vmax.f32 %v5732, %v4580
        %v5734 = vmax.f32 %v5733, %v4583
        %v5735 = vmax.f32 %v5734, %v4585
        %v5736 = vmax.f32 %v5735, %v4588
        %v5737 = vmax.f32 %v5736, %v4590
        %v5738 = vmax.f32 %v5737, %v4593
        %v5739 = vmax.f32 %v5738, %v4595
        %v5740 = vmax.f32 %v5739, %v4598
        %v5741 = vmax.f32 %v5740, %v4600
        %v5742 = vmax.f32 %v5741, %v4603
        %v5743 = vmax.f32 %v5742, %v4605
        %v5744 = vmax.f32 %v5743, %v4608
        %v5745 = vmax.f32 %v5744, %v4610
        %v5746 = vrot.slane %v5745, 4
        %v5747 = vmax.f32 %v5745, %v5746
        %v5748 = vrot.slane %v5747, 2
        %v5749 = vmax.f32 %v5747, %v5748
        %v5750 = vrot.slane %v5749, 1
        %v5751 = vmax.f32 %v5749, %v5750
        %v5752 = vmax.f32 %v4902, %v4904
        %v5753 = vmax.f32 %v5752, %v4907
        %v5754 = vmax.f32 %v5753, %v4909
        %v5755 = vmax.f32 %v5754, %v4912
        %v5756 = vmax.f32 %v5755, %v4914
        %v5757 = vmax.f32 %v5756, %v4917
        %v5758 = vmax.f32 %v5757, %v4919
        %v5759 = vmax.f32 %v5758, %v4922
        %v5760 = vmax.f32 %v5759, %v4924
        %v5761 = vmax.f32 %v5760, %v4927
        %v5762 = vmax.f32 %v5761, %v4929
        %v5763 = vmax.f32 %v5762, %v4932
        %v5764 = vmax.f32 %v5763, %v4934
        %v5765 = vmax.f32 %v5764, %v4937
        %v5766 = vmax.f32 %v5765, %v4939
        %v5767 = vrot.slane %v5766, 4
        %v5768 = vmax.f32 %v5766, %v5767
        %v5769 = vrot.slane %v5768, 2
        %v5770 = vmax.f32 %v5768, %v5769
        %v5771 = vrot.slane %v5770, 1
        %v5772 = vmax.f32 %v5770, %v5771
        %v5773 = vmax.f32 %v2639, %v2641
        %v5774 = vmax.f32 %v5773, %v2644
        %v5775 = vmax.f32 %v5774, %v2646
        %v5776 = vmax.f32 %v5775, %v2649
        %v5777 = vmax.f32 %v5776, %v2651
        %v5778 = vmax.f32 %v5777, %v2654
        %v5779 = vmax.f32 %v5778, %v2656
        %v5780 = vmax.f32 %v5779, %v2659
        %v5781 = vmax.f32 %v5780, %v2661
        %v5782 = vmax.f32 %v5781, %v2664
        %v5783 = vmax.f32 %v5782, %v2666
        %v5784 = vmax.f32 %v5783, %v2669
        %v5785 = vmax.f32 %v5784, %v2671
        %v5786 = vmax.f32 %v5785, %v2674
        %v5787 = vmax.f32 %v5786, %v2676
        %v5788 = vrot.slane %v5787, 4
        %v5789 = vmax.f32 %v5787, %v5788
        %v5790 = vrot.slane %v5789, 2
        %v5791 = vmax.f32 %v5789, %v5790
        %v5792 = vrot.slane %v5791, 1
        %v5793 = vmax.f32 %v5791, %v5792
        %v5794 = vmax.f32 %v2968, %v2970
        %v5795 = vmax.f32 %v5794, %v2973
        %v5796 = vmax.f32 %v5795, %v2975
        %v5797 = vmax.f32 %v5796, %v2978
        %v5798 = vmax.f32 %v5797, %v2980
        %v5799 = vmax.f32 %v5798, %v2983
        %v5800 = vmax.f32 %v5799, %v2985
        %v5801 = vmax.f32 %v5800, %v2988
        %v5802 = vmax.f32 %v5801, %v2990
        %v5803 = vmax.f32 %v5802, %v2993
        %v5804 = vmax.f32 %v5803, %v2995
        %v5805 = vmax.f32 %v5804, %v2998
        %v5806 = vmax.f32 %v5805, %v3000
        %v5807 = vmax.f32 %v5806, %v3003
        %v5808 = vmax.f32 %v5807, %v3005
        %v5809 = vrot.slane %v5808, 4
        %v5810 = vmax.f32 %v5808, %v5809
        %v5811 = vrot.slane %v5810, 2
        %v5812 = vmax.f32 %v5810, %v5811
        %v5813 = vrot.slane %v5812, 1
        %v5814 = vmax.f32 %v5812, %v5813
        %v5815 = vmax.f32 %v3297, %v3299
        %v5816 = vmax.f32 %v5815, %v3302
        %v5817 = vmax.f32 %v5816, %v3304
        %v5818 = vmax.f32 %v5817, %v3307
        %v5819 = vmax.f32 %v5818, %v3309
        %v5820 = vmax.f32 %v5819, %v3312
        %v5821 = vmax.f32 %v5820, %v3314
        %v5822 = vmax.f32 %v5821, %v3317
        %v5823 = vmax.f32 %v5822, %v3319
        %v5824 = vmax.f32 %v5823, %v3322
        %v5825 = vmax.f32 %v5824, %v3324
        %v5826 = vmax.f32 %v5825, %v3327
        %v5827 = vmax.f32 %v5826, %v3329
        %v5828 = vmax.f32 %v5827, %v3332
        %v5829 = vmax.f32 %v5828, %v3334
        %v5830 = vrot.slane %v5829, 4
        %v5831 = vmax.f32 %v5829, %v5830
        %v5832 = vrot.slane %v5831, 2
        %v5833 = vmax.f32 %v5831, %v5832
        %v5834 = vrot.slane %v5833, 1
        %v5835 = vmax.f32 %v5833, %v5834
        %v5836 = vmax.f32 %v3626, %v3628
        %v5837 = vmax.f32 %v5836, %v3631
        %v5838 = vmax.f32 %v5837, %v3633
        %v5839 = vmax.f32 %v5838, %v3636
        %v5840 = vmax.f32 %v5839, %v3638
        %v5841 = vmax.f32 %v5840, %v3641
        %v5842 = vmax.f32 %v5841, %v3643
        %v5843 = vmax.f32 %v5842, %v3646
        %v5844 = vmax.f32 %v5843, %v3648
        %v5845 = vmax.f32 %v5844, %v3651
        %v5846 = vmax.f32 %v5845, %v3653
        %v5847 = vmax.f32 %v5846, %v3656
        %v5848 = vmax.f32 %v5847, %v3658
        %v5849 = vmax.f32 %v5848, %v3661
        %v5850 = vmax.f32 %v5849, %v3663
        %v5851 = vrot.slane %v5850, 4
        %v5852 = vmax.f32 %v5850, %v5851
        %v5853 = vrot.slane %v5852, 2
        %v5854 = vmax.f32 %v5852, %v5853
        %v5855 = vrot.slane %v5854, 1
        %v5856 = vmax.f32 %v5854, %v5855
        %v5857 = vmax.f32 %v3955, %v3957
        %v5858 = vmax.f32 %v5857, %v3960
        %v5859 = vmax.f32 %v5858, %v3962
        %v5860 = vmax.f32 %v5859, %v3965
        %v5861 = vmax.f32 %v5860, %v3967
        %v5862 = vmax.f32 %v5861, %v3970
        %v5863 = vmax.f32 %v5862, %v3972
        %v5864 = vmax.f32 %v5863, %v3975
        %v5865 = vmax.f32 %v5864, %v3977
        %v5866 = vmax.f32 %v5865, %v3980
        %v5867 = vmax.f32 %v5866, %v3982
        %v5868 = vmax.f32 %v5867, %v3985
        %v5869 = vmax.f32 %v5868, %v3987
        %v5870 = vmax.f32 %v5869, %v3990
        %v5871 = vmax.f32 %v5870, %v3992
        %v5872 = vrot.slane %v5871, 4
        %v5873 = vmax.f32 %v5871, %v5872
        %v5874 = vrot.slane %v5873, 2
        %v5875 = vmax.f32 %v5873, %v5874
        %v5876 = vrot.slane %v5875, 1
        %v5877 = vmax.f32 %v5875, %v5876
        %v5878 = vmax.f32 %v4284, %v4286
        %v5879 = vmax.f32 %v5878, %v4289
        %v5880 = vmax.f32 %v5879, %v4291
        %v5881 = vmax.f32 %v5880, %v4294
        %v5882 = vmax.f32 %v5881, %v4296
        %v5883 = vmax.f32 %v5882, %v4299
        %v5884 = vmax.f32 %v5883, %v4301
        %v5885 = vmax.f32 %v5884, %v4304
        %v5886 = vmax.f32 %v5885, %v4306
        %v5887 = vmax.f32 %v5886, %v4309
        %v5888 = vmax.f32 %v5887, %v4311
        %v5889 = vmax.f32 %v5888, %v4314
        %v5890 = vmax.f32 %v5889, %v4316
        %v5891 = vmax.f32 %v5890, %v4319
        %v5892 = vmax.f32 %v5891, %v4321
        %v5893 = vrot.slane %v5892, 4
        %v5894 = vmax.f32 %v5892, %v5893
        %v5895 = vrot.slane %v5894, 2
        %v5896 = vmax.f32 %v5894, %v5895
        %v5897 = vrot.slane %v5896, 1
        %v5898 = vmax.f32 %v5896, %v5897
        %v5899 = vmax.f32 %v4613, %v4615
        %v5900 = vmax.f32 %v5899, %v4618
        %v5901 = vmax.f32 %v5900, %v4620
        %v5902 = vmax.f32 %v5901, %v4623
        %v5903 = vmax.f32 %v5902, %v4625
        %v5904 = vmax.f32 %v5903, %v4628
        %v5905 = vmax.f32 %v5904, %v4630
        %v5906 = vmax.f32 %v5905, %v4633
        %v5907 = vmax.f32 %v5906, %v4635
        %v5908 = vmax.f32 %v5907, %v4638
        %v5909 = vmax.f32 %v5908, %v4640
        %v5910 = vmax.f32 %v5909, %v4643
        %v5911 = vmax.f32 %v5910, %v4645
        %v5912 = vmax.f32 %v5911, %v4648
        %v5913 = vmax.f32 %v5912, %v4650
        %v5914 = vrot.slane %v5913, 4
        %v5915 = vmax.f32 %v5913, %v5914
        %v5916 = vrot.slane %v5915, 2
        %v5917 = vmax.f32 %v5915, %v5916
        %v5918 = vrot.slane %v5917, 1
        %v5919 = vmax.f32 %v5917, %v5918
        %v5920 = vmax.f32 %v4942, %v4944
        %v5921 = vmax.f32 %v5920, %v4947
        %v5922 = vmax.f32 %v5921, %v4949
        %v5923 = vmax.f32 %v5922, %v4952
        %v5924 = vmax.f32 %v5923, %v4954
        %v5925 = vmax.f32 %v5924, %v4957
        %v5926 = vmax.f32 %v5925, %v4959
        %v5927 = vmax.f32 %v5926, %v4962
        %v5928 = vmax.f32 %v5927, %v4964
        %v5929 = vmax.f32 %v5928, %v4967
        %v5930 = vmax.f32 %v5929, %v4969
        %v5931 = vmax.f32 %v5930, %v4972
        %v5932 = vmax.f32 %v5931, %v4974
        %v5933 = vmax.f32 %v5932, %v4977
        %v5934 = vmax.f32 %v5933, %v4979
        %v5935 = vrot.slane %v5934, 4
        %v5936 = vmax.f32 %v5934, %v5935
        %v5937 = vrot.slane %v5936, 2
        %v5938 = vmax.f32 %v5936, %v5937
        %v5939 = vrot.slane %v5938, 1
        %v5940 = vmax.f32 %v5938, %v5939
        %v5941 = vmax.f32 %v2679, %v2681
        %v5942 = vmax.f32 %v5941, %v2684
        %v5943 = vmax.f32 %v5942, %v2686
        %v5944 = vmax.f32 %v5943, %v2689
        %v5945 = vmax.f32 %v5944, %v2691
        %v5946 = vmax.f32 %v5945, %v2694
        %v5947 = vmax.f32 %v5946, %v2696
        %v5948 = vmax.f32 %v5947, %v2699
        %v5949 = vmax.f32 %v5948, %v2701
        %v5950 = vmax.f32 %v5949, %v2704
        %v5951 = vmax.f32 %v5950, %v2706
        %v5952 = vmax.f32 %v5951, %v2709
        %v5953 = vmax.f32 %v5952, %v2711
        %v5954 = vmax.f32 %v5953, %v2714
        %v5955 = vmax.f32 %v5954, %v2716
        %v5956 = vrot.slane %v5955, 4
        %v5957 = vmax.f32 %v5955, %v5956
        %v5958 = vrot.slane %v5957, 2
        %v5959 = vmax.f32 %v5957, %v5958
        %v5960 = vrot.slane %v5959, 1
        %v5961 = vmax.f32 %v5959, %v5960
        %v5962 = vmax.f32 %v3008, %v3010
        %v5963 = vmax.f32 %v5962, %v3013
        %v5964 = vmax.f32 %v5963, %v3015
        %v5965 = vmax.f32 %v5964, %v3018
        %v5966 = vmax.f32 %v5965, %v3020
        %v5967 = vmax.f32 %v5966, %v3023
        %v5968 = vmax.f32 %v5967, %v3025
        %v5969 = vmax.f32 %v5968, %v3028
        %v5970 = vmax.f32 %v5969, %v3030
        %v5971 = vmax.f32 %v5970, %v3033
        %v5972 = vmax.f32 %v5971, %v3035
        %v5973 = vmax.f32 %v5972, %v3038
        %v5974 = vmax.f32 %v5973, %v3040
        %v5975 = vmax.f32 %v5974, %v3043
        %v5976 = vmax.f32 %v5975, %v3045
        %v5977 = vrot.slane %v5976, 4
        %v5978 = vmax.f32 %v5976, %v5977
        %v5979 = vrot.slane %v5978, 2
        %v5980 = vmax.f32 %v5978, %v5979
        %v5981 = vrot.slane %v5980, 1
        %v5982 = vmax.f32 %v5980, %v5981
        %v5983 = vmax.f32 %v3337, %v3339
        %v5984 = vmax.f32 %v5983, %v3342
        %v5985 = vmax.f32 %v5984, %v3344
        %v5986 = vmax.f32 %v5985, %v3347
        %v5987 = vmax.f32 %v5986, %v3349
        %v5988 = vmax.f32 %v5987, %v3352
        %v5989 = vmax.f32 %v5988, %v3354
        %v5990 = vmax.f32 %v5989, %v3357
        %v5991 = vmax.f32 %v5990, %v3359
        %v5992 = vmax.f32 %v5991, %v3362
        %v5993 = vmax.f32 %v5992, %v3364
        %v5994 = vmax.f32 %v5993, %v3367
        %v5995 = vmax.f32 %v5994, %v3369
        %v5996 = vmax.f32 %v5995, %v3372
        %v5997 = vmax.f32 %v5996, %v3374
        %v5998 = vrot.slane %v5997, 4
        %v5999 = vmax.f32 %v5997, %v5998
        %v6000 = vrot.slane %v5999, 2
        %v6001 = vmax.f32 %v5999, %v6000
        %v6002 = vrot.slane %v6001, 1
        %v6003 = vmax.f32 %v6001, %v6002
        %v6004 = vmax.f32 %v3666, %v3668
        %v6005 = vmax.f32 %v6004, %v3671
        %v6006 = vmax.f32 %v6005, %v3673
        %v6007 = vmax.f32 %v6006, %v3676
        %v6008 = vmax.f32 %v6007, %v3678
        %v6009 = vmax.f32 %v6008, %v3681
        %v6010 = vmax.f32 %v6009, %v3683
        %v6011 = vmax.f32 %v6010, %v3686
        %v6012 = vmax.f32 %v6011, %v3688
        %v6013 = vmax.f32 %v6012, %v3691
        %v6014 = vmax.f32 %v6013, %v3693
        %v6015 = vmax.f32 %v6014, %v3696
        %v6016 = vmax.f32 %v6015, %v3698
        %v6017 = vmax.f32 %v6016, %v3701
        %v6018 = vmax.f32 %v6017, %v3703
        %v6019 = vrot.slane %v6018, 4
        %v6020 = vmax.f32 %v6018, %v6019
        %v6021 = vrot.slane %v6020, 2
        %v6022 = vmax.f32 %v6020, %v6021
        %v6023 = vrot.slane %v6022, 1
        %v6024 = vmax.f32 %v6022, %v6023
        %v6025 = vmax.f32 %v3995, %v3997
        %v6026 = vmax.f32 %v6025, %v4000
        %v6027 = vmax.f32 %v6026, %v4002
        %v6028 = vmax.f32 %v6027, %v4005
        %v6029 = vmax.f32 %v6028, %v4007
        %v6030 = vmax.f32 %v6029, %v4010
        %v6031 = vmax.f32 %v6030, %v4012
        %v6032 = vmax.f32 %v6031, %v4015
        %v6033 = vmax.f32 %v6032, %v4017
        %v6034 = vmax.f32 %v6033, %v4020
        %v6035 = vmax.f32 %v6034, %v4022
        %v6036 = vmax.f32 %v6035, %v4025
        %v6037 = vmax.f32 %v6036, %v4027
        %v6038 = vmax.f32 %v6037, %v4030
        %v6039 = vmax.f32 %v6038, %v4032
        %v6040 = vrot.slane %v6039, 4
        %v6041 = vmax.f32 %v6039, %v6040
        %v6042 = vrot.slane %v6041, 2
        %v6043 = vmax.f32 %v6041, %v6042
        %v6044 = vrot.slane %v6043, 1
        %v6045 = vmax.f32 %v6043, %v6044
        %v6046 = vmax.f32 %v4324, %v4326
        %v6047 = vmax.f32 %v6046, %v4329
        %v6048 = vmax.f32 %v6047, %v4331
        %v6049 = vmax.f32 %v6048, %v4334
        %v6050 = vmax.f32 %v6049, %v4336
        %v6051 = vmax.f32 %v6050, %v4339
        %v6052 = vmax.f32 %v6051, %v4341
        %v6053 = vmax.f32 %v6052, %v4344
        %v6054 = vmax.f32 %v6053, %v4346
        %v6055 = vmax.f32 %v6054, %v4349
        %v6056 = vmax.f32 %v6055, %v4351
        %v6057 = vmax.f32 %v6056, %v4354
        %v6058 = vmax.f32 %v6057, %v4356
        %v6059 = vmax.f32 %v6058, %v4359
        %v6060 = vmax.f32 %v6059, %v4361
        %v6061 = vrot.slane %v6060, 4
        %v6062 = vmax.f32 %v6060, %v6061
        %v6063 = vrot.slane %v6062, 2
        %v6064 = vmax.f32 %v6062, %v6063
        %v6065 = vrot.slane %v6064, 1
        %v6066 = vmax.f32 %v6064, %v6065
        %v6067 = vmax.f32 %v4653, %v4655
        %v6068 = vmax.f32 %v6067, %v4658
        %v6069 = vmax.f32 %v6068, %v4660
        %v6070 = vmax.f32 %v6069, %v4663
        %v6071 = vmax.f32 %v6070, %v4665
        %v6072 = vmax.f32 %v6071, %v4668
        %v6073 = vmax.f32 %v6072, %v4670
        %v6074 = vmax.f32 %v6073, %v4673
        %v6075 = vmax.f32 %v6074, %v4675
        %v6076 = vmax.f32 %v6075, %v4678
        %v6077 = vmax.f32 %v6076, %v4680
        %v6078 = vmax.f32 %v6077, %v4683
        %v6079 = vmax.f32 %v6078, %v4685
        %v6080 = vmax.f32 %v6079, %v4688
        %v6081 = vmax.f32 %v6080, %v4690
        %v6082 = vrot.slane %v6081, 4
        %v6083 = vmax.f32 %v6081, %v6082
        %v6084 = vrot.slane %v6083, 2
        %v6085 = vmax.f32 %v6083, %v6084
        %v6086 = vrot.slane %v6085, 1
        %v6087 = vmax.f32 %v6085, %v6086
        %v6088 = vmax.f32 %v4982, %v4984
        %v6089 = vmax.f32 %v6088, %v4987
        %v6090 = vmax.f32 %v6089, %v4989
        %v6091 = vmax.f32 %v6090, %v4992
        %v6092 = vmax.f32 %v6091, %v4994
        %v6093 = vmax.f32 %v6092, %v4997
        %v6094 = vmax.f32 %v6093, %v4999
        %v6095 = vmax.f32 %v6094, %v5002
        %v6096 = vmax.f32 %v6095, %v5004
        %v6097 = vmax.f32 %v6096, %v5007
        %v6098 = vmax.f32 %v6097, %v5009
        %v6099 = vmax.f32 %v6098, %v5012
        %v6100 = vmax.f32 %v6099, %v5014
        %v6101 = vmax.f32 %v6100, %v5017
        %v6102 = vmax.f32 %v6101, %v5019
        %v6103 = vrot.slane %v6102, 4
        %v6104 = vmax.f32 %v6102, %v6103
        %v6105 = vrot.slane %v6104, 2
        %v6106 = vmax.f32 %v6104, %v6105
        %v6107 = vrot.slane %v6106, 1
        %v6108 = vmax.f32 %v6106, %v6107
        %v6109 = vmax.f32 %v2719, %v2721
        %v6110 = vmax.f32 %v6109, %v2724
        %v6111 = vmax.f32 %v6110, %v2726
        %v6112 = vmax.f32 %v6111, %v2729
        %v6113 = vmax.f32 %v6112, %v2731
        %v6114 = vmax.f32 %v6113, %v2734
        %v6115 = vmax.f32 %v6114, %v2736
        %v6116 = vmax.f32 %v6115, %v2739
        %v6117 = vmax.f32 %v6116, %v2741
        %v6118 = vmax.f32 %v6117, %v2744
        %v6119 = vmax.f32 %v6118, %v2746
        %v6120 = vmax.f32 %v6119, %v2749
        %v6121 = vmax.f32 %v6120, %v2751
        %v6122 = vmax.f32 %v6121, %v2754
        %v6123 = vmax.f32 %v6122, %v2756
        %v6124 = vrot.slane %v6123, 4
        %v6125 = vmax.f32 %v6123, %v6124
        %v6126 = vrot.slane %v6125, 2
        %v6127 = vmax.f32 %v6125, %v6126
        %v6128 = vrot.slane %v6127, 1
        %v6129 = vmax.f32 %v6127, %v6128
        %v6130 = vmax.f32 %v3048, %v3050
        %v6131 = vmax.f32 %v6130, %v3053
        %v6132 = vmax.f32 %v6131, %v3055
        %v6133 = vmax.f32 %v6132, %v3058
        %v6134 = vmax.f32 %v6133, %v3060
        %v6135 = vmax.f32 %v6134, %v3063
        %v6136 = vmax.f32 %v6135, %v3065
        %v6137 = vmax.f32 %v6136, %v3068
        %v6138 = vmax.f32 %v6137, %v3070
        %v6139 = vmax.f32 %v6138, %v3073
        %v6140 = vmax.f32 %v6139, %v3075
        %v6141 = vmax.f32 %v6140, %v3078
        %v6142 = vmax.f32 %v6141, %v3080
        %v6143 = vmax.f32 %v6142, %v3083
        %v6144 = vmax.f32 %v6143, %v3085
        %v6145 = vrot.slane %v6144, 4
        %v6146 = vmax.f32 %v6144, %v6145
        %v6147 = vrot.slane %v6146, 2
        %v6148 = vmax.f32 %v6146, %v6147
        %v6149 = vrot.slane %v6148, 1
        %v6150 = vmax.f32 %v6148, %v6149
        %v6151 = vmax.f32 %v3377, %v3379
        %v6152 = vmax.f32 %v6151, %v3382
        %v6153 = vmax.f32 %v6152, %v3384
        %v6154 = vmax.f32 %v6153, %v3387
        %v6155 = vmax.f32 %v6154, %v3389
        %v6156 = vmax.f32 %v6155, %v3392
        %v6157 = vmax.f32 %v6156, %v3394
        %v6158 = vmax.f32 %v6157, %v3397
        %v6159 = vmax.f32 %v6158, %v3399
        %v6160 = vmax.f32 %v6159, %v3402
        %v6161 = vmax.f32 %v6160, %v3404
        %v6162 = vmax.f32 %v6161, %v3407
        %v6163 = vmax.f32 %v6162, %v3409
        %v6164 = vmax.f32 %v6163, %v3412
        %v6165 = vmax.f32 %v6164, %v3414
        %v6166 = vrot.slane %v6165, 4
        %v6167 = vmax.f32 %v6165, %v6166
        %v6168 = vrot.slane %v6167, 2
        %v6169 = vmax.f32 %v6167, %v6168
        %v6170 = vrot.slane %v6169, 1
        %v6171 = vmax.f32 %v6169, %v6170
        %v6172 = vmax.f32 %v3706, %v3708
        %v6173 = vmax.f32 %v6172, %v3711
        %v6174 = vmax.f32 %v6173, %v3713
        %v6175 = vmax.f32 %v6174, %v3716
        %v6176 = vmax.f32 %v6175, %v3718
        %v6177 = vmax.f32 %v6176, %v3721
        %v6178 = vmax.f32 %v6177, %v3723
        %v6179 = vmax.f32 %v6178, %v3726
        %v6180 = vmax.f32 %v6179, %v3728
        %v6181 = vmax.f32 %v6180, %v3731
        %v6182 = vmax.f32 %v6181, %v3733
        %v6183 = vmax.f32 %v6182, %v3736
        %v6184 = vmax.f32 %v6183, %v3738
        %v6185 = vmax.f32 %v6184, %v3741
        %v6186 = vmax.f32 %v6185, %v3743
        %v6187 = vrot.slane %v6186, 4
        %v6188 = vmax.f32 %v6186, %v6187
        %v6189 = vrot.slane %v6188, 2
        %v6190 = vmax.f32 %v6188, %v6189
        %v6191 = vrot.slane %v6190, 1
        %v6192 = vmax.f32 %v6190, %v6191
        %v6193 = vmax.f32 %v4035, %v4037
        %v6194 = vmax.f32 %v6193, %v4040
        %v6195 = vmax.f32 %v6194, %v4042
        %v6196 = vmax.f32 %v6195, %v4045
        %v6197 = vmax.f32 %v6196, %v4047
        %v6198 = vmax.f32 %v6197, %v4050
        %v6199 = vmax.f32 %v6198, %v4052
        %v6200 = vmax.f32 %v6199, %v4055
        %v6201 = vmax.f32 %v6200, %v4057
        %v6202 = vmax.f32 %v6201, %v4060
        %v6203 = vmax.f32 %v6202, %v4062
        %v6204 = vmax.f32 %v6203, %v4065
        %v6205 = vmax.f32 %v6204, %v4067
        %v6206 = vmax.f32 %v6205, %v4070
        %v6207 = vmax.f32 %v6206, %v4072
        %v6208 = vrot.slane %v6207, 4
        %v6209 = vmax.f32 %v6207, %v6208
        %v6210 = vrot.slane %v6209, 2
        %v6211 = vmax.f32 %v6209, %v6210
        %v6212 = vrot.slane %v6211, 1
        %v6213 = vmax.f32 %v6211, %v6212
        %v6214 = vmax.f32 %v4364, %v4366
        %v6215 = vmax.f32 %v6214, %v4369
        %v6216 = vmax.f32 %v6215, %v4371
        %v6217 = vmax.f32 %v6216, %v4374
        %v6218 = vmax.f32 %v6217, %v4376
        %v6219 = vmax.f32 %v6218, %v4379
        %v6220 = vmax.f32 %v6219, %v4381
        %v6221 = vmax.f32 %v6220, %v4384
        %v6222 = vmax.f32 %v6221, %v4386
        %v6223 = vmax.f32 %v6222, %v4389
        %v6224 = vmax.f32 %v6223, %v4391
        %v6225 = vmax.f32 %v6224, %v4394
        %v6226 = vmax.f32 %v6225, %v4396
        %v6227 = vmax.f32 %v6226, %v4399
        %v6228 = vmax.f32 %v6227, %v4401
        %v6229 = vrot.slane %v6228, 4
        %v6230 = vmax.f32 %v6228, %v6229
        %v6231 = vrot.slane %v6230, 2
        %v6232 = vmax.f32 %v6230, %v6231
        %v6233 = vrot.slane %v6232, 1
        %v6234 = vmax.f32 %v6232, %v6233
        %v6235 = vmax.f32 %v4693, %v4695
        %v6236 = vmax.f32 %v6235, %v4698
        %v6237 = vmax.f32 %v6236, %v4700
        %v6238 = vmax.f32 %v6237, %v4703
        %v6239 = vmax.f32 %v6238, %v4705
        %v6240 = vmax.f32 %v6239, %v4708
        %v6241 = vmax.f32 %v6240, %v4710
        %v6242 = vmax.f32 %v6241, %v4713
        %v6243 = vmax.f32 %v6242, %v4715
        %v6244 = vmax.f32 %v6243, %v4718
        %v6245 = vmax.f32 %v6244, %v4720
        %v6246 = vmax.f32 %v6245, %v4723
        %v6247 = vmax.f32 %v6246, %v4725
        %v6248 = vmax.f32 %v6247, %v4728
        %v6249 = vmax.f32 %v6248, %v4730
        %v6250 = vrot.slane %v6249, 4
        %v6251 = vmax.f32 %v6249, %v6250
        %v6252 = vrot.slane %v6251, 2
        %v6253 = vmax.f32 %v6251, %v6252
        %v6254 = vrot.slane %v6253, 1
        %v6255 = vmax.f32 %v6253, %v6254
        %v6256 = vmax.f32 %v5022, %v5024
        %v6257 = vmax.f32 %v6256, %v5027
        %v6258 = vmax.f32 %v6257, %v5029
        %v6259 = vmax.f32 %v6258, %v5032
        %v6260 = vmax.f32 %v6259, %v5034
        %v6261 = vmax.f32 %v6260, %v5037
        %v6262 = vmax.f32 %v6261, %v5039
        %v6263 = vmax.f32 %v6262, %v5042
        %v6264 = vmax.f32 %v6263, %v5044
        %v6265 = vmax.f32 %v6264, %v5047
        %v6266 = vmax.f32 %v6265, %v5049
        %v6267 = vmax.f32 %v6266, %v5052
        %v6268 = vmax.f32 %v6267, %v5054
        %v6269 = vmax.f32 %v6268, %v5057
        %v6270 = vmax.f32 %v6269, %v5059
        %v6271 = vrot.slane %v6270, 4
        %v6272 = vmax.f32 %v6270, %v6271
        %v6273 = vrot.slane %v6272, 2
        %v6274 = vmax.f32 %v6272, %v6273
        %v6275 = vrot.slane %v6274, 1
        %v6276 = vmax.f32 %v6274, %v6275
        %v6277 = vmax.f32 %v2759, %v2761
        %v6278 = vmax.f32 %v6277, %v2764
        %v6279 = vmax.f32 %v6278, %v2766
        %v6280 = vmax.f32 %v6279, %v2769
        %v6281 = vmax.f32 %v6280, %v2771
        %v6282 = vmax.f32 %v6281, %v2774
        %v6283 = vmax.f32 %v6282, %v2776
        %v6284 = vmax.f32 %v6283, %v2779
        %v6285 = vmax.f32 %v6284, %v2781
        %v6286 = vmax.f32 %v6285, %v2784
        %v6287 = vmax.f32 %v6286, %v2786
        %v6288 = vmax.f32 %v6287, %v2789
        %v6289 = vmax.f32 %v6288, %v2791
        %v6290 = vmax.f32 %v6289, %v2794
        %v6291 = vmax.f32 %v6290, %v2796
        %v6292 = vrot.slane %v6291, 4
        %v6293 = vmax.f32 %v6291, %v6292
        %v6294 = vrot.slane %v6293, 2
        %v6295 = vmax.f32 %v6293, %v6294
        %v6296 = vrot.slane %v6295, 1
        %v6297 = vmax.f32 %v6295, %v6296
        %v6298 = vmax.f32 %v3088, %v3090
        %v6299 = vmax.f32 %v6298, %v3093
        %v6300 = vmax.f32 %v6299, %v3095
        %v6301 = vmax.f32 %v6300, %v3098
        %v6302 = vmax.f32 %v6301, %v3100
        %v6303 = vmax.f32 %v6302, %v3103
        %v6304 = vmax.f32 %v6303, %v3105
        %v6305 = vmax.f32 %v6304, %v3108
        %v6306 = vmax.f32 %v6305, %v3110
        %v6307 = vmax.f32 %v6306, %v3113
        %v6308 = vmax.f32 %v6307, %v3115
        %v6309 = vmax.f32 %v6308, %v3118
        %v6310 = vmax.f32 %v6309, %v3120
        %v6311 = vmax.f32 %v6310, %v3123
        %v6312 = vmax.f32 %v6311, %v3125
        %v6313 = vrot.slane %v6312, 4
        %v6314 = vmax.f32 %v6312, %v6313
        %v6315 = vrot.slane %v6314, 2
        %v6316 = vmax.f32 %v6314, %v6315
        %v6317 = vrot.slane %v6316, 1
        %v6318 = vmax.f32 %v6316, %v6317
        %v6319 = vmax.f32 %v3417, %v3419
        %v6320 = vmax.f32 %v6319, %v3422
        %v6321 = vmax.f32 %v6320, %v3424
        %v6322 = vmax.f32 %v6321, %v3427
        %v6323 = vmax.f32 %v6322, %v3429
        %v6324 = vmax.f32 %v6323, %v3432
        %v6325 = vmax.f32 %v6324, %v3434
        %v6326 = vmax.f32 %v6325, %v3437
        %v6327 = vmax.f32 %v6326, %v3439
        %v6328 = vmax.f32 %v6327, %v3442
        %v6329 = vmax.f32 %v6328, %v3444
        %v6330 = vmax.f32 %v6329, %v3447
        %v6331 = vmax.f32 %v6330, %v3449
        %v6332 = vmax.f32 %v6331, %v3452
        %v6333 = vmax.f32 %v6332, %v3454
        %v6334 = vrot.slane %v6333, 4
        %v6335 = vmax.f32 %v6333, %v6334
        %v6336 = vrot.slane %v6335, 2
        %v6337 = vmax.f32 %v6335, %v6336
        %v6338 = vrot.slane %v6337, 1
        %v6339 = vmax.f32 %v6337, %v6338
        %v6340 = vmax.f32 %v3746, %v3748
        %v6341 = vmax.f32 %v6340, %v3751
        %v6342 = vmax.f32 %v6341, %v3753
        %v6343 = vmax.f32 %v6342, %v3756
        %v6344 = vmax.f32 %v6343, %v3758
        %v6345 = vmax.f32 %v6344, %v3761
        %v6346 = vmax.f32 %v6345, %v3763
        %v6347 = vmax.f32 %v6346, %v3766
        %v6348 = vmax.f32 %v6347, %v3768
        %v6349 = vmax.f32 %v6348, %v3771
        %v6350 = vmax.f32 %v6349, %v3773
        %v6351 = vmax.f32 %v6350, %v3776
        %v6352 = vmax.f32 %v6351, %v3778
        %v6353 = vmax.f32 %v6352, %v3781
        %v6354 = vmax.f32 %v6353, %v3783
        %v6355 = vrot.slane %v6354, 4
        %v6356 = vmax.f32 %v6354, %v6355
        %v6357 = vrot.slane %v6356, 2
        %v6358 = vmax.f32 %v6356, %v6357
        %v6359 = vrot.slane %v6358, 1
        %v6360 = vmax.f32 %v6358, %v6359
        %v6361 = vmax.f32 %v4075, %v4077
        %v6362 = vmax.f32 %v6361, %v4080
        %v6363 = vmax.f32 %v6362, %v4082
        %v6364 = vmax.f32 %v6363, %v4085
        %v6365 = vmax.f32 %v6364, %v4087
        %v6366 = vmax.f32 %v6365, %v4090
        %v6367 = vmax.f32 %v6366, %v4092
        %v6368 = vmax.f32 %v6367, %v4095
        %v6369 = vmax.f32 %v6368, %v4097
        %v6370 = vmax.f32 %v6369, %v4100
        %v6371 = vmax.f32 %v6370, %v4102
        %v6372 = vmax.f32 %v6371, %v4105
        %v6373 = vmax.f32 %v6372, %v4107
        %v6374 = vmax.f32 %v6373, %v4110
        %v6375 = vmax.f32 %v6374, %v4112
        %v6376 = vrot.slane %v6375, 4
        %v6377 = vmax.f32 %v6375, %v6376
        %v6378 = vrot.slane %v6377, 2
        %v6379 = vmax.f32 %v6377, %v6378
        %v6380 = vrot.slane %v6379, 1
        %v6381 = vmax.f32 %v6379, %v6380
        %v6382 = vmax.f32 %v4404, %v4406
        %v6383 = vmax.f32 %v6382, %v4409
        %v6384 = vmax.f32 %v6383, %v4411
        %v6385 = vmax.f32 %v6384, %v4414
        %v6386 = vmax.f32 %v6385, %v4416
        %v6387 = vmax.f32 %v6386, %v4419
        %v6388 = vmax.f32 %v6387, %v4421
        %v6389 = vmax.f32 %v6388, %v4424
        %v6390 = vmax.f32 %v6389, %v4426
        %v6391 = vmax.f32 %v6390, %v4429
        %v6392 = vmax.f32 %v6391, %v4431
        %v6393 = vmax.f32 %v6392, %v4434
        %v6394 = vmax.f32 %v6393, %v4436
        %v6395 = vmax.f32 %v6394, %v4439
        %v6396 = vmax.f32 %v6395, %v4441
        %v6397 = vrot.slane %v6396, 4
        %v6398 = vmax.f32 %v6396, %v6397
        %v6399 = vrot.slane %v6398, 2
        %v6400 = vmax.f32 %v6398, %v6399
        %v6401 = vrot.slane %v6400, 1
        %v6402 = vmax.f32 %v6400, %v6401
        %v6403 = vmax.f32 %v4733, %v4735
        %v6404 = vmax.f32 %v6403, %v4738
        %v6405 = vmax.f32 %v6404, %v4740
        %v6406 = vmax.f32 %v6405, %v4743
        %v6407 = vmax.f32 %v6406, %v4745
        %v6408 = vmax.f32 %v6407, %v4748
        %v6409 = vmax.f32 %v6408, %v4750
        %v6410 = vmax.f32 %v6409, %v4753
        %v6411 = vmax.f32 %v6410, %v4755
        %v6412 = vmax.f32 %v6411, %v4758
        %v6413 = vmax.f32 %v6412, %v4760
        %v6414 = vmax.f32 %v6413, %v4763
        %v6415 = vmax.f32 %v6414, %v4765
        %v6416 = vmax.f32 %v6415, %v4768
        %v6417 = vmax.f32 %v6416, %v4770
        %v6418 = vrot.slane %v6417, 4
        %v6419 = vmax.f32 %v6417, %v6418
        %v6420 = vrot.slane %v6419, 2
        %v6421 = vmax.f32 %v6419, %v6420
        %v6422 = vrot.slane %v6421, 1
        %v6423 = vmax.f32 %v6421, %v6422
        %v6424 = vmax.f32 %v5062, %v5064
        %v6425 = vmax.f32 %v6424, %v5067
        %v6426 = vmax.f32 %v6425, %v5069
        %v6427 = vmax.f32 %v6426, %v5072
        %v6428 = vmax.f32 %v6427, %v5074
        %v6429 = vmax.f32 %v6428, %v5077
        %v6430 = vmax.f32 %v6429, %v5079
        %v6431 = vmax.f32 %v6430, %v5082
        %v6432 = vmax.f32 %v6431, %v5084
        %v6433 = vmax.f32 %v6432, %v5087
        %v6434 = vmax.f32 %v6433, %v5089
        %v6435 = vmax.f32 %v6434, %v5092
        %v6436 = vmax.f32 %v6435, %v5094
        %v6437 = vmax.f32 %v6436, %v5097
        %v6438 = vmax.f32 %v6437, %v5099
        %v6439 = vrot.slane %v6438, 4
        %v6440 = vmax.f32 %v6438, %v6439
        %v6441 = vrot.slane %v6440, 2
        %v6442 = vmax.f32 %v6440, %v6441
        %v6443 = vrot.slane %v6442, 1
        %v6444 = vmax.f32 %v6442, %v6443
        %v6445 = vld [vmem:[#allocation2] sm:$0xff]
        %v6446 = vld [vmem:[#allocation2 + $0x8] sm:$0xff]
        %v6447 = vld [vmem:[#allocation2 + $0x10] sm:$0xff]
        %v6448 = vld [vmem:[#allocation2 + $0x18] sm:$0xff]
        %v6449 = vld [vmem:[#allocation2 + $0x20] sm:$0xff]
        %v6450 = vld [vmem:[#allocation2 + $0x28] sm:$0xff]
        %v6451 = vld [vmem:[#allocation2 + $0x30] sm:$0xff]
        %v6452 = vld [vmem:[#allocation2 + $0x38] sm:$0xff]
        %vm6517 = vcmask 1041409
        %v6518 = vsel %vm6517, %v5289, %v5121
        %vm6519 = vcmask 1042434
        %v6520 = vsel %vm6519, %v5457, %v6518
        %vm6521 = vcmask 1043459
        %v6522 = vsel %vm6521, %v5625, %v6520
        %vm6523 = vcmask 1044484
        %v6524 = vsel %vm6523, %v5793, %v6522
        %vm6525 = vcmask 1045509
        %v6526 = vsel %vm6525, %v5961, %v6524
        %vm6527 = vcmask 1046534
        %v6528 = vsel %vm6527, %v6129, %v6526
        %vm6529 = vcmask 1047559
        %v6530 = vsel %vm6529, %v6297, %v6528
        %v6531 = vsel %vm6517, %v5310, %v5142
        %v6532 = vsel %vm6519, %v5478, %v6531
        %v6533 = vsel %vm6521, %v5646, %v6532
        %v6534 = vsel %vm6523, %v5814, %v6533
        %v6535 = vsel %vm6525, %v5982, %v6534
        %v6536 = vsel %vm6527, %v6150, %v6535
        %v6537 = vsel %vm6529, %v6318, %v6536
        %v6538 = vsel %vm6517, %v5331, %v5163
        %v6539 = vsel %vm6519, %v5499, %v6538
        %v6540 = vsel %vm6521, %v5667, %v6539
        %v6541 = vsel %vm6523, %v5835, %v6540
        %v6542 = vsel %vm6525, %v6003, %v6541
        %v6543 = vsel %vm6527, %v6171, %v6542
        %v6544 = vsel %vm6529, %v6339, %v6543
        %v6545 = vsel %vm6517, %v5352, %v5184
        %v6546 = vsel %vm6519, %v5520, %v6545
        %v6547 = vsel %vm6521, %v5688, %v6546
        %v6548 = vsel %vm6523, %v5856, %v6547
        %v6549 = vsel %vm6525, %v6024, %v6548
        %v6550 = vsel %vm6527, %v6192, %v6549
        %v6551 = vsel %vm6529, %v6360, %v6550
        %v6552 = vsel %vm6517, %v5373, %v5205
        %v6553 = vsel %vm6519, %v5541, %v6552
        %v6554 = vsel %vm6521, %v5709, %v6553
        %v6555 = vsel %vm6523, %v5877, %v6554
        %v6556 = vsel %vm6525, %v6045, %v6555
        %v6557 = vsel %vm6527, %v6213, %v6556
        %v6558 = vsel %vm6529, %v6381, %v6557
        %v6559 = vsel %vm6517, %v5394, %v5226
        %v6560 = vsel %vm6519, %v5562, %v6559
        %v6561 = vsel %vm6521, %v5730, %v6560
        %v6562 = vsel %vm6523, %v5898, %v6561
        %v6563 = vsel %vm6525, %v6066, %v6562
        %v6564 = vsel %vm6527, %v6234, %v6563
        %v6565 = vsel %vm6529, %v6402, %v6564
        %v6566 = vsel %vm6517, %v5415, %v5247
        %v6567 = vsel %vm6519, %v5583, %v6566
        %v6568 = vsel %vm6521, %v5751, %v6567
        %v6569 = vsel %vm6523, %v5919, %v6568
        %v6570 = vsel %vm6525, %v6087, %v6569
        %v6571 = vsel %vm6527, %v6255, %v6570
        %v6572 = vsel %vm6529, %v6423, %v6571
        %v6573 = vsel %vm6517, %v5436, %v5268
        %v6574 = vsel %vm6519, %v5604, %v6573
        %v6575 = vsel %vm6521, %v5772, %v6574
        %v6576 = vsel %vm6523, %v5940, %v6575
        %v6577 = vsel %vm6525, %v6108, %v6576
        %v6578 = vsel %vm6527, %v6276, %v6577
        %v6579 = vsel %vm6529, %v6444, %v6578
        %v6588 = vmax.f32 %v6445, %v6530
        %v6589 = vmax.f32 %v6446, %v6537
        %v6590 = vmax.f32 %v6447, %v6544
        %v6591 = vmax.f32 %v6448, %v6551
        %v6592 = vmax.f32 %v6449, %v6558
        %v6593 = vmax.f32 %v6450, %v6565
        %v6594 = vmax.f32 %v6451, %v6572
        %v6595 = vmax.f32 %v6452, %v6579
        %6596 = vst [vmem:[#allocation2] sm:$0xff] %v6588
        %6597 = vst [vmem:[#allocation2 + $0x8] sm:$0xff] %v6589
        %6598 = vst [vmem:[#allocation2 + $0x10] sm:$0xff] %v6590
        %6599 = vst [vmem:[#allocation2 + $0x18] sm:$0xff] %v6591
        %6600 = vst [vmem:[#allocation2 + $0x20] sm:$0xff] %v6592
        %6601 = vst [vmem:[#allocation2 + $0x28] sm:$0xff] %v6593
        %6602 = vst [vmem:[#allocation2 + $0x30] sm:$0xff] %v6594
        %6603 = vst [vmem:[#allocation2 + $0x38] sm:$0xff] %v6595
        %p6604 = scmp.eq.s32.totalorder %s27, 1
        // Predicated region
        $region98: #{tpu_custom_call.1} parent=84 // pred_check
          %p6605 = pneg %p6604
        $region99: #{tpu_custom_call.1} parent=84 // pred_check_branch
          %6607 = sbr.rel (%p6605) target = $region101
        $region100: #{tpu_custom_call.1} parent=84 // pred_region
          %v6608 = vld [vmem:[#allocation2] sm:$0xff]
          %v6609 = vld [vmem:[#allocation2 + $0x8] sm:$0xff]
          %v6610 = vld [vmem:[#allocation2 + $0x10] sm:$0xff]
          %v6611 = vld [vmem:[#allocation2 + $0x18] sm:$0xff]
          %v6612 = vld [vmem:[#allocation2 + $0x20] sm:$0xff]
          %v6613 = vld [vmem:[#allocation2 + $0x28] sm:$0xff]
          %v6614 = vld [vmem:[#allocation2 + $0x30] sm:$0xff]
          %v6615 = vld [vmem:[#allocation2 + $0x38] sm:$0xff]
          %v6616 = vld [vmem:[%s6] sm:$0xff]
          %v6618 = vperm.slane %v6616, 0
          %v6619 = vperm.slane %v6616, 1
          %v6620 = vperm.slane %v6616, 2
          %v6621 = vperm.slane %v6616, 3
          %v6622 = vperm.slane %v6616, 4
          %v6623 = vperm.slane %v6616, 5
          %v6624 = vperm.slane %v6616, 6
          %v6625 = vperm.slane %v6616, 7
          %v6634 = vadd.f32 %v6608, %v6618
          %v6635 = vadd.f32 %v6609, %v6619
          %v6636 = vadd.f32 %v6610, %v6620
          %v6637 = vadd.f32 %v6611, %v6621
          %v6638 = vadd.f32 %v6612, %v6622
          %v6639 = vadd.f32 %v6613, %v6623
          %v6640 = vadd.f32 %v6614, %v6624
          %v6641 = vadd.f32 %v6615, %v6625
          %v6642 = vmax.f32 %v6634, 0.0
          %v6643 = vmax.f32 %v6635, 0.0
          %v6644 = vmax.f32 %v6636, 0.0
          %v6645 = vmax.f32 %v6637, 0.0
          %v6646 = vmax.f32 %v6638, 0.0
          %v6647 = vmax.f32 %v6639, 0.0
          %v6648 = vmax.f32 %v6640, 0.0
          %v6649 = vmax.f32 %v6641, 0.0
          %6650 = vst [vmem:[%s381] sm:$0xff] %v6642
          %6651 = vst [vmem:[%s381 + $0x8] sm:$0xff] %v6643
          %6652 = vst [vmem:[%s381 + $0x10] sm:$0xff] %v6644
          %6653 = vst [vmem:[%s381 + $0x18] sm:$0xff] %v6645
          %6654 = vst [vmem:[%s381 + $0x20] sm:$0xff] %v6646
          %6655 = vst [vmem:[%s381 + $0x28] sm:$0xff] %v6647
          %6656 = vst [vmem:[%s381 + $0x30] sm:$0xff] %v6648
          %6657 = vst [vmem:[%s381 + $0x38] sm:$0xff] %v6649
        $region101: #{tpu_custom_call.1} parent=84 // pred_fallthru
          _
        %s6658 = sand.u32 %s196, 1
        %s6659 = scalar_lea.sflag [#allocation6], %s6658
        %s6660 = sand.u32 %s196, 1
        %s6661 = smul.addr %s6660, 64
        %s6662 = scalar_lea.vmem [#allocation7], %s6661
        // Predicated region
        $region102: #{tpu_custom_call.1} parent=84 // pred_check
          %p6663 = pneg %p206
        $region103: #{tpu_custom_call.1} parent=84 // pred_check_branch
          %6665 = sbr.rel (%p6663) target = $region105
        $region104: #{tpu_custom_call.1} parent=84 // pred_region
          %6667 = vsyncadd %s6659, 0
          %s6668 = smul.addr %s26, 8
          %s6669 = smul.addr %s6668, 8
          %s6670 = scalar_lea.hbm %s7, %s6669
          %s6672 = sshll.u32 %s6662, 4
          %s6673 = int_to_ptr.vmem [resolvable:$true] %s6672
          %s6674 = sshll.u32 %s6670, 4
          %s6675 = int_to_ptr.hbm [resolvable:$true] %s6674
          %6677 = dma.vmem_to_hbm [thread:$0]  %s6673, 1024, %s6675, %s6659
        $region105: #{tpu_custom_call.1} parent=84 // pred_fallthru
          _
      $region85: #{tpu_custom_call.1} parent=5 // pred_fallthru
        _
      %p6678 = scmp.le.s32.totalorder 2, %s17
      // Predicated region
      $region106: #{tpu_custom_call.1} parent=5 // pred_check
        %p6679 = pneg %p6678
      $region107: #{tpu_custom_call.1} parent=5 // pred_check_branch
        %6681 = sbr.rel (%p6679) target = $region109
      $region108: #{tpu_custom_call.1} parent=5 // pred_region
        %s6682 = ssub.s32 %s17, 2
        // Predicated region
        $region110: #{tpu_custom_call.1} parent=108 // pred_check
          %p6683 = pneg %p212
        $region111: #{tpu_custom_call.1} parent=108 // pred_check_branch
          %6685 = sbr.rel (%p6683) target = $region113
        $region112: #{tpu_custom_call.1} parent=108 // pred_region
          %s6686 = sand.u32 %s197, 1
          %s6687 = scalar_lea.sflag [#allocation6], %s6686
          %s6688 = sand.u32 %s197, 1
          %s6689 = smul.addr %s6688, 64
          %s6690 = scalar_lea.vmem [#allocation7], %s6689
          %6692 = dma.done %s6687, 1024
        $region113: #{tpu_custom_call.1} parent=108 // pred_fallthru
          _
      $region109: #{tpu_custom_call.1} parent=5 // pred_fallthru
        _
    $region6: #{tpu_custom_call.1} parent=1 // loop_footer
      %s21 = sadd.s32 1, %s17
    $region7: #{tpu_custom_call.1} parent=1 // loop_footer_branch
      %16 = sbr.rel target = $region3
    $region8: #{tpu_custom_call.1} parent=1 // loop_exit
      _
    %6693 = vsyncpa [#allocation5], 1
    %s6694 = scalar_lea.sflag [#allocation5], 1
    %6695 = vsyncpa %s6694, 1
    %6696 = vsyncpa [#allocation6], 1
    %s6697 = scalar_lea.sflag [#allocation6], 1
    %6698 = vsyncpa %s6697, 1

</llo_original>
